<compile_context>
chip_gen: v5e
topology: v5e:2x2
jax: 0.10.0
libtpu: 0.0.40
codegen_flags: <defaults>
</compile_context>

<pallas_src>
import functools

import jax
import jax.numpy as jnp
from jax import lax
from jax.experimental import pallas as pl
from jax.experimental.pallas import tpu as pltpu


# ----------------------------------------------------------------------------
# Tiling heuristics
# ----------------------------------------------------------------------------
def _pick_nb(F, target_rows=512, max_rows=1024):
    """Batch elements per grid step.

    NB is a multiple of 8 (sublane-dense output stores) and NB*F (the MXU row
    count of every matmul) targets ~512 rows (>=256 fills the v6e/v7x MXU row
    tile, >=128 the v5e one), capped to bound VMEM / vreg pressure.
    """
    nb = -(-target_rows // F)            # ceil
    nb = ((nb + 7) // 8) * 8
    cap = (max_rows // F) // 8 * 8
    if cap >= 8:
        nb = min(nb, cap)
    return max(nb, 8)


# ----------------------------------------------------------------------------
# Fused kernel: conv1(im2col) -> BN -> ReLU -> conv2(folded taps) -> BN -> ReLU
#               -> conv3(per-tap) -> BN -> ReLU -> mean over L -> linear head
#
# Frame layout (row coordinates of the h1/h2 scratch, R = NROWS + 2*LH rows):
#   rows [0, LH)                      : zero left margin
#   rows [LH + j*F + t]  t in [0, L)  : data of local batch j, timestep t
#   rows [LH + j*F + t]  t in [L, F)  : forced to zero (mask) -> 'same' padding
#   rows [LH + NROWS, R)              : zero tail
# acc/y row i corresponds to scratch row i + LH, so every conv tap k is the
# contiguous 2-D slice h[LH - pad + k : LH - pad + k + NROWS, :].
# ----------------------------------------------------------------------------
def fcn_fused_kernel(x_ref, m_ref, w1_ref, s1_ref, t1_ref,
                     w2_ref, s2_ref, t2_ref,
                     w3_ref, s3_ref, t3_ref,
                     hw_ref, hb_ref,
                     o_ref, h1_ref, h2_ref, l2_ref,
                     *, NB, F, L, LH, K2, K3, pad2, pad3):
    NROWS = NB * F
    C1 = w1_ref.shape[1]
    C2 = w2_ref.shape[1]
    C3 = w3_ref.shape[2]

    mask = m_ref[...]                                   # (NROWS, 1) f32, 1.0 on real timesteps

    # ---- layer 1: im2col'd conv = one depth K1*Cin contraction + BN + ReLU --
    acc1 = jnp.dot(x_ref[...], w1_ref[...], preferred_element_type=jnp.float32)
    y1 = jnp.maximum(acc1 * s1_ref[...] + t1_ref[...], 0.0) * mask   # (NROWS, C1) f32

    # Zero ONLY the halo rows (every step: megacore-safe, a few KB), then one
    # aligned dense store of the masked interior (offset LH=16, bf16-tile aligned).
    h1_ref[0:LH, :] = jnp.zeros((LH, C1), h1_ref.dtype)
    h1_ref[LH + NROWS:LH + NROWS + LH, :] = jnp.zeros((LH, C1), h1_ref.dtype)
    h1_ref[LH:LH + NROWS, :] = y1.astype(h1_ref.dtype)

    # ---- layer 2: fold the K2 taps into ONE deep contraction (depth K2*C1) --
    # Each tap is a contiguous 2-D slice of the frame-layout scratch (no reshape).
    for k in range(K2):
        l2_ref[:, k * C1:(k + 1) * C1] = h1_ref[LH - pad2 + k:LH - pad2 + k + NROWS, :]
    acc2 = jnp.dot(l2_ref[...], w2_ref[...], preferred_element_type=jnp.float32)
    y2 = jnp.maximum(acc2 * s2_ref[...] + t2_ref[...], 0.0) * mask   # (NROWS, C2) f32

    h2_ref[0:LH, :] = jnp.zeros((LH, C2), h2_ref.dtype)
    h2_ref[LH + NROWS:LH + NROWS + LH, :] = jnp.zeros((LH, C2), h2_ref.dtype)
    h2_ref[LH:LH + NROWS, :] = y2.astype(h2_ref.dtype)

    # ---- layer 3: per-tap matmuls (C2=256 already fills the MXU depth); -----
    # accumulator initialized by the first dot (no zeros materialization).
    acc3 = jnp.dot(h2_ref[LH - pad3:LH - pad3 + NROWS, :], w3_ref[0],
                   preferred_element_type=jnp.float32)
    for k in range(1, K3):
        acc3 = acc3 + jnp.dot(h2_ref[LH - pad3 + k:LH - pad3 + k + NROWS, :],
                              w3_ref[k], preferred_element_type=jnp.float32)
    y3 = jnp.maximum(acc3 * s3_ref[...] + t3_ref[...], 0.0) * mask   # (NROWS, C3) f32

    # ---- global average pool over the L real timesteps + linear head --------
    feat = jnp.sum(y3.reshape(NB, F, C3), axis=1) * (1.0 / L)        # (NB, C3) f32
    out = jnp.dot(feat.astype(hw_ref.dtype), hw_ref[...],
                  preferred_element_type=jnp.float32) + hb_ref[...]
    o_ref[...] = out.astype(o_ref.dtype)                             # (NB, Dpad)


# ----------------------------------------------------------------------------
# Forward pass wrapper
# ----------------------------------------------------------------------------
def fcn_forward(x_ncl, conv_params, head_w, head_b):
    (w1, s1, t1), (w2, s2, t2), (w3, s3, t3) = conv_params
    K1, Cin, C1 = w1.shape
    K2, _, C2 = w2.shape
    K3, _, C3 = w3.shape
    D = head_w.shape[1]
    N, _, L = x_ncl.shape

    LH = 16                                  # halo rows per frame (bf16-tile aligned)
    L_pad = ((L + 7) // 8) * 8               # pad time so frames stay sublane-aligned
    F = LH + L_pad
    NB = _pick_nb(F)
    NROWS = NB * F
    G = max(1, -(-N // NB))
    N_pad = G * NB                           # zero-pad batch -> full MXU rows per step

    pad2 = (K2 - 1) // 2
    pad3 = (K3 - 1) // 2
    p1l = (K1 - 1) // 2
    p1r = (K1 - 1) - p1l

    # ---- frame-layout im2col'd input (layer-1 'same' padding folded in) -----
    x_nlc = jnp.transpose(x_ncl, (0, 2, 1))                       # (N, L, Cin) channels on lanes
    xp = jnp.pad(x_nlc, ((0, N_pad - N), (p1l, p1r), (0, 0)))     # pad batch + layer-1 time halo
    cols = jnp.concatenate([xp[:, k:k + L, :] for k in range(K1)], axis=-1)  # (N_pad, L, K1*Cin)
    KC1 = K1 * Cin
    xfr = jnp.zeros((N_pad, F, KC1), jnp.bfloat16)
    xfr = xfr.at[:, :L, :].set(cols.astype(jnp.bfloat16))
    x2d = xfr.reshape(N_pad * F, KC1)                             # (G*NROWS, KC1)

    # Row mask: 1.0 on real timesteps, 0.0 on frame halo / L-pad rows (these
    # zeros act as the 'same' zero padding seen by the next conv layer).
    mrow = (jnp.arange(F) < L).astype(jnp.float32)
    mask_col = jnp.tile(mrow, (NB,)).reshape(NROWS, 1)

    # bf16 matmul operands (f32 accumulation), f32 BN scale/shift & bias.
    w1b = w1.reshape(KC1, C1).astype(jnp.bfloat16)
    w2f = w2.reshape(K2 * C1, C2).astype(jnp.bfloat16)            # taps folded into depth
    w3b = w3.astype(jnp.bfloat16)

    # Lane-dense head output slab: pad latent_dim up to a multiple of 128.
    Dpad = ((D + 127) // 128) * 128
    hw = jnp.zeros((C3, Dpad), jnp.bfloat16).at[:, :D].set(head_w.astype(jnp.bfloat16))
    hb = jnp.zeros((1, Dpad), jnp.float32).at[:, :D].set(head_b[None, :])

    kernel = functools.partial(fcn_fused_kernel, NB=NB, F=F, L=L, LH=LH,
                               K2=K2, K3=K3, pad2=pad2, pad3=pad3)

    out_pad = pl.pallas_call(
        kernel,
        out_shape=jax.ShapeDtypeStruct((N_pad, Dpad), jnp.float32),
        grid_spec=pltpu.PrefetchScalarGridSpec(
            num_scalar_prefetch=0,
            grid=(G,),
            in_specs=[
                pl.BlockSpec((NROWS, KC1), lambda n: (n, 0)),      # x (im2col, frame layout)
                pl.BlockSpec((NROWS, 1), lambda n: (0, 0)),        # data-row mask
                pl.BlockSpec((KC1, C1), lambda n: (0, 0)),         # w1 (K1*Cin, C1)
                pl.BlockSpec((1, C1), lambda n: (0, 0)),           # bn1 scale
                pl.BlockSpec((1, C1), lambda n: (0, 0)),           # bn1 shift
                pl.BlockSpec((K2 * C1, C2), lambda n: (0, 0)),     # w2 (folded taps)
                pl.BlockSpec((1, C2), lambda n: (0, 0)),           # bn2 scale
                pl.BlockSpec((1, C2), lambda n: (0, 0)),           # bn2 shift
                pl.BlockSpec((K3, C2, C3), lambda n: (0, 0, 0)),   # w3
                pl.BlockSpec((1, C3), lambda n: (0, 0)),           # bn3 scale
                pl.BlockSpec((1, C3), lambda n: (0, 0)),           # bn3 shift
                pl.BlockSpec((C3, Dpad), lambda n: (0, 0)),        # head W (padded)
                pl.BlockSpec((1, Dpad), lambda n: (0, 0)),         # head b (padded)
            ],
            out_specs=pl.BlockSpec((NB, Dpad), lambda n: (n, 0)),
            scratch_shapes=[
                pltpu.VMEM((NROWS + 2 * LH, C1), jnp.bfloat16),    # conv1 out, frame layout
                pltpu.VMEM((NROWS + 2 * LH, C2), jnp.bfloat16),    # conv2 out, frame layout
                pltpu.VMEM((NROWS, K2 * C1), jnp.bfloat16),        # layer-2 in-VMEM im2col
            ],
        ),
        compiler_params=pltpu.CompilerParams(
            dimension_semantics=("parallel",),
            vmem_limit_bytes=48 * 1024 * 1024),
    )(x2d, mask_col,
      w1b, s1.reshape(1, C1), t1.reshape(1, C1),
      w2f, s2.reshape(1, C2), t2.reshape(1, C2),
      w3b, s3.reshape(1, C3), t3.reshape(1, C3),
      hw, hb)

    return out_pad[:N, :D]


# ----------------------------------------------------------------------------
# Deterministic parameter init (synthetic; shapes from FCNClassifier.__init__)
# ----------------------------------------------------------------------------
def init_params(key, in_channels, latent_dim):
    specs = [(in_channels, 128, 8), (128, 256, 5), (256, 128, 3)]
    eps = 1e-5
    convs = []
    for cin, cout, k in specs:
        key, k1, k2, k3, k4, k5 = jax.random.split(key, 6)
        w = jax.random.normal(k1, (k, cin, cout), jnp.float32) / jnp.sqrt(cin * k)
        gamma = 1.0 + 0.1 * jax.random.normal(k2, (cout,), jnp.float32)
        beta = 0.1 * jax.random.normal(k3, (cout,), jnp.float32)
        run_mean = 0.1 * jax.random.normal(k4, (cout,), jnp.float32)
        run_var = jnp.abs(jax.random.normal(k5, (cout,), jnp.float32)) + 0.5
        scale = gamma / jnp.sqrt(run_var + eps)
        shift = beta - run_mean * scale
        convs.append((w, scale, shift))
    key, kw, kb = jax.random.split(key, 3)
    head_w = jax.random.normal(kw, (128, latent_dim), jnp.float32) / jnp.sqrt(128.0)
    head_b = 0.1 * jax.random.normal(kb, (latent_dim,), jnp.float32)
    return convs, head_w, head_b


# ----------------------------------------------------------------------------
# Pure-JAX f32 reference (lax conv) for correctness check
# ----------------------------------------------------------------------------
def ref_forward(x_ncl, conv_params, head_w, head_b):
    h = x_ncl
    for w, scale, shift in conv_params:
        K = w.shape[0]
        w_oik = jnp.transpose(w, (2, 1, 0))  # (Cout, Cin, K)
        pad_l = (K - 1) // 2
        pad_r = (K - 1) - pad_l
        h = lax.conv_general_dilated(
            h, w_oik, window_strides=(1,), padding=[(pad_l, pad_r)],
            dimension_numbers=("NCH", "OIH", "NCH"))
        h = h * scale[None, :, None] + shift[None, :, None]
        h = jnp.maximum(h, 0.0)
    feat = h.mean(axis=-1)  # (N, 128)
    return feat @ head_w + head_b


if __name__ == "__main__":
    batch, in_channels, seq_len, latent_dim = 2, 4, 16, 8

    key = jax.random.PRNGKey(0)
    key, kx, kp = jax.random.split(key, 3)
    x = jax.random.normal(kx, (batch, in_channels, seq_len), jnp.float32)  # NCL

    conv_params, head_w, head_b = init_params(kp, in_channels, latent_dim)

    out = fcn_forward(x, conv_params, head_w, head_b)
    out = jax.block_until_ready(out)

    ref = ref_forward(x, conv_params, head_w, head_b)
    assert out.shape == (batch, latent_dim)
    # bf16 matmul operands / bf16 inter-layer activations (f32 accumulation)
    # -> loosened tolerance vs f32 reference.
    assert jnp.allclose(out, ref, rtol=5e-2, atol=5e-2), (out, ref)

    print("KERNEL_OK")
</pallas_src>

<mosaic_0001>
module attributes {stable_mosaic.version = 11 : i64} {
  func.func @fcn_fused_kernel(%arg0: i32, %arg1: memref<512x32xbf16, #tpu.memory_space<vmem>>, %arg2: memref<512x1xf32, #tpu.memory_space<vmem>>, %arg3: memref<32x128xbf16, #tpu.memory_space<vmem>>, %arg4: memref<1x128xf32, #tpu.memory_space<vmem>>, %arg5: memref<1x128xf32, #tpu.memory_space<vmem>>, %arg6: memref<640x256xbf16, #tpu.memory_space<vmem>>, %arg7: memref<1x256xf32, #tpu.memory_space<vmem>>, %arg8: memref<1x256xf32, #tpu.memory_space<vmem>>, %arg9: memref<3x256x128xbf16, #tpu.memory_space<vmem>>, %arg10: memref<1x128xf32, #tpu.memory_space<vmem>>, %arg11: memref<1x128xf32, #tpu.memory_space<vmem>>, %arg12: memref<128x128xbf16, #tpu.memory_space<vmem>>, %arg13: memref<1x128xf32, #tpu.memory_space<vmem>>, %arg14: memref<16x128xf32, #tpu.memory_space<vmem>>, %arg15: memref<544x128xbf16, #tpu.memory_space<vmem>>, %arg16: memref<544x256xbf16, #tpu.memory_space<vmem>>, %arg17: memref<512x640xbf16, #tpu.memory_space<vmem>>) attributes {dimension_semantics = [#tpu.dimension_semantics<parallel>], iteration_bounds = array<i64: 1>, scalar_prefetch = 0 : i64, scratch_operands = 3 : i64, tpu.core_type = #tpu.core_type<tc>, window_params = [{transform_indices = @transform_0, window_bounds = array<i64: 512, 32>}, {pipeline_mode = #tpu.pipeline_mode<synchronous>, transform_indices = @transform_1, window_bounds = array<i64: 512, 1>}, {pipeline_mode = #tpu.pipeline_mode<synchronous>, transform_indices = @transform_2, window_bounds = array<i64: 32, 128>}, {pipeline_mode = #tpu.pipeline_mode<synchronous>, transform_indices = @transform_3, window_bounds = array<i64: 1, 128>}, {pipeline_mode = #tpu.pipeline_mode<synchronous>, transform_indices = @transform_4, window_bounds = array<i64: 1, 128>}, {pipeline_mode = #tpu.pipeline_mode<synchronous>, transform_indices = @transform_5, window_bounds = array<i64: 640, 256>}, {pipeline_mode = #tpu.pipeline_mode<synchronous>, transform_indices = @transform_6, window_bounds = array<i64: 1, 256>}, {pipeline_mode = #tpu.pipeline_mode<synchronous>, transform_indices = @transform_7, window_bounds = array<i64: 1, 256>}, {pipeline_mode = #tpu.pipeline_mode<synchronous>, transform_indices = @transform_8, window_bounds = array<i64: 3, 256, 128>}, {pipeline_mode = #tpu.pipeline_mode<synchronous>, transform_indices = @transform_9, window_bounds = array<i64: 1, 128>}, {pipeline_mode = #tpu.pipeline_mode<synchronous>, transform_indices = @transform_10, window_bounds = array<i64: 1, 128>}, {pipeline_mode = #tpu.pipeline_mode<synchronous>, transform_indices = @transform_11, window_bounds = array<i64: 128, 128>}, {pipeline_mode = #tpu.pipeline_mode<synchronous>, transform_indices = @transform_12, window_bounds = array<i64: 1, 128>}, {transform_indices = @transform_13, window_bounds = array<i64: 16, 128>}]} {
    %c0 = arith.constant 0 : index
    %c0_0 = arith.constant 0 : index
    %0 = vector.load %arg2[%c0, %c0_0] : memref<512x1xf32, #tpu.memory_space<vmem>>, vector<512x1xf32>
    %c0_1 = arith.constant 0 : index
    %c0_2 = arith.constant 0 : index
    %1 = vector.load %arg1[%c0_1, %c0_2] : memref<512x32xbf16, #tpu.memory_space<vmem>>, vector<512x32xbf16>
    %c0_3 = arith.constant 0 : index
    %c0_4 = arith.constant 0 : index
    %2 = vector.load %arg3[%c0_3, %c0_4] : memref<32x128xbf16, #tpu.memory_space<vmem>>, vector<32x128xbf16>
    %cst = arith.constant dense<0.000000e+00> : vector<512x128xf32>
    %3 = tpu.matmul %1, %2, %cst {dimension_numbers = #tpu.dot_dimension_numbers<[1], [0], [0], [1], [0, 0, 1, 1], [], []>} : vector<512x32xbf16>, vector<32x128xbf16>, vector<512x128xf32> -> vector<512x128xf32>
    %c0_5 = arith.constant 0 : index
    %c0_6 = arith.constant 0 : index
    %4 = vector.load %arg4[%c0_5, %c0_6] : memref<1x128xf32, #tpu.memory_space<vmem>>, vector<1x128xf32>
    %5 = vector.broadcast %4 : vector<1x128xf32> to vector<512x128xf32>
    %6 = arith.mulf %3, %5 : vector<512x128xf32>
    %c0_7 = arith.constant 0 : index
    %c0_8 = arith.constant 0 : index
    %7 = vector.load %arg5[%c0_7, %c0_8] : memref<1x128xf32, #tpu.memory_space<vmem>>, vector<1x128xf32>
    %8 = vector.broadcast %7 : vector<1x128xf32> to vector<512x128xf32>
    %9 = arith.addf %6, %8 : vector<512x128xf32>
    %cst_9 = arith.constant 0.000000e+00 : f32
    %10 = vector.broadcast %cst_9 : f32 to vector<512x128xf32>
    %11 = arith.maximumf %9, %10 : vector<512x128xf32>
    %12 = vector.broadcast %0 : vector<512x1xf32> to vector<512x128xf32>
    %13 = arith.mulf %11, %12 : vector<512x128xf32>
    %cst_10 = arith.constant 0.000000e+00 : bf16
    %14 = vector.broadcast %cst_10 : bf16 to vector<16x128xbf16>
    %c0_11 = arith.constant 0 : index
    %c0_12 = arith.constant 0 : index
    %15 = vector.load %arg15[%c0_11, %c0_12] : memref<544x128xbf16, #tpu.memory_space<vmem>>, vector<16x128xbf16>
    tpu.vector_store %arg15[%c0_11, %c0_12], %14 {strides = array<i32>} : memref<544x128xbf16, #tpu.memory_space<vmem>>, vector<16x128xbf16>,
    %cst_13 = arith.constant 0.000000e+00 : bf16
    %16 = vector.broadcast %cst_13 : bf16 to vector<16x128xbf16>
    %c528 = arith.constant 528 : index
    %c0_14 = arith.constant 0 : index
    %17 = vector.load %arg15[%c528, %c0_14] : memref<544x128xbf16, #tpu.memory_space<vmem>>, vector<16x128xbf16>
    tpu.vector_store %arg15[%c528, %c0_14], %16 {strides = array<i32>} : memref<544x128xbf16, #tpu.memory_space<vmem>>, vector<16x128xbf16>,
    %18 = arith.truncf %13 : vector<512x128xf32> to vector<512x128xbf16>
    %c16 = arith.constant 16 : index
    %c0_15 = arith.constant 0 : index
    %19 = vector.load %arg15[%c16, %c0_15] : memref<544x128xbf16, #tpu.memory_space<vmem>>, vector<512x128xbf16>
    tpu.vector_store %arg15[%c16, %c0_15], %18 {strides = array<i32>} : memref<544x128xbf16, #tpu.memory_space<vmem>>, vector<512x128xbf16>,
    %c14 = arith.constant 14 : index
    %c0_16 = arith.constant 0 : index
    %20 = vector.load %arg15[%c14, %c0_16] : memref<544x128xbf16, #tpu.memory_space<vmem>>, vector<512x128xbf16>
    %c0_17 = arith.constant 0 : index
    %c0_18 = arith.constant 0 : index
    %21 = vector.load %arg17[%c0_17, %c0_18] : memref<512x640xbf16, #tpu.memory_space<vmem>>, vector<512x128xbf16>
    tpu.vector_store %arg17[%c0_17, %c0_18], %20 {strides = array<i32>} : memref<512x640xbf16, #tpu.memory_space<vmem>>, vector<512x128xbf16>,
    %c15 = arith.constant 15 : index
    %c0_19 = arith.constant 0 : index
    %22 = vector.load %arg15[%c15, %c0_19] : memref<544x128xbf16, #tpu.memory_space<vmem>>, vector<512x128xbf16>
    %c0_20 = arith.constant 0 : index
    %c128 = arith.constant 128 : index
    %23 = vector.load %arg17[%c0_20, %c128] : memref<512x640xbf16, #tpu.memory_space<vmem>>, vector<512x128xbf16>
    tpu.vector_store %arg17[%c0_20, %c128], %22 {strides = array<i32>} : memref<512x640xbf16, #tpu.memory_space<vmem>>, vector<512x128xbf16>,
    %c16_21 = arith.constant 16 : index
    %c0_22 = arith.constant 0 : index
    %24 = vector.load %arg15[%c16_21, %c0_22] : memref<544x128xbf16, #tpu.memory_space<vmem>>, vector<512x128xbf16>
    %c0_23 = arith.constant 0 : index
    %c256 = arith.constant 256 : index
    %25 = vector.load %arg17[%c0_23, %c256] : memref<512x640xbf16, #tpu.memory_space<vmem>>, vector<512x128xbf16>
    tpu.vector_store %arg17[%c0_23, %c256], %24 {strides = array<i32>} : memref<512x640xbf16, #tpu.memory_space<vmem>>, vector<512x128xbf16>,
    %c17 = arith.constant 17 : index
    %c0_24 = arith.constant 0 : index
    %26 = vector.load %arg15[%c17, %c0_24] : memref<544x128xbf16, #tpu.memory_space<vmem>>, vector<512x128xbf16>
    %c0_25 = arith.constant 0 : index
    %c384 = arith.constant 384 : index
    %27 = vector.load %arg17[%c0_25, %c384] : memref<512x640xbf16, #tpu.memory_space<vmem>>, vector<512x128xbf16>
    tpu.vector_store %arg17[%c0_25, %c384], %26 {strides = array<i32>} : memref<512x640xbf16, #tpu.memory_space<vmem>>, vector<512x128xbf16>,
    %c18 = arith.constant 18 : index
    %c0_26 = arith.constant 0 : index
    %28 = vector.load %arg15[%c18, %c0_26] : memref<544x128xbf16, #tpu.memory_space<vmem>>, vector<512x128xbf16>
    %c0_27 = arith.constant 0 : index
    %c512 = arith.constant 512 : index
    %29 = vector.load %arg17[%c0_27, %c512] : memref<512x640xbf16, #tpu.memory_space<vmem>>, vector<512x128xbf16>
    tpu.vector_store %arg17[%c0_27, %c512], %28 {strides = array<i32>} : memref<512x640xbf16, #tpu.memory_space<vmem>>, vector<512x128xbf16>,
    %c0_28 = arith.constant 0 : index
    %c0_29 = arith.constant 0 : index
    %30 = vector.load %arg17[%c0_28, %c0_29] : memref<512x640xbf16, #tpu.memory_space<vmem>>, vector<512x640xbf16>
    %c0_30 = arith.constant 0 : index
    %c0_31 = arith.constant 0 : index
    %31 = vector.load %arg6[%c0_30, %c0_31] : memref<640x256xbf16, #tpu.memory_space<vmem>>, vector<640x256xbf16>
    %cst_32 = arith.constant dense<0.000000e+00> : vector<512x256xf32>
    %32 = tpu.matmul %30, %31, %cst_32 {dimension_numbers = #tpu.dot_dimension_numbers<[1], [0], [0], [1], [0, 0, 1, 1], [], []>} : vector<512x640xbf16>, vector<640x256xbf16>, vector<512x256xf32> -> vector<512x256xf32>
    %c0_33 = arith.constant 0 : index
    %c0_34 = arith.constant 0 : index
    %33 = vector.load %arg7[%c0_33, %c0_34] : memref<1x256xf32, #tpu.memory_space<vmem>>, vector<1x256xf32>
    %34 = vector.broadcast %33 : vector<1x256xf32> to vector<512x256xf32>
    %35 = arith.mulf %32, %34 : vector<512x256xf32>
    %c0_35 = arith.constant 0 : index
    %c0_36 = arith.constant 0 : index
    %36 = vector.load %arg8[%c0_35, %c0_36] : memref<1x256xf32, #tpu.memory_space<vmem>>, vector<1x256xf32>
    %37 = vector.broadcast %36 : vector<1x256xf32> to vector<512x256xf32>
    %38 = arith.addf %35, %37 : vector<512x256xf32>
    %cst_37 = arith.constant 0.000000e+00 : f32
    %39 = vector.broadcast %cst_37 : f32 to vector<512x256xf32>
    %40 = arith.maximumf %38, %39 : vector<512x256xf32>
    %41 = vector.broadcast %0 : vector<512x1xf32> to vector<512x256xf32>
    %42 = arith.mulf %40, %41 : vector<512x256xf32>
    %cst_38 = arith.constant 0.000000e+00 : bf16
    %43 = vector.broadcast %cst_38 : bf16 to vector<16x256xbf16>
    %c0_39 = arith.constant 0 : index
    %c0_40 = arith.constant 0 : index
    %44 = vector.load %arg16[%c0_39, %c0_40] : memref<544x256xbf16, #tpu.memory_space<vmem>>, vector<16x256xbf16>
    tpu.vector_store %arg16[%c0_39, %c0_40], %43 {strides = array<i32>} : memref<544x256xbf16, #tpu.memory_space<vmem>>, vector<16x256xbf16>,
    %cst_41 = arith.constant 0.000000e+00 : bf16
    %45 = vector.broadcast %cst_41 : bf16 to vector<16x256xbf16>
    %c528_42 = arith.constant 528 : index
    %c0_43 = arith.constant 0 : index
    %46 = vector.load %arg16[%c528_42, %c0_43] : memref<544x256xbf16, #tpu.memory_space<vmem>>, vector<16x256xbf16>
    tpu.vector_store %arg16[%c528_42, %c0_43], %45 {strides = array<i32>} : memref<544x256xbf16, #tpu.memory_space<vmem>>, vector<16x256xbf16>,
    %47 = arith.truncf %42 : vector<512x256xf32> to vector<512x256xbf16>
    %c16_44 = arith.constant 16 : index
    %c0_45 = arith.constant 0 : index
    %48 = vector.load %arg16[%c16_44, %c0_45] : memref<544x256xbf16, #tpu.memory_space<vmem>>, vector<512x256xbf16>
    tpu.vector_store %arg16[%c16_44, %c0_45], %47 {strides = array<i32>} : memref<544x256xbf16, #tpu.memory_space<vmem>>, vector<512x256xbf16>,
    %c15_46 = arith.constant 15 : index
    %c0_47 = arith.constant 0 : index
    %49 = vector.load %arg16[%c15_46, %c0_47] : memref<544x256xbf16, #tpu.memory_space<vmem>>, vector<512x256xbf16>
    %c0_48 = arith.constant 0 : index
    %c0_49 = arith.constant 0 : index
    %c0_50 = arith.constant 0 : index
    %50 = vector.load %arg9[%c0_48, %c0_49, %c0_50] : memref<3x256x128xbf16, #tpu.memory_space<vmem>>, vector<1x256x128xbf16>
    %51 = vector.shape_cast %50 : vector<1x256x128xbf16> to vector<256x128xbf16>
    %cst_51 = arith.constant dense<0.000000e+00> : vector<512x128xf32>
    %52 = tpu.matmul %49, %51, %cst_51 {dimension_numbers = #tpu.dot_dimension_numbers<[1], [0], [0], [1], [0, 0, 1, 1], [], []>} : vector<512x256xbf16>, vector<256x128xbf16>, vector<512x128xf32> -> vector<512x128xf32>
    %c16_52 = arith.constant 16 : index
    %c0_53 = arith.constant 0 : index
    %53 = vector.load %arg16[%c16_52, %c0_53] : memref<544x256xbf16, #tpu.memory_space<vmem>>, vector<512x256xbf16>
    %c1 = arith.constant 1 : index
    %c0_54 = arith.constant 0 : index
    %c0_55 = arith.constant 0 : index
    %54 = vector.load %arg9[%c1, %c0_54, %c0_55] : memref<3x256x128xbf16, #tpu.memory_space<vmem>>, vector<1x256x128xbf16>
    %55 = vector.shape_cast %54 : vector<1x256x128xbf16> to vector<256x128xbf16>
    %cst_56 = arith.constant dense<0.000000e+00> : vector<512x128xf32>
    %56 = tpu.matmul %53, %55, %cst_56 {dimension_numbers = #tpu.dot_dimension_numbers<[1], [0], [0], [1], [0, 0, 1, 1], [], []>} : vector<512x256xbf16>, vector<256x128xbf16>, vector<512x128xf32> -> vector<512x128xf32>
    %57 = arith.addf %52, %56 : vector<512x128xf32>
    %c17_57 = arith.constant 17 : index
    %c0_58 = arith.constant 0 : index
    %58 = vector.load %arg16[%c17_57, %c0_58] : memref<544x256xbf16, #tpu.memory_space<vmem>>, vector<512x256xbf16>
    %c2 = arith.constant 2 : index
    %c0_59 = arith.constant 0 : index
    %c0_60 = arith.constant 0 : index
    %59 = vector.load %arg9[%c2, %c0_59, %c0_60] : memref<3x256x128xbf16, #tpu.memory_space<vmem>>, vector<1x256x128xbf16>
    %60 = vector.shape_cast %59 : vector<1x256x128xbf16> to vector<256x128xbf16>
    %cst_61 = arith.constant dense<0.000000e+00> : vector<512x128xf32>
    %61 = tpu.matmul %58, %60, %cst_61 {dimension_numbers = #tpu.dot_dimension_numbers<[1], [0], [0], [1], [0, 0, 1, 1], [], []>} : vector<512x256xbf16>, vector<256x128xbf16>, vector<512x128xf32> -> vector<512x128xf32>
    %62 = arith.addf %57, %61 : vector<512x128xf32>
    %c0_62 = arith.constant 0 : index
    %c0_63 = arith.constant 0 : index
    %63 = vector.load %arg10[%c0_62, %c0_63] : memref<1x128xf32, #tpu.memory_space<vmem>>, vector<1x128xf32>
    %64 = vector.broadcast %63 : vector<1x128xf32> to vector<512x128xf32>
    %65 = arith.mulf %62, %64 : vector<512x128xf32>
    %c0_64 = arith.constant 0 : index
    %c0_65 = arith.constant 0 : index
    %66 = vector.load %arg11[%c0_64, %c0_65] : memref<1x128xf32, #tpu.memory_space<vmem>>, vector<1x128xf32>
    %67 = vector.broadcast %66 : vector<1x128xf32> to vector<512x128xf32>
    %68 = arith.addf %65, %67 : vector<512x128xf32>
    %cst_66 = arith.constant 0.000000e+00 : f32
    %69 = vector.broadcast %cst_66 : f32 to vector<512x128xf32>
    %70 = arith.maximumf %68, %69 : vector<512x128xf32>
    %71 = vector.broadcast %0 : vector<512x1xf32> to vector<512x128xf32>
    %72 = arith.mulf %70, %71 : vector<512x128xf32>
    %73 = vector.shape_cast %72 : vector<512x128xf32> to vector<16x32x128xf32>
    %cst_67 = arith.constant dense<0.000000e+00> : vector<16x128xf32>
    %74 = vector.multi_reduction <add>, %73, %cst_67 [1] : vector<16x32x128xf32> to vector<16x128xf32>
    %cst_68 = arith.constant 6.250000e-02 : f32
    %75 = vector.broadcast %cst_68 : f32 to vector<16x128xf32>
    %76 = arith.mulf %74, %75 : vector<16x128xf32>
    %77 = arith.truncf %76 : vector<16x128xf32> to vector<16x128xbf16>
    %c0_69 = arith.constant 0 : index
    %c0_70 = arith.constant 0 : index
    %78 = vector.load %arg12[%c0_69, %c0_70] : memref<128x128xbf16, #tpu.memory_space<vmem>>, vector<128x128xbf16>
    %cst_71 = arith.constant dense<0.000000e+00> : vector<16x128xf32>
    %79 = tpu.matmul %77, %78, %cst_71 {dimension_numbers = #tpu.dot_dimension_numbers<[1], [0], [0], [1], [0, 0, 1, 1], [], []>} : vector<16x128xbf16>, vector<128x128xbf16>, vector<16x128xf32> -> vector<16x128xf32>
    %c0_72 = arith.constant 0 : index
    %c0_73 = arith.constant 0 : index
    %80 = vector.load %arg13[%c0_72, %c0_73] : memref<1x128xf32, #tpu.memory_space<vmem>>, vector<1x128xf32>
    %81 = vector.broadcast %80 : vector<1x128xf32> to vector<16x128xf32>
    %82 = arith.addf %79, %81 : vector<16x128xf32>
    %c0_74 = arith.constant 0 : index
    %c0_75 = arith.constant 0 : index
    %83 = vector.load %arg14[%c0_74, %c0_75] : memref<16x128xf32, #tpu.memory_space<vmem>>, vector<16x128xf32>
    tpu.vector_store %arg14[%c0_74, %c0_75], %82 {strides = array<i32>} : memref<16x128xf32, #tpu.memory_space<vmem>>, vector<16x128xf32>,
    return
  }
  func.func @transform_0(%arg0: i32) -> (i32, i32) {
    %c0_i32 = arith.constant 0 : i32
    %c0_i32_0 = arith.constant 0 : i32
    return %arg0, %c0_i32 : i32, i32
  }
  func.func @transform_1(%arg0: i32) -> (i32, i32) {
    %c0_i32 = arith.constant 0 : i32
    %c0_i32_0 = arith.constant 0 : i32
    %c0_i32_1 = arith.constant 0 : i32
    return %c0_i32, %c0_i32_0 : i32, i32
  }
  func.func @transform_2(%arg0: i32) -> (i32, i32) {
    %c0_i32 = arith.constant 0 : i32
    %c0_i32_0 = arith.constant 0 : i32
    %c0_i32_1 = arith.constant 0 : i32
    return %c0_i32, %c0_i32_0 : i32, i32
  }
  func.func @transform_3(%arg0: i32) -> (i32, i32) {
    %c0_i32 = arith.constant 0 : i32
    %c0_i32_0 = arith.constant 0 : i32
    %c0_i32_1 = arith.constant 0 : i32
    return %c0_i32, %c0_i32_0 : i32, i32
  }
  func.func @transform_4(%arg0: i32) -> (i32, i32) {
    %c0_i32 = arith.constant 0 : i32
    %c0_i32_0 = arith.constant 0 : i32
    %c0_i32_1 = arith.constant 0 : i32
    return %c0_i32, %c0_i32_0 : i32, i32
  }
  func.func @transform_5(%arg0: i32) -> (i32, i32) {
    %c0_i32 = arith.constant 0 : i32
    %c0_i32_0 = arith.constant 0 : i32
    %c0_i32_1 = arith.constant 0 : i32
    return %c0_i32, %c0_i32_0 : i32, i32
  }
  func.func @transform_6(%arg0: i32) -> (i32, i32) {
    %c0_i32 = arith.constant 0 : i32
    %c0_i32_0 = arith.constant 0 : i32
    %c0_i32_1 = arith.constant 0 : i32
    return %c0_i32, %c0_i32_0 : i32, i32
  }
  func.func @transform_7(%arg0: i32) -> (i32, i32) {
    %c0_i32 = arith.constant 0 : i32
    %c0_i32_0 = arith.constant 0 : i32
    %c0_i32_1 = arith.constant 0 : i32
    return %c0_i32, %c0_i32_0 : i32, i32
  }
  func.func @transform_8(%arg0: i32) -> (i32, i32, i32) {
    %c0_i32 = arith.constant 0 : i32
    %c0_i32_0 = arith.constant 0 : i32
    %c0_i32_1 = arith.constant 0 : i32
    %c0_i32_2 = arith.constant 0 : i32
    return %c0_i32, %c0_i32_0, %c0_i32_1 : i32, i32, i32
  }
  func.func @transform_9(%arg0: i32) -> (i32, i32) {
    %c0_i32 = arith.constant 0 : i32
    %c0_i32_0 = arith.constant 0 : i32
    %c0_i32_1 = arith.constant 0 : i32
    return %c0_i32, %c0_i32_0 : i32, i32
  }
  func.func @transform_10(%arg0: i32) -> (i32, i32) {
    %c0_i32 = arith.constant 0 : i32
    %c0_i32_0 = arith.constant 0 : i32
    %c0_i32_1 = arith.constant 0 : i32
    return %c0_i32, %c0_i32_0 : i32, i32
  }
  func.func @transform_11(%arg0: i32) -> (i32, i32) {
    %c0_i32 = arith.constant 0 : i32
    %c0_i32_0 = arith.constant 0 : i32
    %c0_i32_1 = arith.constant 0 : i32
    return %c0_i32, %c0_i32_0 : i32, i32
  }
  func.func @transform_12(%arg0: i32) -> (i32, i32) {
    %c0_i32 = arith.constant 0 : i32
    %c0_i32_0 = arith.constant 0 : i32
    %c0_i32_1 = arith.constant 0 : i32
    return %c0_i32, %c0_i32_0 : i32, i32
  }
  func.func @transform_13(%arg0: i32) -> (i32, i32) {
    %c0_i32 = arith.constant 0 : i32
    %c0_i32_0 = arith.constant 0 : i32
    return %arg0, %c0_i32 : i32, i32
  }
}

</mosaic_0001>

<llo_original>
// kernel: tpu_custom_call.1
$region0: #{tpu_custom_call.1}
  #allocation0 [shape = 'u32[]', space=smem, size = 0x4, offset = 0x4, fixed_abs, tag = 'smem constant byte address 0x4 - core index']
  #allocation1 [shape = 'u32[72,128]{1,0:T(1,128)}', space=vmem, size = 0x9000, scoped, tag = 'internal scratch']
  #allocation2 [shape = 'bf16[544,128]{1,0:T(8,128)(2,1)}', space=vmem, size = 0x22000, scoped, tag = 'scratch operand']
  #allocation3 [shape = 'bf16[544,256]{1,0:T(8,128)(2,1)}', space=vmem, size = 0x44000, scoped, tag = 'scratch operand']
  #allocation4 [shape = 'bf16[512,640]{1,0:T(8,128)(2,1)}', space=vmem, size = 0xa0000, scoped, tag = 'scratch operand']
  %s0 = inlined_call_operand.vmem [shape: bf16[512,32], index: 0, kind: input, shape index: {}]
  %s1 = inlined_call_operand.vmem [shape: f32[512,1], index: 1, kind: input, shape index: {}]
  %s2 = inlined_call_operand.vmem [shape: bf16[32,128], index: 2, kind: input, shape index: {}]
  %s3 = inlined_call_operand.vmem [shape: f32[1,128], index: 3, kind: input, shape index: {}]
  %s4 = inlined_call_operand.vmem [shape: f32[1,128], index: 4, kind: input, shape index: {}]
  %s5 = inlined_call_operand.vmem [shape: bf16[640,256], index: 5, kind: input, shape index: {}]
  %s6 = inlined_call_operand.vmem [shape: f32[1,256], index: 6, kind: input, shape index: {}]
  %s7 = inlined_call_operand.vmem [shape: f32[1,256], index: 7, kind: input, shape index: {}]
  %s8 = inlined_call_operand.hbm [shape: bf16[3,256,128], index: 8, kind: input, shape index: {}]
  %s9 = inlined_call_operand.vmem [shape: f32[1,128], index: 9, kind: input, shape index: {}]
  %s10 = inlined_call_operand.vmem [shape: f32[1,128], index: 10, kind: input, shape index: {}]
  %s11 = inlined_call_operand.vmem [shape: bf16[128,128], index: 11, kind: input, shape index: {}]
  %s12 = inlined_call_operand.vmem [shape: f32[1,128], index: 12, kind: input, shape index: {}]
  %s13 = inlined_call_operand.hbm [shape: f32[16,128], index: 13, kind: output, shape index: {}]
  %s14 = sld [smem:[#allocation0]]
  $region66: #{tpu_custom_call.1} parent=0
    _
  %s16 = ssub.s32 1, %s14
  %s17 = scalar_select 0, %s16, %s14
  $region1: #{tpu_custom_call.1} parent=0
    #allocation5 [shape = 'u8[196608]{0}', space=vmem, size = 0x30000, scoped, tag = 'input window, operand 8, single buffered']
    #allocation6 [shape = 's32[1]{0}', space=sflag, size = 0x4, scoped, tag = 'scoped memory for tpu_custom_call.1']
    #allocation7 [shape = 's32[1]{0}', space=sflag, size = 0x4, scoped, tag = 'scoped memory for tpu_custom_call.1']
    #allocation8 [shape = 'u8[8192]{0}', space=vmem, size = 0x2000, scoped, tag = 'output window, operand 0, single buffered']
    %18 = vsyncpa [#allocation6], 0
    %19 = vsyncpa [#allocation7], 0
    // Predicated region
    $region2: #{tpu_custom_call.1} parent=1 // pred_check
      _
    $region3: #{tpu_custom_call.1} parent=1 // pred_check_branch
      %21 = sbr.rel (0) target = $region5
    $region4: #{tpu_custom_call.1} parent=1 // pred_region
      _
    $region5: #{tpu_custom_call.1} parent=1 // pred_fallthru
      _
    // Predicated region
    $region6: #{tpu_custom_call.1} parent=1 // pred_check
      _
    $region7: #{tpu_custom_call.1} parent=1 // pred_check_branch
      %23 = sbr.rel (0) target = $region9
    $region8: #{tpu_custom_call.1} parent=1 // pred_region
      _
    $region9: #{tpu_custom_call.1} parent=1 // pred_fallthru
      _
    // Predicated region
    $region10: #{tpu_custom_call.1} parent=1 // pred_check
      _
    $region11: #{tpu_custom_call.1} parent=1 // pred_check_branch
      %25 = sbr.rel (0) target = $region13
    $region12: #{tpu_custom_call.1} parent=1 // pred_region
      _
    $region13: #{tpu_custom_call.1} parent=1 // pred_fallthru
      _
    // Predicated region
    $region14: #{tpu_custom_call.1} parent=1 // pred_check
      _
    $region15: #{tpu_custom_call.1} parent=1 // pred_check_branch
      %27 = sbr.rel (0) target = $region17
    $region16: #{tpu_custom_call.1} parent=1 // pred_region
      _
    $region17: #{tpu_custom_call.1} parent=1 // pred_fallthru
      _
    // Predicated region
    $region18: #{tpu_custom_call.1} parent=1 // pred_check
      _
    $region19: #{tpu_custom_call.1} parent=1 // pred_check_branch
      %29 = sbr.rel (0) target = $region21
    $region20: #{tpu_custom_call.1} parent=1 // pred_region
      _
    $region21: #{tpu_custom_call.1} parent=1 // pred_fallthru
      _
    // Predicated region
    $region22: #{tpu_custom_call.1} parent=1 // pred_check
      _
    $region23: #{tpu_custom_call.1} parent=1 // pred_check_branch
      %31 = sbr.rel (0) target = $region25
    $region24: #{tpu_custom_call.1} parent=1 // pred_region
      _
    $region25: #{tpu_custom_call.1} parent=1 // pred_fallthru
      _
    // Predicated region
    $region26: #{tpu_custom_call.1} parent=1 // pred_check
      _
    $region27: #{tpu_custom_call.1} parent=1 // pred_check_branch
      %33 = sbr.rel (0) target = $region29
    $region28: #{tpu_custom_call.1} parent=1 // pred_region
      _
    $region29: #{tpu_custom_call.1} parent=1 // pred_fallthru
      _
    // Predicated region
    $region30: #{tpu_custom_call.1} parent=1 // pred_check
      _
    $region31: #{tpu_custom_call.1} parent=1 // pred_check_branch
      %35 = sbr.rel (0) target = $region33
    $region32: #{tpu_custom_call.1} parent=1 // pred_region
      _
    $region33: #{tpu_custom_call.1} parent=1 // pred_fallthru
      _
    // Predicated region
    $region34: #{tpu_custom_call.1} parent=1 // pred_check
      _
    $region35: #{tpu_custom_call.1} parent=1 // pred_check_branch
      %37 = sbr.rel (0) target = $region37
    $region36: #{tpu_custom_call.1} parent=1 // pred_region
      %39 = vsyncadd [#allocation6], 0
      %s40 = sshll.u32 %s8, 4
      %s41 = int_to_ptr.hbm [resolvable:$true] %s40
      %s42 = sshll.u32 [#allocation5], 4
      %s43 = int_to_ptr.vmem [resolvable:$true] %s42
      %48 = dma.hbm_to_vmem [thread:$0]  %s41, 6144, %s43, [#allocation6], 64, 64, 4
    $region37: #{tpu_custom_call.1} parent=1 // pred_fallthru
      _
    // Predicated region
    $region38: #{tpu_custom_call.1} parent=1 // pred_check
      _
    $region39: #{tpu_custom_call.1} parent=1 // pred_check_branch
      %50 = sbr.rel (0) target = $region41
    $region40: #{tpu_custom_call.1} parent=1 // pred_region
      _
    $region41: #{tpu_custom_call.1} parent=1 // pred_fallthru
      _
    // Predicated region
    $region42: #{tpu_custom_call.1} parent=1 // pred_check
      _
    $region43: #{tpu_custom_call.1} parent=1 // pred_check_branch
      %52 = sbr.rel (0) target = $region45
    $region44: #{tpu_custom_call.1} parent=1 // pred_region
      _
    $region45: #{tpu_custom_call.1} parent=1 // pred_fallthru
      _
    // Predicated region
    $region46: #{tpu_custom_call.1} parent=1 // pred_check
      _
    $region47: #{tpu_custom_call.1} parent=1 // pred_check_branch
      %54 = sbr.rel (0) target = $region49
    $region48: #{tpu_custom_call.1} parent=1 // pred_region
      _
    $region49: #{tpu_custom_call.1} parent=1 // pred_fallthru
      _
    // Predicated region
    $region50: #{tpu_custom_call.1} parent=1 // pred_check
      _
    $region51: #{tpu_custom_call.1} parent=1 // pred_check_branch
      %56 = sbr.rel (0) target = $region53
    $region52: #{tpu_custom_call.1} parent=1 // pred_region
      _
    $region53: #{tpu_custom_call.1} parent=1 // pred_fallthru
      _
    // Predicated region
    $region54: #{tpu_custom_call.1} parent=1 // pred_check
      _
    $region55: #{tpu_custom_call.1} parent=1 // pred_check_branch
      %58 = sbr.rel (0) target = $region57
    $region56: #{tpu_custom_call.1} parent=1 // pred_region
      %60 = dma.done [#allocation6], 6144
    $region57: #{tpu_custom_call.1} parent=1 // pred_fallthru
      _
    %v62 = vld [vmem:[%s1] sm:$0xff]
    %v63 = vld [vmem:[%s1 + $0x8] sm:$0xff]
    %v64 = vld [vmem:[%s1 + $0x10] sm:$0xff]
    %v65 = vld [vmem:[%s1 + $0x18] sm:$0xff]
    %v66 = vld [vmem:[%s1 + $0x20] sm:$0xff]
    %v67 = vld [vmem:[%s1 + $0x28] sm:$0xff]
    %v68 = vld [vmem:[%s1 + $0x30] sm:$0xff]
    %v69 = vld [vmem:[%s1 + $0x38] sm:$0xff]
    %v70 = vld [vmem:[%s1 + $0x40] sm:$0xff]
    %v71 = vld [vmem:[%s1 + $0x48] sm:$0xff]
    %v72 = vld [vmem:[%s1 + $0x50] sm:$0xff]
    %v73 = vld [vmem:[%s1 + $0x58] sm:$0xff]
    %v74 = vld [vmem:[%s1 + $0x60] sm:$0xff]
    %v75 = vld [vmem:[%s1 + $0x68] sm:$0xff]
    %v76 = vld [vmem:[%s1 + $0x70] sm:$0xff]
    %v77 = vld [vmem:[%s1 + $0x78] sm:$0xff]
    %v78 = vld [vmem:[%s1 + $0x80] sm:$0xff]
    %v79 = vld [vmem:[%s1 + $0x88] sm:$0xff]
    %v80 = vld [vmem:[%s1 + $0x90] sm:$0xff]
    %v81 = vld [vmem:[%s1 + $0x98] sm:$0xff]
    %v82 = vld [vmem:[%s1 + $0xa0] sm:$0xff]
    %v83 = vld [vmem:[%s1 + $0xa8] sm:$0xff]
    %v84 = vld [vmem:[%s1 + $0xb0] sm:$0xff]
    %v85 = vld [vmem:[%s1 + $0xb8] sm:$0xff]
    %v86 = vld [vmem:[%s1 + $0xc0] sm:$0xff]
    %v87 = vld [vmem:[%s1 + $0xc8] sm:$0xff]
    %v88 = vld [vmem:[%s1 + $0xd0] sm:$0xff]
    %v89 = vld [vmem:[%s1 + $0xd8] sm:$0xff]
    %v90 = vld [vmem:[%s1 + $0xe0] sm:$0xff]
    %v91 = vld [vmem:[%s1 + $0xe8] sm:$0xff]
    %v92 = vld [vmem:[%s1 + $0xf0] sm:$0xff]
    %v93 = vld [vmem:[%s1 + $0xf8] sm:$0xff]
    %v94 = vld [vmem:[%s1 + $0x100] sm:$0xff]
    %v95 = vld [vmem:[%s1 + $0x108] sm:$0xff]
    %v96 = vld [vmem:[%s1 + $0x110] sm:$0xff]
    %v97 = vld [vmem:[%s1 + $0x118] sm:$0xff]
    %v98 = vld [vmem:[%s1 + $0x120] sm:$0xff]
    %v99 = vld [vmem:[%s1 + $0x128] sm:$0xff]
    %v100 = vld [vmem:[%s1 + $0x130] sm:$0xff]
    %v101 = vld [vmem:[%s1 + $0x138] sm:$0xff]
    %v102 = vld [vmem:[%s1 + $0x140] sm:$0xff]
    %v103 = vld [vmem:[%s1 + $0x148] sm:$0xff]
    %v104 = vld [vmem:[%s1 + $0x150] sm:$0xff]
    %v105 = vld [vmem:[%s1 + $0x158] sm:$0xff]
    %v106 = vld [vmem:[%s1 + $0x160] sm:$0xff]
    %v107 = vld [vmem:[%s1 + $0x168] sm:$0xff]
    %v108 = vld [vmem:[%s1 + $0x170] sm:$0xff]
    %v109 = vld [vmem:[%s1 + $0x178] sm:$0xff]
    %v110 = vld [vmem:[%s1 + $0x180] sm:$0xff]
    %v111 = vld [vmem:[%s1 + $0x188] sm:$0xff]
    %v112 = vld [vmem:[%s1 + $0x190] sm:$0xff]
    %v113 = vld [vmem:[%s1 + $0x198] sm:$0xff]
    %v114 = vld [vmem:[%s1 + $0x1a0] sm:$0xff]
    %v115 = vld [vmem:[%s1 + $0x1a8] sm:$0xff]
    %v116 = vld [vmem:[%s1 + $0x1b0] sm:$0xff]
    %v117 = vld [vmem:[%s1 + $0x1b8] sm:$0xff]
    %v118 = vld [vmem:[%s1 + $0x1c0] sm:$0xff]
    %v119 = vld [vmem:[%s1 + $0x1c8] sm:$0xff]
    %v120 = vld [vmem:[%s1 + $0x1d0] sm:$0xff]
    %v121 = vld [vmem:[%s1 + $0x1d8] sm:$0xff]
    %v122 = vld [vmem:[%s1 + $0x1e0] sm:$0xff]
    %v123 = vld [vmem:[%s1 + $0x1e8] sm:$0xff]
    %v124 = vld [vmem:[%s1 + $0x1f0] sm:$0xff]
    %v125 = vld [vmem:[%s1 + $0x1f8] sm:$0xff]
    %v126 = vld [vmem:[%s0] sm:$0xf]
    %v127 = vld [vmem:[%s0 + $0x4] sm:$0xf]
    %v128 = vld [vmem:[%s0 + $0x8] sm:$0xf]
    %v129 = vld [vmem:[%s0 + $0xc] sm:$0xf]
    %v130 = vld [vmem:[%s0 + $0x10] sm:$0xf]
    %v131 = vld [vmem:[%s0 + $0x14] sm:$0xf]
    %v132 = vld [vmem:[%s0 + $0x18] sm:$0xf]
    %v133 = vld [vmem:[%s0 + $0x1c] sm:$0xf]
    %v134 = vld [vmem:[%s0 + $0x20] sm:$0xf]
    %v135 = vld [vmem:[%s0 + $0x24] sm:$0xf]
    %v136 = vld [vmem:[%s0 + $0x28] sm:$0xf]
    %v137 = vld [vmem:[%s0 + $0x2c] sm:$0xf]
    %v138 = vld [vmem:[%s0 + $0x30] sm:$0xf]
    %v139 = vld [vmem:[%s0 + $0x34] sm:$0xf]
    %v140 = vld [vmem:[%s0 + $0x38] sm:$0xf]
    %v141 = vld [vmem:[%s0 + $0x3c] sm:$0xf]
    %v142 = vld [vmem:[%s0 + $0x40] sm:$0xf]
    %v143 = vld [vmem:[%s0 + $0x44] sm:$0xf]
    %v144 = vld [vmem:[%s0 + $0x48] sm:$0xf]
    %v145 = vld [vmem:[%s0 + $0x4c] sm:$0xf]
    %v146 = vld [vmem:[%s0 + $0x50] sm:$0xf]
    %v147 = vld [vmem:[%s0 + $0x54] sm:$0xf]
    %v148 = vld [vmem:[%s0 + $0x58] sm:$0xf]
    %v149 = vld [vmem:[%s0 + $0x5c] sm:$0xf]
    %v150 = vld [vmem:[%s0 + $0x60] sm:$0xf]
    %v151 = vld [vmem:[%s0 + $0x64] sm:$0xf]
    %v152 = vld [vmem:[%s0 + $0x68] sm:$0xf]
    %v153 = vld [vmem:[%s0 + $0x6c] sm:$0xf]
    %v154 = vld [vmem:[%s0 + $0x70] sm:$0xf]
    %v155 = vld [vmem:[%s0 + $0x74] sm:$0xf]
    %v156 = vld [vmem:[%s0 + $0x78] sm:$0xf]
    %v157 = vld [vmem:[%s0 + $0x7c] sm:$0xf]
    %v158 = vld [vmem:[%s0 + $0x80] sm:$0xf]
    %v159 = vld [vmem:[%s0 + $0x84] sm:$0xf]
    %v160 = vld [vmem:[%s0 + $0x88] sm:$0xf]
    %v161 = vld [vmem:[%s0 + $0x8c] sm:$0xf]
    %v162 = vld [vmem:[%s0 + $0x90] sm:$0xf]
    %v163 = vld [vmem:[%s0 + $0x94] sm:$0xf]
    %v164 = vld [vmem:[%s0 + $0x98] sm:$0xf]
    %v165 = vld [vmem:[%s0 + $0x9c] sm:$0xf]
    %v166 = vld [vmem:[%s0 + $0xa0] sm:$0xf]
    %v167 = vld [vmem:[%s0 + $0xa4] sm:$0xf]
    %v168 = vld [vmem:[%s0 + $0xa8] sm:$0xf]
    %v169 = vld [vmem:[%s0 + $0xac] sm:$0xf]
    %v170 = vld [vmem:[%s0 + $0xb0] sm:$0xf]
    %v171 = vld [vmem:[%s0 + $0xb4] sm:$0xf]
    %v172 = vld [vmem:[%s0 + $0xb8] sm:$0xf]
    %v173 = vld [vmem:[%s0 + $0xbc] sm:$0xf]
    %v174 = vld [vmem:[%s0 + $0xc0] sm:$0xf]
    %v175 = vld [vmem:[%s0 + $0xc4] sm:$0xf]
    %v176 = vld [vmem:[%s0 + $0xc8] sm:$0xf]
    %v177 = vld [vmem:[%s0 + $0xcc] sm:$0xf]
    %v178 = vld [vmem:[%s0 + $0xd0] sm:$0xf]
    %v179 = vld [vmem:[%s0 + $0xd4] sm:$0xf]
    %v180 = vld [vmem:[%s0 + $0xd8] sm:$0xf]
    %v181 = vld [vmem:[%s0 + $0xdc] sm:$0xf]
    %v182 = vld [vmem:[%s0 + $0xe0] sm:$0xf]
    %v183 = vld [vmem:[%s0 + $0xe4] sm:$0xf]
    %v184 = vld [vmem:[%s0 + $0xe8] sm:$0xf]
    %v185 = vld [vmem:[%s0 + $0xec] sm:$0xf]
    %v186 = vld [vmem:[%s0 + $0xf0] sm:$0xf]
    %v187 = vld [vmem:[%s0 + $0xf4] sm:$0xf]
    %v188 = vld [vmem:[%s0 + $0xf8] sm:$0xf]
    %v189 = vld [vmem:[%s0 + $0xfc] sm:$0xf]
    %v190 = vld [vmem:[%s2] sm:$0xf]
    %v191 = vld [vmem:[%s2 + $0x4] sm:$0xf]
    %v192 = vld [vmem:[%s2 + $0x8] sm:$0xf]
    %v193 = vld [vmem:[%s2 + $0xc] sm:$0xf]
    %v258 = vunpack.c.l.b16 %v126
    %v259 = vunpack.c.l.b16 %v127
    %v260 = vunpack.c.l.b16 %v128
    %v261 = vunpack.c.l.b16 %v129
    %v262 = vunpack.c.l.b16 %v130
    %v263 = vunpack.c.l.b16 %v131
    %v264 = vunpack.c.l.b16 %v132
    %v265 = vunpack.c.l.b16 %v133
    %v266 = vunpack.c.l.b16 %v134
    %v267 = vunpack.c.l.b16 %v135
    %v268 = vunpack.c.l.b16 %v136
    %v269 = vunpack.c.l.b16 %v137
    %v270 = vunpack.c.l.b16 %v138
    %v271 = vunpack.c.l.b16 %v139
    %v272 = vunpack.c.l.b16 %v140
    %v273 = vunpack.c.l.b16 %v141
    %v274 = vunpack.c.l.b16 %v142
    %v275 = vunpack.c.l.b16 %v143
    %v276 = vunpack.c.l.b16 %v144
    %v277 = vunpack.c.l.b16 %v145
    %v278 = vunpack.c.l.b16 %v146
    %v279 = vunpack.c.l.b16 %v147
    %v280 = vunpack.c.l.b16 %v148
    %v281 = vunpack.c.l.b16 %v149
    %v282 = vunpack.c.l.b16 %v150
    %v283 = vunpack.c.l.b16 %v151
    %v284 = vunpack.c.l.b16 %v152
    %v285 = vunpack.c.l.b16 %v153
    %v286 = vunpack.c.l.b16 %v154
    %v287 = vunpack.c.l.b16 %v155
    %v288 = vunpack.c.l.b16 %v156
    %v289 = vunpack.c.l.b16 %v157
    %v290 = vunpack.c.l.b16 %v158
    %v291 = vunpack.c.l.b16 %v159
    %v292 = vunpack.c.l.b16 %v160
    %v293 = vunpack.c.l.b16 %v161
    %v294 = vunpack.c.l.b16 %v162
    %v295 = vunpack.c.l.b16 %v163
    %v296 = vunpack.c.l.b16 %v164
    %v297 = vunpack.c.l.b16 %v165
    %v298 = vunpack.c.l.b16 %v166
    %v299 = vunpack.c.l.b16 %v167
    %v300 = vunpack.c.l.b16 %v168
    %v301 = vunpack.c.l.b16 %v169
    %v302 = vunpack.c.l.b16 %v170
    %v303 = vunpack.c.l.b16 %v171
    %v304 = vunpack.c.l.b16 %v172
    %v305 = vunpack.c.l.b16 %v173
    %v306 = vunpack.c.l.b16 %v174
    %v307 = vunpack.c.l.b16 %v175
    %v308 = vunpack.c.l.b16 %v176
    %v309 = vunpack.c.l.b16 %v177
    %v310 = vunpack.c.l.b16 %v178
    %v311 = vunpack.c.l.b16 %v179
    %v312 = vunpack.c.l.b16 %v180
    %v313 = vunpack.c.l.b16 %v181
    %v314 = vunpack.c.l.b16 %v182
    %v315 = vunpack.c.l.b16 %v183
    %v316 = vunpack.c.l.b16 %v184
    %v317 = vunpack.c.l.b16 %v185
    %v318 = vunpack.c.l.b16 %v186
    %v319 = vunpack.c.l.b16 %v187
    %v320 = vunpack.c.l.b16 %v188
    %v321 = vunpack.c.l.b16 %v189
    %v322 = vpack.c.b16 %v259, %v258
    %v323 = vpack.c.b16 %v261, %v260
    %v324 = vpack.c.b16 %v263, %v262
    %v325 = vpack.c.b16 %v265, %v264
    %v326 = vpack.c.b16 %v267, %v266
    %v327 = vpack.c.b16 %v269, %v268
    %v328 = vpack.c.b16 %v271, %v270
    %v329 = vpack.c.b16 %v273, %v272
    %v330 = vpack.c.b16 %v275, %v274
    %v331 = vpack.c.b16 %v277, %v276
    %v332 = vpack.c.b16 %v279, %v278
    %v333 = vpack.c.b16 %v281, %v280
    %v334 = vpack.c.b16 %v283, %v282
    %v335 = vpack.c.b16 %v285, %v284
    %v336 = vpack.c.b16 %v287, %v286
    %v337 = vpack.c.b16 %v289, %v288
    %v338 = vpack.c.b16 %v291, %v290
    %v339 = vpack.c.b16 %v293, %v292
    %v340 = vpack.c.b16 %v295, %v294
    %v341 = vpack.c.b16 %v297, %v296
    %v342 = vpack.c.b16 %v299, %v298
    %v343 = vpack.c.b16 %v301, %v300
    %v344 = vpack.c.b16 %v303, %v302
    %v345 = vpack.c.b16 %v305, %v304
    %v346 = vpack.c.b16 %v307, %v306
    %v347 = vpack.c.b16 %v309, %v308
    %v348 = vpack.c.b16 %v311, %v310
    %v349 = vpack.c.b16 %v313, %v312
    %v350 = vpack.c.b16 %v315, %v314
    %v351 = vpack.c.b16 %v317, %v316
    %v352 = vpack.c.b16 %v319, %v318
    %v353 = vpack.c.b16 %v321, %v320
    %v358 = vunpack.c.l.b16 %v190
    %v359 = vunpack.c.l.b16 %v191
    %v360 = vunpack.c.l.b16 %v192
    %v361 = vunpack.c.l.b16 %v193
    %v362 = vpack.c.b16 %v359, %v358
    %v363 = vpack.c.b16 %v361, %v360
    %vm366 = vcmask 261120
    %v368 = vsel %vm366, %v322, 0
    %v371 = vsel %vm366, %v323, 0
    %v374 = vsel %vm366, %v324, 0
    %v377 = vsel %vm366, %v325, 0
    %v380 = vsel %vm366, %v326, 0
    %v383 = vsel %vm366, %v327, 0
    %v386 = vsel %vm366, %v328, 0
    %v389 = vsel %vm366, %v329, 0
    %v392 = vsel %vm366, %v330, 0
    %v395 = vsel %vm366, %v331, 0
    %v398 = vsel %vm366, %v332, 0
    %v401 = vsel %vm366, %v333, 0
    %v404 = vsel %vm366, %v334, 0
    %v407 = vsel %vm366, %v335, 0
    %v410 = vsel %vm366, %v336, 0
    %v413 = vsel %vm366, %v337, 0
    %v416 = vsel %vm366, %v338, 0
    %v419 = vsel %vm366, %v339, 0
    %v422 = vsel %vm366, %v340, 0
    %v425 = vsel %vm366, %v341, 0
    %v428 = vsel %vm366, %v342, 0
    %v431 = vsel %vm366, %v343, 0
    %v434 = vsel %vm366, %v344, 0
    %v437 = vsel %vm366, %v345, 0
    %v440 = vsel %vm366, %v346, 0
    %v443 = vsel %vm366, %v347, 0
    %v446 = vsel %vm366, %v348, 0
    %v449 = vsel %vm366, %v349, 0
    %v452 = vsel %vm366, %v350, 0
    %v455 = vsel %vm366, %v351, 0
    %v458 = vsel %vm366, %v352, 0
    %v461 = vsel %vm366, %v353, 0
    %463 = vmatpush.bf16.msra.mxu0 0
    %464 = vmatpush.bf16.msra.mxu0 0
    %465 = vmatpush.bf16.msra.mxu0 0
    %466 = vmatpush.bf16.msra.mxu0 0
    %467 = vmatpush.bf16.msra.mxu0 0
    %468 = vmatpush.bf16.msra.mxu0 0
    %469 = vmatpush.bf16.msra.mxu0 %v363
    %470 = vmatpush.bf16.msra.mxu0 %v362
    %471 = vmatmul.bf16.gmra.mxu0 %v368
    %v472 = vpop.f32.mrf.mxu0
    %v473 = vadd.f32 0.0, %v472
    %v474 = vpop.f32.mrf.mxu0
    %v475 = vadd.f32 0.0, %v474
    %476 = vmatmul.bf16.gmra.mxu0 %v371
    %v477 = vpop.f32.mrf.mxu0
    %v478 = vadd.f32 0.0, %v477
    %v479 = vpop.f32.mrf.mxu0
    %v480 = vadd.f32 0.0, %v479
    %481 = vmatmul.bf16.gmra.mxu0 %v374
    %v482 = vpop.f32.mrf.mxu0
    %v483 = vadd.f32 0.0, %v482
    %v484 = vpop.f32.mrf.mxu0
    %v485 = vadd.f32 0.0, %v484
    %486 = vmatmul.bf16.gmra.mxu0 %v377
    %v487 = vpop.f32.mrf.mxu0
    %v488 = vadd.f32 0.0, %v487
    %v489 = vpop.f32.mrf.mxu0
    %v490 = vadd.f32 0.0, %v489
    %491 = vmatmul.bf16.gmra.mxu0 %v380
    %v492 = vpop.f32.mrf.mxu0
    %v493 = vadd.f32 0.0, %v492
    %v494 = vpop.f32.mrf.mxu0
    %v495 = vadd.f32 0.0, %v494
    %496 = vmatmul.bf16.gmra.mxu0 %v383
    %v497 = vpop.f32.mrf.mxu0
    %v498 = vadd.f32 0.0, %v497
    %v499 = vpop.f32.mrf.mxu0
    %v500 = vadd.f32 0.0, %v499
    %501 = vmatmul.bf16.gmra.mxu0 %v386
    %v502 = vpop.f32.mrf.mxu0
    %v503 = vadd.f32 0.0, %v502
    %v504 = vpop.f32.mrf.mxu0
    %v505 = vadd.f32 0.0, %v504
    %506 = vmatmul.bf16.gmra.mxu0 %v389
    %v507 = vpop.f32.mrf.mxu0
    %v508 = vadd.f32 0.0, %v507
    %v509 = vpop.f32.mrf.mxu0
    %v510 = vadd.f32 0.0, %v509
    %511 = vmatmul.bf16.gmra.mxu0 %v392
    %v512 = vpop.f32.mrf.mxu0
    %v513 = vadd.f32 0.0, %v512
    %v514 = vpop.f32.mrf.mxu0
    %v515 = vadd.f32 0.0, %v514
    %516 = vmatmul.bf16.gmra.mxu0 %v395
    %v517 = vpop.f32.mrf.mxu0
    %v518 = vadd.f32 0.0, %v517
    %v519 = vpop.f32.mrf.mxu0
    %v520 = vadd.f32 0.0, %v519
    %521 = vmatmul.bf16.gmra.mxu0 %v398
    %v522 = vpop.f32.mrf.mxu0
    %v523 = vadd.f32 0.0, %v522
    %v524 = vpop.f32.mrf.mxu0
    %v525 = vadd.f32 0.0, %v524
    %526 = vmatmul.bf16.gmra.mxu0 %v401
    %v527 = vpop.f32.mrf.mxu0
    %v528 = vadd.f32 0.0, %v527
    %v529 = vpop.f32.mrf.mxu0
    %v530 = vadd.f32 0.0, %v529
    %531 = vmatmul.bf16.gmra.mxu0 %v404
    %v532 = vpop.f32.mrf.mxu0
    %v533 = vadd.f32 0.0, %v532
    %v534 = vpop.f32.mrf.mxu0
    %v535 = vadd.f32 0.0, %v534
    %536 = vmatmul.bf16.gmra.mxu0 %v407
    %v537 = vpop.f32.mrf.mxu0
    %v538 = vadd.f32 0.0, %v537
    %v539 = vpop.f32.mrf.mxu0
    %v540 = vadd.f32 0.0, %v539
    %541 = vmatmul.bf16.gmra.mxu0 %v410
    %v542 = vpop.f32.mrf.mxu0
    %v543 = vadd.f32 0.0, %v542
    %v544 = vpop.f32.mrf.mxu0
    %v545 = vadd.f32 0.0, %v544
    %546 = vmatmul.bf16.gmra.mxu0 %v413
    %v547 = vpop.f32.mrf.mxu0
    %v548 = vadd.f32 0.0, %v547
    %v549 = vpop.f32.mrf.mxu0
    %v550 = vadd.f32 0.0, %v549
    %551 = vmatmul.bf16.gmra.mxu0 %v416
    %v552 = vpop.f32.mrf.mxu0
    %v553 = vadd.f32 0.0, %v552
    %v554 = vpop.f32.mrf.mxu0
    %v555 = vadd.f32 0.0, %v554
    %556 = vmatmul.bf16.gmra.mxu0 %v419
    %v557 = vpop.f32.mrf.mxu0
    %v558 = vadd.f32 0.0, %v557
    %v559 = vpop.f32.mrf.mxu0
    %v560 = vadd.f32 0.0, %v559
    %561 = vmatmul.bf16.gmra.mxu0 %v422
    %v562 = vpop.f32.mrf.mxu0
    %v563 = vadd.f32 0.0, %v562
    %v564 = vpop.f32.mrf.mxu0
    %v565 = vadd.f32 0.0, %v564
    %566 = vmatmul.bf16.gmra.mxu0 %v425
    %v567 = vpop.f32.mrf.mxu0
    %v568 = vadd.f32 0.0, %v567
    %v569 = vpop.f32.mrf.mxu0
    %v570 = vadd.f32 0.0, %v569
    %571 = vmatmul.bf16.gmra.mxu0 %v428
    %v572 = vpop.f32.mrf.mxu0
    %v573 = vadd.f32 0.0, %v572
    %v574 = vpop.f32.mrf.mxu0
    %v575 = vadd.f32 0.0, %v574
    %576 = vmatmul.bf16.gmra.mxu0 %v431
    %v577 = vpop.f32.mrf.mxu0
    %v578 = vadd.f32 0.0, %v577
    %v579 = vpop.f32.mrf.mxu0
    %v580 = vadd.f32 0.0, %v579
    %581 = vmatmul.bf16.gmra.mxu0 %v434
    %v582 = vpop.f32.mrf.mxu0
    %v583 = vadd.f32 0.0, %v582
    %v584 = vpop.f32.mrf.mxu0
    %v585 = vadd.f32 0.0, %v584
    %586 = vmatmul.bf16.gmra.mxu0 %v437
    %v587 = vpop.f32.mrf.mxu0
    %v588 = vadd.f32 0.0, %v587
    %v589 = vpop.f32.mrf.mxu0
    %v590 = vadd.f32 0.0, %v589
    %591 = vmatmul.bf16.gmra.mxu0 %v440
    %v592 = vpop.f32.mrf.mxu0
    %v593 = vadd.f32 0.0, %v592
    %v594 = vpop.f32.mrf.mxu0
    %v595 = vadd.f32 0.0, %v594
    %596 = vmatmul.bf16.gmra.mxu0 %v443
    %v597 = vpop.f32.mrf.mxu0
    %v598 = vadd.f32 0.0, %v597
    %v599 = vpop.f32.mrf.mxu0
    %v600 = vadd.f32 0.0, %v599
    %601 = vmatmul.bf16.gmra.mxu0 %v446
    %v602 = vpop.f32.mrf.mxu0
    %v603 = vadd.f32 0.0, %v602
    %v604 = vpop.f32.mrf.mxu0
    %v605 = vadd.f32 0.0, %v604
    %606 = vmatmul.bf16.gmra.mxu0 %v449
    %v607 = vpop.f32.mrf.mxu0
    %v608 = vadd.f32 0.0, %v607
    %v609 = vpop.f32.mrf.mxu0
    %v610 = vadd.f32 0.0, %v609
    %611 = vmatmul.bf16.gmra.mxu0 %v452
    %v612 = vpop.f32.mrf.mxu0
    %v613 = vadd.f32 0.0, %v612
    %v614 = vpop.f32.mrf.mxu0
    %v615 = vadd.f32 0.0, %v614
    %616 = vmatmul.bf16.gmra.mxu0 %v455
    %v617 = vpop.f32.mrf.mxu0
    %v618 = vadd.f32 0.0, %v617
    %v619 = vpop.f32.mrf.mxu0
    %v620 = vadd.f32 0.0, %v619
    %621 = vmatmul.bf16.gmra.mxu0 %v458
    %v622 = vpop.f32.mrf.mxu0
    %v623 = vadd.f32 0.0, %v622
    %v624 = vpop.f32.mrf.mxu0
    %v625 = vadd.f32 0.0, %v624
    %626 = vmatmul.bf16.gmra.mxu0 %v461
    %v627 = vpop.f32.mrf.mxu0
    %v628 = vadd.f32 0.0, %v627
    %v629 = vpop.f32.mrf.mxu0
    %v630 = vadd.f32 0.0, %v629
    %631 = vdwg.mxu0
    %v632 = vld [vmem:[%s3] sm:$0x1]
    %v634 = vperm.slane %v632, 0
    %v636 = vmul.f32 %v473, %v634
    %v637 = vmul.f32 %v475, %v634
    %v638 = vmul.f32 %v478, %v634
    %v639 = vmul.f32 %v480, %v634
    %v640 = vmul.f32 %v483, %v634
    %v641 = vmul.f32 %v485, %v634
    %v642 = vmul.f32 %v488, %v634
    %v643 = vmul.f32 %v490, %v634
    %v644 = vmul.f32 %v493, %v634
    %v645 = vmul.f32 %v495, %v634
    %v646 = vmul.f32 %v498, %v634
    %v647 = vmul.f32 %v500, %v634
    %v648 = vmul.f32 %v503, %v634
    %v649 = vmul.f32 %v505, %v634
    %v650 = vmul.f32 %v508, %v634
    %v651 = vmul.f32 %v510, %v634
    %v652 = vmul.f32 %v513, %v634
    %v653 = vmul.f32 %v515, %v634
    %v654 = vmul.f32 %v518, %v634
    %v655 = vmul.f32 %v520, %v634
    %v656 = vmul.f32 %v523, %v634
    %v657 = vmul.f32 %v525, %v634
    %v658 = vmul.f32 %v528, %v634
    %v659 = vmul.f32 %v530, %v634
    %v660 = vmul.f32 %v533, %v634
    %v661 = vmul.f32 %v535, %v634
    %v662 = vmul.f32 %v538, %v634
    %v663 = vmul.f32 %v540, %v634
    %v664 = vmul.f32 %v543, %v634
    %v665 = vmul.f32 %v545, %v634
    %v666 = vmul.f32 %v548, %v634
    %v667 = vmul.f32 %v550, %v634
    %v668 = vmul.f32 %v553, %v634
    %v669 = vmul.f32 %v555, %v634
    %v670 = vmul.f32 %v558, %v634
    %v671 = vmul.f32 %v560, %v634
    %v672 = vmul.f32 %v563, %v634
    %v673 = vmul.f32 %v565, %v634
    %v674 = vmul.f32 %v568, %v634
    %v675 = vmul.f32 %v570, %v634
    %v676 = vmul.f32 %v573, %v634
    %v677 = vmul.f32 %v575, %v634
    %v678 = vmul.f32 %v578, %v634
    %v679 = vmul.f32 %v580, %v634
    %v680 = vmul.f32 %v583, %v634
    %v681 = vmul.f32 %v585, %v634
    %v682 = vmul.f32 %v588, %v634
    %v683 = vmul.f32 %v590, %v634
    %v684 = vmul.f32 %v593, %v634
    %v685 = vmul.f32 %v595, %v634
    %v686 = vmul.f32 %v598, %v634
    %v687 = vmul.f32 %v600, %v634
    %v688 = vmul.f32 %v603, %v634
    %v689 = vmul.f32 %v605, %v634
    %v690 = vmul.f32 %v608, %v634
    %v691 = vmul.f32 %v610, %v634
    %v692 = vmul.f32 %v613, %v634
    %v693 = vmul.f32 %v615, %v634
    %v694 = vmul.f32 %v618, %v634
    %v695 = vmul.f32 %v620, %v634
    %v696 = vmul.f32 %v623, %v634
    %v697 = vmul.f32 %v625, %v634
    %v698 = vmul.f32 %v628, %v634
    %v699 = vmul.f32 %v630, %v634
    %v700 = vld [vmem:[%s4] sm:$0x1]
    %v702 = vperm.slane %v700, 0
    %v704 = vadd.f32 %v636, %v702
    %v705 = vadd.f32 %v637, %v702
    %v706 = vadd.f32 %v638, %v702
    %v707 = vadd.f32 %v639, %v702
    %v708 = vadd.f32 %v640, %v702
    %v709 = vadd.f32 %v641, %v702
    %v710 = vadd.f32 %v642, %v702
    %v711 = vadd.f32 %v643, %v702
    %v712 = vadd.f32 %v644, %v702
    %v713 = vadd.f32 %v645, %v702
    %v714 = vadd.f32 %v646, %v702
    %v715 = vadd.f32 %v647, %v702
    %v716 = vadd.f32 %v648, %v702
    %v717 = vadd.f32 %v649, %v702
    %v718 = vadd.f32 %v650, %v702
    %v719 = vadd.f32 %v651, %v702
    %v720 = vadd.f32 %v652, %v702
    %v721 = vadd.f32 %v653, %v702
    %v722 = vadd.f32 %v654, %v702
    %v723 = vadd.f32 %v655, %v702
    %v724 = vadd.f32 %v656, %v702
    %v725 = vadd.f32 %v657, %v702
    %v726 = vadd.f32 %v658, %v702
    %v727 = vadd.f32 %v659, %v702
    %v728 = vadd.f32 %v660, %v702
    %v729 = vadd.f32 %v661, %v702
    %v730 = vadd.f32 %v662, %v702
    %v731 = vadd.f32 %v663, %v702
    %v732 = vadd.f32 %v664, %v702
    %v733 = vadd.f32 %v665, %v702
    %v734 = vadd.f32 %v666, %v702
    %v735 = vadd.f32 %v667, %v702
    %v736 = vadd.f32 %v668, %v702
    %v737 = vadd.f32 %v669, %v702
    %v738 = vadd.f32 %v670, %v702
    %v739 = vadd.f32 %v671, %v702
    %v740 = vadd.f32 %v672, %v702
    %v741 = vadd.f32 %v673, %v702
    %v742 = vadd.f32 %v674, %v702
    %v743 = vadd.f32 %v675, %v702
    %v744 = vadd.f32 %v676, %v702
    %v745 = vadd.f32 %v677, %v702
    %v746 = vadd.f32 %v678, %v702
    %v747 = vadd.f32 %v679, %v702
    %v748 = vadd.f32 %v680, %v702
    %v749 = vadd.f32 %v681, %v702
    %v750 = vadd.f32 %v682, %v702
    %v751 = vadd.f32 %v683, %v702
    %v752 = vadd.f32 %v684, %v702
    %v753 = vadd.f32 %v685, %v702
    %v754 = vadd.f32 %v686, %v702
    %v755 = vadd.f32 %v687, %v702
    %v756 = vadd.f32 %v688, %v702
    %v757 = vadd.f32 %v689, %v702
    %v758 = vadd.f32 %v690, %v702
    %v759 = vadd.f32 %v691, %v702
    %v760 = vadd.f32 %v692, %v702
    %v761 = vadd.f32 %v693, %v702
    %v762 = vadd.f32 %v694, %v702
    %v763 = vadd.f32 %v695, %v702
    %v764 = vadd.f32 %v696, %v702
    %v765 = vadd.f32 %v697, %v702
    %v766 = vadd.f32 %v698, %v702
    %v767 = vadd.f32 %v699, %v702
    %v768 = vmax.f32 %v704, 0.0
    %v769 = vmax.f32 %v705, 0.0
    %v770 = vmax.f32 %v706, 0.0
    %v771 = vmax.f32 %v707, 0.0
    %v772 = vmax.f32 %v708, 0.0
    %v773 = vmax.f32 %v709, 0.0
    %v774 = vmax.f32 %v710, 0.0
    %v775 = vmax.f32 %v711, 0.0
    %v776 = vmax.f32 %v712, 0.0
    %v777 = vmax.f32 %v713, 0.0
    %v778 = vmax.f32 %v714, 0.0
    %v779 = vmax.f32 %v715, 0.0
    %v780 = vmax.f32 %v716, 0.0
    %v781 = vmax.f32 %v717, 0.0
    %v782 = vmax.f32 %v718, 0.0
    %v783 = vmax.f32 %v719, 0.0
    %v784 = vmax.f32 %v720, 0.0
    %v785 = vmax.f32 %v721, 0.0
    %v786 = vmax.f32 %v722, 0.0
    %v787 = vmax.f32 %v723, 0.0
    %v788 = vmax.f32 %v724, 0.0
    %v789 = vmax.f32 %v725, 0.0
    %v790 = vmax.f32 %v726, 0.0
    %v791 = vmax.f32 %v727, 0.0
    %v792 = vmax.f32 %v728, 0.0
    %v793 = vmax.f32 %v729, 0.0
    %v794 = vmax.f32 %v730, 0.0
    %v795 = vmax.f32 %v731, 0.0
    %v796 = vmax.f32 %v732, 0.0
    %v797 = vmax.f32 %v733, 0.0
    %v798 = vmax.f32 %v734, 0.0
    %v799 = vmax.f32 %v735, 0.0
    %v800 = vmax.f32 %v736, 0.0
    %v801 = vmax.f32 %v737, 0.0
    %v802 = vmax.f32 %v738, 0.0
    %v803 = vmax.f32 %v739, 0.0
    %v804 = vmax.f32 %v740, 0.0
    %v805 = vmax.f32 %v741, 0.0
    %v806 = vmax.f32 %v742, 0.0
    %v807 = vmax.f32 %v743, 0.0
    %v808 = vmax.f32 %v744, 0.0
    %v809 = vmax.f32 %v745, 0.0
    %v810 = vmax.f32 %v746, 0.0
    %v811 = vmax.f32 %v747, 0.0
    %v812 = vmax.f32 %v748, 0.0
    %v813 = vmax.f32 %v749, 0.0
    %v814 = vmax.f32 %v750, 0.0
    %v815 = vmax.f32 %v751, 0.0
    %v816 = vmax.f32 %v752, 0.0
    %v817 = vmax.f32 %v753, 0.0
    %v818 = vmax.f32 %v754, 0.0
    %v819 = vmax.f32 %v755, 0.0
    %v820 = vmax.f32 %v756, 0.0
    %v821 = vmax.f32 %v757, 0.0
    %v822 = vmax.f32 %v758, 0.0
    %v823 = vmax.f32 %v759, 0.0
    %v824 = vmax.f32 %v760, 0.0
    %v825 = vmax.f32 %v761, 0.0
    %v826 = vmax.f32 %v762, 0.0
    %v827 = vmax.f32 %v763, 0.0
    %v828 = vmax.f32 %v764, 0.0
    %v829 = vmax.f32 %v765, 0.0
    %v830 = vmax.f32 %v766, 0.0
    %v831 = vmax.f32 %v767, 0.0
    %833 = vset.pattern.permute.xlu0 0
    %834 = vperm.xlu0 %833, %v62
    %v835 = vpop.permute.xlu0 %834
    %838 = vset.pattern.permute.xlu0 0
    %839 = vperm.xlu0 %838, %v63
    %v840 = vpop.permute.xlu0 %839
    %843 = vset.pattern.permute.xlu0 0
    %844 = vperm.xlu0 %843, %v64
    %v845 = vpop.permute.xlu0 %844
    %848 = vset.pattern.permute.xlu0 0
    %849 = vperm.xlu0 %848, %v65
    %v850 = vpop.permute.xlu0 %849
    %853 = vset.pattern.permute.xlu0 0
    %854 = vperm.xlu0 %853, %v66
    %v855 = vpop.permute.xlu0 %854
    %858 = vset.pattern.permute.xlu0 0
    %859 = vperm.xlu0 %858, %v67
    %v860 = vpop.permute.xlu0 %859
    %863 = vset.pattern.permute.xlu0 0
    %864 = vperm.xlu0 %863, %v68
    %v865 = vpop.permute.xlu0 %864
    %868 = vset.pattern.permute.xlu0 0
    %869 = vperm.xlu0 %868, %v69
    %v870 = vpop.permute.xlu0 %869
    %873 = vset.pattern.permute.xlu0 0
    %874 = vperm.xlu0 %873, %v70
    %v875 = vpop.permute.xlu0 %874
    %878 = vset.pattern.permute.xlu0 0
    %879 = vperm.xlu0 %878, %v71
    %v880 = vpop.permute.xlu0 %879
    %883 = vset.pattern.permute.xlu0 0
    %884 = vperm.xlu0 %883, %v72
    %v885 = vpop.permute.xlu0 %884
    %888 = vset.pattern.permute.xlu0 0
    %889 = vperm.xlu0 %888, %v73
    %v890 = vpop.permute.xlu0 %889
    %893 = vset.pattern.permute.xlu0 0
    %894 = vperm.xlu0 %893, %v74
    %v895 = vpop.permute.xlu0 %894
    %898 = vset.pattern.permute.xlu0 0
    %899 = vperm.xlu0 %898, %v75
    %v900 = vpop.permute.xlu0 %899
    %903 = vset.pattern.permute.xlu0 0
    %904 = vperm.xlu0 %903, %v76
    %v905 = vpop.permute.xlu0 %904
    %908 = vset.pattern.permute.xlu0 0
    %909 = vperm.xlu0 %908, %v77
    %v910 = vpop.permute.xlu0 %909
    %913 = vset.pattern.permute.xlu0 0
    %914 = vperm.xlu0 %913, %v78
    %v915 = vpop.permute.xlu0 %914
    %918 = vset.pattern.permute.xlu0 0
    %919 = vperm.xlu0 %918, %v79
    %v920 = vpop.permute.xlu0 %919
    %923 = vset.pattern.permute.xlu0 0
    %924 = vperm.xlu0 %923, %v80
    %v925 = vpop.permute.xlu0 %924
    %928 = vset.pattern.permute.xlu0 0
    %929 = vperm.xlu0 %928, %v81
    %v930 = vpop.permute.xlu0 %929
    %933 = vset.pattern.permute.xlu0 0
    %934 = vperm.xlu0 %933, %v82
    %v935 = vpop.permute.xlu0 %934
    %938 = vset.pattern.permute.xlu0 0
    %939 = vperm.xlu0 %938, %v83
    %v940 = vpop.permute.xlu0 %939
    %943 = vset.pattern.permute.xlu0 0
    %944 = vperm.xlu0 %943, %v84
    %v945 = vpop.permute.xlu0 %944
    %948 = vset.pattern.permute.xlu0 0
    %949 = vperm.xlu0 %948, %v85
    %v950 = vpop.permute.xlu0 %949
    %953 = vset.pattern.permute.xlu0 0
    %954 = vperm.xlu0 %953, %v86
    %v955 = vpop.permute.xlu0 %954
    %958 = vset.pattern.permute.xlu0 0
    %959 = vperm.xlu0 %958, %v87
    %v960 = vpop.permute.xlu0 %959
    %963 = vset.pattern.permute.xlu0 0
    %964 = vperm.xlu0 %963, %v88
    %v965 = vpop.permute.xlu0 %964
    %968 = vset.pattern.permute.xlu0 0
    %969 = vperm.xlu0 %968, %v89
    %v970 = vpop.permute.xlu0 %969
    %973 = vset.pattern.permute.xlu0 0
    %974 = vperm.xlu0 %973, %v90
    %v975 = vpop.permute.xlu0 %974
    %978 = vset.pattern.permute.xlu0 0
    %979 = vperm.xlu0 %978, %v91
    %v980 = vpop.permute.xlu0 %979
    %983 = vset.pattern.permute.xlu0 0
    %984 = vperm.xlu0 %983, %v92
    %v985 = vpop.permute.xlu0 %984
    %988 = vset.pattern.permute.xlu0 0
    %989 = vperm.xlu0 %988, %v93
    %v990 = vpop.permute.xlu0 %989
    %993 = vset.pattern.permute.xlu0 0
    %994 = vperm.xlu0 %993, %v94
    %v995 = vpop.permute.xlu0 %994
    %998 = vset.pattern.permute.xlu0 0
    %999 = vperm.xlu0 %998, %v95
    %v1000 = vpop.permute.xlu0 %999
    %1003 = vset.pattern.permute.xlu0 0
    %1004 = vperm.xlu0 %1003, %v96
    %v1005 = vpop.permute.xlu0 %1004
    %1008 = vset.pattern.permute.xlu0 0
    %1009 = vperm.xlu0 %1008, %v97
    %v1010 = vpop.permute.xlu0 %1009
    %1013 = vset.pattern.permute.xlu0 0
    %1014 = vperm.xlu0 %1013, %v98
    %v1015 = vpop.permute.xlu0 %1014
    %1018 = vset.pattern.permute.xlu0 0
    %1019 = vperm.xlu0 %1018, %v99
    %v1020 = vpop.permute.xlu0 %1019
    %1023 = vset.pattern.permute.xlu0 0
    %1024 = vperm.xlu0 %1023, %v100
    %v1025 = vpop.permute.xlu0 %1024
    %1028 = vset.pattern.permute.xlu0 0
    %1029 = vperm.xlu0 %1028, %v101
    %v1030 = vpop.permute.xlu0 %1029
    %1033 = vset.pattern.permute.xlu0 0
    %1034 = vperm.xlu0 %1033, %v102
    %v1035 = vpop.permute.xlu0 %1034
    %1038 = vset.pattern.permute.xlu0 0
    %1039 = vperm.xlu0 %1038, %v103
    %v1040 = vpop.permute.xlu0 %1039
    %1043 = vset.pattern.permute.xlu0 0
    %1044 = vperm.xlu0 %1043, %v104
    %v1045 = vpop.permute.xlu0 %1044
    %1048 = vset.pattern.permute.xlu0 0
    %1049 = vperm.xlu0 %1048, %v105
    %v1050 = vpop.permute.xlu0 %1049
    %1053 = vset.pattern.permute.xlu0 0
    %1054 = vperm.xlu0 %1053, %v106
    %v1055 = vpop.permute.xlu0 %1054
    %1058 = vset.pattern.permute.xlu0 0
    %1059 = vperm.xlu0 %1058, %v107
    %v1060 = vpop.permute.xlu0 %1059
    %1063 = vset.pattern.permute.xlu0 0
    %1064 = vperm.xlu0 %1063, %v108
    %v1065 = vpop.permute.xlu0 %1064
    %1068 = vset.pattern.permute.xlu0 0
    %1069 = vperm.xlu0 %1068, %v109
    %v1070 = vpop.permute.xlu0 %1069
    %1073 = vset.pattern.permute.xlu0 0
    %1074 = vperm.xlu0 %1073, %v110
    %v1075 = vpop.permute.xlu0 %1074
    %1078 = vset.pattern.permute.xlu0 0
    %1079 = vperm.xlu0 %1078, %v111
    %v1080 = vpop.permute.xlu0 %1079
    %1083 = vset.pattern.permute.xlu0 0
    %1084 = vperm.xlu0 %1083, %v112
    %v1085 = vpop.permute.xlu0 %1084
    %1088 = vset.pattern.permute.xlu0 0
    %1089 = vperm.xlu0 %1088, %v113
    %v1090 = vpop.permute.xlu0 %1089
    %1093 = vset.pattern.permute.xlu0 0
    %1094 = vperm.xlu0 %1093, %v114
    %v1095 = vpop.permute.xlu0 %1094
    %1098 = vset.pattern.permute.xlu0 0
    %1099 = vperm.xlu0 %1098, %v115
    %v1100 = vpop.permute.xlu0 %1099
    %1103 = vset.pattern.permute.xlu0 0
    %1104 = vperm.xlu0 %1103, %v116
    %v1105 = vpop.permute.xlu0 %1104
    %1108 = vset.pattern.permute.xlu0 0
    %1109 = vperm.xlu0 %1108, %v117
    %v1110 = vpop.permute.xlu0 %1109
    %1113 = vset.pattern.permute.xlu0 0
    %1114 = vperm.xlu0 %1113, %v118
    %v1115 = vpop.permute.xlu0 %1114
    %1118 = vset.pattern.permute.xlu0 0
    %1119 = vperm.xlu0 %1118, %v119
    %v1120 = vpop.permute.xlu0 %1119
    %1123 = vset.pattern.permute.xlu0 0
    %1124 = vperm.xlu0 %1123, %v120
    %v1125 = vpop.permute.xlu0 %1124
    %1128 = vset.pattern.permute.xlu0 0
    %1129 = vperm.xlu0 %1128, %v121
    %v1130 = vpop.permute.xlu0 %1129
    %1133 = vset.pattern.permute.xlu0 0
    %1134 = vperm.xlu0 %1133, %v122
    %v1135 = vpop.permute.xlu0 %1134
    %1138 = vset.pattern.permute.xlu0 0
    %1139 = vperm.xlu0 %1138, %v123
    %v1140 = vpop.permute.xlu0 %1139
    %1143 = vset.pattern.permute.xlu0 0
    %1144 = vperm.xlu0 %1143, %v124
    %v1145 = vpop.permute.xlu0 %1144
    %1148 = vset.pattern.permute.xlu0 0
    %1149 = vperm.xlu0 %1148, %v125
    %v1150 = vpop.permute.xlu0 %1149
    %v1152 = vmul.f32 %v768, %v835
    %v1153 = vmul.f32 %v769, %v840
    %v1154 = vmul.f32 %v770, %v845
    %v1155 = vmul.f32 %v771, %v850
    %v1156 = vmul.f32 %v772, %v855
    %v1157 = vmul.f32 %v773, %v860
    %v1158 = vmul.f32 %v774, %v865
    %v1159 = vmul.f32 %v775, %v870
    %v1160 = vmul.f32 %v776, %v875
    %v1161 = vmul.f32 %v777, %v880
    %v1162 = vmul.f32 %v778, %v885
    %v1163 = vmul.f32 %v779, %v890
    %v1164 = vmul.f32 %v780, %v895
    %v1165 = vmul.f32 %v781, %v900
    %v1166 = vmul.f32 %v782, %v905
    %v1167 = vmul.f32 %v783, %v910
    %v1168 = vmul.f32 %v784, %v915
    %v1169 = vmul.f32 %v785, %v920
    %v1170 = vmul.f32 %v786, %v925
    %v1171 = vmul.f32 %v787, %v930
    %v1172 = vmul.f32 %v788, %v935
    %v1173 = vmul.f32 %v789, %v940
    %v1174 = vmul.f32 %v790, %v945
    %v1175 = vmul.f32 %v791, %v950
    %v1176 = vmul.f32 %v792, %v955
    %v1177 = vmul.f32 %v793, %v960
    %v1178 = vmul.f32 %v794, %v965
    %v1179 = vmul.f32 %v795, %v970
    %v1180 = vmul.f32 %v796, %v975
    %v1181 = vmul.f32 %v797, %v980
    %v1182 = vmul.f32 %v798, %v985
    %v1183 = vmul.f32 %v799, %v990
    %v1184 = vmul.f32 %v800, %v995
    %v1185 = vmul.f32 %v801, %v1000
    %v1186 = vmul.f32 %v802, %v1005
    %v1187 = vmul.f32 %v803, %v1010
    %v1188 = vmul.f32 %v804, %v1015
    %v1189 = vmul.f32 %v805, %v1020
    %v1190 = vmul.f32 %v806, %v1025
    %v1191 = vmul.f32 %v807, %v1030
    %v1192 = vmul.f32 %v808, %v1035
    %v1193 = vmul.f32 %v809, %v1040
    %v1194 = vmul.f32 %v810, %v1045
    %v1195 = vmul.f32 %v811, %v1050
    %v1196 = vmul.f32 %v812, %v1055
    %v1197 = vmul.f32 %v813, %v1060
    %v1198 = vmul.f32 %v814, %v1065
    %v1199 = vmul.f32 %v815, %v1070
    %v1200 = vmul.f32 %v816, %v1075
    %v1201 = vmul.f32 %v817, %v1080
    %v1202 = vmul.f32 %v818, %v1085
    %v1203 = vmul.f32 %v819, %v1090
    %v1204 = vmul.f32 %v820, %v1095
    %v1205 = vmul.f32 %v821, %v1100
    %v1206 = vmul.f32 %v822, %v1105
    %v1207 = vmul.f32 %v823, %v1110
    %v1208 = vmul.f32 %v824, %v1115
    %v1209 = vmul.f32 %v825, %v1120
    %v1210 = vmul.f32 %v826, %v1125
    %v1211 = vmul.f32 %v827, %v1130
    %v1212 = vmul.f32 %v828, %v1135
    %v1213 = vmul.f32 %v829, %v1140
    %v1214 = vmul.f32 %v830, %v1145
    %v1215 = vmul.f32 %v831, %v1150
    %1216 = vst [vmem:[#allocation2] sm:$0xf] 0
    %1217 = vst [vmem:[#allocation2 + $0x4] sm:$0xf] 0
    %1218 = vst [vmem:[#allocation2 + $0x108] sm:$0xf] 0
    %1219 = vst [vmem:[#allocation2 + $0x10c] sm:$0xf] 0
    %v1220 = vpack.c.bf16 %v1152, %v1152
    %v1221 = vpack.c.bf16 %v1153, %v1153
    %v1222 = vpack.c.bf16 %v1154, %v1154
    %v1223 = vpack.c.bf16 %v1155, %v1155
    %v1224 = vpack.c.bf16 %v1156, %v1156
    %v1225 = vpack.c.bf16 %v1157, %v1157
    %v1226 = vpack.c.bf16 %v1158, %v1158
    %v1227 = vpack.c.bf16 %v1159, %v1159
    %v1228 = vpack.c.bf16 %v1160, %v1160
    %v1229 = vpack.c.bf16 %v1161, %v1161
    %v1230 = vpack.c.bf16 %v1162, %v1162
    %v1231 = vpack.c.bf16 %v1163, %v1163
    %v1232 = vpack.c.bf16 %v1164, %v1164
    %v1233 = vpack.c.bf16 %v1165, %v1165
    %v1234 = vpack.c.bf16 %v1166, %v1166
    %v1235 = vpack.c.bf16 %v1167, %v1167
    %v1236 = vpack.c.bf16 %v1168, %v1168
    %v1237 = vpack.c.bf16 %v1169, %v1169
    %v1238 = vpack.c.bf16 %v1170, %v1170
    %v1239 = vpack.c.bf16 %v1171, %v1171
    %v1240 = vpack.c.bf16 %v1172, %v1172
    %v1241 = vpack.c.bf16 %v1173, %v1173
    %v1242 = vpack.c.bf16 %v1174, %v1174
    %v1243 = vpack.c.bf16 %v1175, %v1175
    %v1244 = vpack.c.bf16 %v1176, %v1176
    %v1245 = vpack.c.bf16 %v1177, %v1177
    %v1246 = vpack.c.bf16 %v1178, %v1178
    %v1247 = vpack.c.bf16 %v1179, %v1179
    %v1248 = vpack.c.bf16 %v1180, %v1180
    %v1249 = vpack.c.bf16 %v1181, %v1181
    %v1250 = vpack.c.bf16 %v1182, %v1182
    %v1251 = vpack.c.bf16 %v1183, %v1183
    %v1252 = vpack.c.bf16 %v1184, %v1184
    %v1253 = vpack.c.bf16 %v1185, %v1185
    %v1254 = vpack.c.bf16 %v1186, %v1186
    %v1255 = vpack.c.bf16 %v1187, %v1187
    %v1256 = vpack.c.bf16 %v1188, %v1188
    %v1257 = vpack.c.bf16 %v1189, %v1189
    %v1258 = vpack.c.bf16 %v1190, %v1190
    %v1259 = vpack.c.bf16 %v1191, %v1191
    %v1260 = vpack.c.bf16 %v1192, %v1192
    %v1261 = vpack.c.bf16 %v1193, %v1193
    %v1262 = vpack.c.bf16 %v1194, %v1194
    %v1263 = vpack.c.bf16 %v1195, %v1195
    %v1264 = vpack.c.bf16 %v1196, %v1196
    %v1265 = vpack.c.bf16 %v1197, %v1197
    %v1266 = vpack.c.bf16 %v1198, %v1198
    %v1267 = vpack.c.bf16 %v1199, %v1199
    %v1268 = vpack.c.bf16 %v1200, %v1200
    %v1269 = vpack.c.bf16 %v1201, %v1201
    %v1270 = vpack.c.bf16 %v1202, %v1202
    %v1271 = vpack.c.bf16 %v1203, %v1203
    %v1272 = vpack.c.bf16 %v1204, %v1204
    %v1273 = vpack.c.bf16 %v1205, %v1205
    %v1274 = vpack.c.bf16 %v1206, %v1206
    %v1275 = vpack.c.bf16 %v1207, %v1207
    %v1276 = vpack.c.bf16 %v1208, %v1208
    %v1277 = vpack.c.bf16 %v1209, %v1209
    %v1278 = vpack.c.bf16 %v1210, %v1210
    %v1279 = vpack.c.bf16 %v1211, %v1211
    %v1280 = vpack.c.bf16 %v1212, %v1212
    %v1281 = vpack.c.bf16 %v1213, %v1213
    %v1282 = vpack.c.bf16 %v1214, %v1214
    %v1283 = vpack.c.bf16 %v1215, %v1215
    %1284 = vst [vmem:[#allocation2 + $0x8] sm:$0xf] %v1220
    %1285 = vst [vmem:[#allocation2 + $0xc] sm:$0xf] %v1221
    %1286 = vst [vmem:[#allocation2 + $0x10] sm:$0xf] %v1222
    %1287 = vst [vmem:[#allocation2 + $0x14] sm:$0xf] %v1223
    %1288 = vst [vmem:[#allocation2 + $0x18] sm:$0xf] %v1224
    %1289 = vst [vmem:[#allocation2 + $0x1c] sm:$0xf] %v1225
    %1290 = vst [vmem:[#allocation2 + $0x20] sm:$0xf] %v1226
    %1291 = vst [vmem:[#allocation2 + $0x24] sm:$0xf] %v1227
    %1292 = vst [vmem:[#allocation2 + $0x28] sm:$0xf] %v1228
    %1293 = vst [vmem:[#allocation2 + $0x2c] sm:$0xf] %v1229
    %1294 = vst [vmem:[#allocation2 + $0x30] sm:$0xf] %v1230
    %1295 = vst [vmem:[#allocation2 + $0x34] sm:$0xf] %v1231
    %1296 = vst [vmem:[#allocation2 + $0x38] sm:$0xf] %v1232
    %1297 = vst [vmem:[#allocation2 + $0x3c] sm:$0xf] %v1233
    %1298 = vst [vmem:[#allocation2 + $0x40] sm:$0xf] %v1234
    %1299 = vst [vmem:[#allocation2 + $0x44] sm:$0xf] %v1235
    %1300 = vst [vmem:[#allocation2 + $0x48] sm:$0xf] %v1236
    %1301 = vst [vmem:[#allocation2 + $0x4c] sm:$0xf] %v1237
    %1302 = vst [vmem:[#allocation2 + $0x50] sm:$0xf] %v1238
    %1303 = vst [vmem:[#allocation2 + $0x54] sm:$0xf] %v1239
    %1304 = vst [vmem:[#allocation2 + $0x58] sm:$0xf] %v1240
    %1305 = vst [vmem:[#allocation2 + $0x5c] sm:$0xf] %v1241
    %1306 = vst [vmem:[#allocation2 + $0x60] sm:$0xf] %v1242
    %1307 = vst [vmem:[#allocation2 + $0x64] sm:$0xf] %v1243
    %1308 = vst [vmem:[#allocation2 + $0x68] sm:$0xf] %v1244
    %1309 = vst [vmem:[#allocation2 + $0x6c] sm:$0xf] %v1245
    %1310 = vst [vmem:[#allocation2 + $0x70] sm:$0xf] %v1246
    %1311 = vst [vmem:[#allocation2 + $0x74] sm:$0xf] %v1247
    %1312 = vst [vmem:[#allocation2 + $0x78] sm:$0xf] %v1248
    %1313 = vst [vmem:[#allocation2 + $0x7c] sm:$0xf] %v1249
    %1314 = vst [vmem:[#allocation2 + $0x80] sm:$0xf] %v1250
    %1315 = vst [vmem:[#allocation2 + $0x84] sm:$0xf] %v1251
    %1316 = vst [vmem:[#allocation2 + $0x88] sm:$0xf] %v1252
    %1317 = vst [vmem:[#allocation2 + $0x8c] sm:$0xf] %v1253
    %1318 = vst [vmem:[#allocation2 + $0x90] sm:$0xf] %v1254
    %1319 = vst [vmem:[#allocation2 + $0x94] sm:$0xf] %v1255
    %1320 = vst [vmem:[#allocation2 + $0x98] sm:$0xf] %v1256
    %1321 = vst [vmem:[#allocation2 + $0x9c] sm:$0xf] %v1257
    %1322 = vst [vmem:[#allocation2 + $0xa0] sm:$0xf] %v1258
    %1323 = vst [vmem:[#allocation2 + $0xa4] sm:$0xf] %v1259
    %1324 = vst [vmem:[#allocation2 + $0xa8] sm:$0xf] %v1260
    %1325 = vst [vmem:[#allocation2 + $0xac] sm:$0xf] %v1261
    %1326 = vst [vmem:[#allocation2 + $0xb0] sm:$0xf] %v1262
    %1327 = vst [vmem:[#allocation2 + $0xb4] sm:$0xf] %v1263
    %1328 = vst [vmem:[#allocation2 + $0xb8] sm:$0xf] %v1264
    %1329 = vst [vmem:[#allocation2 + $0xbc] sm:$0xf] %v1265
    %1330 = vst [vmem:[#allocation2 + $0xc0] sm:$0xf] %v1266
    %1331 = vst [vmem:[#allocation2 + $0xc4] sm:$0xf] %v1267
    %1332 = vst [vmem:[#allocation2 + $0xc8] sm:$0xf] %v1268
    %1333 = vst [vmem:[#allocation2 + $0xcc] sm:$0xf] %v1269
    %1334 = vst [vmem:[#allocation2 + $0xd0] sm:$0xf] %v1270
    %1335 = vst [vmem:[#allocation2 + $0xd4] sm:$0xf] %v1271
    %1336 = vst [vmem:[#allocation2 + $0xd8] sm:$0xf] %v1272
    %1337 = vst [vmem:[#allocation2 + $0xdc] sm:$0xf] %v1273
    %1338 = vst [vmem:[#allocation2 + $0xe0] sm:$0xf] %v1274
    %1339 = vst [vmem:[#allocation2 + $0xe4] sm:$0xf] %v1275
    %1340 = vst [vmem:[#allocation2 + $0xe8] sm:$0xf] %v1276
    %1341 = vst [vmem:[#allocation2 + $0xec] sm:$0xf] %v1277
    %1342 = vst [vmem:[#allocation2 + $0xf0] sm:$0xf] %v1278
    %1343 = vst [vmem:[#allocation2 + $0xf4] sm:$0xf] %v1279
    %1344 = vst [vmem:[#allocation2 + $0xf8] sm:$0xf] %v1280
    %1345 = vst [vmem:[#allocation2 + $0xfc] sm:$0xf] %v1281
    %1346 = vst [vmem:[#allocation2 + $0x100] sm:$0xf] %v1282
    %1347 = vst [vmem:[#allocation2 + $0x104] sm:$0xf] %v1283
    %v1348 = vld [vmem:[#allocation2 + $0x4] sm:$0x8]
    %v1349 = vld [vmem:[#allocation2 + $0x8] sm:$0xf]
    %v1350 = vld [vmem:[#allocation2 + $0xc] sm:$0xf]
    %v1351 = vld [vmem:[#allocation2 + $0x10] sm:$0xf]
    %v1352 = vld [vmem:[#allocation2 + $0x14] sm:$0xf]
    %v1353 = vld [vmem:[#allocation2 + $0x18] sm:$0xf]
    %v1354 = vld [vmem:[#allocation2 + $0x1c] sm:$0xf]
    %v1355 = vld [vmem:[#allocation2 + $0x20] sm:$0xf]
    %v1356 = vld [vmem:[#allocation2 + $0x24] sm:$0xf]
    %v1357 = vld [vmem:[#allocation2 + $0x28] sm:$0xf]
    %v1358 = vld [vmem:[#allocation2 + $0x2c] sm:$0xf]
    %v1359 = vld [vmem:[#allocation2 + $0x30] sm:$0xf]
    %v1360 = vld [vmem:[#allocation2 + $0x34] sm:$0xf]
    %v1361 = vld [vmem:[#allocation2 + $0x38] sm:$0xf]
    %v1362 = vld [vmem:[#allocation2 + $0x3c] sm:$0xf]
    %v1363 = vld [vmem:[#allocation2 + $0x40] sm:$0xf]
    %v1364 = vld [vmem:[#allocation2 + $0x44] sm:$0xf]
    %v1365 = vld [vmem:[#allocation2 + $0x48] sm:$0xf]
    %v1366 = vld [vmem:[#allocation2 + $0x4c] sm:$0xf]
    %v1367 = vld [vmem:[#allocation2 + $0x50] sm:$0xf]
    %v1368 = vld [vmem:[#allocation2 + $0x54] sm:$0xf]
    %v1369 = vld [vmem:[#allocation2 + $0x58] sm:$0xf]
    %v1370 = vld [vmem:[#allocation2 + $0x5c] sm:$0xf]
    %v1371 = vld [vmem:[#allocation2 + $0x60] sm:$0xf]
    %v1372 = vld [vmem:[#allocation2 + $0x64] sm:$0xf]
    %v1373 = vld [vmem:[#allocation2 + $0x68] sm:$0xf]
    %v1374 = vld [vmem:[#allocation2 + $0x6c] sm:$0xf]
    %v1375 = vld [vmem:[#allocation2 + $0x70] sm:$0xf]
    %v1376 = vld [vmem:[#allocation2 + $0x74] sm:$0xf]
    %v1377 = vld [vmem:[#allocation2 + $0x78] sm:$0xf]
    %v1378 = vld [vmem:[#allocation2 + $0x7c] sm:$0xf]
    %v1379 = vld [vmem:[#allocation2 + $0x80] sm:$0xf]
    %v1380 = vld [vmem:[#allocation2 + $0x84] sm:$0xf]
    %v1381 = vld [vmem:[#allocation2 + $0x88] sm:$0xf]
    %v1382 = vld [vmem:[#allocation2 + $0x8c] sm:$0xf]
    %v1383 = vld [vmem:[#allocation2 + $0x90] sm:$0xf]
    %v1384 = vld [vmem:[#allocation2 + $0x94] sm:$0xf]
    %v1385 = vld [vmem:[#allocation2 + $0x98] sm:$0xf]
    %v1386 = vld [vmem:[#allocation2 + $0x9c] sm:$0xf]
    %v1387 = vld [vmem:[#allocation2 + $0xa0] sm:$0xf]
    %v1388 = vld [vmem:[#allocation2 + $0xa4] sm:$0xf]
    %v1389 = vld [vmem:[#allocation2 + $0xa8] sm:$0xf]
    %v1390 = vld [vmem:[#allocation2 + $0xac] sm:$0xf]
    %v1391 = vld [vmem:[#allocation2 + $0xb0] sm:$0xf]
    %v1392 = vld [vmem:[#allocation2 + $0xb4] sm:$0xf]
    %v1393 = vld [vmem:[#allocation2 + $0xb8] sm:$0xf]
    %v1394 = vld [vmem:[#allocation2 + $0xbc] sm:$0xf]
    %v1395 = vld [vmem:[#allocation2 + $0xc0] sm:$0xf]
    %v1396 = vld [vmem:[#allocation2 + $0xc4] sm:$0xf]
    %v1397 = vld [vmem:[#allocation2 + $0xc8] sm:$0xf]
    %v1398 = vld [vmem:[#allocation2 + $0xcc] sm:$0xf]
    %v1399 = vld [vmem:[#allocation2 + $0xd0] sm:$0xf]
    %v1400 = vld [vmem:[#allocation2 + $0xd4] sm:$0xf]
    %v1401 = vld [vmem:[#allocation2 + $0xd8] sm:$0xf]
    %v1402 = vld [vmem:[#allocation2 + $0xdc] sm:$0xf]
    %v1403 = vld [vmem:[#allocation2 + $0xe0] sm:$0xf]
    %v1404 = vld [vmem:[#allocation2 + $0xe4] sm:$0xf]
    %v1405 = vld [vmem:[#allocation2 + $0xe8] sm:$0xf]
    %v1406 = vld [vmem:[#allocation2 + $0xec] sm:$0xf]
    %v1407 = vld [vmem:[#allocation2 + $0xf0] sm:$0xf]
    %v1408 = vld [vmem:[#allocation2 + $0xf4] sm:$0xf]
    %v1409 = vld [vmem:[#allocation2 + $0xf8] sm:$0xf]
    %v1410 = vld [vmem:[#allocation2 + $0xfc] sm:$0xf]
    %v1411 = vld [vmem:[#allocation2 + $0x100] sm:$0xf]
    %v1412 = vld [vmem:[#allocation2 + $0x104] sm:$0x7]
    %vm1478 = vcmask 1040384
    %vm1479 = vcmask 1044484
    %vm1480 = vmor %vm1478, %vm1479
    %v1481 = vrot.slane %v1348, 7
    %v1482 = vrot.slane %v1481, 4
    %v1483 = vrot.slane %v1349, 7
    %v1484 = vsel %vm1480, %v1482, %v1483
    %v1485 = vrot.slane %v1483, 4
    %v1486 = vrot.slane %v1350, 7
    %v1487 = vsel %vm1480, %v1485, %v1486
    %v1488 = vrot.slane %v1486, 4
    %v1489 = vrot.slane %v1351, 7
    %v1490 = vsel %vm1480, %v1488, %v1489
    %v1491 = vrot.slane %v1489, 4
    %v1492 = vrot.slane %v1352, 7
    %v1493 = vsel %vm1480, %v1491, %v1492
    %v1494 = vrot.slane %v1492, 4
    %v1495 = vrot.slane %v1353, 7
    %v1496 = vsel %vm1480, %v1494, %v1495
    %v1497 = vrot.slane %v1495, 4
    %v1498 = vrot.slane %v1354, 7
    %v1499 = vsel %vm1480, %v1497, %v1498
    %v1500 = vrot.slane %v1498, 4
    %v1501 = vrot.slane %v1355, 7
    %v1502 = vsel %vm1480, %v1500, %v1501
    %v1503 = vrot.slane %v1501, 4
    %v1504 = vrot.slane %v1356, 7
    %v1505 = vsel %vm1480, %v1503, %v1504
    %v1506 = vrot.slane %v1504, 4
    %v1507 = vrot.slane %v1357, 7
    %v1508 = vsel %vm1480, %v1506, %v1507
    %v1509 = vrot.slane %v1507, 4
    %v1510 = vrot.slane %v1358, 7
    %v1511 = vsel %vm1480, %v1509, %v1510
    %v1512 = vrot.slane %v1510, 4
    %v1513 = vrot.slane %v1359, 7
    %v1514 = vsel %vm1480, %v1512, %v1513
    %v1515 = vrot.slane %v1513, 4
    %v1516 = vrot.slane %v1360, 7
    %v1517 = vsel %vm1480, %v1515, %v1516
    %v1518 = vrot.slane %v1516, 4
    %v1519 = vrot.slane %v1361, 7
    %v1520 = vsel %vm1480, %v1518, %v1519
    %v1521 = vrot.slane %v1519, 4
    %v1522 = vrot.slane %v1362, 7
    %v1523 = vsel %vm1480, %v1521, %v1522
    %v1524 = vrot.slane %v1522, 4
    %v1525 = vrot.slane %v1363, 7
    %v1526 = vsel %vm1480, %v1524, %v1525
    %v1527 = vrot.slane %v1525, 4
    %v1528 = vrot.slane %v1364, 7
    %v1529 = vsel %vm1480, %v1527, %v1528
    %v1530 = vrot.slane %v1528, 4
    %v1531 = vrot.slane %v1365, 7
    %v1532 = vsel %vm1480, %v1530, %v1531
    %v1533 = vrot.slane %v1531, 4
    %v1534 = vrot.slane %v1366, 7
    %v1535 = vsel %vm1480, %v1533, %v1534
    %v1536 = vrot.slane %v1534, 4
    %v1537 = vrot.slane %v1367, 7
    %v1538 = vsel %vm1480, %v1536, %v1537
    %v1539 = vrot.slane %v1537, 4
    %v1540 = vrot.slane %v1368, 7
    %v1541 = vsel %vm1480, %v1539, %v1540
    %v1542 = vrot.slane %v1540, 4
    %v1543 = vrot.slane %v1369, 7
    %v1544 = vsel %vm1480, %v1542, %v1543
    %v1545 = vrot.slane %v1543, 4
    %v1546 = vrot.slane %v1370, 7
    %v1547 = vsel %vm1480, %v1545, %v1546
    %v1548 = vrot.slane %v1546, 4
    %v1549 = vrot.slane %v1371, 7
    %v1550 = vsel %vm1480, %v1548, %v1549
    %v1551 = vrot.slane %v1549, 4
    %v1552 = vrot.slane %v1372, 7
    %v1553 = vsel %vm1480, %v1551, %v1552
    %v1554 = vrot.slane %v1552, 4
    %v1555 = vrot.slane %v1373, 7
    %v1556 = vsel %vm1480, %v1554, %v1555
    %v1557 = vrot.slane %v1555, 4
    %v1558 = vrot.slane %v1374, 7
    %v1559 = vsel %vm1480, %v1557, %v1558
    %v1560 = vrot.slane %v1558, 4
    %v1561 = vrot.slane %v1375, 7
    %v1562 = vsel %vm1480, %v1560, %v1561
    %v1563 = vrot.slane %v1561, 4
    %v1564 = vrot.slane %v1376, 7
    %v1565 = vsel %vm1480, %v1563, %v1564
    %v1566 = vrot.slane %v1564, 4
    %v1567 = vrot.slane %v1377, 7
    %v1568 = vsel %vm1480, %v1566, %v1567
    %v1569 = vrot.slane %v1567, 4
    %v1570 = vrot.slane %v1378, 7
    %v1571 = vsel %vm1480, %v1569, %v1570
    %v1572 = vrot.slane %v1570, 4
    %v1573 = vrot.slane %v1379, 7
    %v1574 = vsel %vm1480, %v1572, %v1573
    %v1575 = vrot.slane %v1573, 4
    %v1576 = vrot.slane %v1380, 7
    %v1577 = vsel %vm1480, %v1575, %v1576
    %v1578 = vrot.slane %v1576, 4
    %v1579 = vrot.slane %v1381, 7
    %v1580 = vsel %vm1480, %v1578, %v1579
    %v1581 = vrot.slane %v1579, 4
    %v1582 = vrot.slane %v1382, 7
    %v1583 = vsel %vm1480, %v1581, %v1582
    %v1584 = vrot.slane %v1582, 4
    %v1585 = vrot.slane %v1383, 7
    %v1586 = vsel %vm1480, %v1584, %v1585
    %v1587 = vrot.slane %v1585, 4
    %v1588 = vrot.slane %v1384, 7
    %v1589 = vsel %vm1480, %v1587, %v1588
    %v1590 = vrot.slane %v1588, 4
    %v1591 = vrot.slane %v1385, 7
    %v1592 = vsel %vm1480, %v1590, %v1591
    %v1593 = vrot.slane %v1591, 4
    %v1594 = vrot.slane %v1386, 7
    %v1595 = vsel %vm1480, %v1593, %v1594
    %v1596 = vrot.slane %v1594, 4
    %v1597 = vrot.slane %v1387, 7
    %v1598 = vsel %vm1480, %v1596, %v1597
    %v1599 = vrot.slane %v1597, 4
    %v1600 = vrot.slane %v1388, 7
    %v1601 = vsel %vm1480, %v1599, %v1600
    %v1602 = vrot.slane %v1600, 4
    %v1603 = vrot.slane %v1389, 7
    %v1604 = vsel %vm1480, %v1602, %v1603
    %v1605 = vrot.slane %v1603, 4
    %v1606 = vrot.slane %v1390, 7
    %v1607 = vsel %vm1480, %v1605, %v1606
    %v1608 = vrot.slane %v1606, 4
    %v1609 = vrot.slane %v1391, 7
    %v1610 = vsel %vm1480, %v1608, %v1609
    %v1611 = vrot.slane %v1609, 4
    %v1612 = vrot.slane %v1392, 7
    %v1613 = vsel %vm1480, %v1611, %v1612
    %v1614 = vrot.slane %v1612, 4
    %v1615 = vrot.slane %v1393, 7
    %v1616 = vsel %vm1480, %v1614, %v1615
    %v1617 = vrot.slane %v1615, 4
    %v1618 = vrot.slane %v1394, 7
    %v1619 = vsel %vm1480, %v1617, %v1618
    %v1620 = vrot.slane %v1618, 4
    %v1621 = vrot.slane %v1395, 7
    %v1622 = vsel %vm1480, %v1620, %v1621
    %v1623 = vrot.slane %v1621, 4
    %v1624 = vrot.slane %v1396, 7
    %v1625 = vsel %vm1480, %v1623, %v1624
    %v1626 = vrot.slane %v1624, 4
    %v1627 = vrot.slane %v1397, 7
    %v1628 = vsel %vm1480, %v1626, %v1627
    %v1629 = vrot.slane %v1627, 4
    %v1630 = vrot.slane %v1398, 7
    %v1631 = vsel %vm1480, %v1629, %v1630
    %v1632 = vrot.slane %v1630, 4
    %v1633 = vrot.slane %v1399, 7
    %v1634 = vsel %vm1480, %v1632, %v1633
    %v1635 = vrot.slane %v1633, 4
    %v1636 = vrot.slane %v1400, 7
    %v1637 = vsel %vm1480, %v1635, %v1636
    %v1638 = vrot.slane %v1636, 4
    %v1639 = vrot.slane %v1401, 7
    %v1640 = vsel %vm1480, %v1638, %v1639
    %v1641 = vrot.slane %v1639, 4
    %v1642 = vrot.slane %v1402, 7
    %v1643 = vsel %vm1480, %v1641, %v1642
    %v1644 = vrot.slane %v1642, 4
    %v1645 = vrot.slane %v1403, 7
    %v1646 = vsel %vm1480, %v1644, %v1645
    %v1647 = vrot.slane %v1645, 4
    %v1648 = vrot.slane %v1404, 7
    %v1649 = vsel %vm1480, %v1647, %v1648
    %v1650 = vrot.slane %v1648, 4
    %v1651 = vrot.slane %v1405, 7
    %v1652 = vsel %vm1480, %v1650, %v1651
    %v1653 = vrot.slane %v1651, 4
    %v1654 = vrot.slane %v1406, 7
    %v1655 = vsel %vm1480, %v1653, %v1654
    %v1656 = vrot.slane %v1654, 4
    %v1657 = vrot.slane %v1407, 7
    %v1658 = vsel %vm1480, %v1656, %v1657
    %v1659 = vrot.slane %v1657, 4
    %v1660 = vrot.slane %v1408, 7
    %v1661 = vsel %vm1480, %v1659, %v1660
    %v1662 = vrot.slane %v1660, 4
    %v1663 = vrot.slane %v1409, 7
    %v1664 = vsel %vm1480, %v1662, %v1663
    %v1665 = vrot.slane %v1663, 4
    %v1666 = vrot.slane %v1410, 7
    %v1667 = vsel %vm1480, %v1665, %v1666
    %v1668 = vrot.slane %v1666, 4
    %v1669 = vrot.slane %v1411, 7
    %v1670 = vsel %vm1480, %v1668, %v1669
    %v1671 = vrot.slane %v1669, 4
    %v1672 = vrot.slane %v1412, 7
    %v1673 = vsel %vm1480, %v1671, %v1672
    %1738 = vst [vmem:[#allocation4] sm:$0xf] %v1484
    %1739 = vst [vmem:[#allocation4 + $0x14] sm:$0xf] %v1487
    %1740 = vst [vmem:[#allocation4 + $0x28] sm:$0xf] %v1490
    %1741 = vst [vmem:[#allocation4 + $0x3c] sm:$0xf] %v1493
    %1742 = vst [vmem:[#allocation4 + $0x50] sm:$0xf] %v1496
    %1743 = vst [vmem:[#allocation4 + $0x64] sm:$0xf] %v1499
    %1744 = vst [vmem:[#allocation4 + $0x78] sm:$0xf] %v1502
    %1745 = vst [vmem:[#allocation4 + $0x8c] sm:$0xf] %v1505
    %1746 = vst [vmem:[#allocation4 + $0xa0] sm:$0xf] %v1508
    %1747 = vst [vmem:[#allocation4 + $0xb4] sm:$0xf] %v1511
    %1748 = vst [vmem:[#allocation4 + $0xc8] sm:$0xf] %v1514
    %1749 = vst [vmem:[#allocation4 + $0xdc] sm:$0xf] %v1517
    %1750 = vst [vmem:[#allocation4 + $0xf0] sm:$0xf] %v1520
    %1751 = vst [vmem:[#allocation4 + $0x104] sm:$0xf] %v1523
    %1752 = vst [vmem:[#allocation4 + $0x118] sm:$0xf] %v1526
    %1753 = vst [vmem:[#allocation4 + $0x12c] sm:$0xf] %v1529
    %1754 = vst [vmem:[#allocation4 + $0x140] sm:$0xf] %v1532
    %1755 = vst [vmem:[#allocation4 + $0x154] sm:$0xf] %v1535
    %1756 = vst [vmem:[#allocation4 + $0x168] sm:$0xf] %v1538
    %1757 = vst [vmem:[#allocation4 + $0x17c] sm:$0xf] %v1541
    %1758 = vst [vmem:[#allocation4 + $0x190] sm:$0xf] %v1544
    %1759 = vst [vmem:[#allocation4 + $0x1a4] sm:$0xf] %v1547
    %1760 = vst [vmem:[#allocation4 + $0x1b8] sm:$0xf] %v1550
    %1761 = vst [vmem:[#allocation4 + $0x1cc] sm:$0xf] %v1553
    %1762 = vst [vmem:[#allocation4 + $0x1e0] sm:$0xf] %v1556
    %1763 = vst [vmem:[#allocation4 + $0x1f4] sm:$0xf] %v1559
    %1764 = vst [vmem:[#allocation4 + $0x208] sm:$0xf] %v1562
    %1765 = vst [vmem:[#allocation4 + $0x21c] sm:$0xf] %v1565
    %1766 = vst [vmem:[#allocation4 + $0x230] sm:$0xf] %v1568
    %1767 = vst [vmem:[#allocation4 + $0x244] sm:$0xf] %v1571
    %1768 = vst [vmem:[#allocation4 + $0x258] sm:$0xf] %v1574
    %1769 = vst [vmem:[#allocation4 + $0x26c] sm:$0xf] %v1577
    %1770 = vst [vmem:[#allocation4 + $0x280] sm:$0xf] %v1580
    %1771 = vst [vmem:[#allocation4 + $0x294] sm:$0xf] %v1583
    %1772 = vst [vmem:[#allocation4 + $0x2a8] sm:$0xf] %v1586
    %1773 = vst [vmem:[#allocation4 + $0x2bc] sm:$0xf] %v1589
    %1774 = vst [vmem:[#allocation4 + $0x2d0] sm:$0xf] %v1592
    %1775 = vst [vmem:[#allocation4 + $0x2e4] sm:$0xf] %v1595
    %1776 = vst [vmem:[#allocation4 + $0x2f8] sm:$0xf] %v1598
    %1777 = vst [vmem:[#allocation4 + $0x30c] sm:$0xf] %v1601
    %1778 = vst [vmem:[#allocation4 + $0x320] sm:$0xf] %v1604
    %1779 = vst [vmem:[#allocation4 + $0x334] sm:$0xf] %v1607
    %1780 = vst [vmem:[#allocation4 + $0x348] sm:$0xf] %v1610
    %1781 = vst [vmem:[#allocation4 + $0x35c] sm:$0xf] %v1613
    %1782 = vst [vmem:[#allocation4 + $0x370] sm:$0xf] %v1616
    %1783 = vst [vmem:[#allocation4 + $0x384] sm:$0xf] %v1619
    %1784 = vst [vmem:[#allocation4 + $0x398] sm:$0xf] %v1622
    %1785 = vst [vmem:[#allocation4 + $0x3ac] sm:$0xf] %v1625
    %1786 = vst [vmem:[#allocation4 + $0x3c0] sm:$0xf] %v1628
    %1787 = vst [vmem:[#allocation4 + $0x3d4] sm:$0xf] %v1631
    %1788 = vst [vmem:[#allocation4 + $0x3e8] sm:$0xf] %v1634
    %1789 = vst [vmem:[#allocation4 + $0x3fc] sm:$0xf] %v1637
    %1790 = vst [vmem:[#allocation4 + $0x410] sm:$0xf] %v1640
    %1791 = vst [vmem:[#allocation4 + $0x424] sm:$0xf] %v1643
    %1792 = vst [vmem:[#allocation4 + $0x438] sm:$0xf] %v1646
    %1793 = vst [vmem:[#allocation4 + $0x44c] sm:$0xf] %v1649
    %1794 = vst [vmem:[#allocation4 + $0x460] sm:$0xf] %v1652
    %1795 = vst [vmem:[#allocation4 + $0x474] sm:$0xf] %v1655
    %1796 = vst [vmem:[#allocation4 + $0x488] sm:$0xf] %v1658
    %1797 = vst [vmem:[#allocation4 + $0x49c] sm:$0xf] %v1661
    %1798 = vst [vmem:[#allocation4 + $0x4b0] sm:$0xf] %v1664
    %1799 = vst [vmem:[#allocation4 + $0x4c4] sm:$0xf] %v1667
    %1800 = vst [vmem:[#allocation4 + $0x4d8] sm:$0xf] %v1670
    %1801 = vst [vmem:[#allocation4 + $0x4ec] sm:$0xf] %v1673
    %v1802 = vld [vmem:[#allocation2 + $0x4] sm:$0x8]
    %v1803 = vld [vmem:[#allocation2 + $0x8] sm:$0xf]
    %v1804 = vld [vmem:[#allocation2 + $0xc] sm:$0xf]
    %v1805 = vld [vmem:[#allocation2 + $0x10] sm:$0xf]
    %v1806 = vld [vmem:[#allocation2 + $0x14] sm:$0xf]
    %v1807 = vld [vmem:[#allocation2 + $0x18] sm:$0xf]
    %v1808 = vld [vmem:[#allocation2 + $0x1c] sm:$0xf]
    %v1809 = vld [vmem:[#allocation2 + $0x20] sm:$0xf]
    %v1810 = vld [vmem:[#allocation2 + $0x24] sm:$0xf]
    %v1811 = vld [vmem:[#allocation2 + $0x28] sm:$0xf]
    %v1812 = vld [vmem:[#allocation2 + $0x2c] sm:$0xf]
    %v1813 = vld [vmem:[#allocation2 + $0x30] sm:$0xf]
    %v1814 = vld [vmem:[#allocation2 + $0x34] sm:$0xf]
    %v1815 = vld [vmem:[#allocation2 + $0x38] sm:$0xf]
    %v1816 = vld [vmem:[#allocation2 + $0x3c] sm:$0xf]
    %v1817 = vld [vmem:[#allocation2 + $0x40] sm:$0xf]
    %v1818 = vld [vmem:[#allocation2 + $0x44] sm:$0xf]
    %v1819 = vld [vmem:[#allocation2 + $0x48] sm:$0xf]
    %v1820 = vld [vmem:[#allocation2 + $0x4c] sm:$0xf]
    %v1821 = vld [vmem:[#allocation2 + $0x50] sm:$0xf]
    %v1822 = vld [vmem:[#allocation2 + $0x54] sm:$0xf]
    %v1823 = vld [vmem:[#allocation2 + $0x58] sm:$0xf]
    %v1824 = vld [vmem:[#allocation2 + $0x5c] sm:$0xf]
    %v1825 = vld [vmem:[#allocation2 + $0x60] sm:$0xf]
    %v1826 = vld [vmem:[#allocation2 + $0x64] sm:$0xf]
    %v1827 = vld [vmem:[#allocation2 + $0x68] sm:$0xf]
    %v1828 = vld [vmem:[#allocation2 + $0x6c] sm:$0xf]
    %v1829 = vld [vmem:[#allocation2 + $0x70] sm:$0xf]
    %v1830 = vld [vmem:[#allocation2 + $0x74] sm:$0xf]
    %v1831 = vld [vmem:[#allocation2 + $0x78] sm:$0xf]
    %v1832 = vld [vmem:[#allocation2 + $0x7c] sm:$0xf]
    %v1833 = vld [vmem:[#allocation2 + $0x80] sm:$0xf]
    %v1834 = vld [vmem:[#allocation2 + $0x84] sm:$0xf]
    %v1835 = vld [vmem:[#allocation2 + $0x88] sm:$0xf]
    %v1836 = vld [vmem:[#allocation2 + $0x8c] sm:$0xf]
    %v1837 = vld [vmem:[#allocation2 + $0x90] sm:$0xf]
    %v1838 = vld [vmem:[#allocation2 + $0x94] sm:$0xf]
    %v1839 = vld [vmem:[#allocation2 + $0x98] sm:$0xf]
    %v1840 = vld [vmem:[#allocation2 + $0x9c] sm:$0xf]
    %v1841 = vld [vmem:[#allocation2 + $0xa0] sm:$0xf]
    %v1842 = vld [vmem:[#allocation2 + $0xa4] sm:$0xf]
    %v1843 = vld [vmem:[#allocation2 + $0xa8] sm:$0xf]
    %v1844 = vld [vmem:[#allocation2 + $0xac] sm:$0xf]
    %v1845 = vld [vmem:[#allocation2 + $0xb0] sm:$0xf]
    %v1846 = vld [vmem:[#allocation2 + $0xb4] sm:$0xf]
    %v1847 = vld [vmem:[#allocation2 + $0xb8] sm:$0xf]
    %v1848 = vld [vmem:[#allocation2 + $0xbc] sm:$0xf]
    %v1849 = vld [vmem:[#allocation2 + $0xc0] sm:$0xf]
    %v1850 = vld [vmem:[#allocation2 + $0xc4] sm:$0xf]
    %v1851 = vld [vmem:[#allocation2 + $0xc8] sm:$0xf]
    %v1852 = vld [vmem:[#allocation2 + $0xcc] sm:$0xf]
    %v1853 = vld [vmem:[#allocation2 + $0xd0] sm:$0xf]
    %v1854 = vld [vmem:[#allocation2 + $0xd4] sm:$0xf]
    %v1855 = vld [vmem:[#allocation2 + $0xd8] sm:$0xf]
    %v1856 = vld [vmem:[#allocation2 + $0xdc] sm:$0xf]
    %v1857 = vld [vmem:[#allocation2 + $0xe0] sm:$0xf]
    %v1858 = vld [vmem:[#allocation2 + $0xe4] sm:$0xf]
    %v1859 = vld [vmem:[#allocation2 + $0xe8] sm:$0xf]
    %v1860 = vld [vmem:[#allocation2 + $0xec] sm:$0xf]
    %v1861 = vld [vmem:[#allocation2 + $0xf0] sm:$0xf]
    %v1862 = vld [vmem:[#allocation2 + $0xf4] sm:$0xf]
    %v1863 = vld [vmem:[#allocation2 + $0xf8] sm:$0xf]
    %v1864 = vld [vmem:[#allocation2 + $0xfc] sm:$0xf]
    %v1865 = vld [vmem:[#allocation2 + $0x100] sm:$0xf]
    %v1866 = vld [vmem:[#allocation2 + $0x104] sm:$0xf]
    %vm1867 = vsmask.f32 256
    %vm1868 = vsmask.f32 4368
    %vm1869 = vmor %vm1867, %vm1868
    %v1871 = vshrl.u32 %v1802, 16
    %v1873 = vrot.slane %v1871, 7
    %v1874 = vrot.slane %v1873, 4
    %v1876 = vshrl.u32 %v1803, 16
    %v1878 = vrot.slane %v1876, 7
    %v1879 = vshll.u32 %v1803, 16
    %v1881 = vor.u32 %v1878, %v1879
    %v1882 = vsel %vm1869, %v1874, %v1881
    %v1883 = vrot.slane %v1878, 4
    %v1885 = vshrl.u32 %v1804, 16
    %v1887 = vrot.slane %v1885, 7
    %v1888 = vshll.u32 %v1804, 16
    %v1890 = vor.u32 %v1887, %v1888
    %v1891 = vsel %vm1869, %v1883, %v1890
    %v1892 = vrot.slane %v1887, 4
    %v1894 = vshrl.u32 %v1805, 16
    %v1896 = vrot.slane %v1894, 7
    %v1897 = vshll.u32 %v1805, 16
    %v1899 = vor.u32 %v1896, %v1897
    %v1900 = vsel %vm1869, %v1892, %v1899
    %v1901 = vrot.slane %v1896, 4
    %v1903 = vshrl.u32 %v1806, 16
    %v1905 = vrot.slane %v1903, 7
    %v1906 = vshll.u32 %v1806, 16
    %v1908 = vor.u32 %v1905, %v1906
    %v1909 = vsel %vm1869, %v1901, %v1908
    %v1910 = vrot.slane %v1905, 4
    %v1912 = vshrl.u32 %v1807, 16
    %v1914 = vrot.slane %v1912, 7
    %v1915 = vshll.u32 %v1807, 16
    %v1917 = vor.u32 %v1914, %v1915
    %v1918 = vsel %vm1869, %v1910, %v1917
    %v1919 = vrot.slane %v1914, 4
    %v1921 = vshrl.u32 %v1808, 16
    %v1923 = vrot.slane %v1921, 7
    %v1924 = vshll.u32 %v1808, 16
    %v1926 = vor.u32 %v1923, %v1924
    %v1927 = vsel %vm1869, %v1919, %v1926
    %v1928 = vrot.slane %v1923, 4
    %v1930 = vshrl.u32 %v1809, 16
    %v1932 = vrot.slane %v1930, 7
    %v1933 = vshll.u32 %v1809, 16
    %v1935 = vor.u32 %v1932, %v1933
    %v1936 = vsel %vm1869, %v1928, %v1935
    %v1937 = vrot.slane %v1932, 4
    %v1939 = vshrl.u32 %v1810, 16
    %v1941 = vrot.slane %v1939, 7
    %v1942 = vshll.u32 %v1810, 16
    %v1944 = vor.u32 %v1941, %v1942
    %v1945 = vsel %vm1869, %v1937, %v1944
    %v1946 = vrot.slane %v1941, 4
    %v1948 = vshrl.u32 %v1811, 16
    %v1950 = vrot.slane %v1948, 7
    %v1951 = vshll.u32 %v1811, 16
    %v1953 = vor.u32 %v1950, %v1951
    %v1954 = vsel %vm1869, %v1946, %v1953
    %v1955 = vrot.slane %v1950, 4
    %v1957 = vshrl.u32 %v1812, 16
    %v1959 = vrot.slane %v1957, 7
    %v1960 = vshll.u32 %v1812, 16
    %v1962 = vor.u32 %v1959, %v1960
    %v1963 = vsel %vm1869, %v1955, %v1962
    %v1964 = vrot.slane %v1959, 4
    %v1966 = vshrl.u32 %v1813, 16
    %v1968 = vrot.slane %v1966, 7
    %v1969 = vshll.u32 %v1813, 16
    %v1971 = vor.u32 %v1968, %v1969
    %v1972 = vsel %vm1869, %v1964, %v1971
    %v1973 = vrot.slane %v1968, 4
    %v1975 = vshrl.u32 %v1814, 16
    %v1977 = vrot.slane %v1975, 7
    %v1978 = vshll.u32 %v1814, 16
    %v1980 = vor.u32 %v1977, %v1978
    %v1981 = vsel %vm1869, %v1973, %v1980
    %v1982 = vrot.slane %v1977, 4
    %v1984 = vshrl.u32 %v1815, 16
    %v1986 = vrot.slane %v1984, 7
    %v1987 = vshll.u32 %v1815, 16
    %v1989 = vor.u32 %v1986, %v1987
    %v1990 = vsel %vm1869, %v1982, %v1989
    %v1991 = vrot.slane %v1986, 4
    %v1993 = vshrl.u32 %v1816, 16
    %v1995 = vrot.slane %v1993, 7
    %v1996 = vshll.u32 %v1816, 16
    %v1998 = vor.u32 %v1995, %v1996
    %v1999 = vsel %vm1869, %v1991, %v1998
    %v2000 = vrot.slane %v1995, 4
    %v2002 = vshrl.u32 %v1817, 16
    %v2004 = vrot.slane %v2002, 7
    %v2005 = vshll.u32 %v1817, 16
    %v2007 = vor.u32 %v2004, %v2005
    %v2008 = vsel %vm1869, %v2000, %v2007
    %v2009 = vrot.slane %v2004, 4
    %v2011 = vshrl.u32 %v1818, 16
    %v2013 = vrot.slane %v2011, 7
    %v2014 = vshll.u32 %v1818, 16
    %v2016 = vor.u32 %v2013, %v2014
    %v2017 = vsel %vm1869, %v2009, %v2016
    %v2018 = vrot.slane %v2013, 4
    %v2020 = vshrl.u32 %v1819, 16
    %v2022 = vrot.slane %v2020, 7
    %v2023 = vshll.u32 %v1819, 16
    %v2025 = vor.u32 %v2022, %v2023
    %v2026 = vsel %vm1869, %v2018, %v2025
    %v2027 = vrot.slane %v2022, 4
    %v2029 = vshrl.u32 %v1820, 16
    %v2031 = vrot.slane %v2029, 7
    %v2032 = vshll.u32 %v1820, 16
    %v2034 = vor.u32 %v2031, %v2032
    %v2035 = vsel %vm1869, %v2027, %v2034
    %v2036 = vrot.slane %v2031, 4
    %v2038 = vshrl.u32 %v1821, 16
    %v2040 = vrot.slane %v2038, 7
    %v2041 = vshll.u32 %v1821, 16
    %v2043 = vor.u32 %v2040, %v2041
    %v2044 = vsel %vm1869, %v2036, %v2043
    %v2045 = vrot.slane %v2040, 4
    %v2047 = vshrl.u32 %v1822, 16
    %v2049 = vrot.slane %v2047, 7
    %v2050 = vshll.u32 %v1822, 16
    %v2052 = vor.u32 %v2049, %v2050
    %v2053 = vsel %vm1869, %v2045, %v2052
    %v2054 = vrot.slane %v2049, 4
    %v2056 = vshrl.u32 %v1823, 16
    %v2058 = vrot.slane %v2056, 7
    %v2059 = vshll.u32 %v1823, 16
    %v2061 = vor.u32 %v2058, %v2059
    %v2062 = vsel %vm1869, %v2054, %v2061
    %v2063 = vrot.slane %v2058, 4
    %v2065 = vshrl.u32 %v1824, 16
    %v2067 = vrot.slane %v2065, 7
    %v2068 = vshll.u32 %v1824, 16
    %v2070 = vor.u32 %v2067, %v2068
    %v2071 = vsel %vm1869, %v2063, %v2070
    %v2072 = vrot.slane %v2067, 4
    %v2074 = vshrl.u32 %v1825, 16
    %v2076 = vrot.slane %v2074, 7
    %v2077 = vshll.u32 %v1825, 16
    %v2079 = vor.u32 %v2076, %v2077
    %v2080 = vsel %vm1869, %v2072, %v2079
    %v2081 = vrot.slane %v2076, 4
    %v2083 = vshrl.u32 %v1826, 16
    %v2085 = vrot.slane %v2083, 7
    %v2086 = vshll.u32 %v1826, 16
    %v2088 = vor.u32 %v2085, %v2086
    %v2089 = vsel %vm1869, %v2081, %v2088
    %v2090 = vrot.slane %v2085, 4
    %v2092 = vshrl.u32 %v1827, 16
    %v2094 = vrot.slane %v2092, 7
    %v2095 = vshll.u32 %v1827, 16
    %v2097 = vor.u32 %v2094, %v2095
    %v2098 = vsel %vm1869, %v2090, %v2097
    %v2099 = vrot.slane %v2094, 4
    %v2101 = vshrl.u32 %v1828, 16
    %v2103 = vrot.slane %v2101, 7
    %v2104 = vshll.u32 %v1828, 16
    %v2106 = vor.u32 %v2103, %v2104
    %v2107 = vsel %vm1869, %v2099, %v2106
    %v2108 = vrot.slane %v2103, 4
    %v2110 = vshrl.u32 %v1829, 16
    %v2112 = vrot.slane %v2110, 7
    %v2113 = vshll.u32 %v1829, 16
    %v2115 = vor.u32 %v2112, %v2113
    %v2116 = vsel %vm1869, %v2108, %v2115
    %v2117 = vrot.slane %v2112, 4
    %v2119 = vshrl.u32 %v1830, 16
    %v2121 = vrot.slane %v2119, 7
    %v2122 = vshll.u32 %v1830, 16
    %v2124 = vor.u32 %v2121, %v2122
    %v2125 = vsel %vm1869, %v2117, %v2124
    %v2126 = vrot.slane %v2121, 4
    %v2128 = vshrl.u32 %v1831, 16
    %v2130 = vrot.slane %v2128, 7
    %v2131 = vshll.u32 %v1831, 16
    %v2133 = vor.u32 %v2130, %v2131
    %v2134 = vsel %vm1869, %v2126, %v2133
    %v2135 = vrot.slane %v2130, 4
    %v2137 = vshrl.u32 %v1832, 16
    %v2139 = vrot.slane %v2137, 7
    %v2140 = vshll.u32 %v1832, 16
    %v2142 = vor.u32 %v2139, %v2140
    %v2143 = vsel %vm1869, %v2135, %v2142
    %v2144 = vrot.slane %v2139, 4
    %v2146 = vshrl.u32 %v1833, 16
    %v2148 = vrot.slane %v2146, 7
    %v2149 = vshll.u32 %v1833, 16
    %v2151 = vor.u32 %v2148, %v2149
    %v2152 = vsel %vm1869, %v2144, %v2151
    %v2153 = vrot.slane %v2148, 4
    %v2155 = vshrl.u32 %v1834, 16
    %v2157 = vrot.slane %v2155, 7
    %v2158 = vshll.u32 %v1834, 16
    %v2160 = vor.u32 %v2157, %v2158
    %v2161 = vsel %vm1869, %v2153, %v2160
    %v2162 = vrot.slane %v2157, 4
    %v2164 = vshrl.u32 %v1835, 16
    %v2166 = vrot.slane %v2164, 7
    %v2167 = vshll.u32 %v1835, 16
    %v2169 = vor.u32 %v2166, %v2167
    %v2170 = vsel %vm1869, %v2162, %v2169
    %v2171 = vrot.slane %v2166, 4
    %v2173 = vshrl.u32 %v1836, 16
    %v2175 = vrot.slane %v2173, 7
    %v2176 = vshll.u32 %v1836, 16
    %v2178 = vor.u32 %v2175, %v2176
    %v2179 = vsel %vm1869, %v2171, %v2178
    %v2180 = vrot.slane %v2175, 4
    %v2182 = vshrl.u32 %v1837, 16
    %v2184 = vrot.slane %v2182, 7
    %v2185 = vshll.u32 %v1837, 16
    %v2187 = vor.u32 %v2184, %v2185
    %v2188 = vsel %vm1869, %v2180, %v2187
    %v2189 = vrot.slane %v2184, 4
    %v2191 = vshrl.u32 %v1838, 16
    %v2193 = vrot.slane %v2191, 7
    %v2194 = vshll.u32 %v1838, 16
    %v2196 = vor.u32 %v2193, %v2194
    %v2197 = vsel %vm1869, %v2189, %v2196
    %v2198 = vrot.slane %v2193, 4
    %v2200 = vshrl.u32 %v1839, 16
    %v2202 = vrot.slane %v2200, 7
    %v2203 = vshll.u32 %v1839, 16
    %v2205 = vor.u32 %v2202, %v2203
    %v2206 = vsel %vm1869, %v2198, %v2205
    %v2207 = vrot.slane %v2202, 4
    %v2209 = vshrl.u32 %v1840, 16
    %v2211 = vrot.slane %v2209, 7
    %v2212 = vshll.u32 %v1840, 16
    %v2214 = vor.u32 %v2211, %v2212
    %v2215 = vsel %vm1869, %v2207, %v2214
    %v2216 = vrot.slane %v2211, 4
    %v2218 = vshrl.u32 %v1841, 16
    %v2220 = vrot.slane %v2218, 7
    %v2221 = vshll.u32 %v1841, 16
    %v2223 = vor.u32 %v2220, %v2221
    %v2224 = vsel %vm1869, %v2216, %v2223
    %v2225 = vrot.slane %v2220, 4
    %v2227 = vshrl.u32 %v1842, 16
    %v2229 = vrot.slane %v2227, 7
    %v2230 = vshll.u32 %v1842, 16
    %v2232 = vor.u32 %v2229, %v2230
    %v2233 = vsel %vm1869, %v2225, %v2232
    %v2234 = vrot.slane %v2229, 4
    %v2236 = vshrl.u32 %v1843, 16
    %v2238 = vrot.slane %v2236, 7
    %v2239 = vshll.u32 %v1843, 16
    %v2241 = vor.u32 %v2238, %v2239
    %v2242 = vsel %vm1869, %v2234, %v2241
    %v2243 = vrot.slane %v2238, 4
    %v2245 = vshrl.u32 %v1844, 16
    %v2247 = vrot.slane %v2245, 7
    %v2248 = vshll.u32 %v1844, 16
    %v2250 = vor.u32 %v2247, %v2248
    %v2251 = vsel %vm1869, %v2243, %v2250
    %v2252 = vrot.slane %v2247, 4
    %v2254 = vshrl.u32 %v1845, 16
    %v2256 = vrot.slane %v2254, 7
    %v2257 = vshll.u32 %v1845, 16
    %v2259 = vor.u32 %v2256, %v2257
    %v2260 = vsel %vm1869, %v2252, %v2259
    %v2261 = vrot.slane %v2256, 4
    %v2263 = vshrl.u32 %v1846, 16
    %v2265 = vrot.slane %v2263, 7
    %v2266 = vshll.u32 %v1846, 16
    %v2268 = vor.u32 %v2265, %v2266
    %v2269 = vsel %vm1869, %v2261, %v2268
    %v2270 = vrot.slane %v2265, 4
    %v2272 = vshrl.u32 %v1847, 16
    %v2274 = vrot.slane %v2272, 7
    %v2275 = vshll.u32 %v1847, 16
    %v2277 = vor.u32 %v2274, %v2275
    %v2278 = vsel %vm1869, %v2270, %v2277
    %v2279 = vrot.slane %v2274, 4
    %v2281 = vshrl.u32 %v1848, 16
    %v2283 = vrot.slane %v2281, 7
    %v2284 = vshll.u32 %v1848, 16
    %v2286 = vor.u32 %v2283, %v2284
    %v2287 = vsel %vm1869, %v2279, %v2286
    %v2288 = vrot.slane %v2283, 4
    %v2290 = vshrl.u32 %v1849, 16
    %v2292 = vrot.slane %v2290, 7
    %v2293 = vshll.u32 %v1849, 16
    %v2295 = vor.u32 %v2292, %v2293
    %v2296 = vsel %vm1869, %v2288, %v2295
    %v2297 = vrot.slane %v2292, 4
    %v2299 = vshrl.u32 %v1850, 16
    %v2301 = vrot.slane %v2299, 7
    %v2302 = vshll.u32 %v1850, 16
    %v2304 = vor.u32 %v2301, %v2302
    %v2305 = vsel %vm1869, %v2297, %v2304
    %v2306 = vrot.slane %v2301, 4
    %v2308 = vshrl.u32 %v1851, 16
    %v2310 = vrot.slane %v2308, 7
    %v2311 = vshll.u32 %v1851, 16
    %v2313 = vor.u32 %v2310, %v2311
    %v2314 = vsel %vm1869, %v2306, %v2313
    %v2315 = vrot.slane %v2310, 4
    %v2317 = vshrl.u32 %v1852, 16
    %v2319 = vrot.slane %v2317, 7
    %v2320 = vshll.u32 %v1852, 16
    %v2322 = vor.u32 %v2319, %v2320
    %v2323 = vsel %vm1869, %v2315, %v2322
    %v2324 = vrot.slane %v2319, 4
    %v2326 = vshrl.u32 %v1853, 16
    %v2328 = vrot.slane %v2326, 7
    %v2329 = vshll.u32 %v1853, 16
    %v2331 = vor.u32 %v2328, %v2329
    %v2332 = vsel %vm1869, %v2324, %v2331
    %v2333 = vrot.slane %v2328, 4
    %v2335 = vshrl.u32 %v1854, 16
    %v2337 = vrot.slane %v2335, 7
    %v2338 = vshll.u32 %v1854, 16
    %v2340 = vor.u32 %v2337, %v2338
    %v2341 = vsel %vm1869, %v2333, %v2340
    %v2342 = vrot.slane %v2337, 4
    %v2344 = vshrl.u32 %v1855, 16
    %v2346 = vrot.slane %v2344, 7
    %v2347 = vshll.u32 %v1855, 16
    %v2349 = vor.u32 %v2346, %v2347
    %v2350 = vsel %vm1869, %v2342, %v2349
    %v2351 = vrot.slane %v2346, 4
    %v2353 = vshrl.u32 %v1856, 16
    %v2355 = vrot.slane %v2353, 7
    %v2356 = vshll.u32 %v1856, 16
    %v2358 = vor.u32 %v2355, %v2356
    %v2359 = vsel %vm1869, %v2351, %v2358
    %v2360 = vrot.slane %v2355, 4
    %v2362 = vshrl.u32 %v1857, 16
    %v2364 = vrot.slane %v2362, 7
    %v2365 = vshll.u32 %v1857, 16
    %v2367 = vor.u32 %v2364, %v2365
    %v2368 = vsel %vm1869, %v2360, %v2367
    %v2369 = vrot.slane %v2364, 4
    %v2371 = vshrl.u32 %v1858, 16
    %v2373 = vrot.slane %v2371, 7
    %v2374 = vshll.u32 %v1858, 16
    %v2376 = vor.u32 %v2373, %v2374
    %v2377 = vsel %vm1869, %v2369, %v2376
    %v2378 = vrot.slane %v2373, 4
    %v2380 = vshrl.u32 %v1859, 16
    %v2382 = vrot.slane %v2380, 7
    %v2383 = vshll.u32 %v1859, 16
    %v2385 = vor.u32 %v2382, %v2383
    %v2386 = vsel %vm1869, %v2378, %v2385
    %v2387 = vrot.slane %v2382, 4
    %v2389 = vshrl.u32 %v1860, 16
    %v2391 = vrot.slane %v2389, 7
    %v2392 = vshll.u32 %v1860, 16
    %v2394 = vor.u32 %v2391, %v2392
    %v2395 = vsel %vm1869, %v2387, %v2394
    %v2396 = vrot.slane %v2391, 4
    %v2398 = vshrl.u32 %v1861, 16
    %v2400 = vrot.slane %v2398, 7
    %v2401 = vshll.u32 %v1861, 16
    %v2403 = vor.u32 %v2400, %v2401
    %v2404 = vsel %vm1869, %v2396, %v2403
    %v2405 = vrot.slane %v2400, 4
    %v2407 = vshrl.u32 %v1862, 16
    %v2409 = vrot.slane %v2407, 7
    %v2410 = vshll.u32 %v1862, 16
    %v2412 = vor.u32 %v2409, %v2410
    %v2413 = vsel %vm1869, %v2405, %v2412
    %v2414 = vrot.slane %v2409, 4
    %v2416 = vshrl.u32 %v1863, 16
    %v2418 = vrot.slane %v2416, 7
    %v2419 = vshll.u32 %v1863, 16
    %v2421 = vor.u32 %v2418, %v2419
    %v2422 = vsel %vm1869, %v2414, %v2421
    %v2423 = vrot.slane %v2418, 4
    %v2425 = vshrl.u32 %v1864, 16
    %v2427 = vrot.slane %v2425, 7
    %v2428 = vshll.u32 %v1864, 16
    %v2430 = vor.u32 %v2427, %v2428
    %v2431 = vsel %vm1869, %v2423, %v2430
    %v2432 = vrot.slane %v2427, 4
    %v2434 = vshrl.u32 %v1865, 16
    %v2436 = vrot.slane %v2434, 7
    %v2437 = vshll.u32 %v1865, 16
    %v2439 = vor.u32 %v2436, %v2437
    %v2440 = vsel %vm1869, %v2432, %v2439
    %v2441 = vrot.slane %v2436, 4
    %v2443 = vshrl.u32 %v1866, 16
    %v2445 = vrot.slane %v2443, 7
    %v2446 = vshll.u32 %v1866, 16
    %v2448 = vor.u32 %v2445, %v2446
    %v2449 = vsel %vm1869, %v2441, %v2448
    %2514 = vst [vmem:[#allocation4 + $0x4] sm:$0xf] %v1882
    %2515 = vst [vmem:[#allocation4 + $0x18] sm:$0xf] %v1891
    %2516 = vst [vmem:[#allocation4 + $0x2c] sm:$0xf] %v1900
    %2517 = vst [vmem:[#allocation4 + $0x40] sm:$0xf] %v1909
    %2518 = vst [vmem:[#allocation4 + $0x54] sm:$0xf] %v1918
    %2519 = vst [vmem:[#allocation4 + $0x68] sm:$0xf] %v1927
    %2520 = vst [vmem:[#allocation4 + $0x7c] sm:$0xf] %v1936
    %2521 = vst [vmem:[#allocation4 + $0x90] sm:$0xf] %v1945
    %2522 = vst [vmem:[#allocation4 + $0xa4] sm:$0xf] %v1954
    %2523 = vst [vmem:[#allocation4 + $0xb8] sm:$0xf] %v1963
    %2524 = vst [vmem:[#allocation4 + $0xcc] sm:$0xf] %v1972
    %2525 = vst [vmem:[#allocation4 + $0xe0] sm:$0xf] %v1981
    %2526 = vst [vmem:[#allocation4 + $0xf4] sm:$0xf] %v1990
    %2527 = vst [vmem:[#allocation4 + $0x108] sm:$0xf] %v1999
    %2528 = vst [vmem:[#allocation4 + $0x11c] sm:$0xf] %v2008
    %2529 = vst [vmem:[#allocation4 + $0x130] sm:$0xf] %v2017
    %2530 = vst [vmem:[#allocation4 + $0x144] sm:$0xf] %v2026
    %2531 = vst [vmem:[#allocation4 + $0x158] sm:$0xf] %v2035
    %2532 = vst [vmem:[#allocation4 + $0x16c] sm:$0xf] %v2044
    %2533 = vst [vmem:[#allocation4 + $0x180] sm:$0xf] %v2053
    %2534 = vst [vmem:[#allocation4 + $0x194] sm:$0xf] %v2062
    %2535 = vst [vmem:[#allocation4 + $0x1a8] sm:$0xf] %v2071
    %2536 = vst [vmem:[#allocation4 + $0x1bc] sm:$0xf] %v2080
    %2537 = vst [vmem:[#allocation4 + $0x1d0] sm:$0xf] %v2089
    %2538 = vst [vmem:[#allocation4 + $0x1e4] sm:$0xf] %v2098
    %2539 = vst [vmem:[#allocation4 + $0x1f8] sm:$0xf] %v2107
    %2540 = vst [vmem:[#allocation4 + $0x20c] sm:$0xf] %v2116
    %2541 = vst [vmem:[#allocation4 + $0x220] sm:$0xf] %v2125
    %2542 = vst [vmem:[#allocation4 + $0x234] sm:$0xf] %v2134
    %2543 = vst [vmem:[#allocation4 + $0x248] sm:$0xf] %v2143
    %2544 = vst [vmem:[#allocation4 + $0x25c] sm:$0xf] %v2152
    %2545 = vst [vmem:[#allocation4 + $0x270] sm:$0xf] %v2161
    %2546 = vst [vmem:[#allocation4 + $0x284] sm:$0xf] %v2170
    %2547 = vst [vmem:[#allocation4 + $0x298] sm:$0xf] %v2179
    %2548 = vst [vmem:[#allocation4 + $0x2ac] sm:$0xf] %v2188
    %2549 = vst [vmem:[#allocation4 + $0x2c0] sm:$0xf] %v2197
    %2550 = vst [vmem:[#allocation4 + $0x2d4] sm:$0xf] %v2206
    %2551 = vst [vmem:[#allocation4 + $0x2e8] sm:$0xf] %v2215
    %2552 = vst [vmem:[#allocation4 + $0x2fc] sm:$0xf] %v2224
    %2553 = vst [vmem:[#allocation4 + $0x310] sm:$0xf] %v2233
    %2554 = vst [vmem:[#allocation4 + $0x324] sm:$0xf] %v2242
    %2555 = vst [vmem:[#allocation4 + $0x338] sm:$0xf] %v2251
    %2556 = vst [vmem:[#allocation4 + $0x34c] sm:$0xf] %v2260
    %2557 = vst [vmem:[#allocation4 + $0x360] sm:$0xf] %v2269
    %2558 = vst [vmem:[#allocation4 + $0x374] sm:$0xf] %v2278
    %2559 = vst [vmem:[#allocation4 + $0x388] sm:$0xf] %v2287
    %2560 = vst [vmem:[#allocation4 + $0x39c] sm:$0xf] %v2296
    %2561 = vst [vmem:[#allocation4 + $0x3b0] sm:$0xf] %v2305
    %2562 = vst [vmem:[#allocation4 + $0x3c4] sm:$0xf] %v2314
    %2563 = vst [vmem:[#allocation4 + $0x3d8] sm:$0xf] %v2323
    %2564 = vst [vmem:[#allocation4 + $0x3ec] sm:$0xf] %v2332
    %2565 = vst [vmem:[#allocation4 + $0x400] sm:$0xf] %v2341
    %2566 = vst [vmem:[#allocation4 + $0x414] sm:$0xf] %v2350
    %2567 = vst [vmem:[#allocation4 + $0x428] sm:$0xf] %v2359
    %2568 = vst [vmem:[#allocation4 + $0x43c] sm:$0xf] %v2368
    %2569 = vst [vmem:[#allocation4 + $0x450] sm:$0xf] %v2377
    %2570 = vst [vmem:[#allocation4 + $0x464] sm:$0xf] %v2386
    %2571 = vst [vmem:[#allocation4 + $0x478] sm:$0xf] %v2395
    %2572 = vst [vmem:[#allocation4 + $0x48c] sm:$0xf] %v2404
    %2573 = vst [vmem:[#allocation4 + $0x4a0] sm:$0xf] %v2413
    %2574 = vst [vmem:[#allocation4 + $0x4b4] sm:$0xf] %v2422
    %2575 = vst [vmem:[#allocation4 + $0x4c8] sm:$0xf] %v2431
    %2576 = vst [vmem:[#allocation4 + $0x4dc] sm:$0xf] %v2440
    %2577 = vst [vmem:[#allocation4 + $0x4f0] sm:$0xf] %v2449
    %v2578 = vld [vmem:[#allocation2 + $0x8] sm:$0xf]
    %v2579 = vld [vmem:[#allocation2 + $0xc] sm:$0xf]
    %v2580 = vld [vmem:[#allocation2 + $0x10] sm:$0xf]
    %v2581 = vld [vmem:[#allocation2 + $0x14] sm:$0xf]
    %v2582 = vld [vmem:[#allocation2 + $0x18] sm:$0xf]
    %v2583 = vld [vmem:[#allocation2 + $0x1c] sm:$0xf]
    %v2584 = vld [vmem:[#allocation2 + $0x20] sm:$0xf]
    %v2585 = vld [vmem:[#allocation2 + $0x24] sm:$0xf]
    %v2586 = vld [vmem:[#allocation2 + $0x28] sm:$0xf]
    %v2587 = vld [vmem:[#allocation2 + $0x2c] sm:$0xf]
    %v2588 = vld [vmem:[#allocation2 + $0x30] sm:$0xf]
    %v2589 = vld [vmem:[#allocation2 + $0x34] sm:$0xf]
    %v2590 = vld [vmem:[#allocation2 + $0x38] sm:$0xf]
    %v2591 = vld [vmem:[#allocation2 + $0x3c] sm:$0xf]
    %v2592 = vld [vmem:[#allocation2 + $0x40] sm:$0xf]
    %v2593 = vld [vmem:[#allocation2 + $0x44] sm:$0xf]
    %v2594 = vld [vmem:[#allocation2 + $0x48] sm:$0xf]
    %v2595 = vld [vmem:[#allocation2 + $0x4c] sm:$0xf]
    %v2596 = vld [vmem:[#allocation2 + $0x50] sm:$0xf]
    %v2597 = vld [vmem:[#allocation2 + $0x54] sm:$0xf]
    %v2598 = vld [vmem:[#allocation2 + $0x58] sm:$0xf]
    %v2599 = vld [vmem:[#allocation2 + $0x5c] sm:$0xf]
    %v2600 = vld [vmem:[#allocation2 + $0x60] sm:$0xf]
    %v2601 = vld [vmem:[#allocation2 + $0x64] sm:$0xf]
    %v2602 = vld [vmem:[#allocation2 + $0x68] sm:$0xf]
    %v2603 = vld [vmem:[#allocation2 + $0x6c] sm:$0xf]
    %v2604 = vld [vmem:[#allocation2 + $0x70] sm:$0xf]
    %v2605 = vld [vmem:[#allocation2 + $0x74] sm:$0xf]
    %v2606 = vld [vmem:[#allocation2 + $0x78] sm:$0xf]
    %v2607 = vld [vmem:[#allocation2 + $0x7c] sm:$0xf]
    %v2608 = vld [vmem:[#allocation2 + $0x80] sm:$0xf]
    %v2609 = vld [vmem:[#allocation2 + $0x84] sm:$0xf]
    %v2610 = vld [vmem:[#allocation2 + $0x88] sm:$0xf]
    %v2611 = vld [vmem:[#allocation2 + $0x8c] sm:$0xf]
    %v2612 = vld [vmem:[#allocation2 + $0x90] sm:$0xf]
    %v2613 = vld [vmem:[#allocation2 + $0x94] sm:$0xf]
    %v2614 = vld [vmem:[#allocation2 + $0x98] sm:$0xf]
    %v2615 = vld [vmem:[#allocation2 + $0x9c] sm:$0xf]
    %v2616 = vld [vmem:[#allocation2 + $0xa0] sm:$0xf]
    %v2617 = vld [vmem:[#allocation2 + $0xa4] sm:$0xf]
    %v2618 = vld [vmem:[#allocation2 + $0xa8] sm:$0xf]
    %v2619 = vld [vmem:[#allocation2 + $0xac] sm:$0xf]
    %v2620 = vld [vmem:[#allocation2 + $0xb0] sm:$0xf]
    %v2621 = vld [vmem:[#allocation2 + $0xb4] sm:$0xf]
    %v2622 = vld [vmem:[#allocation2 + $0xb8] sm:$0xf]
    %v2623 = vld [vmem:[#allocation2 + $0xbc] sm:$0xf]
    %v2624 = vld [vmem:[#allocation2 + $0xc0] sm:$0xf]
    %v2625 = vld [vmem:[#allocation2 + $0xc4] sm:$0xf]
    %v2626 = vld [vmem:[#allocation2 + $0xc8] sm:$0xf]
    %v2627 = vld [vmem:[#allocation2 + $0xcc] sm:$0xf]
    %v2628 = vld [vmem:[#allocation2 + $0xd0] sm:$0xf]
    %v2629 = vld [vmem:[#allocation2 + $0xd4] sm:$0xf]
    %v2630 = vld [vmem:[#allocation2 + $0xd8] sm:$0xf]
    %v2631 = vld [vmem:[#allocation2 + $0xdc] sm:$0xf]
    %v2632 = vld [vmem:[#allocation2 + $0xe0] sm:$0xf]
    %v2633 = vld [vmem:[#allocation2 + $0xe4] sm:$0xf]
    %v2634 = vld [vmem:[#allocation2 + $0xe8] sm:$0xf]
    %v2635 = vld [vmem:[#allocation2 + $0xec] sm:$0xf]
    %v2636 = vld [vmem:[#allocation2 + $0xf0] sm:$0xf]
    %v2637 = vld [vmem:[#allocation2 + $0xf4] sm:$0xf]
    %v2638 = vld [vmem:[#allocation2 + $0xf8] sm:$0xf]
    %v2639 = vld [vmem:[#allocation2 + $0xfc] sm:$0xf]
    %v2640 = vld [vmem:[#allocation2 + $0x100] sm:$0xf]
    %v2641 = vld [vmem:[#allocation2 + $0x104] sm:$0xf]
    %2642 = vst [vmem:[#allocation4 + $0x8] sm:$0xf] %v2578
    %2643 = vst [vmem:[#allocation4 + $0x1c] sm:$0xf] %v2579
    %2644 = vst [vmem:[#allocation4 + $0x30] sm:$0xf] %v2580
    %2645 = vst [vmem:[#allocation4 + $0x44] sm:$0xf] %v2581
    %2646 = vst [vmem:[#allocation4 + $0x58] sm:$0xf] %v2582
    %2647 = vst [vmem:[#allocation4 + $0x6c] sm:$0xf] %v2583
    %2648 = vst [vmem:[#allocation4 + $0x80] sm:$0xf] %v2584
    %2649 = vst [vmem:[#allocation4 + $0x94] sm:$0xf] %v2585
    %2650 = vst [vmem:[#allocation4 + $0xa8] sm:$0xf] %v2586
    %2651 = vst [vmem:[#allocation4 + $0xbc] sm:$0xf] %v2587
    %2652 = vst [vmem:[#allocation4 + $0xd0] sm:$0xf] %v2588
    %2653 = vst [vmem:[#allocation4 + $0xe4] sm:$0xf] %v2589
    %2654 = vst [vmem:[#allocation4 + $0xf8] sm:$0xf] %v2590
    %2655 = vst [vmem:[#allocation4 + $0x10c] sm:$0xf] %v2591
    %2656 = vst [vmem:[#allocation4 + $0x120] sm:$0xf] %v2592
    %2657 = vst [vmem:[#allocation4 + $0x134] sm:$0xf] %v2593
    %2658 = vst [vmem:[#allocation4 + $0x148] sm:$0xf] %v2594
    %2659 = vst [vmem:[#allocation4 + $0x15c] sm:$0xf] %v2595
    %2660 = vst [vmem:[#allocation4 + $0x170] sm:$0xf] %v2596
    %2661 = vst [vmem:[#allocation4 + $0x184] sm:$0xf] %v2597
    %2662 = vst [vmem:[#allocation4 + $0x198] sm:$0xf] %v2598
    %2663 = vst [vmem:[#allocation4 + $0x1ac] sm:$0xf] %v2599
    %2664 = vst [vmem:[#allocation4 + $0x1c0] sm:$0xf] %v2600
    %2665 = vst [vmem:[#allocation4 + $0x1d4] sm:$0xf] %v2601
    %2666 = vst [vmem:[#allocation4 + $0x1e8] sm:$0xf] %v2602
    %2667 = vst [vmem:[#allocation4 + $0x1fc] sm:$0xf] %v2603
    %2668 = vst [vmem:[#allocation4 + $0x210] sm:$0xf] %v2604
    %2669 = vst [vmem:[#allocation4 + $0x224] sm:$0xf] %v2605
    %2670 = vst [vmem:[#allocation4 + $0x238] sm:$0xf] %v2606
    %2671 = vst [vmem:[#allocation4 + $0x24c] sm:$0xf] %v2607
    %2672 = vst [vmem:[#allocation4 + $0x260] sm:$0xf] %v2608
    %2673 = vst [vmem:[#allocation4 + $0x274] sm:$0xf] %v2609
    %2674 = vst [vmem:[#allocation4 + $0x288] sm:$0xf] %v2610
    %2675 = vst [vmem:[#allocation4 + $0x29c] sm:$0xf] %v2611
    %2676 = vst [vmem:[#allocation4 + $0x2b0] sm:$0xf] %v2612
    %2677 = vst [vmem:[#allocation4 + $0x2c4] sm:$0xf] %v2613
    %2678 = vst [vmem:[#allocation4 + $0x2d8] sm:$0xf] %v2614
    %2679 = vst [vmem:[#allocation4 + $0x2ec] sm:$0xf] %v2615
    %2680 = vst [vmem:[#allocation4 + $0x300] sm:$0xf] %v2616
    %2681 = vst [vmem:[#allocation4 + $0x314] sm:$0xf] %v2617
    %2682 = vst [vmem:[#allocation4 + $0x328] sm:$0xf] %v2618
    %2683 = vst [vmem:[#allocation4 + $0x33c] sm:$0xf] %v2619
    %2684 = vst [vmem:[#allocation4 + $0x350] sm:$0xf] %v2620
    %2685 = vst [vmem:[#allocation4 + $0x364] sm:$0xf] %v2621
    %2686 = vst [vmem:[#allocation4 + $0x378] sm:$0xf] %v2622
    %2687 = vst [vmem:[#allocation4 + $0x38c] sm:$0xf] %v2623
    %2688 = vst [vmem:[#allocation4 + $0x3a0] sm:$0xf] %v2624
    %2689 = vst [vmem:[#allocation4 + $0x3b4] sm:$0xf] %v2625
    %2690 = vst [vmem:[#allocation4 + $0x3c8] sm:$0xf] %v2626
    %2691 = vst [vmem:[#allocation4 + $0x3dc] sm:$0xf] %v2627
    %2692 = vst [vmem:[#allocation4 + $0x3f0] sm:$0xf] %v2628
    %2693 = vst [vmem:[#allocation4 + $0x404] sm:$0xf] %v2629
    %2694 = vst [vmem:[#allocation4 + $0x418] sm:$0xf] %v2630
    %2695 = vst [vmem:[#allocation4 + $0x42c] sm:$0xf] %v2631
    %2696 = vst [vmem:[#allocation4 + $0x440] sm:$0xf] %v2632
    %2697 = vst [vmem:[#allocation4 + $0x454] sm:$0xf] %v2633
    %2698 = vst [vmem:[#allocation4 + $0x468] sm:$0xf] %v2634
    %2699 = vst [vmem:[#allocation4 + $0x47c] sm:$0xf] %v2635
    %2700 = vst [vmem:[#allocation4 + $0x490] sm:$0xf] %v2636
    %2701 = vst [vmem:[#allocation4 + $0x4a4] sm:$0xf] %v2637
    %2702 = vst [vmem:[#allocation4 + $0x4b8] sm:$0xf] %v2638
    %2703 = vst [vmem:[#allocation4 + $0x4cc] sm:$0xf] %v2639
    %2704 = vst [vmem:[#allocation4 + $0x4e0] sm:$0xf] %v2640
    %2705 = vst [vmem:[#allocation4 + $0x4f4] sm:$0xf] %v2641
    %v2706 = vld [vmem:[#allocation2 + $0x8] sm:$0xf]
    %v2707 = vld [vmem:[#allocation2 + $0xc] sm:$0xf]
    %v2708 = vld [vmem:[#allocation2 + $0x10] sm:$0xf]
    %v2709 = vld [vmem:[#allocation2 + $0x14] sm:$0xf]
    %v2710 = vld [vmem:[#allocation2 + $0x18] sm:$0xf]
    %v2711 = vld [vmem:[#allocation2 + $0x1c] sm:$0xf]
    %v2712 = vld [vmem:[#allocation2 + $0x20] sm:$0xf]
    %v2713 = vld [vmem:[#allocation2 + $0x24] sm:$0xf]
    %v2714 = vld [vmem:[#allocation2 + $0x28] sm:$0xf]
    %v2715 = vld [vmem:[#allocation2 + $0x2c] sm:$0xf]
    %v2716 = vld [vmem:[#allocation2 + $0x30] sm:$0xf]
    %v2717 = vld [vmem:[#allocation2 + $0x34] sm:$0xf]
    %v2718 = vld [vmem:[#allocation2 + $0x38] sm:$0xf]
    %v2719 = vld [vmem:[#allocation2 + $0x3c] sm:$0xf]
    %v2720 = vld [vmem:[#allocation2 + $0x40] sm:$0xf]
    %v2721 = vld [vmem:[#allocation2 + $0x44] sm:$0xf]
    %v2722 = vld [vmem:[#allocation2 + $0x48] sm:$0xf]
    %v2723 = vld [vmem:[#allocation2 + $0x4c] sm:$0xf]
    %v2724 = vld [vmem:[#allocation2 + $0x50] sm:$0xf]
    %v2725 = vld [vmem:[#allocation2 + $0x54] sm:$0xf]
    %v2726 = vld [vmem:[#allocation2 + $0x58] sm:$0xf]
    %v2727 = vld [vmem:[#allocation2 + $0x5c] sm:$0xf]
    %v2728 = vld [vmem:[#allocation2 + $0x60] sm:$0xf]
    %v2729 = vld [vmem:[#allocation2 + $0x64] sm:$0xf]
    %v2730 = vld [vmem:[#allocation2 + $0x68] sm:$0xf]
    %v2731 = vld [vmem:[#allocation2 + $0x6c] sm:$0xf]
    %v2732 = vld [vmem:[#allocation2 + $0x70] sm:$0xf]
    %v2733 = vld [vmem:[#allocation2 + $0x74] sm:$0xf]
    %v2734 = vld [vmem:[#allocation2 + $0x78] sm:$0xf]
    %v2735 = vld [vmem:[#allocation2 + $0x7c] sm:$0xf]
    %v2736 = vld [vmem:[#allocation2 + $0x80] sm:$0xf]
    %v2737 = vld [vmem:[#allocation2 + $0x84] sm:$0xf]
    %v2738 = vld [vmem:[#allocation2 + $0x88] sm:$0xf]
    %v2739 = vld [vmem:[#allocation2 + $0x8c] sm:$0xf]
    %v2740 = vld [vmem:[#allocation2 + $0x90] sm:$0xf]
    %v2741 = vld [vmem:[#allocation2 + $0x94] sm:$0xf]
    %v2742 = vld [vmem:[#allocation2 + $0x98] sm:$0xf]
    %v2743 = vld [vmem:[#allocation2 + $0x9c] sm:$0xf]
    %v2744 = vld [vmem:[#allocation2 + $0xa0] sm:$0xf]
    %v2745 = vld [vmem:[#allocation2 + $0xa4] sm:$0xf]
    %v2746 = vld [vmem:[#allocation2 + $0xa8] sm:$0xf]
    %v2747 = vld [vmem:[#allocation2 + $0xac] sm:$0xf]
    %v2748 = vld [vmem:[#allocation2 + $0xb0] sm:$0xf]
    %v2749 = vld [vmem:[#allocation2 + $0xb4] sm:$0xf]
    %v2750 = vld [vmem:[#allocation2 + $0xb8] sm:$0xf]
    %v2751 = vld [vmem:[#allocation2 + $0xbc] sm:$0xf]
    %v2752 = vld [vmem:[#allocation2 + $0xc0] sm:$0xf]
    %v2753 = vld [vmem:[#allocation2 + $0xc4] sm:$0xf]
    %v2754 = vld [vmem:[#allocation2 + $0xc8] sm:$0xf]
    %v2755 = vld [vmem:[#allocation2 + $0xcc] sm:$0xf]
    %v2756 = vld [vmem:[#allocation2 + $0xd0] sm:$0xf]
    %v2757 = vld [vmem:[#allocation2 + $0xd4] sm:$0xf]
    %v2758 = vld [vmem:[#allocation2 + $0xd8] sm:$0xf]
    %v2759 = vld [vmem:[#allocation2 + $0xdc] sm:$0xf]
    %v2760 = vld [vmem:[#allocation2 + $0xe0] sm:$0xf]
    %v2761 = vld [vmem:[#allocation2 + $0xe4] sm:$0xf]
    %v2762 = vld [vmem:[#allocation2 + $0xe8] sm:$0xf]
    %v2763 = vld [vmem:[#allocation2 + $0xec] sm:$0xf]
    %v2764 = vld [vmem:[#allocation2 + $0xf0] sm:$0xf]
    %v2765 = vld [vmem:[#allocation2 + $0xf4] sm:$0xf]
    %v2766 = vld [vmem:[#allocation2 + $0xf8] sm:$0xf]
    %v2767 = vld [vmem:[#allocation2 + $0xfc] sm:$0xf]
    %v2768 = vld [vmem:[#allocation2 + $0x100] sm:$0xf]
    %v2769 = vld [vmem:[#allocation2 + $0x104] sm:$0xf]
    %v2770 = vld [vmem:[#allocation2 + $0x108] sm:$0x1]
    %vm2771 = vsmask.f32 3328
    %vm2772 = vsmask.f32 7440
    %vm2773 = vmor %vm2771, %vm2772
    %v2775 = vshrl.u32 %v2706, 16
    %v2777 = vrot.slane %v2775, 4
    %v2778 = vshll.u32 %v2706, 16
    %v2780 = vrot.slane %v2778, 5
    %v2781 = vor.u32 %v2777, %v2780
    %v2782 = vrot.slane %v2781, 4
    %v2784 = vshll.u32 %v2707, 16
    %v2786 = vrot.slane %v2784, 5
    %v2787 = vsel %vm2773, %v2782, %v2786
    %v2788 = vshrl.u32 %v2707, 16
    %v2790 = vrot.slane %v2788, 4
    %v2791 = vor.u32 %v2790, %v2786
    %v2792 = vrot.slane %v2791, 4
    %v2794 = vshll.u32 %v2708, 16
    %v2796 = vrot.slane %v2794, 5
    %v2797 = vsel %vm2773, %v2792, %v2796
    %v2798 = vshrl.u32 %v2708, 16
    %v2800 = vrot.slane %v2798, 4
    %v2801 = vor.u32 %v2800, %v2796
    %v2802 = vrot.slane %v2801, 4
    %v2804 = vshll.u32 %v2709, 16
    %v2806 = vrot.slane %v2804, 5
    %v2807 = vsel %vm2773, %v2802, %v2806
    %v2808 = vshrl.u32 %v2709, 16
    %v2810 = vrot.slane %v2808, 4
    %v2811 = vor.u32 %v2810, %v2806
    %v2812 = vrot.slane %v2811, 4
    %v2814 = vshll.u32 %v2710, 16
    %v2816 = vrot.slane %v2814, 5
    %v2817 = vsel %vm2773, %v2812, %v2816
    %v2818 = vshrl.u32 %v2710, 16
    %v2820 = vrot.slane %v2818, 4
    %v2821 = vor.u32 %v2820, %v2816
    %v2822 = vrot.slane %v2821, 4
    %v2824 = vshll.u32 %v2711, 16
    %v2826 = vrot.slane %v2824, 5
    %v2827 = vsel %vm2773, %v2822, %v2826
    %v2828 = vshrl.u32 %v2711, 16
    %v2830 = vrot.slane %v2828, 4
    %v2831 = vor.u32 %v2830, %v2826
    %v2832 = vrot.slane %v2831, 4
    %v2834 = vshll.u32 %v2712, 16
    %v2836 = vrot.slane %v2834, 5
    %v2837 = vsel %vm2773, %v2832, %v2836
    %v2838 = vshrl.u32 %v2712, 16
    %v2840 = vrot.slane %v2838, 4
    %v2841 = vor.u32 %v2840, %v2836
    %v2842 = vrot.slane %v2841, 4
    %v2844 = vshll.u32 %v2713, 16
    %v2846 = vrot.slane %v2844, 5
    %v2847 = vsel %vm2773, %v2842, %v2846
    %v2848 = vshrl.u32 %v2713, 16
    %v2850 = vrot.slane %v2848, 4
    %v2851 = vor.u32 %v2850, %v2846
    %v2852 = vrot.slane %v2851, 4
    %v2854 = vshll.u32 %v2714, 16
    %v2856 = vrot.slane %v2854, 5
    %v2857 = vsel %vm2773, %v2852, %v2856
    %v2858 = vshrl.u32 %v2714, 16
    %v2860 = vrot.slane %v2858, 4
    %v2861 = vor.u32 %v2860, %v2856
    %v2862 = vrot.slane %v2861, 4
    %v2864 = vshll.u32 %v2715, 16
    %v2866 = vrot.slane %v2864, 5
    %v2867 = vsel %vm2773, %v2862, %v2866
    %v2868 = vshrl.u32 %v2715, 16
    %v2870 = vrot.slane %v2868, 4
    %v2871 = vor.u32 %v2870, %v2866
    %v2872 = vrot.slane %v2871, 4
    %v2874 = vshll.u32 %v2716, 16
    %v2876 = vrot.slane %v2874, 5
    %v2877 = vsel %vm2773, %v2872, %v2876
    %v2878 = vshrl.u32 %v2716, 16
    %v2880 = vrot.slane %v2878, 4
    %v2881 = vor.u32 %v2880, %v2876
    %v2882 = vrot.slane %v2881, 4
    %v2884 = vshll.u32 %v2717, 16
    %v2886 = vrot.slane %v2884, 5
    %v2887 = vsel %vm2773, %v2882, %v2886
    %v2888 = vshrl.u32 %v2717, 16
    %v2890 = vrot.slane %v2888, 4
    %v2891 = vor.u32 %v2890, %v2886
    %v2892 = vrot.slane %v2891, 4
    %v2894 = vshll.u32 %v2718, 16
    %v2896 = vrot.slane %v2894, 5
    %v2897 = vsel %vm2773, %v2892, %v2896
    %v2898 = vshrl.u32 %v2718, 16
    %v2900 = vrot.slane %v2898, 4
    %v2901 = vor.u32 %v2900, %v2896
    %v2902 = vrot.slane %v2901, 4
    %v2904 = vshll.u32 %v2719, 16
    %v2906 = vrot.slane %v2904, 5
    %v2907 = vsel %vm2773, %v2902, %v2906
    %v2908 = vshrl.u32 %v2719, 16
    %v2910 = vrot.slane %v2908, 4
    %v2911 = vor.u32 %v2910, %v2906
    %v2912 = vrot.slane %v2911, 4
    %v2914 = vshll.u32 %v2720, 16
    %v2916 = vrot.slane %v2914, 5
    %v2917 = vsel %vm2773, %v2912, %v2916
    %v2918 = vshrl.u32 %v2720, 16
    %v2920 = vrot.slane %v2918, 4
    %v2921 = vor.u32 %v2920, %v2916
    %v2922 = vrot.slane %v2921, 4
    %v2924 = vshll.u32 %v2721, 16
    %v2926 = vrot.slane %v2924, 5
    %v2927 = vsel %vm2773, %v2922, %v2926
    %v2928 = vshrl.u32 %v2721, 16
    %v2930 = vrot.slane %v2928, 4
    %v2931 = vor.u32 %v2930, %v2926
    %v2932 = vrot.slane %v2931, 4
    %v2934 = vshll.u32 %v2722, 16
    %v2936 = vrot.slane %v2934, 5
    %v2937 = vsel %vm2773, %v2932, %v2936
    %v2938 = vshrl.u32 %v2722, 16
    %v2940 = vrot.slane %v2938, 4
    %v2941 = vor.u32 %v2940, %v2936
    %v2942 = vrot.slane %v2941, 4
    %v2944 = vshll.u32 %v2723, 16
    %v2946 = vrot.slane %v2944, 5
    %v2947 = vsel %vm2773, %v2942, %v2946
    %v2948 = vshrl.u32 %v2723, 16
    %v2950 = vrot.slane %v2948, 4
    %v2951 = vor.u32 %v2950, %v2946
    %v2952 = vrot.slane %v2951, 4
    %v2954 = vshll.u32 %v2724, 16
    %v2956 = vrot.slane %v2954, 5
    %v2957 = vsel %vm2773, %v2952, %v2956
    %v2958 = vshrl.u32 %v2724, 16
    %v2960 = vrot.slane %v2958, 4
    %v2961 = vor.u32 %v2960, %v2956
    %v2962 = vrot.slane %v2961, 4
    %v2964 = vshll.u32 %v2725, 16
    %v2966 = vrot.slane %v2964, 5
    %v2967 = vsel %vm2773, %v2962, %v2966
    %v2968 = vshrl.u32 %v2725, 16
    %v2970 = vrot.slane %v2968, 4
    %v2971 = vor.u32 %v2970, %v2966
    %v2972 = vrot.slane %v2971, 4
    %v2974 = vshll.u32 %v2726, 16
    %v2976 = vrot.slane %v2974, 5
    %v2977 = vsel %vm2773, %v2972, %v2976
    %v2978 = vshrl.u32 %v2726, 16
    %v2980 = vrot.slane %v2978, 4
    %v2981 = vor.u32 %v2980, %v2976
    %v2982 = vrot.slane %v2981, 4
    %v2984 = vshll.u32 %v2727, 16
    %v2986 = vrot.slane %v2984, 5
    %v2987 = vsel %vm2773, %v2982, %v2986
    %v2988 = vshrl.u32 %v2727, 16
    %v2990 = vrot.slane %v2988, 4
    %v2991 = vor.u32 %v2990, %v2986
    %v2992 = vrot.slane %v2991, 4
    %v2994 = vshll.u32 %v2728, 16
    %v2996 = vrot.slane %v2994, 5
    %v2997 = vsel %vm2773, %v2992, %v2996
    %v2998 = vshrl.u32 %v2728, 16
    %v3000 = vrot.slane %v2998, 4
    %v3001 = vor.u32 %v3000, %v2996
    %v3002 = vrot.slane %v3001, 4
    %v3004 = vshll.u32 %v2729, 16
    %v3006 = vrot.slane %v3004, 5
    %v3007 = vsel %vm2773, %v3002, %v3006
    %v3008 = vshrl.u32 %v2729, 16
    %v3010 = vrot.slane %v3008, 4
    %v3011 = vor.u32 %v3010, %v3006
    %v3012 = vrot.slane %v3011, 4
    %v3014 = vshll.u32 %v2730, 16
    %v3016 = vrot.slane %v3014, 5
    %v3017 = vsel %vm2773, %v3012, %v3016
    %v3018 = vshrl.u32 %v2730, 16
    %v3020 = vrot.slane %v3018, 4
    %v3021 = vor.u32 %v3020, %v3016
    %v3022 = vrot.slane %v3021, 4
    %v3024 = vshll.u32 %v2731, 16
    %v3026 = vrot.slane %v3024, 5
    %v3027 = vsel %vm2773, %v3022, %v3026
    %v3028 = vshrl.u32 %v2731, 16
    %v3030 = vrot.slane %v3028, 4
    %v3031 = vor.u32 %v3030, %v3026
    %v3032 = vrot.slane %v3031, 4
    %v3034 = vshll.u32 %v2732, 16
    %v3036 = vrot.slane %v3034, 5
    %v3037 = vsel %vm2773, %v3032, %v3036
    %v3038 = vshrl.u32 %v2732, 16
    %v3040 = vrot.slane %v3038, 4
    %v3041 = vor.u32 %v3040, %v3036
    %v3042 = vrot.slane %v3041, 4
    %v3044 = vshll.u32 %v2733, 16
    %v3046 = vrot.slane %v3044, 5
    %v3047 = vsel %vm2773, %v3042, %v3046
    %v3048 = vshrl.u32 %v2733, 16
    %v3050 = vrot.slane %v3048, 4
    %v3051 = vor.u32 %v3050, %v3046
    %v3052 = vrot.slane %v3051, 4
    %v3054 = vshll.u32 %v2734, 16
    %v3056 = vrot.slane %v3054, 5
    %v3057 = vsel %vm2773, %v3052, %v3056
    %v3058 = vshrl.u32 %v2734, 16
    %v3060 = vrot.slane %v3058, 4
    %v3061 = vor.u32 %v3060, %v3056
    %v3062 = vrot.slane %v3061, 4
    %v3064 = vshll.u32 %v2735, 16
    %v3066 = vrot.slane %v3064, 5
    %v3067 = vsel %vm2773, %v3062, %v3066
    %v3068 = vshrl.u32 %v2735, 16
    %v3070 = vrot.slane %v3068, 4
    %v3071 = vor.u32 %v3070, %v3066
    %v3072 = vrot.slane %v3071, 4
    %v3074 = vshll.u32 %v2736, 16
    %v3076 = vrot.slane %v3074, 5
    %v3077 = vsel %vm2773, %v3072, %v3076
    %v3078 = vshrl.u32 %v2736, 16
    %v3080 = vrot.slane %v3078, 4
    %v3081 = vor.u32 %v3080, %v3076
    %v3082 = vrot.slane %v3081, 4
    %v3084 = vshll.u32 %v2737, 16
    %v3086 = vrot.slane %v3084, 5
    %v3087 = vsel %vm2773, %v3082, %v3086
    %v3088 = vshrl.u32 %v2737, 16
    %v3090 = vrot.slane %v3088, 4
    %v3091 = vor.u32 %v3090, %v3086
    %v3092 = vrot.slane %v3091, 4
    %v3094 = vshll.u32 %v2738, 16
    %v3096 = vrot.slane %v3094, 5
    %v3097 = vsel %vm2773, %v3092, %v3096
    %v3098 = vshrl.u32 %v2738, 16
    %v3100 = vrot.slane %v3098, 4
    %v3101 = vor.u32 %v3100, %v3096
    %v3102 = vrot.slane %v3101, 4
    %v3104 = vshll.u32 %v2739, 16
    %v3106 = vrot.slane %v3104, 5
    %v3107 = vsel %vm2773, %v3102, %v3106
    %v3108 = vshrl.u32 %v2739, 16
    %v3110 = vrot.slane %v3108, 4
    %v3111 = vor.u32 %v3110, %v3106
    %v3112 = vrot.slane %v3111, 4
    %v3114 = vshll.u32 %v2740, 16
    %v3116 = vrot.slane %v3114, 5
    %v3117 = vsel %vm2773, %v3112, %v3116
    %v3118 = vshrl.u32 %v2740, 16
    %v3120 = vrot.slane %v3118, 4
    %v3121 = vor.u32 %v3120, %v3116
    %v3122 = vrot.slane %v3121, 4
    %v3124 = vshll.u32 %v2741, 16
    %v3126 = vrot.slane %v3124, 5
    %v3127 = vsel %vm2773, %v3122, %v3126
    %v3128 = vshrl.u32 %v2741, 16
    %v3130 = vrot.slane %v3128, 4
    %v3131 = vor.u32 %v3130, %v3126
    %v3132 = vrot.slane %v3131, 4
    %v3134 = vshll.u32 %v2742, 16
    %v3136 = vrot.slane %v3134, 5
    %v3137 = vsel %vm2773, %v3132, %v3136
    %v3138 = vshrl.u32 %v2742, 16
    %v3140 = vrot.slane %v3138, 4
    %v3141 = vor.u32 %v3140, %v3136
    %v3142 = vrot.slane %v3141, 4
    %v3144 = vshll.u32 %v2743, 16
    %v3146 = vrot.slane %v3144, 5
    %v3147 = vsel %vm2773, %v3142, %v3146
    %v3148 = vshrl.u32 %v2743, 16
    %v3150 = vrot.slane %v3148, 4
    %v3151 = vor.u32 %v3150, %v3146
    %v3152 = vrot.slane %v3151, 4
    %v3154 = vshll.u32 %v2744, 16
    %v3156 = vrot.slane %v3154, 5
    %v3157 = vsel %vm2773, %v3152, %v3156
    %v3158 = vshrl.u32 %v2744, 16
    %v3160 = vrot.slane %v3158, 4
    %v3161 = vor.u32 %v3160, %v3156
    %v3162 = vrot.slane %v3161, 4
    %v3164 = vshll.u32 %v2745, 16
    %v3166 = vrot.slane %v3164, 5
    %v3167 = vsel %vm2773, %v3162, %v3166
    %v3168 = vshrl.u32 %v2745, 16
    %v3170 = vrot.slane %v3168, 4
    %v3171 = vor.u32 %v3170, %v3166
    %v3172 = vrot.slane %v3171, 4
    %v3174 = vshll.u32 %v2746, 16
    %v3176 = vrot.slane %v3174, 5
    %v3177 = vsel %vm2773, %v3172, %v3176
    %v3178 = vshrl.u32 %v2746, 16
    %v3180 = vrot.slane %v3178, 4
    %v3181 = vor.u32 %v3180, %v3176
    %v3182 = vrot.slane %v3181, 4
    %v3184 = vshll.u32 %v2747, 16
    %v3186 = vrot.slane %v3184, 5
    %v3187 = vsel %vm2773, %v3182, %v3186
    %v3188 = vshrl.u32 %v2747, 16
    %v3190 = vrot.slane %v3188, 4
    %v3191 = vor.u32 %v3190, %v3186
    %v3192 = vrot.slane %v3191, 4
    %v3194 = vshll.u32 %v2748, 16
    %v3196 = vrot.slane %v3194, 5
    %v3197 = vsel %vm2773, %v3192, %v3196
    %v3198 = vshrl.u32 %v2748, 16
    %v3200 = vrot.slane %v3198, 4
    %v3201 = vor.u32 %v3200, %v3196
    %v3202 = vrot.slane %v3201, 4
    %v3204 = vshll.u32 %v2749, 16
    %v3206 = vrot.slane %v3204, 5
    %v3207 = vsel %vm2773, %v3202, %v3206
    %v3208 = vshrl.u32 %v2749, 16
    %v3210 = vrot.slane %v3208, 4
    %v3211 = vor.u32 %v3210, %v3206
    %v3212 = vrot.slane %v3211, 4
    %v3214 = vshll.u32 %v2750, 16
    %v3216 = vrot.slane %v3214, 5
    %v3217 = vsel %vm2773, %v3212, %v3216
    %v3218 = vshrl.u32 %v2750, 16
    %v3220 = vrot.slane %v3218, 4
    %v3221 = vor.u32 %v3220, %v3216
    %v3222 = vrot.slane %v3221, 4
    %v3224 = vshll.u32 %v2751, 16
    %v3226 = vrot.slane %v3224, 5
    %v3227 = vsel %vm2773, %v3222, %v3226
    %v3228 = vshrl.u32 %v2751, 16
    %v3230 = vrot.slane %v3228, 4
    %v3231 = vor.u32 %v3230, %v3226
    %v3232 = vrot.slane %v3231, 4
    %v3234 = vshll.u32 %v2752, 16
    %v3236 = vrot.slane %v3234, 5
    %v3237 = vsel %vm2773, %v3232, %v3236
    %v3238 = vshrl.u32 %v2752, 16
    %v3240 = vrot.slane %v3238, 4
    %v3241 = vor.u32 %v3240, %v3236
    %v3242 = vrot.slane %v3241, 4
    %v3244 = vshll.u32 %v2753, 16
    %v3246 = vrot.slane %v3244, 5
    %v3247 = vsel %vm2773, %v3242, %v3246
    %v3248 = vshrl.u32 %v2753, 16
    %v3250 = vrot.slane %v3248, 4
    %v3251 = vor.u32 %v3250, %v3246
    %v3252 = vrot.slane %v3251, 4
    %v3254 = vshll.u32 %v2754, 16
    %v3256 = vrot.slane %v3254, 5
    %v3257 = vsel %vm2773, %v3252, %v3256
    %v3258 = vshrl.u32 %v2754, 16
    %v3260 = vrot.slane %v3258, 4
    %v3261 = vor.u32 %v3260, %v3256
    %v3262 = vrot.slane %v3261, 4
    %v3264 = vshll.u32 %v2755, 16
    %v3266 = vrot.slane %v3264, 5
    %v3267 = vsel %vm2773, %v3262, %v3266
    %v3268 = vshrl.u32 %v2755, 16
    %v3270 = vrot.slane %v3268, 4
    %v3271 = vor.u32 %v3270, %v3266
    %v3272 = vrot.slane %v3271, 4
    %v3274 = vshll.u32 %v2756, 16
    %v3276 = vrot.slane %v3274, 5
    %v3277 = vsel %vm2773, %v3272, %v3276
    %v3278 = vshrl.u32 %v2756, 16
    %v3280 = vrot.slane %v3278, 4
    %v3281 = vor.u32 %v3280, %v3276
    %v3282 = vrot.slane %v3281, 4
    %v3284 = vshll.u32 %v2757, 16
    %v3286 = vrot.slane %v3284, 5
    %v3287 = vsel %vm2773, %v3282, %v3286
    %v3288 = vshrl.u32 %v2757, 16
    %v3290 = vrot.slane %v3288, 4
    %v3291 = vor.u32 %v3290, %v3286
    %v3292 = vrot.slane %v3291, 4
    %v3294 = vshll.u32 %v2758, 16
    %v3296 = vrot.slane %v3294, 5
    %v3297 = vsel %vm2773, %v3292, %v3296
    %v3298 = vshrl.u32 %v2758, 16
    %v3300 = vrot.slane %v3298, 4
    %v3301 = vor.u32 %v3300, %v3296
    %v3302 = vrot.slane %v3301, 4
    %v3304 = vshll.u32 %v2759, 16
    %v3306 = vrot.slane %v3304, 5
    %v3307 = vsel %vm2773, %v3302, %v3306
    %v3308 = vshrl.u32 %v2759, 16
    %v3310 = vrot.slane %v3308, 4
    %v3311 = vor.u32 %v3310, %v3306
    %v3312 = vrot.slane %v3311, 4
    %v3314 = vshll.u32 %v2760, 16
    %v3316 = vrot.slane %v3314, 5
    %v3317 = vsel %vm2773, %v3312, %v3316
    %v3318 = vshrl.u32 %v2760, 16
    %v3320 = vrot.slane %v3318, 4
    %v3321 = vor.u32 %v3320, %v3316
    %v3322 = vrot.slane %v3321, 4
    %v3324 = vshll.u32 %v2761, 16
    %v3326 = vrot.slane %v3324, 5
    %v3327 = vsel %vm2773, %v3322, %v3326
    %v3328 = vshrl.u32 %v2761, 16
    %v3330 = vrot.slane %v3328, 4
    %v3331 = vor.u32 %v3330, %v3326
    %v3332 = vrot.slane %v3331, 4
    %v3334 = vshll.u32 %v2762, 16
    %v3336 = vrot.slane %v3334, 5
    %v3337 = vsel %vm2773, %v3332, %v3336
    %v3338 = vshrl.u32 %v2762, 16
    %v3340 = vrot.slane %v3338, 4
    %v3341 = vor.u32 %v3340, %v3336
    %v3342 = vrot.slane %v3341, 4
    %v3344 = vshll.u32 %v2763, 16
    %v3346 = vrot.slane %v3344, 5
    %v3347 = vsel %vm2773, %v3342, %v3346
    %v3348 = vshrl.u32 %v2763, 16
    %v3350 = vrot.slane %v3348, 4
    %v3351 = vor.u32 %v3350, %v3346
    %v3352 = vrot.slane %v3351, 4
    %v3354 = vshll.u32 %v2764, 16
    %v3356 = vrot.slane %v3354, 5
    %v3357 = vsel %vm2773, %v3352, %v3356
    %v3358 = vshrl.u32 %v2764, 16
    %v3360 = vrot.slane %v3358, 4
    %v3361 = vor.u32 %v3360, %v3356
    %v3362 = vrot.slane %v3361, 4
    %v3364 = vshll.u32 %v2765, 16
    %v3366 = vrot.slane %v3364, 5
    %v3367 = vsel %vm2773, %v3362, %v3366
    %v3368 = vshrl.u32 %v2765, 16
    %v3370 = vrot.slane %v3368, 4
    %v3371 = vor.u32 %v3370, %v3366
    %v3372 = vrot.slane %v3371, 4
    %v3374 = vshll.u32 %v2766, 16
    %v3376 = vrot.slane %v3374, 5
    %v3377 = vsel %vm2773, %v3372, %v3376
    %v3378 = vshrl.u32 %v2766, 16
    %v3380 = vrot.slane %v3378, 4
    %v3381 = vor.u32 %v3380, %v3376
    %v3382 = vrot.slane %v3381, 4
    %v3384 = vshll.u32 %v2767, 16
    %v3386 = vrot.slane %v3384, 5
    %v3387 = vsel %vm2773, %v3382, %v3386
    %v3388 = vshrl.u32 %v2767, 16
    %v3390 = vrot.slane %v3388, 4
    %v3391 = vor.u32 %v3390, %v3386
    %v3392 = vrot.slane %v3391, 4
    %v3394 = vshll.u32 %v2768, 16
    %v3396 = vrot.slane %v3394, 5
    %v3397 = vsel %vm2773, %v3392, %v3396
    %v3398 = vshrl.u32 %v2768, 16
    %v3400 = vrot.slane %v3398, 4
    %v3401 = vor.u32 %v3400, %v3396
    %v3402 = vrot.slane %v3401, 4
    %v3404 = vshll.u32 %v2769, 16
    %v3406 = vrot.slane %v3404, 5
    %v3407 = vsel %vm2773, %v3402, %v3406
    %v3408 = vshrl.u32 %v2769, 16
    %v3410 = vrot.slane %v3408, 4
    %v3411 = vor.u32 %v3410, %v3406
    %v3412 = vrot.slane %v3411, 4
    %v3414 = vshll.u32 %v2770, 16
    %v3416 = vrot.slane %v3414, 5
    %v3417 = vsel %vm2773, %v3412, %v3416
    %3482 = vst [vmem:[#allocation4 + $0xc] sm:$0xf] %v2787
    %3483 = vst [vmem:[#allocation4 + $0x20] sm:$0xf] %v2797
    %3484 = vst [vmem:[#allocation4 + $0x34] sm:$0xf] %v2807
    %3485 = vst [vmem:[#allocation4 + $0x48] sm:$0xf] %v2817
    %3486 = vst [vmem:[#allocation4 + $0x5c] sm:$0xf] %v2827
    %3487 = vst [vmem:[#allocation4 + $0x70] sm:$0xf] %v2837
    %3488 = vst [vmem:[#allocation4 + $0x84] sm:$0xf] %v2847
    %3489 = vst [vmem:[#allocation4 + $0x98] sm:$0xf] %v2857
    %3490 = vst [vmem:[#allocation4 + $0xac] sm:$0xf] %v2867
    %3491 = vst [vmem:[#allocation4 + $0xc0] sm:$0xf] %v2877
    %3492 = vst [vmem:[#allocation4 + $0xd4] sm:$0xf] %v2887
    %3493 = vst [vmem:[#allocation4 + $0xe8] sm:$0xf] %v2897
    %3494 = vst [vmem:[#allocation4 + $0xfc] sm:$0xf] %v2907
    %3495 = vst [vmem:[#allocation4 + $0x110] sm:$0xf] %v2917
    %3496 = vst [vmem:[#allocation4 + $0x124] sm:$0xf] %v2927
    %3497 = vst [vmem:[#allocation4 + $0x138] sm:$0xf] %v2937
    %3498 = vst [vmem:[#allocation4 + $0x14c] sm:$0xf] %v2947
    %3499 = vst [vmem:[#allocation4 + $0x160] sm:$0xf] %v2957
    %3500 = vst [vmem:[#allocation4 + $0x174] sm:$0xf] %v2967
    %3501 = vst [vmem:[#allocation4 + $0x188] sm:$0xf] %v2977
    %3502 = vst [vmem:[#allocation4 + $0x19c] sm:$0xf] %v2987
    %3503 = vst [vmem:[#allocation4 + $0x1b0] sm:$0xf] %v2997
    %3504 = vst [vmem:[#allocation4 + $0x1c4] sm:$0xf] %v3007
    %3505 = vst [vmem:[#allocation4 + $0x1d8] sm:$0xf] %v3017
    %3506 = vst [vmem:[#allocation4 + $0x1ec] sm:$0xf] %v3027
    %3507 = vst [vmem:[#allocation4 + $0x200] sm:$0xf] %v3037
    %3508 = vst [vmem:[#allocation4 + $0x214] sm:$0xf] %v3047
    %3509 = vst [vmem:[#allocation4 + $0x228] sm:$0xf] %v3057
    %3510 = vst [vmem:[#allocation4 + $0x23c] sm:$0xf] %v3067
    %3511 = vst [vmem:[#allocation4 + $0x250] sm:$0xf] %v3077
    %3512 = vst [vmem:[#allocation4 + $0x264] sm:$0xf] %v3087
    %3513 = vst [vmem:[#allocation4 + $0x278] sm:$0xf] %v3097
    %3514 = vst [vmem:[#allocation4 + $0x28c] sm:$0xf] %v3107
    %3515 = vst [vmem:[#allocation4 + $0x2a0] sm:$0xf] %v3117
    %3516 = vst [vmem:[#allocation4 + $0x2b4] sm:$0xf] %v3127
    %3517 = vst [vmem:[#allocation4 + $0x2c8] sm:$0xf] %v3137
    %3518 = vst [vmem:[#allocation4 + $0x2dc] sm:$0xf] %v3147
    %3519 = vst [vmem:[#allocation4 + $0x2f0] sm:$0xf] %v3157
    %3520 = vst [vmem:[#allocation4 + $0x304] sm:$0xf] %v3167
    %3521 = vst [vmem:[#allocation4 + $0x318] sm:$0xf] %v3177
    %3522 = vst [vmem:[#allocation4 + $0x32c] sm:$0xf] %v3187
    %3523 = vst [vmem:[#allocation4 + $0x340] sm:$0xf] %v3197
    %3524 = vst [vmem:[#allocation4 + $0x354] sm:$0xf] %v3207
    %3525 = vst [vmem:[#allocation4 + $0x368] sm:$0xf] %v3217
    %3526 = vst [vmem:[#allocation4 + $0x37c] sm:$0xf] %v3227
    %3527 = vst [vmem:[#allocation4 + $0x390] sm:$0xf] %v3237
    %3528 = vst [vmem:[#allocation4 + $0x3a4] sm:$0xf] %v3247
    %3529 = vst [vmem:[#allocation4 + $0x3b8] sm:$0xf] %v3257
    %3530 = vst [vmem:[#allocation4 + $0x3cc] sm:$0xf] %v3267
    %3531 = vst [vmem:[#allocation4 + $0x3e0] sm:$0xf] %v3277
    %3532 = vst [vmem:[#allocation4 + $0x3f4] sm:$0xf] %v3287
    %3533 = vst [vmem:[#allocation4 + $0x408] sm:$0xf] %v3297
    %3534 = vst [vmem:[#allocation4 + $0x41c] sm:$0xf] %v3307
    %3535 = vst [vmem:[#allocation4 + $0x430] sm:$0xf] %v3317
    %3536 = vst [vmem:[#allocation4 + $0x444] sm:$0xf] %v3327
    %3537 = vst [vmem:[#allocation4 + $0x458] sm:$0xf] %v3337
    %3538 = vst [vmem:[#allocation4 + $0x46c] sm:$0xf] %v3347
    %3539 = vst [vmem:[#allocation4 + $0x480] sm:$0xf] %v3357
    %3540 = vst [vmem:[#allocation4 + $0x494] sm:$0xf] %v3367
    %3541 = vst [vmem:[#allocation4 + $0x4a8] sm:$0xf] %v3377
    %3542 = vst [vmem:[#allocation4 + $0x4bc] sm:$0xf] %v3387
    %3543 = vst [vmem:[#allocation4 + $0x4d0] sm:$0xf] %v3397
    %3544 = vst [vmem:[#allocation4 + $0x4e4] sm:$0xf] %v3407
    %3545 = vst [vmem:[#allocation4 + $0x4f8] sm:$0xf] %v3417
    %v3546 = vld [vmem:[#allocation2 + $0x8] sm:$0xe]
    %v3547 = vld [vmem:[#allocation2 + $0xc] sm:$0xf]
    %v3548 = vld [vmem:[#allocation2 + $0x10] sm:$0xf]
    %v3549 = vld [vmem:[#allocation2 + $0x14] sm:$0xf]
    %v3550 = vld [vmem:[#allocation2 + $0x18] sm:$0xf]
    %v3551 = vld [vmem:[#allocation2 + $0x1c] sm:$0xf]
    %v3552 = vld [vmem:[#allocation2 + $0x20] sm:$0xf]
    %v3553 = vld [vmem:[#allocation2 + $0x24] sm:$0xf]
    %v3554 = vld [vmem:[#allocation2 + $0x28] sm:$0xf]
    %v3555 = vld [vmem:[#allocation2 + $0x2c] sm:$0xf]
    %v3556 = vld [vmem:[#allocation2 + $0x30] sm:$0xf]
    %v3557 = vld [vmem:[#allocation2 + $0x34] sm:$0xf]
    %v3558 = vld [vmem:[#allocation2 + $0x38] sm:$0xf]
    %v3559 = vld [vmem:[#allocation2 + $0x3c] sm:$0xf]
    %v3560 = vld [vmem:[#allocation2 + $0x40] sm:$0xf]
    %v3561 = vld [vmem:[#allocation2 + $0x44] sm:$0xf]
    %v3562 = vld [vmem:[#allocation2 + $0x48] sm:$0xf]
    %v3563 = vld [vmem:[#allocation2 + $0x4c] sm:$0xf]
    %v3564 = vld [vmem:[#allocation2 + $0x50] sm:$0xf]
    %v3565 = vld [vmem:[#allocation2 + $0x54] sm:$0xf]
    %v3566 = vld [vmem:[#allocation2 + $0x58] sm:$0xf]
    %v3567 = vld [vmem:[#allocation2 + $0x5c] sm:$0xf]
    %v3568 = vld [vmem:[#allocation2 + $0x60] sm:$0xf]
    %v3569 = vld [vmem:[#allocation2 + $0x64] sm:$0xf]
    %v3570 = vld [vmem:[#allocation2 + $0x68] sm:$0xf]
    %v3571 = vld [vmem:[#allocation2 + $0x6c] sm:$0xf]
    %v3572 = vld [vmem:[#allocation2 + $0x70] sm:$0xf]
    %v3573 = vld [vmem:[#allocation2 + $0x74] sm:$0xf]
    %v3574 = vld [vmem:[#allocation2 + $0x78] sm:$0xf]
    %v3575 = vld [vmem:[#allocation2 + $0x7c] sm:$0xf]
    %v3576 = vld [vmem:[#allocation2 + $0x80] sm:$0xf]
    %v3577 = vld [vmem:[#allocation2 + $0x84] sm:$0xf]
    %v3578 = vld [vmem:[#allocation2 + $0x88] sm:$0xf]
    %v3579 = vld [vmem:[#allocation2 + $0x8c] sm:$0xf]
    %v3580 = vld [vmem:[#allocation2 + $0x90] sm:$0xf]
    %v3581 = vld [vmem:[#allocation2 + $0x94] sm:$0xf]
    %v3582 = vld [vmem:[#allocation2 + $0x98] sm:$0xf]
    %v3583 = vld [vmem:[#allocation2 + $0x9c] sm:$0xf]
    %v3584 = vld [vmem:[#allocation2 + $0xa0] sm:$0xf]
    %v3585 = vld [vmem:[#allocation2 + $0xa4] sm:$0xf]
    %v3586 = vld [vmem:[#allocation2 + $0xa8] sm:$0xf]
    %v3587 = vld [vmem:[#allocation2 + $0xac] sm:$0xf]
    %v3588 = vld [vmem:[#allocation2 + $0xb0] sm:$0xf]
    %v3589 = vld [vmem:[#allocation2 + $0xb4] sm:$0xf]
    %v3590 = vld [vmem:[#allocation2 + $0xb8] sm:$0xf]
    %v3591 = vld [vmem:[#allocation2 + $0xbc] sm:$0xf]
    %v3592 = vld [vmem:[#allocation2 + $0xc0] sm:$0xf]
    %v3593 = vld [vmem:[#allocation2 + $0xc4] sm:$0xf]
    %v3594 = vld [vmem:[#allocation2 + $0xc8] sm:$0xf]
    %v3595 = vld [vmem:[#allocation2 + $0xcc] sm:$0xf]
    %v3596 = vld [vmem:[#allocation2 + $0xd0] sm:$0xf]
    %v3597 = vld [vmem:[#allocation2 + $0xd4] sm:$0xf]
    %v3598 = vld [vmem:[#allocation2 + $0xd8] sm:$0xf]
    %v3599 = vld [vmem:[#allocation2 + $0xdc] sm:$0xf]
    %v3600 = vld [vmem:[#allocation2 + $0xe0] sm:$0xf]
    %v3601 = vld [vmem:[#allocation2 + $0xe4] sm:$0xf]
    %v3602 = vld [vmem:[#allocation2 + $0xe8] sm:$0xf]
    %v3603 = vld [vmem:[#allocation2 + $0xec] sm:$0xf]
    %v3604 = vld [vmem:[#allocation2 + $0xf0] sm:$0xf]
    %v3605 = vld [vmem:[#allocation2 + $0xf4] sm:$0xf]
    %v3606 = vld [vmem:[#allocation2 + $0xf8] sm:$0xf]
    %v3607 = vld [vmem:[#allocation2 + $0xfc] sm:$0xf]
    %v3608 = vld [vmem:[#allocation2 + $0x100] sm:$0xf]
    %v3609 = vld [vmem:[#allocation2 + $0x104] sm:$0xf]
    %v3610 = vld [vmem:[#allocation2 + $0x108] sm:$0x1]
    %vm3676 = vcmask 1042432
    %vm3677 = vcmask 1046532
    %vm3678 = vmor %vm3676, %vm3677
    %v3679 = vrot.slane %v3546, 5
    %v3680 = vrot.slane %v3679, 4
    %v3681 = vrot.slane %v3547, 5
    %v3682 = vsel %vm3678, %v3680, %v3681
    %v3683 = vrot.slane %v3681, 4
    %v3684 = vrot.slane %v3548, 5
    %v3685 = vsel %vm3678, %v3683, %v3684
    %v3686 = vrot.slane %v3684, 4
    %v3687 = vrot.slane %v3549, 5
    %v3688 = vsel %vm3678, %v3686, %v3687
    %v3689 = vrot.slane %v3687, 4
    %v3690 = vrot.slane %v3550, 5
    %v3691 = vsel %vm3678, %v3689, %v3690
    %v3692 = vrot.slane %v3690, 4
    %v3693 = vrot.slane %v3551, 5
    %v3694 = vsel %vm3678, %v3692, %v3693
    %v3695 = vrot.slane %v3693, 4
    %v3696 = vrot.slane %v3552, 5
    %v3697 = vsel %vm3678, %v3695, %v3696
    %v3698 = vrot.slane %v3696, 4
    %v3699 = vrot.slane %v3553, 5
    %v3700 = vsel %vm3678, %v3698, %v3699
    %v3701 = vrot.slane %v3699, 4
    %v3702 = vrot.slane %v3554, 5
    %v3703 = vsel %vm3678, %v3701, %v3702
    %v3704 = vrot.slane %v3702, 4
    %v3705 = vrot.slane %v3555, 5
    %v3706 = vsel %vm3678, %v3704, %v3705
    %v3707 = vrot.slane %v3705, 4
    %v3708 = vrot.slane %v3556, 5
    %v3709 = vsel %vm3678, %v3707, %v3708
    %v3710 = vrot.slane %v3708, 4
    %v3711 = vrot.slane %v3557, 5
    %v3712 = vsel %vm3678, %v3710, %v3711
    %v3713 = vrot.slane %v3711, 4
    %v3714 = vrot.slane %v3558, 5
    %v3715 = vsel %vm3678, %v3713, %v3714
    %v3716 = vrot.slane %v3714, 4
    %v3717 = vrot.slane %v3559, 5
    %v3718 = vsel %vm3678, %v3716, %v3717
    %v3719 = vrot.slane %v3717, 4
    %v3720 = vrot.slane %v3560, 5
    %v3721 = vsel %vm3678, %v3719, %v3720
    %v3722 = vrot.slane %v3720, 4
    %v3723 = vrot.slane %v3561, 5
    %v3724 = vsel %vm3678, %v3722, %v3723
    %v3725 = vrot.slane %v3723, 4
    %v3726 = vrot.slane %v3562, 5
    %v3727 = vsel %vm3678, %v3725, %v3726
    %v3728 = vrot.slane %v3726, 4
    %v3729 = vrot.slane %v3563, 5
    %v3730 = vsel %vm3678, %v3728, %v3729
    %v3731 = vrot.slane %v3729, 4
    %v3732 = vrot.slane %v3564, 5
    %v3733 = vsel %vm3678, %v3731, %v3732
    %v3734 = vrot.slane %v3732, 4
    %v3735 = vrot.slane %v3565, 5
    %v3736 = vsel %vm3678, %v3734, %v3735
    %v3737 = vrot.slane %v3735, 4
    %v3738 = vrot.slane %v3566, 5
    %v3739 = vsel %vm3678, %v3737, %v3738
    %v3740 = vrot.slane %v3738, 4
    %v3741 = vrot.slane %v3567, 5
    %v3742 = vsel %vm3678, %v3740, %v3741
    %v3743 = vrot.slane %v3741, 4
    %v3744 = vrot.slane %v3568, 5
    %v3745 = vsel %vm3678, %v3743, %v3744
    %v3746 = vrot.slane %v3744, 4
    %v3747 = vrot.slane %v3569, 5
    %v3748 = vsel %vm3678, %v3746, %v3747
    %v3749 = vrot.slane %v3747, 4
    %v3750 = vrot.slane %v3570, 5
    %v3751 = vsel %vm3678, %v3749, %v3750
    %v3752 = vrot.slane %v3750, 4
    %v3753 = vrot.slane %v3571, 5
    %v3754 = vsel %vm3678, %v3752, %v3753
    %v3755 = vrot.slane %v3753, 4
    %v3756 = vrot.slane %v3572, 5
    %v3757 = vsel %vm3678, %v3755, %v3756
    %v3758 = vrot.slane %v3756, 4
    %v3759 = vrot.slane %v3573, 5
    %v3760 = vsel %vm3678, %v3758, %v3759
    %v3761 = vrot.slane %v3759, 4
    %v3762 = vrot.slane %v3574, 5
    %v3763 = vsel %vm3678, %v3761, %v3762
    %v3764 = vrot.slane %v3762, 4
    %v3765 = vrot.slane %v3575, 5
    %v3766 = vsel %vm3678, %v3764, %v3765
    %v3767 = vrot.slane %v3765, 4
    %v3768 = vrot.slane %v3576, 5
    %v3769 = vsel %vm3678, %v3767, %v3768
    %v3770 = vrot.slane %v3768, 4
    %v3771 = vrot.slane %v3577, 5
    %v3772 = vsel %vm3678, %v3770, %v3771
    %v3773 = vrot.slane %v3771, 4
    %v3774 = vrot.slane %v3578, 5
    %v3775 = vsel %vm3678, %v3773, %v3774
    %v3776 = vrot.slane %v3774, 4
    %v3777 = vrot.slane %v3579, 5
    %v3778 = vsel %vm3678, %v3776, %v3777
    %v3779 = vrot.slane %v3777, 4
    %v3780 = vrot.slane %v3580, 5
    %v3781 = vsel %vm3678, %v3779, %v3780
    %v3782 = vrot.slane %v3780, 4
    %v3783 = vrot.slane %v3581, 5
    %v3784 = vsel %vm3678, %v3782, %v3783
    %v3785 = vrot.slane %v3783, 4
    %v3786 = vrot.slane %v3582, 5
    %v3787 = vsel %vm3678, %v3785, %v3786
    %v3788 = vrot.slane %v3786, 4
    %v3789 = vrot.slane %v3583, 5
    %v3790 = vsel %vm3678, %v3788, %v3789
    %v3791 = vrot.slane %v3789, 4
    %v3792 = vrot.slane %v3584, 5
    %v3793 = vsel %vm3678, %v3791, %v3792
    %v3794 = vrot.slane %v3792, 4
    %v3795 = vrot.slane %v3585, 5
    %v3796 = vsel %vm3678, %v3794, %v3795
    %v3797 = vrot.slane %v3795, 4
    %v3798 = vrot.slane %v3586, 5
    %v3799 = vsel %vm3678, %v3797, %v3798
    %v3800 = vrot.slane %v3798, 4
    %v3801 = vrot.slane %v3587, 5
    %v3802 = vsel %vm3678, %v3800, %v3801
    %v3803 = vrot.slane %v3801, 4
    %v3804 = vrot.slane %v3588, 5
    %v3805 = vsel %vm3678, %v3803, %v3804
    %v3806 = vrot.slane %v3804, 4
    %v3807 = vrot.slane %v3589, 5
    %v3808 = vsel %vm3678, %v3806, %v3807
    %v3809 = vrot.slane %v3807, 4
    %v3810 = vrot.slane %v3590, 5
    %v3811 = vsel %vm3678, %v3809, %v3810
    %v3812 = vrot.slane %v3810, 4
    %v3813 = vrot.slane %v3591, 5
    %v3814 = vsel %vm3678, %v3812, %v3813
    %v3815 = vrot.slane %v3813, 4
    %v3816 = vrot.slane %v3592, 5
    %v3817 = vsel %vm3678, %v3815, %v3816
    %v3818 = vrot.slane %v3816, 4
    %v3819 = vrot.slane %v3593, 5
    %v3820 = vsel %vm3678, %v3818, %v3819
    %v3821 = vrot.slane %v3819, 4
    %v3822 = vrot.slane %v3594, 5
    %v3823 = vsel %vm3678, %v3821, %v3822
    %v3824 = vrot.slane %v3822, 4
    %v3825 = vrot.slane %v3595, 5
    %v3826 = vsel %vm3678, %v3824, %v3825
    %v3827 = vrot.slane %v3825, 4
    %v3828 = vrot.slane %v3596, 5
    %v3829 = vsel %vm3678, %v3827, %v3828
    %v3830 = vrot.slane %v3828, 4
    %v3831 = vrot.slane %v3597, 5
    %v3832 = vsel %vm3678, %v3830, %v3831
    %v3833 = vrot.slane %v3831, 4
    %v3834 = vrot.slane %v3598, 5
    %v3835 = vsel %vm3678, %v3833, %v3834
    %v3836 = vrot.slane %v3834, 4
    %v3837 = vrot.slane %v3599, 5
    %v3838 = vsel %vm3678, %v3836, %v3837
    %v3839 = vrot.slane %v3837, 4
    %v3840 = vrot.slane %v3600, 5
    %v3841 = vsel %vm3678, %v3839, %v3840
    %v3842 = vrot.slane %v3840, 4
    %v3843 = vrot.slane %v3601, 5
    %v3844 = vsel %vm3678, %v3842, %v3843
    %v3845 = vrot.slane %v3843, 4
    %v3846 = vrot.slane %v3602, 5
    %v3847 = vsel %vm3678, %v3845, %v3846
    %v3848 = vrot.slane %v3846, 4
    %v3849 = vrot.slane %v3603, 5
    %v3850 = vsel %vm3678, %v3848, %v3849
    %v3851 = vrot.slane %v3849, 4
    %v3852 = vrot.slane %v3604, 5
    %v3853 = vsel %vm3678, %v3851, %v3852
    %v3854 = vrot.slane %v3852, 4
    %v3855 = vrot.slane %v3605, 5
    %v3856 = vsel %vm3678, %v3854, %v3855
    %v3857 = vrot.slane %v3855, 4
    %v3858 = vrot.slane %v3606, 5
    %v3859 = vsel %vm3678, %v3857, %v3858
    %v3860 = vrot.slane %v3858, 4
    %v3861 = vrot.slane %v3607, 5
    %v3862 = vsel %vm3678, %v3860, %v3861
    %v3863 = vrot.slane %v3861, 4
    %v3864 = vrot.slane %v3608, 5
    %v3865 = vsel %vm3678, %v3863, %v3864
    %v3866 = vrot.slane %v3864, 4
    %v3867 = vrot.slane %v3609, 5
    %v3868 = vsel %vm3678, %v3866, %v3867
    %v3869 = vrot.slane %v3867, 4
    %v3870 = vrot.slane %v3610, 5
    %v3871 = vsel %vm3678, %v3869, %v3870
    %3936 = vst [vmem:[#allocation4 + $0x10] sm:$0xf] %v3682
    %3937 = vst [vmem:[#allocation4 + $0x24] sm:$0xf] %v3685
    %3938 = vst [vmem:[#allocation4 + $0x38] sm:$0xf] %v3688
    %3939 = vst [vmem:[#allocation4 + $0x4c] sm:$0xf] %v3691
    %3940 = vst [vmem:[#allocation4 + $0x60] sm:$0xf] %v3694
    %3941 = vst [vmem:[#allocation4 + $0x74] sm:$0xf] %v3697
    %3942 = vst [vmem:[#allocation4 + $0x88] sm:$0xf] %v3700
    %3943 = vst [vmem:[#allocation4 + $0x9c] sm:$0xf] %v3703
    %3944 = vst [vmem:[#allocation4 + $0xb0] sm:$0xf] %v3706
    %3945 = vst [vmem:[#allocation4 + $0xc4] sm:$0xf] %v3709
    %3946 = vst [vmem:[#allocation4 + $0xd8] sm:$0xf] %v3712
    %3947 = vst [vmem:[#allocation4 + $0xec] sm:$0xf] %v3715
    %3948 = vst [vmem:[#allocation4 + $0x100] sm:$0xf] %v3718
    %3949 = vst [vmem:[#allocation4 + $0x114] sm:$0xf] %v3721
    %3950 = vst [vmem:[#allocation4 + $0x128] sm:$0xf] %v3724
    %3951 = vst [vmem:[#allocation4 + $0x13c] sm:$0xf] %v3727
    %3952 = vst [vmem:[#allocation4 + $0x150] sm:$0xf] %v3730
    %3953 = vst [vmem:[#allocation4 + $0x164] sm:$0xf] %v3733
    %3954 = vst [vmem:[#allocation4 + $0x178] sm:$0xf] %v3736
    %3955 = vst [vmem:[#allocation4 + $0x18c] sm:$0xf] %v3739
    %3956 = vst [vmem:[#allocation4 + $0x1a0] sm:$0xf] %v3742
    %3957 = vst [vmem:[#allocation4 + $0x1b4] sm:$0xf] %v3745
    %3958 = vst [vmem:[#allocation4 + $0x1c8] sm:$0xf] %v3748
    %3959 = vst [vmem:[#allocation4 + $0x1dc] sm:$0xf] %v3751
    %3960 = vst [vmem:[#allocation4 + $0x1f0] sm:$0xf] %v3754
    %3961 = vst [vmem:[#allocation4 + $0x204] sm:$0xf] %v3757
    %3962 = vst [vmem:[#allocation4 + $0x218] sm:$0xf] %v3760
    %3963 = vst [vmem:[#allocation4 + $0x22c] sm:$0xf] %v3763
    %3964 = vst [vmem:[#allocation4 + $0x240] sm:$0xf] %v3766
    %3965 = vst [vmem:[#allocation4 + $0x254] sm:$0xf] %v3769
    %3966 = vst [vmem:[#allocation4 + $0x268] sm:$0xf] %v3772
    %3967 = vst [vmem:[#allocation4 + $0x27c] sm:$0xf] %v3775
    %3968 = vst [vmem:[#allocation4 + $0x290] sm:$0xf] %v3778
    %3969 = vst [vmem:[#allocation4 + $0x2a4] sm:$0xf] %v3781
    %3970 = vst [vmem:[#allocation4 + $0x2b8] sm:$0xf] %v3784
    %3971 = vst [vmem:[#allocation4 + $0x2cc] sm:$0xf] %v3787
    %3972 = vst [vmem:[#allocation4 + $0x2e0] sm:$0xf] %v3790
    %3973 = vst [vmem:[#allocation4 + $0x2f4] sm:$0xf] %v3793
    %3974 = vst [vmem:[#allocation4 + $0x308] sm:$0xf] %v3796
    %3975 = vst [vmem:[#allocation4 + $0x31c] sm:$0xf] %v3799
    %3976 = vst [vmem:[#allocation4 + $0x330] sm:$0xf] %v3802
    %3977 = vst [vmem:[#allocation4 + $0x344] sm:$0xf] %v3805
    %3978 = vst [vmem:[#allocation4 + $0x358] sm:$0xf] %v3808
    %3979 = vst [vmem:[#allocation4 + $0x36c] sm:$0xf] %v3811
    %3980 = vst [vmem:[#allocation4 + $0x380] sm:$0xf] %v3814
    %3981 = vst [vmem:[#allocation4 + $0x394] sm:$0xf] %v3817
    %3982 = vst [vmem:[#allocation4 + $0x3a8] sm:$0xf] %v3820
    %3983 = vst [vmem:[#allocation4 + $0x3bc] sm:$0xf] %v3823
    %3984 = vst [vmem:[#allocation4 + $0x3d0] sm:$0xf] %v3826
    %3985 = vst [vmem:[#allocation4 + $0x3e4] sm:$0xf] %v3829
    %3986 = vst [vmem:[#allocation4 + $0x3f8] sm:$0xf] %v3832
    %3987 = vst [vmem:[#allocation4 + $0x40c] sm:$0xf] %v3835
    %3988 = vst [vmem:[#allocation4 + $0x420] sm:$0xf] %v3838
    %3989 = vst [vmem:[#allocation4 + $0x434] sm:$0xf] %v3841
    %3990 = vst [vmem:[#allocation4 + $0x448] sm:$0xf] %v3844
    %3991 = vst [vmem:[#allocation4 + $0x45c] sm:$0xf] %v3847
    %3992 = vst [vmem:[#allocation4 + $0x470] sm:$0xf] %v3850
    %3993 = vst [vmem:[#allocation4 + $0x484] sm:$0xf] %v3853
    %3994 = vst [vmem:[#allocation4 + $0x498] sm:$0xf] %v3856
    %3995 = vst [vmem:[#allocation4 + $0x4ac] sm:$0xf] %v3859
    %3996 = vst [vmem:[#allocation4 + $0x4c0] sm:$0xf] %v3862
    %3997 = vst [vmem:[#allocation4 + $0x4d4] sm:$0xf] %v3865
    %3998 = vst [vmem:[#allocation4 + $0x4e8] sm:$0xf] %v3868
    %3999 = vst [vmem:[#allocation4 + $0x4fc] sm:$0xf] %v3871
    %v4000 = vld [vmem:[#allocation4] sm:$0xff]
    %v4001 = vld [vmem:[#allocation4 + $0x8] sm:$0xff]
    %v4002 = vld [vmem:[#allocation4 + $0x10] sm:$0xf]
    %v4003 = vld [vmem:[#allocation4 + $0x14] sm:$0xff]
    %v4004 = vld [vmem:[#allocation4 + $0x1c] sm:$0xff]
    %v4005 = vld [vmem:[#allocation4 + $0x24] sm:$0xf]
    %v4006 = vld [vmem:[#allocation4 + $0x28] sm:$0xff]
    %v4007 = vld [vmem:[#allocation4 + $0x30] sm:$0xff]
    %v4008 = vld [vmem:[#allocation4 + $0x38] sm:$0xf]
    %v4009 = vld [vmem:[#allocation4 + $0x3c] sm:$0xff]
    %v4010 = vld [vmem:[#allocation4 + $0x44] sm:$0xff]
    %v4011 = vld [vmem:[#allocation4 + $0x4c] sm:$0xf]
    %v4012 = vld [vmem:[#allocation4 + $0x50] sm:$0xff]
    %v4013 = vld [vmem:[#allocation4 + $0x58] sm:$0xff]
    %v4014 = vld [vmem:[#allocation4 + $0x60] sm:$0xf]
    %v4015 = vld [vmem:[#allocation4 + $0x64] sm:$0xff]
    %v4016 = vld [vmem:[#allocation4 + $0x6c] sm:$0xff]
    %v4017 = vld [vmem:[#allocation4 + $0x74] sm:$0xf]
    %v4018 = vld [vmem:[#allocation4 + $0x78] sm:$0xff]
    %v4019 = vld [vmem:[#allocation4 + $0x80] sm:$0xff]
    %v4020 = vld [vmem:[#allocation4 + $0x88] sm:$0xf]
    %v4021 = vld [vmem:[#allocation4 + $0x8c] sm:$0xff]
    %v4022 = vld [vmem:[#allocation4 + $0x94] sm:$0xff]
    %v4023 = vld [vmem:[#allocation4 + $0x9c] sm:$0xf]
    %v4024 = vld [vmem:[#allocation4 + $0xa0] sm:$0xff]
    %v4025 = vld [vmem:[#allocation4 + $0xa8] sm:$0xff]
    %v4026 = vld [vmem:[#allocation4 + $0xb0] sm:$0xf]
    %v4027 = vld [vmem:[#allocation4 + $0xb4] sm:$0xff]
    %v4028 = vld [vmem:[#allocation4 + $0xbc] sm:$0xff]
    %v4029 = vld [vmem:[#allocation4 + $0xc4] sm:$0xf]
    %v4030 = vld [vmem:[#allocation4 + $0xc8] sm:$0xff]
    %v4031 = vld [vmem:[#allocation4 + $0xd0] sm:$0xff]
    %v4032 = vld [vmem:[#allocation4 + $0xd8] sm:$0xf]
    %v4033 = vld [vmem:[#allocation4 + $0xdc] sm:$0xff]
    %v4034 = vld [vmem:[#allocation4 + $0xe4] sm:$0xff]
    %v4035 = vld [vmem:[#allocation4 + $0xec] sm:$0xf]
    %v4036 = vld [vmem:[#allocation4 + $0xf0] sm:$0xff]
    %v4037 = vld [vmem:[#allocation4 + $0xf8] sm:$0xff]
    %v4038 = vld [vmem:[#allocation4 + $0x100] sm:$0xf]
    %v4039 = vld [vmem:[#allocation4 + $0x104] sm:$0xff]
    %v4040 = vld [vmem:[#allocation4 + $0x10c] sm:$0xff]
    %v4041 = vld [vmem:[#allocation4 + $0x114] sm:$0xf]
    %v4042 = vld [vmem:[#allocation4 + $0x118] sm:$0xff]
    %v4043 = vld [vmem:[#allocation4 + $0x120] sm:$0xff]
    %v4044 = vld [vmem:[#allocation4 + $0x128] sm:$0xf]
    %v4045 = vld [vmem:[#allocation4 + $0x12c] sm:$0xff]
    %v4046 = vld [vmem:[#allocation4 + $0x134] sm:$0xff]
    %v4047 = vld [vmem:[#allocation4 + $0x13c] sm:$0xf]
    %v4048 = vld [vmem:[#allocation4 + $0x140] sm:$0xff]
    %v4049 = vld [vmem:[#allocation4 + $0x148] sm:$0xff]
    %v4050 = vld [vmem:[#allocation4 + $0x150] sm:$0xf]
    %v4051 = vld [vmem:[#allocation4 + $0x154] sm:$0xff]
    %v4052 = vld [vmem:[#allocation4 + $0x15c] sm:$0xff]
    %v4053 = vld [vmem:[#allocation4 + $0x164] sm:$0xf]
    %v4054 = vld [vmem:[#allocation4 + $0x168] sm:$0xff]
    %v4055 = vld [vmem:[#allocation4 + $0x170] sm:$0xff]
    %v4056 = vld [vmem:[#allocation4 + $0x178] sm:$0xf]
    %v4057 = vld [vmem:[#allocation4 + $0x17c] sm:$0xff]
    %v4058 = vld [vmem:[#allocation4 + $0x184] sm:$0xff]
    %v4059 = vld [vmem:[#allocation4 + $0x18c] sm:$0xf]
    %v4060 = vld [vmem:[#allocation4 + $0x190] sm:$0xff]
    %v4061 = vld [vmem:[#allocation4 + $0x198] sm:$0xff]
    %v4062 = vld [vmem:[#allocation4 + $0x1a0] sm:$0xf]
    %v4063 = vld [vmem:[#allocation4 + $0x1a4] sm:$0xff]
    %v4064 = vld [vmem:[#allocation4 + $0x1ac] sm:$0xff]
    %v4065 = vld [vmem:[#allocation4 + $0x1b4] sm:$0xf]
    %v4066 = vld [vmem:[#allocation4 + $0x1b8] sm:$0xff]
    %v4067 = vld [vmem:[#allocation4 + $0x1c0] sm:$0xff]
    %v4068 = vld [vmem:[#allocation4 + $0x1c8] sm:$0xf]
    %v4069 = vld [vmem:[#allocation4 + $0x1cc] sm:$0xff]
    %v4070 = vld [vmem:[#allocation4 + $0x1d4] sm:$0xff]
    %v4071 = vld [vmem:[#allocation4 + $0x1dc] sm:$0xf]
    %v4072 = vld [vmem:[#allocation4 + $0x1e0] sm:$0xff]
    %v4073 = vld [vmem:[#allocation4 + $0x1e8] sm:$0xff]
    %v4074 = vld [vmem:[#allocation4 + $0x1f0] sm:$0xf]
    %v4075 = vld [vmem:[#allocation4 + $0x1f4] sm:$0xff]
    %v4076 = vld [vmem:[#allocation4 + $0x1fc] sm:$0xff]
    %v4077 = vld [vmem:[#allocation4 + $0x204] sm:$0xf]
    %v4078 = vld [vmem:[#allocation4 + $0x208] sm:$0xff]
    %v4079 = vld [vmem:[#allocation4 + $0x210] sm:$0xff]
    %v4080 = vld [vmem:[#allocation4 + $0x218] sm:$0xf]
    %v4081 = vld [vmem:[#allocation4 + $0x21c] sm:$0xff]
    %v4082 = vld [vmem:[#allocation4 + $0x224] sm:$0xff]
    %v4083 = vld [vmem:[#allocation4 + $0x22c] sm:$0xf]
    %v4084 = vld [vmem:[#allocation4 + $0x230] sm:$0xff]
    %v4085 = vld [vmem:[#allocation4 + $0x238] sm:$0xff]
    %v4086 = vld [vmem:[#allocation4 + $0x240] sm:$0xf]
    %v4087 = vld [vmem:[#allocation4 + $0x244] sm:$0xff]
    %v4088 = vld [vmem:[#allocation4 + $0x24c] sm:$0xff]
    %v4089 = vld [vmem:[#allocation4 + $0x254] sm:$0xf]
    %v4090 = vld [vmem:[#allocation4 + $0x258] sm:$0xff]
    %v4091 = vld [vmem:[#allocation4 + $0x260] sm:$0xff]
    %v4092 = vld [vmem:[#allocation4 + $0x268] sm:$0xf]
    %v4093 = vld [vmem:[#allocation4 + $0x26c] sm:$0xff]
    %v4094 = vld [vmem:[#allocation4 + $0x274] sm:$0xff]
    %v4095 = vld [vmem:[#allocation4 + $0x27c] sm:$0xf]
    %v4096 = vld [vmem:[#allocation4 + $0x280] sm:$0xff]
    %v4097 = vld [vmem:[#allocation4 + $0x288] sm:$0xff]
    %v4098 = vld [vmem:[#allocation4 + $0x290] sm:$0xf]
    %v4099 = vld [vmem:[#allocation4 + $0x294] sm:$0xff]
    %v4100 = vld [vmem:[#allocation4 + $0x29c] sm:$0xff]
    %v4101 = vld [vmem:[#allocation4 + $0x2a4] sm:$0xf]
    %v4102 = vld [vmem:[#allocation4 + $0x2a8] sm:$0xff]
    %v4103 = vld [vmem:[#allocation4 + $0x2b0] sm:$0xff]
    %v4104 = vld [vmem:[#allocation4 + $0x2b8] sm:$0xf]
    %v4105 = vld [vmem:[#allocation4 + $0x2bc] sm:$0xff]
    %v4106 = vld [vmem:[#allocation4 + $0x2c4] sm:$0xff]
    %v4107 = vld [vmem:[#allocation4 + $0x2cc] sm:$0xf]
    %v4108 = vld [vmem:[#allocation4 + $0x2d0] sm:$0xff]
    %v4109 = vld [vmem:[#allocation4 + $0x2d8] sm:$0xff]
    %v4110 = vld [vmem:[#allocation4 + $0x2e0] sm:$0xf]
    %v4111 = vld [vmem:[#allocation4 + $0x2e4] sm:$0xff]
    %v4112 = vld [vmem:[#allocation4 + $0x2ec] sm:$0xff]
    %v4113 = vld [vmem:[#allocation4 + $0x2f4] sm:$0xf]
    %v4114 = vld [vmem:[#allocation4 + $0x2f8] sm:$0xff]
    %v4115 = vld [vmem:[#allocation4 + $0x300] sm:$0xff]
    %v4116 = vld [vmem:[#allocation4 + $0x308] sm:$0xf]
    %v4117 = vld [vmem:[#allocation4 + $0x30c] sm:$0xff]
    %v4118 = vld [vmem:[#allocation4 + $0x314] sm:$0xff]
    %v4119 = vld [vmem:[#allocation4 + $0x31c] sm:$0xf]
    %v4120 = vld [vmem:[#allocation4 + $0x320] sm:$0xff]
    %v4121 = vld [vmem:[#allocation4 + $0x328] sm:$0xff]
    %v4122 = vld [vmem:[#allocation4 + $0x330] sm:$0xf]
    %v4123 = vld [vmem:[#allocation4 + $0x334] sm:$0xff]
    %v4124 = vld [vmem:[#allocation4 + $0x33c] sm:$0xff]
    %v4125 = vld [vmem:[#allocation4 + $0x344] sm:$0xf]
    %v4126 = vld [vmem:[#allocation4 + $0x348] sm:$0xff]
    %v4127 = vld [vmem:[#allocation4 + $0x350] sm:$0xff]
    %v4128 = vld [vmem:[#allocation4 + $0x358] sm:$0xf]
    %v4129 = vld [vmem:[#allocation4 + $0x35c] sm:$0xff]
    %v4130 = vld [vmem:[#allocation4 + $0x364] sm:$0xff]
    %v4131 = vld [vmem:[#allocation4 + $0x36c] sm:$0xf]
    %v4132 = vld [vmem:[#allocation4 + $0x370] sm:$0xff]
    %v4133 = vld [vmem:[#allocation4 + $0x378] sm:$0xff]
    %v4134 = vld [vmem:[#allocation4 + $0x380] sm:$0xf]
    %v4135 = vld [vmem:[#allocation4 + $0x384] sm:$0xff]
    %v4136 = vld [vmem:[#allocation4 + $0x38c] sm:$0xff]
    %v4137 = vld [vmem:[#allocation4 + $0x394] sm:$0xf]
    %v4138 = vld [vmem:[#allocation4 + $0x398] sm:$0xff]
    %v4139 = vld [vmem:[#allocation4 + $0x3a0] sm:$0xff]
    %v4140 = vld [vmem:[#allocation4 + $0x3a8] sm:$0xf]
    %v4141 = vld [vmem:[#allocation4 + $0x3ac] sm:$0xff]
    %v4142 = vld [vmem:[#allocation4 + $0x3b4] sm:$0xff]
    %v4143 = vld [vmem:[#allocation4 + $0x3bc] sm:$0xf]
    %v4144 = vld [vmem:[#allocation4 + $0x3c0] sm:$0xff]
    %v4145 = vld [vmem:[#allocation4 + $0x3c8] sm:$0xff]
    %v4146 = vld [vmem:[#allocation4 + $0x3d0] sm:$0xf]
    %v4147 = vld [vmem:[#allocation4 + $0x3d4] sm:$0xff]
    %v4148 = vld [vmem:[#allocation4 + $0x3dc] sm:$0xff]
    %v4149 = vld [vmem:[#allocation4 + $0x3e4] sm:$0xf]
    %v4150 = vld [vmem:[#allocation4 + $0x3e8] sm:$0xff]
    %v4151 = vld [vmem:[#allocation4 + $0x3f0] sm:$0xff]
    %v4152 = vld [vmem:[#allocation4 + $0x3f8] sm:$0xf]
    %v4153 = vld [vmem:[#allocation4 + $0x3fc] sm:$0xff]
    %v4154 = vld [vmem:[#allocation4 + $0x404] sm:$0xff]
    %v4155 = vld [vmem:[#allocation4 + $0x40c] sm:$0xf]
    %v4156 = vld [vmem:[#allocation4 + $0x410] sm:$0xff]
    %v4157 = vld [vmem:[#allocation4 + $0x418] sm:$0xff]
    %v4158 = vld [vmem:[#allocation4 + $0x420] sm:$0xf]
    %v4159 = vld [vmem:[#allocation4 + $0x424] sm:$0xff]
    %v4160 = vld [vmem:[#allocation4 + $0x42c] sm:$0xff]
    %v4161 = vld [vmem:[#allocation4 + $0x434] sm:$0xf]
    %v4162 = vld [vmem:[#allocation4 + $0x438] sm:$0xff]
    %v4163 = vld [vmem:[#allocation4 + $0x440] sm:$0xff]
    %v4164 = vld [vmem:[#allocation4 + $0x448] sm:$0xf]
    %v4165 = vld [vmem:[#allocation4 + $0x44c] sm:$0xff]
    %v4166 = vld [vmem:[#allocation4 + $0x454] sm:$0xff]
    %v4167 = vld [vmem:[#allocation4 + $0x45c] sm:$0xf]
    %v4168 = vld [vmem:[#allocation4 + $0x460] sm:$0xff]
    %v4169 = vld [vmem:[#allocation4 + $0x468] sm:$0xff]
    %v4170 = vld [vmem:[#allocation4 + $0x470] sm:$0xf]
    %v4171 = vld [vmem:[#allocation4 + $0x474] sm:$0xff]
    %v4172 = vld [vmem:[#allocation4 + $0x47c] sm:$0xff]
    %v4173 = vld [vmem:[#allocation4 + $0x484] sm:$0xf]
    %v4174 = vld [vmem:[#allocation4 + $0x488] sm:$0xff]
    %v4175 = vld [vmem:[#allocation4 + $0x490] sm:$0xff]
    %v4176 = vld [vmem:[#allocation4 + $0x498] sm:$0xf]
    %v4177 = vld [vmem:[#allocation4 + $0x49c] sm:$0xff]
    %v4178 = vld [vmem:[#allocation4 + $0x4a4] sm:$0xff]
    %v4179 = vld [vmem:[#allocation4 + $0x4ac] sm:$0xf]
    %v4180 = vld [vmem:[#allocation4 + $0x4b0] sm:$0xff]
    %v4181 = vld [vmem:[#allocation4 + $0x4b8] sm:$0xff]
    %v4182 = vld [vmem:[#allocation4 + $0x4c0] sm:$0xf]
    %v4183 = vld [vmem:[#allocation4 + $0x4c4] sm:$0xff]
    %v4184 = vld [vmem:[#allocation4 + $0x4cc] sm:$0xff]
    %v4185 = vld [vmem:[#allocation4 + $0x4d4] sm:$0xf]
    %v4186 = vld [vmem:[#allocation4 + $0x4d8] sm:$0xff]
    %v4187 = vld [vmem:[#allocation4 + $0x4e0] sm:$0xff]
    %v4188 = vld [vmem:[#allocation4 + $0x4e8] sm:$0xf]
    %v4189 = vld [vmem:[#allocation4 + $0x4ec] sm:$0xff]
    %v4190 = vld [vmem:[#allocation4 + $0x4f4] sm:$0xff]
    %v4191 = vld [vmem:[#allocation4 + $0x4fc] sm:$0xf]
    %v4192 = vld [vmem:[%s5] sm:$0xff]
    %v4193 = vld [vmem:[%s5 + $0x8] sm:$0xff]
    %v4194 = vld [vmem:[%s5 + $0x10] sm:$0xff]
    %v4195 = vld [vmem:[%s5 + $0x18] sm:$0xff]
    %v4196 = vld [vmem:[%s5 + $0x20] sm:$0xff]
    %v4197 = vld [vmem:[%s5 + $0x28] sm:$0xff]
    %v4198 = vld [vmem:[%s5 + $0x30] sm:$0xff]
    %v4199 = vld [vmem:[%s5 + $0x38] sm:$0xff]
    %v4200 = vld [vmem:[%s5 + $0x40] sm:$0xff]
    %v4201 = vld [vmem:[%s5 + $0x48] sm:$0xff]
    %v4202 = vld [vmem:[%s5 + $0x50] sm:$0xff]
    %v4203 = vld [vmem:[%s5 + $0x58] sm:$0xff]
    %v4204 = vld [vmem:[%s5 + $0x60] sm:$0xff]
    %v4205 = vld [vmem:[%s5 + $0x68] sm:$0xff]
    %v4206 = vld [vmem:[%s5 + $0x70] sm:$0xff]
    %v4207 = vld [vmem:[%s5 + $0x78] sm:$0xff]
    %v4208 = vld [vmem:[%s5 + $0x80] sm:$0xff]
    %v4209 = vld [vmem:[%s5 + $0x88] sm:$0xff]
    %v4210 = vld [vmem:[%s5 + $0x90] sm:$0xff]
    %v4211 = vld [vmem:[%s5 + $0x98] sm:$0xff]
    %v4212 = vld [vmem:[%s5 + $0xa0] sm:$0xff]
    %v4213 = vld [vmem:[%s5 + $0xa8] sm:$0xff]
    %v4214 = vld [vmem:[%s5 + $0xb0] sm:$0xff]
    %v4215 = vld [vmem:[%s5 + $0xb8] sm:$0xff]
    %v4216 = vld [vmem:[%s5 + $0xc0] sm:$0xff]
    %v4217 = vld [vmem:[%s5 + $0xc8] sm:$0xff]
    %v4218 = vld [vmem:[%s5 + $0xd0] sm:$0xff]
    %v4219 = vld [vmem:[%s5 + $0xd8] sm:$0xff]
    %v4220 = vld [vmem:[%s5 + $0xe0] sm:$0xff]
    %v4221 = vld [vmem:[%s5 + $0xe8] sm:$0xff]
    %v4222 = vld [vmem:[%s5 + $0xf0] sm:$0xff]
    %v4223 = vld [vmem:[%s5 + $0xf8] sm:$0xff]
    %v4224 = vld [vmem:[%s5 + $0x100] sm:$0xff]
    %v4225 = vld [vmem:[%s5 + $0x108] sm:$0xff]
    %v4226 = vld [vmem:[%s5 + $0x110] sm:$0xff]
    %v4227 = vld [vmem:[%s5 + $0x118] sm:$0xff]
    %v4228 = vld [vmem:[%s5 + $0x120] sm:$0xff]
    %v4229 = vld [vmem:[%s5 + $0x128] sm:$0xff]
    %v4230 = vld [vmem:[%s5 + $0x130] sm:$0xff]
    %v4231 = vld [vmem:[%s5 + $0x138] sm:$0xff]
    %v4232 = vld [vmem:[%s5 + $0x140] sm:$0xff]
    %v4233 = vld [vmem:[%s5 + $0x148] sm:$0xff]
    %v4234 = vld [vmem:[%s5 + $0x150] sm:$0xff]
    %v4235 = vld [vmem:[%s5 + $0x158] sm:$0xff]
    %v4236 = vld [vmem:[%s5 + $0x160] sm:$0xff]
    %v4237 = vld [vmem:[%s5 + $0x168] sm:$0xff]
    %v4238 = vld [vmem:[%s5 + $0x170] sm:$0xff]
    %v4239 = vld [vmem:[%s5 + $0x178] sm:$0xff]
    %v4240 = vld [vmem:[%s5 + $0x180] sm:$0xff]
    %v4241 = vld [vmem:[%s5 + $0x188] sm:$0xff]
    %v4242 = vld [vmem:[%s5 + $0x190] sm:$0xff]
    %v4243 = vld [vmem:[%s5 + $0x198] sm:$0xff]
    %v4244 = vld [vmem:[%s5 + $0x1a0] sm:$0xff]
    %v4245 = vld [vmem:[%s5 + $0x1a8] sm:$0xff]
    %v4246 = vld [vmem:[%s5 + $0x1b0] sm:$0xff]
    %v4247 = vld [vmem:[%s5 + $0x1b8] sm:$0xff]
    %v4248 = vld [vmem:[%s5 + $0x1c0] sm:$0xff]
    %v4249 = vld [vmem:[%s5 + $0x1c8] sm:$0xff]
    %v4250 = vld [vmem:[%s5 + $0x1d0] sm:$0xff]
    %v4251 = vld [vmem:[%s5 + $0x1d8] sm:$0xff]
    %v4252 = vld [vmem:[%s5 + $0x1e0] sm:$0xff]
    %v4253 = vld [vmem:[%s5 + $0x1e8] sm:$0xff]
    %v4254 = vld [vmem:[%s5 + $0x1f0] sm:$0xff]
    %v4255 = vld [vmem:[%s5 + $0x1f8] sm:$0xff]
    %v4256 = vld [vmem:[%s5 + $0x200] sm:$0xff]
    %v4257 = vld [vmem:[%s5 + $0x208] sm:$0xff]
    %v4258 = vld [vmem:[%s5 + $0x210] sm:$0xff]
    %v4259 = vld [vmem:[%s5 + $0x218] sm:$0xff]
    %v4260 = vld [vmem:[%s5 + $0x220] sm:$0xff]
    %v4261 = vld [vmem:[%s5 + $0x228] sm:$0xff]
    %v4262 = vld [vmem:[%s5 + $0x230] sm:$0xff]
    %v4263 = vld [vmem:[%s5 + $0x238] sm:$0xff]
    %v4264 = vld [vmem:[%s5 + $0x240] sm:$0xff]
    %v4265 = vld [vmem:[%s5 + $0x248] sm:$0xff]
    %v4266 = vld [vmem:[%s5 + $0x250] sm:$0xff]
    %v4267 = vld [vmem:[%s5 + $0x258] sm:$0xff]
    %v4268 = vld [vmem:[%s5 + $0x260] sm:$0xff]
    %v4269 = vld [vmem:[%s5 + $0x268] sm:$0xff]
    %v4270 = vld [vmem:[%s5 + $0x270] sm:$0xff]
    %v4271 = vld [vmem:[%s5 + $0x278] sm:$0xff]
    %v4464 = vunpack.c.l.b16 %v4000
    %v4465 = vunpack.c.h.b16 %v4000
    %v4466 = vunpack.c.l.b16 %v4001
    %v4467 = vunpack.c.h.b16 %v4001
    %v4468 = vunpack.c.l.b16 %v4002
    %v4469 = vunpack.c.l.b16 %v4003
    %v4470 = vunpack.c.h.b16 %v4003
    %v4471 = vunpack.c.l.b16 %v4004
    %v4472 = vunpack.c.h.b16 %v4004
    %v4473 = vunpack.c.l.b16 %v4005
    %v4474 = vunpack.c.l.b16 %v4006
    %v4475 = vunpack.c.h.b16 %v4006
    %v4476 = vunpack.c.l.b16 %v4007
    %v4477 = vunpack.c.h.b16 %v4007
    %v4478 = vunpack.c.l.b16 %v4008
    %v4479 = vunpack.c.l.b16 %v4009
    %v4480 = vunpack.c.h.b16 %v4009
    %v4481 = vunpack.c.l.b16 %v4010
    %v4482 = vunpack.c.h.b16 %v4010
    %v4483 = vunpack.c.l.b16 %v4011
    %v4484 = vunpack.c.l.b16 %v4012
    %v4485 = vunpack.c.h.b16 %v4012
    %v4486 = vunpack.c.l.b16 %v4013
    %v4487 = vunpack.c.h.b16 %v4013
    %v4488 = vunpack.c.l.b16 %v4014
    %v4489 = vunpack.c.l.b16 %v4015
    %v4490 = vunpack.c.h.b16 %v4015
    %v4491 = vunpack.c.l.b16 %v4016
    %v4492 = vunpack.c.h.b16 %v4016
    %v4493 = vunpack.c.l.b16 %v4017
    %v4494 = vunpack.c.l.b16 %v4018
    %v4495 = vunpack.c.h.b16 %v4018
    %v4496 = vunpack.c.l.b16 %v4019
    %v4497 = vunpack.c.h.b16 %v4019
    %v4498 = vunpack.c.l.b16 %v4020
    %v4499 = vunpack.c.l.b16 %v4021
    %v4500 = vunpack.c.h.b16 %v4021
    %v4501 = vunpack.c.l.b16 %v4022
    %v4502 = vunpack.c.h.b16 %v4022
    %v4503 = vunpack.c.l.b16 %v4023
    %v4504 = vunpack.c.l.b16 %v4024
    %v4505 = vunpack.c.h.b16 %v4024
    %v4506 = vunpack.c.l.b16 %v4025
    %v4507 = vunpack.c.h.b16 %v4025
    %v4508 = vunpack.c.l.b16 %v4026
    %v4509 = vunpack.c.l.b16 %v4027
    %v4510 = vunpack.c.h.b16 %v4027
    %v4511 = vunpack.c.l.b16 %v4028
    %v4512 = vunpack.c.h.b16 %v4028
    %v4513 = vunpack.c.l.b16 %v4029
    %v4514 = vunpack.c.l.b16 %v4030
    %v4515 = vunpack.c.h.b16 %v4030
    %v4516 = vunpack.c.l.b16 %v4031
    %v4517 = vunpack.c.h.b16 %v4031
    %v4518 = vunpack.c.l.b16 %v4032
    %v4519 = vunpack.c.l.b16 %v4033
    %v4520 = vunpack.c.h.b16 %v4033
    %v4521 = vunpack.c.l.b16 %v4034
    %v4522 = vunpack.c.h.b16 %v4034
    %v4523 = vunpack.c.l.b16 %v4035
    %v4524 = vunpack.c.l.b16 %v4036
    %v4525 = vunpack.c.h.b16 %v4036
    %v4526 = vunpack.c.l.b16 %v4037
    %v4527 = vunpack.c.h.b16 %v4037
    %v4528 = vunpack.c.l.b16 %v4038
    %v4529 = vunpack.c.l.b16 %v4039
    %v4530 = vunpack.c.h.b16 %v4039
    %v4531 = vunpack.c.l.b16 %v4040
    %v4532 = vunpack.c.h.b16 %v4040
    %v4533 = vunpack.c.l.b16 %v4041
    %v4534 = vunpack.c.l.b16 %v4042
    %v4535 = vunpack.c.h.b16 %v4042
    %v4536 = vunpack.c.l.b16 %v4043
    %v4537 = vunpack.c.h.b16 %v4043
    %v4538 = vunpack.c.l.b16 %v4044
    %v4539 = vunpack.c.l.b16 %v4045
    %v4540 = vunpack.c.h.b16 %v4045
    %v4541 = vunpack.c.l.b16 %v4046
    %v4542 = vunpack.c.h.b16 %v4046
    %v4543 = vunpack.c.l.b16 %v4047
    %v4544 = vunpack.c.l.b16 %v4048
    %v4545 = vunpack.c.h.b16 %v4048
    %v4546 = vunpack.c.l.b16 %v4049
    %v4547 = vunpack.c.h.b16 %v4049
    %v4548 = vunpack.c.l.b16 %v4050
    %v4549 = vunpack.c.l.b16 %v4051
    %v4550 = vunpack.c.h.b16 %v4051
    %v4551 = vunpack.c.l.b16 %v4052
    %v4552 = vunpack.c.h.b16 %v4052
    %v4553 = vunpack.c.l.b16 %v4053
    %v4554 = vunpack.c.l.b16 %v4054
    %v4555 = vunpack.c.h.b16 %v4054
    %v4556 = vunpack.c.l.b16 %v4055
    %v4557 = vunpack.c.h.b16 %v4055
    %v4558 = vunpack.c.l.b16 %v4056
    %v4559 = vunpack.c.l.b16 %v4057
    %v4560 = vunpack.c.h.b16 %v4057
    %v4561 = vunpack.c.l.b16 %v4058
    %v4562 = vunpack.c.h.b16 %v4058
    %v4563 = vunpack.c.l.b16 %v4059
    %v4564 = vunpack.c.l.b16 %v4060
    %v4565 = vunpack.c.h.b16 %v4060
    %v4566 = vunpack.c.l.b16 %v4061
    %v4567 = vunpack.c.h.b16 %v4061
    %v4568 = vunpack.c.l.b16 %v4062
    %v4569 = vunpack.c.l.b16 %v4063
    %v4570 = vunpack.c.h.b16 %v4063
    %v4571 = vunpack.c.l.b16 %v4064
    %v4572 = vunpack.c.h.b16 %v4064
    %v4573 = vunpack.c.l.b16 %v4065
    %v4574 = vunpack.c.l.b16 %v4066
    %v4575 = vunpack.c.h.b16 %v4066
    %v4576 = vunpack.c.l.b16 %v4067
    %v4577 = vunpack.c.h.b16 %v4067
    %v4578 = vunpack.c.l.b16 %v4068
    %v4579 = vunpack.c.l.b16 %v4069
    %v4580 = vunpack.c.h.b16 %v4069
    %v4581 = vunpack.c.l.b16 %v4070
    %v4582 = vunpack.c.h.b16 %v4070
    %v4583 = vunpack.c.l.b16 %v4071
    %v4584 = vunpack.c.l.b16 %v4072
    %v4585 = vunpack.c.h.b16 %v4072
    %v4586 = vunpack.c.l.b16 %v4073
    %v4587 = vunpack.c.h.b16 %v4073
    %v4588 = vunpack.c.l.b16 %v4074
    %v4589 = vunpack.c.l.b16 %v4075
    %v4590 = vunpack.c.h.b16 %v4075
    %v4591 = vunpack.c.l.b16 %v4076
    %v4592 = vunpack.c.h.b16 %v4076
    %v4593 = vunpack.c.l.b16 %v4077
    %v4594 = vunpack.c.l.b16 %v4078
    %v4595 = vunpack.c.h.b16 %v4078
    %v4596 = vunpack.c.l.b16 %v4079
    %v4597 = vunpack.c.h.b16 %v4079
    %v4598 = vunpack.c.l.b16 %v4080
    %v4599 = vunpack.c.l.b16 %v4081
    %v4600 = vunpack.c.h.b16 %v4081
    %v4601 = vunpack.c.l.b16 %v4082
    %v4602 = vunpack.c.h.b16 %v4082
    %v4603 = vunpack.c.l.b16 %v4083
    %v4604 = vunpack.c.l.b16 %v4084
    %v4605 = vunpack.c.h.b16 %v4084
    %v4606 = vunpack.c.l.b16 %v4085
    %v4607 = vunpack.c.h.b16 %v4085
    %v4608 = vunpack.c.l.b16 %v4086
    %v4609 = vunpack.c.l.b16 %v4087
    %v4610 = vunpack.c.h.b16 %v4087
    %v4611 = vunpack.c.l.b16 %v4088
    %v4612 = vunpack.c.h.b16 %v4088
    %v4613 = vunpack.c.l.b16 %v4089
    %v4614 = vunpack.c.l.b16 %v4090
    %v4615 = vunpack.c.h.b16 %v4090
    %v4616 = vunpack.c.l.b16 %v4091
    %v4617 = vunpack.c.h.b16 %v4091
    %v4618 = vunpack.c.l.b16 %v4092
    %v4619 = vunpack.c.l.b16 %v4093
    %v4620 = vunpack.c.h.b16 %v4093
    %v4621 = vunpack.c.l.b16 %v4094
    %v4622 = vunpack.c.h.b16 %v4094
    %v4623 = vunpack.c.l.b16 %v4095
    %v4624 = vunpack.c.l.b16 %v4096
    %v4625 = vunpack.c.h.b16 %v4096
    %v4626 = vunpack.c.l.b16 %v4097
    %v4627 = vunpack.c.h.b16 %v4097
    %v4628 = vunpack.c.l.b16 %v4098
    %v4629 = vunpack.c.l.b16 %v4099
    %v4630 = vunpack.c.h.b16 %v4099
    %v4631 = vunpack.c.l.b16 %v4100
    %v4632 = vunpack.c.h.b16 %v4100
    %v4633 = vunpack.c.l.b16 %v4101
    %v4634 = vunpack.c.l.b16 %v4102
    %v4635 = vunpack.c.h.b16 %v4102
    %v4636 = vunpack.c.l.b16 %v4103
    %v4637 = vunpack.c.h.b16 %v4103
    %v4638 = vunpack.c.l.b16 %v4104
    %v4639 = vunpack.c.l.b16 %v4105
    %v4640 = vunpack.c.h.b16 %v4105
    %v4641 = vunpack.c.l.b16 %v4106
    %v4642 = vunpack.c.h.b16 %v4106
    %v4643 = vunpack.c.l.b16 %v4107
    %v4644 = vunpack.c.l.b16 %v4108
    %v4645 = vunpack.c.h.b16 %v4108
    %v4646 = vunpack.c.l.b16 %v4109
    %v4647 = vunpack.c.h.b16 %v4109
    %v4648 = vunpack.c.l.b16 %v4110
    %v4649 = vunpack.c.l.b16 %v4111
    %v4650 = vunpack.c.h.b16 %v4111
    %v4651 = vunpack.c.l.b16 %v4112
    %v4652 = vunpack.c.h.b16 %v4112
    %v4653 = vunpack.c.l.b16 %v4113
    %v4654 = vunpack.c.l.b16 %v4114
    %v4655 = vunpack.c.h.b16 %v4114
    %v4656 = vunpack.c.l.b16 %v4115
    %v4657 = vunpack.c.h.b16 %v4115
    %v4658 = vunpack.c.l.b16 %v4116
    %v4659 = vunpack.c.l.b16 %v4117
    %v4660 = vunpack.c.h.b16 %v4117
    %v4661 = vunpack.c.l.b16 %v4118
    %v4662 = vunpack.c.h.b16 %v4118
    %v4663 = vunpack.c.l.b16 %v4119
    %v4664 = vunpack.c.l.b16 %v4120
    %v4665 = vunpack.c.h.b16 %v4120
    %v4666 = vunpack.c.l.b16 %v4121
    %v4667 = vunpack.c.h.b16 %v4121
    %v4668 = vunpack.c.l.b16 %v4122
    %v4669 = vunpack.c.l.b16 %v4123
    %v4670 = vunpack.c.h.b16 %v4123
    %v4671 = vunpack.c.l.b16 %v4124
    %v4672 = vunpack.c.h.b16 %v4124
    %v4673 = vunpack.c.l.b16 %v4125
    %v4674 = vunpack.c.l.b16 %v4126
    %v4675 = vunpack.c.h.b16 %v4126
    %v4676 = vunpack.c.l.b16 %v4127
    %v4677 = vunpack.c.h.b16 %v4127
    %v4678 = vunpack.c.l.b16 %v4128
    %v4679 = vunpack.c.l.b16 %v4129
    %v4680 = vunpack.c.h.b16 %v4129
    %v4681 = vunpack.c.l.b16 %v4130
    %v4682 = vunpack.c.h.b16 %v4130
    %v4683 = vunpack.c.l.b16 %v4131
    %v4684 = vunpack.c.l.b16 %v4132
    %v4685 = vunpack.c.h.b16 %v4132
    %v4686 = vunpack.c.l.b16 %v4133
    %v4687 = vunpack.c.h.b16 %v4133
    %v4688 = vunpack.c.l.b16 %v4134
    %v4689 = vunpack.c.l.b16 %v4135
    %v4690 = vunpack.c.h.b16 %v4135
    %v4691 = vunpack.c.l.b16 %v4136
    %v4692 = vunpack.c.h.b16 %v4136
    %v4693 = vunpack.c.l.b16 %v4137
    %v4694 = vunpack.c.l.b16 %v4138
    %v4695 = vunpack.c.h.b16 %v4138
    %v4696 = vunpack.c.l.b16 %v4139
    %v4697 = vunpack.c.h.b16 %v4139
    %v4698 = vunpack.c.l.b16 %v4140
    %v4699 = vunpack.c.l.b16 %v4141
    %v4700 = vunpack.c.h.b16 %v4141
    %v4701 = vunpack.c.l.b16 %v4142
    %v4702 = vunpack.c.h.b16 %v4142
    %v4703 = vunpack.c.l.b16 %v4143
    %v4704 = vunpack.c.l.b16 %v4144
    %v4705 = vunpack.c.h.b16 %v4144
    %v4706 = vunpack.c.l.b16 %v4145
    %v4707 = vunpack.c.h.b16 %v4145
    %v4708 = vunpack.c.l.b16 %v4146
    %v4709 = vunpack.c.l.b16 %v4147
    %v4710 = vunpack.c.h.b16 %v4147
    %v4711 = vunpack.c.l.b16 %v4148
    %v4712 = vunpack.c.h.b16 %v4148
    %v4713 = vunpack.c.l.b16 %v4149
    %v4714 = vunpack.c.l.b16 %v4150
    %v4715 = vunpack.c.h.b16 %v4150
    %v4716 = vunpack.c.l.b16 %v4151
    %v4717 = vunpack.c.h.b16 %v4151
    %v4718 = vunpack.c.l.b16 %v4152
    %v4719 = vunpack.c.l.b16 %v4153
    %v4720 = vunpack.c.h.b16 %v4153
    %v4721 = vunpack.c.l.b16 %v4154
    %v4722 = vunpack.c.h.b16 %v4154
    %v4723 = vunpack.c.l.b16 %v4155
    %v4724 = vunpack.c.l.b16 %v4156
    %v4725 = vunpack.c.h.b16 %v4156
    %v4726 = vunpack.c.l.b16 %v4157
    %v4727 = vunpack.c.h.b16 %v4157
    %v4728 = vunpack.c.l.b16 %v4158
    %v4729 = vunpack.c.l.b16 %v4159
    %v4730 = vunpack.c.h.b16 %v4159
    %v4731 = vunpack.c.l.b16 %v4160
    %v4732 = vunpack.c.h.b16 %v4160
    %v4733 = vunpack.c.l.b16 %v4161
    %v4734 = vunpack.c.l.b16 %v4162
    %v4735 = vunpack.c.h.b16 %v4162
    %v4736 = vunpack.c.l.b16 %v4163
    %v4737 = vunpack.c.h.b16 %v4163
    %v4738 = vunpack.c.l.b16 %v4164
    %v4739 = vunpack.c.l.b16 %v4165
    %v4740 = vunpack.c.h.b16 %v4165
    %v4741 = vunpack.c.l.b16 %v4166
    %v4742 = vunpack.c.h.b16 %v4166
    %v4743 = vunpack.c.l.b16 %v4167
    %v4744 = vunpack.c.l.b16 %v4168
    %v4745 = vunpack.c.h.b16 %v4168
    %v4746 = vunpack.c.l.b16 %v4169
    %v4747 = vunpack.c.h.b16 %v4169
    %v4748 = vunpack.c.l.b16 %v4170
    %v4749 = vunpack.c.l.b16 %v4171
    %v4750 = vunpack.c.h.b16 %v4171
    %v4751 = vunpack.c.l.b16 %v4172
    %v4752 = vunpack.c.h.b16 %v4172
    %v4753 = vunpack.c.l.b16 %v4173
    %v4754 = vunpack.c.l.b16 %v4174
    %v4755 = vunpack.c.h.b16 %v4174
    %v4756 = vunpack.c.l.b16 %v4175
    %v4757 = vunpack.c.h.b16 %v4175
    %v4758 = vunpack.c.l.b16 %v4176
    %v4759 = vunpack.c.l.b16 %v4177
    %v4760 = vunpack.c.h.b16 %v4177
    %v4761 = vunpack.c.l.b16 %v4178
    %v4762 = vunpack.c.h.b16 %v4178
    %v4763 = vunpack.c.l.b16 %v4179
    %v4764 = vunpack.c.l.b16 %v4180
    %v4765 = vunpack.c.h.b16 %v4180
    %v4766 = vunpack.c.l.b16 %v4181
    %v4767 = vunpack.c.h.b16 %v4181
    %v4768 = vunpack.c.l.b16 %v4182
    %v4769 = vunpack.c.l.b16 %v4183
    %v4770 = vunpack.c.h.b16 %v4183
    %v4771 = vunpack.c.l.b16 %v4184
    %v4772 = vunpack.c.h.b16 %v4184
    %v4773 = vunpack.c.l.b16 %v4185
    %v4774 = vunpack.c.l.b16 %v4186
    %v4775 = vunpack.c.h.b16 %v4186
    %v4776 = vunpack.c.l.b16 %v4187
    %v4777 = vunpack.c.h.b16 %v4187
    %v4778 = vunpack.c.l.b16 %v4188
    %v4779 = vunpack.c.l.b16 %v4189
    %v4780 = vunpack.c.h.b16 %v4189
    %v4781 = vunpack.c.l.b16 %v4190
    %v4782 = vunpack.c.h.b16 %v4190
    %v4783 = vunpack.c.l.b16 %v4191
    %v4784 = vpack.c.b16 %v4469, %v4464
    %v4785 = vpack.c.b16 %v4470, %v4465
    %v4786 = vpack.c.b16 %v4471, %v4466
    %v4787 = vpack.c.b16 %v4472, %v4467
    %v4788 = vpack.c.b16 %v4473, %v4468
    %v4789 = vpack.c.b16 %v4479, %v4474
    %v4790 = vpack.c.b16 %v4480, %v4475
    %v4791 = vpack.c.b16 %v4481, %v4476
    %v4792 = vpack.c.b16 %v4482, %v4477
    %v4793 = vpack.c.b16 %v4483, %v4478
    %v4794 = vpack.c.b16 %v4489, %v4484
    %v4795 = vpack.c.b16 %v4490, %v4485
    %v4796 = vpack.c.b16 %v4491, %v4486
    %v4797 = vpack.c.b16 %v4492, %v4487
    %v4798 = vpack.c.b16 %v4493, %v4488
    %v4799 = vpack.c.b16 %v4499, %v4494
    %v4800 = vpack.c.b16 %v4500, %v4495
    %v4801 = vpack.c.b16 %v4501, %v4496
    %v4802 = vpack.c.b16 %v4502, %v4497
    %v4803 = vpack.c.b16 %v4503, %v4498
    %v4804 = vpack.c.b16 %v4509, %v4504
    %v4805 = vpack.c.b16 %v4510, %v4505
    %v4806 = vpack.c.b16 %v4511, %v4506
    %v4807 = vpack.c.b16 %v4512, %v4507
    %v4808 = vpack.c.b16 %v4513, %v4508
    %v4809 = vpack.c.b16 %v4519, %v4514
    %v4810 = vpack.c.b16 %v4520, %v4515
    %v4811 = vpack.c.b16 %v4521, %v4516
    %v4812 = vpack.c.b16 %v4522, %v4517
    %v4813 = vpack.c.b16 %v4523, %v4518
    %v4814 = vpack.c.b16 %v4529, %v4524
    %v4815 = vpack.c.b16 %v4530, %v4525
    %v4816 = vpack.c.b16 %v4531, %v4526
    %v4817 = vpack.c.b16 %v4532, %v4527
    %v4818 = vpack.c.b16 %v4533, %v4528
    %v4819 = vpack.c.b16 %v4539, %v4534
    %v4820 = vpack.c.b16 %v4540, %v4535
    %v4821 = vpack.c.b16 %v4541, %v4536
    %v4822 = vpack.c.b16 %v4542, %v4537
    %v4823 = vpack.c.b16 %v4543, %v4538
    %v4824 = vpack.c.b16 %v4549, %v4544
    %v4825 = vpack.c.b16 %v4550, %v4545
    %v4826 = vpack.c.b16 %v4551, %v4546
    %v4827 = vpack.c.b16 %v4552, %v4547
    %v4828 = vpack.c.b16 %v4553, %v4548
    %v4829 = vpack.c.b16 %v4559, %v4554
    %v4830 = vpack.c.b16 %v4560, %v4555
    %v4831 = vpack.c.b16 %v4561, %v4556
    %v4832 = vpack.c.b16 %v4562, %v4557
    %v4833 = vpack.c.b16 %v4563, %v4558
    %v4834 = vpack.c.b16 %v4569, %v4564
    %v4835 = vpack.c.b16 %v4570, %v4565
    %v4836 = vpack.c.b16 %v4571, %v4566
    %v4837 = vpack.c.b16 %v4572, %v4567
    %v4838 = vpack.c.b16 %v4573, %v4568
    %v4839 = vpack.c.b16 %v4579, %v4574
    %v4840 = vpack.c.b16 %v4580, %v4575
    %v4841 = vpack.c.b16 %v4581, %v4576
    %v4842 = vpack.c.b16 %v4582, %v4577
    %v4843 = vpack.c.b16 %v4583, %v4578
    %v4844 = vpack.c.b16 %v4589, %v4584
    %v4845 = vpack.c.b16 %v4590, %v4585
    %v4846 = vpack.c.b16 %v4591, %v4586
    %v4847 = vpack.c.b16 %v4592, %v4587
    %v4848 = vpack.c.b16 %v4593, %v4588
    %v4849 = vpack.c.b16 %v4599, %v4594
    %v4850 = vpack.c.b16 %v4600, %v4595
    %v4851 = vpack.c.b16 %v4601, %v4596
    %v4852 = vpack.c.b16 %v4602, %v4597
    %v4853 = vpack.c.b16 %v4603, %v4598
    %v4854 = vpack.c.b16 %v4609, %v4604
    %v4855 = vpack.c.b16 %v4610, %v4605
    %v4856 = vpack.c.b16 %v4611, %v4606
    %v4857 = vpack.c.b16 %v4612, %v4607
    %v4858 = vpack.c.b16 %v4613, %v4608
    %v4859 = vpack.c.b16 %v4619, %v4614
    %v4860 = vpack.c.b16 %v4620, %v4615
    %v4861 = vpack.c.b16 %v4621, %v4616
    %v4862 = vpack.c.b16 %v4622, %v4617
    %v4863 = vpack.c.b16 %v4623, %v4618
    %v4864 = vpack.c.b16 %v4629, %v4624
    %v4865 = vpack.c.b16 %v4630, %v4625
    %v4866 = vpack.c.b16 %v4631, %v4626
    %v4867 = vpack.c.b16 %v4632, %v4627
    %v4868 = vpack.c.b16 %v4633, %v4628
    %v4869 = vpack.c.b16 %v4639, %v4634
    %v4870 = vpack.c.b16 %v4640, %v4635
    %v4871 = vpack.c.b16 %v4641, %v4636
    %v4872 = vpack.c.b16 %v4642, %v4637
    %v4873 = vpack.c.b16 %v4643, %v4638
    %v4874 = vpack.c.b16 %v4649, %v4644
    %v4875 = vpack.c.b16 %v4650, %v4645
    %v4876 = vpack.c.b16 %v4651, %v4646
    %v4877 = vpack.c.b16 %v4652, %v4647
    %v4878 = vpack.c.b16 %v4653, %v4648
    %v4879 = vpack.c.b16 %v4659, %v4654
    %v4880 = vpack.c.b16 %v4660, %v4655
    %v4881 = vpack.c.b16 %v4661, %v4656
    %v4882 = vpack.c.b16 %v4662, %v4657
    %v4883 = vpack.c.b16 %v4663, %v4658
    %v4884 = vpack.c.b16 %v4669, %v4664
    %v4885 = vpack.c.b16 %v4670, %v4665
    %v4886 = vpack.c.b16 %v4671, %v4666
    %v4887 = vpack.c.b16 %v4672, %v4667
    %v4888 = vpack.c.b16 %v4673, %v4668
    %v4889 = vpack.c.b16 %v4679, %v4674
    %v4890 = vpack.c.b16 %v4680, %v4675
    %v4891 = vpack.c.b16 %v4681, %v4676
    %v4892 = vpack.c.b16 %v4682, %v4677
    %v4893 = vpack.c.b16 %v4683, %v4678
    %v4894 = vpack.c.b16 %v4689, %v4684
    %v4895 = vpack.c.b16 %v4690, %v4685
    %v4896 = vpack.c.b16 %v4691, %v4686
    %v4897 = vpack.c.b16 %v4692, %v4687
    %v4898 = vpack.c.b16 %v4693, %v4688
    %v4899 = vpack.c.b16 %v4699, %v4694
    %v4900 = vpack.c.b16 %v4700, %v4695
    %v4901 = vpack.c.b16 %v4701, %v4696
    %v4902 = vpack.c.b16 %v4702, %v4697
    %v4903 = vpack.c.b16 %v4703, %v4698
    %v4904 = vpack.c.b16 %v4709, %v4704
    %v4905 = vpack.c.b16 %v4710, %v4705
    %v4906 = vpack.c.b16 %v4711, %v4706
    %v4907 = vpack.c.b16 %v4712, %v4707
    %v4908 = vpack.c.b16 %v4713, %v4708
    %v4909 = vpack.c.b16 %v4719, %v4714
    %v4910 = vpack.c.b16 %v4720, %v4715
    %v4911 = vpack.c.b16 %v4721, %v4716
    %v4912 = vpack.c.b16 %v4722, %v4717
    %v4913 = vpack.c.b16 %v4723, %v4718
    %v4914 = vpack.c.b16 %v4729, %v4724
    %v4915 = vpack.c.b16 %v4730, %v4725
    %v4916 = vpack.c.b16 %v4731, %v4726
    %v4917 = vpack.c.b16 %v4732, %v4727
    %v4918 = vpack.c.b16 %v4733, %v4728
    %v4919 = vpack.c.b16 %v4739, %v4734
    %v4920 = vpack.c.b16 %v4740, %v4735
    %v4921 = vpack.c.b16 %v4741, %v4736
    %v4922 = vpack.c.b16 %v4742, %v4737
    %v4923 = vpack.c.b16 %v4743, %v4738
    %v4924 = vpack.c.b16 %v4749, %v4744
    %v4925 = vpack.c.b16 %v4750, %v4745
    %v4926 = vpack.c.b16 %v4751, %v4746
    %v4927 = vpack.c.b16 %v4752, %v4747
    %v4928 = vpack.c.b16 %v4753, %v4748
    %v4929 = vpack.c.b16 %v4759, %v4754
    %v4930 = vpack.c.b16 %v4760, %v4755
    %v4931 = vpack.c.b16 %v4761, %v4756
    %v4932 = vpack.c.b16 %v4762, %v4757
    %v4933 = vpack.c.b16 %v4763, %v4758
    %v4934 = vpack.c.b16 %v4769, %v4764
    %v4935 = vpack.c.b16 %v4770, %v4765
    %v4936 = vpack.c.b16 %v4771, %v4766
    %v4937 = vpack.c.b16 %v4772, %v4767
    %v4938 = vpack.c.b16 %v4773, %v4768
    %v4939 = vpack.c.b16 %v4779, %v4774
    %v4940 = vpack.c.b16 %v4780, %v4775
    %v4941 = vpack.c.b16 %v4781, %v4776
    %v4942 = vpack.c.b16 %v4782, %v4777
    %v4943 = vpack.c.b16 %v4783, %v4778
    %v5184 = vunpack.c.l.b16 %v4192
    %v5185 = vunpack.c.h.b16 %v4192
    %v5186 = vunpack.c.l.b16 %v4193
    %v5187 = vunpack.c.h.b16 %v4193
    %v5188 = vunpack.c.l.b16 %v4194
    %v5189 = vunpack.c.h.b16 %v4194
    %v5190 = vunpack.c.l.b16 %v4195
    %v5191 = vunpack.c.h.b16 %v4195
    %v5192 = vunpack.c.l.b16 %v4196
    %v5193 = vunpack.c.h.b16 %v4196
    %v5194 = vunpack.c.l.b16 %v4197
    %v5195 = vunpack.c.h.b16 %v4197
    %v5196 = vunpack.c.l.b16 %v4198
    %v5197 = vunpack.c.h.b16 %v4198
    %v5198 = vunpack.c.l.b16 %v4199
    %v5199 = vunpack.c.h.b16 %v4199
    %v5200 = vunpack.c.l.b16 %v4200
    %v5201 = vunpack.c.h.b16 %v4200
    %v5202 = vunpack.c.l.b16 %v4201
    %v5203 = vunpack.c.h.b16 %v4201
    %v5204 = vunpack.c.l.b16 %v4202
    %v5205 = vunpack.c.h.b16 %v4202
    %v5206 = vunpack.c.l.b16 %v4203
    %v5207 = vunpack.c.h.b16 %v4203
    %v5208 = vunpack.c.l.b16 %v4204
    %v5209 = vunpack.c.h.b16 %v4204
    %v5210 = vunpack.c.l.b16 %v4205
    %v5211 = vunpack.c.h.b16 %v4205
    %v5212 = vunpack.c.l.b16 %v4206
    %v5213 = vunpack.c.h.b16 %v4206
    %v5214 = vunpack.c.l.b16 %v4207
    %v5215 = vunpack.c.h.b16 %v4207
    %v5216 = vunpack.c.l.b16 %v4208
    %v5217 = vunpack.c.h.b16 %v4208
    %v5218 = vunpack.c.l.b16 %v4209
    %v5219 = vunpack.c.h.b16 %v4209
    %v5220 = vunpack.c.l.b16 %v4210
    %v5221 = vunpack.c.h.b16 %v4210
    %v5222 = vunpack.c.l.b16 %v4211
    %v5223 = vunpack.c.h.b16 %v4211
    %v5224 = vunpack.c.l.b16 %v4212
    %v5225 = vunpack.c.h.b16 %v4212
    %v5226 = vunpack.c.l.b16 %v4213
    %v5227 = vunpack.c.h.b16 %v4213
    %v5228 = vunpack.c.l.b16 %v4214
    %v5229 = vunpack.c.h.b16 %v4214
    %v5230 = vunpack.c.l.b16 %v4215
    %v5231 = vunpack.c.h.b16 %v4215
    %v5232 = vunpack.c.l.b16 %v4216
    %v5233 = vunpack.c.h.b16 %v4216
    %v5234 = vunpack.c.l.b16 %v4217
    %v5235 = vunpack.c.h.b16 %v4217
    %v5236 = vunpack.c.l.b16 %v4218
    %v5237 = vunpack.c.h.b16 %v4218
    %v5238 = vunpack.c.l.b16 %v4219
    %v5239 = vunpack.c.h.b16 %v4219
    %v5240 = vunpack.c.l.b16 %v4220
    %v5241 = vunpack.c.h.b16 %v4220
    %v5242 = vunpack.c.l.b16 %v4221
    %v5243 = vunpack.c.h.b16 %v4221
    %v5244 = vunpack.c.l.b16 %v4222
    %v5245 = vunpack.c.h.b16 %v4222
    %v5246 = vunpack.c.l.b16 %v4223
    %v5247 = vunpack.c.h.b16 %v4223
    %v5248 = vunpack.c.l.b16 %v4224
    %v5249 = vunpack.c.h.b16 %v4224
    %v5250 = vunpack.c.l.b16 %v4225
    %v5251 = vunpack.c.h.b16 %v4225
    %v5252 = vunpack.c.l.b16 %v4226
    %v5253 = vunpack.c.h.b16 %v4226
    %v5254 = vunpack.c.l.b16 %v4227
    %v5255 = vunpack.c.h.b16 %v4227
    %v5256 = vunpack.c.l.b16 %v4228
    %v5257 = vunpack.c.h.b16 %v4228
    %v5258 = vunpack.c.l.b16 %v4229
    %v5259 = vunpack.c.h.b16 %v4229
    %v5260 = vunpack.c.l.b16 %v4230
    %v5261 = vunpack.c.h.b16 %v4230
    %v5262 = vunpack.c.l.b16 %v4231
    %v5263 = vunpack.c.h.b16 %v4231
    %v5264 = vunpack.c.l.b16 %v4232
    %v5265 = vunpack.c.h.b16 %v4232
    %v5266 = vunpack.c.l.b16 %v4233
    %v5267 = vunpack.c.h.b16 %v4233
    %v5268 = vunpack.c.l.b16 %v4234
    %v5269 = vunpack.c.h.b16 %v4234
    %v5270 = vunpack.c.l.b16 %v4235
    %v5271 = vunpack.c.h.b16 %v4235
    %v5272 = vunpack.c.l.b16 %v4236
    %v5273 = vunpack.c.h.b16 %v4236
    %v5274 = vunpack.c.l.b16 %v4237
    %v5275 = vunpack.c.h.b16 %v4237
    %v5276 = vunpack.c.l.b16 %v4238
    %v5277 = vunpack.c.h.b16 %v4238
    %v5278 = vunpack.c.l.b16 %v4239
    %v5279 = vunpack.c.h.b16 %v4239
    %v5280 = vunpack.c.l.b16 %v4240
    %v5281 = vunpack.c.h.b16 %v4240
    %v5282 = vunpack.c.l.b16 %v4241
    %v5283 = vunpack.c.h.b16 %v4241
    %v5284 = vunpack.c.l.b16 %v4242
    %v5285 = vunpack.c.h.b16 %v4242
    %v5286 = vunpack.c.l.b16 %v4243
    %v5287 = vunpack.c.h.b16 %v4243
    %v5288 = vunpack.c.l.b16 %v4244
    %v5289 = vunpack.c.h.b16 %v4244
    %v5290 = vunpack.c.l.b16 %v4245
    %v5291 = vunpack.c.h.b16 %v4245
    %v5292 = vunpack.c.l.b16 %v4246
    %v5293 = vunpack.c.h.b16 %v4246
    %v5294 = vunpack.c.l.b16 %v4247
    %v5295 = vunpack.c.h.b16 %v4247
    %v5296 = vunpack.c.l.b16 %v4248
    %v5297 = vunpack.c.h.b16 %v4248
    %v5298 = vunpack.c.l.b16 %v4249
    %v5299 = vunpack.c.h.b16 %v4249
    %v5300 = vunpack.c.l.b16 %v4250
    %v5301 = vunpack.c.h.b16 %v4250
    %v5302 = vunpack.c.l.b16 %v4251
    %v5303 = vunpack.c.h.b16 %v4251
    %v5304 = vunpack.c.l.b16 %v4252
    %v5305 = vunpack.c.h.b16 %v4252
    %v5306 = vunpack.c.l.b16 %v4253
    %v5307 = vunpack.c.h.b16 %v4253
    %v5308 = vunpack.c.l.b16 %v4254
    %v5309 = vunpack.c.h.b16 %v4254
    %v5310 = vunpack.c.l.b16 %v4255
    %v5311 = vunpack.c.h.b16 %v4255
    %v5312 = vunpack.c.l.b16 %v4256
    %v5313 = vunpack.c.h.b16 %v4256
    %v5314 = vunpack.c.l.b16 %v4257
    %v5315 = vunpack.c.h.b16 %v4257
    %v5316 = vunpack.c.l.b16 %v4258
    %v5317 = vunpack.c.h.b16 %v4258
    %v5318 = vunpack.c.l.b16 %v4259
    %v5319 = vunpack.c.h.b16 %v4259
    %v5320 = vunpack.c.l.b16 %v4260
    %v5321 = vunpack.c.h.b16 %v4260
    %v5322 = vunpack.c.l.b16 %v4261
    %v5323 = vunpack.c.h.b16 %v4261
    %v5324 = vunpack.c.l.b16 %v4262
    %v5325 = vunpack.c.h.b16 %v4262
    %v5326 = vunpack.c.l.b16 %v4263
    %v5327 = vunpack.c.h.b16 %v4263
    %v5328 = vunpack.c.l.b16 %v4264
    %v5329 = vunpack.c.h.b16 %v4264
    %v5330 = vunpack.c.l.b16 %v4265
    %v5331 = vunpack.c.h.b16 %v4265
    %v5332 = vunpack.c.l.b16 %v4266
    %v5333 = vunpack.c.h.b16 %v4266
    %v5334 = vunpack.c.l.b16 %v4267
    %v5335 = vunpack.c.h.b16 %v4267
    %v5336 = vunpack.c.l.b16 %v4268
    %v5337 = vunpack.c.h.b16 %v4268
    %v5338 = vunpack.c.l.b16 %v4269
    %v5339 = vunpack.c.h.b16 %v4269
    %v5340 = vunpack.c.l.b16 %v4270
    %v5341 = vunpack.c.h.b16 %v4270
    %v5342 = vunpack.c.l.b16 %v4271
    %v5343 = vunpack.c.h.b16 %v4271
    %v5344 = vpack.c.b16 %v5186, %v5184
    %v5345 = vpack.c.b16 %v5187, %v5185
    %v5346 = vpack.c.b16 %v5190, %v5188
    %v5347 = vpack.c.b16 %v5191, %v5189
    %v5348 = vpack.c.b16 %v5194, %v5192
    %v5349 = vpack.c.b16 %v5195, %v5193
    %v5350 = vpack.c.b16 %v5198, %v5196
    %v5351 = vpack.c.b16 %v5199, %v5197
    %v5352 = vpack.c.b16 %v5202, %v5200
    %v5353 = vpack.c.b16 %v5203, %v5201
    %v5354 = vpack.c.b16 %v5206, %v5204
    %v5355 = vpack.c.b16 %v5207, %v5205
    %v5356 = vpack.c.b16 %v5210, %v5208
    %v5357 = vpack.c.b16 %v5211, %v5209
    %v5358 = vpack.c.b16 %v5214, %v5212
    %v5359 = vpack.c.b16 %v5215, %v5213
    %v5360 = vpack.c.b16 %v5218, %v5216
    %v5361 = vpack.c.b16 %v5219, %v5217
    %v5362 = vpack.c.b16 %v5222, %v5220
    %v5363 = vpack.c.b16 %v5223, %v5221
    %v5364 = vpack.c.b16 %v5226, %v5224
    %v5365 = vpack.c.b16 %v5227, %v5225
    %v5366 = vpack.c.b16 %v5230, %v5228
    %v5367 = vpack.c.b16 %v5231, %v5229
    %v5368 = vpack.c.b16 %v5234, %v5232
    %v5369 = vpack.c.b16 %v5235, %v5233
    %v5370 = vpack.c.b16 %v5238, %v5236
    %v5371 = vpack.c.b16 %v5239, %v5237
    %v5372 = vpack.c.b16 %v5242, %v5240
    %v5373 = vpack.c.b16 %v5243, %v5241
    %v5374 = vpack.c.b16 %v5246, %v5244
    %v5375 = vpack.c.b16 %v5247, %v5245
    %v5376 = vpack.c.b16 %v5250, %v5248
    %v5377 = vpack.c.b16 %v5251, %v5249
    %v5378 = vpack.c.b16 %v5254, %v5252
    %v5379 = vpack.c.b16 %v5255, %v5253
    %v5380 = vpack.c.b16 %v5258, %v5256
    %v5381 = vpack.c.b16 %v5259, %v5257
    %v5382 = vpack.c.b16 %v5262, %v5260
    %v5383 = vpack.c.b16 %v5263, %v5261
    %v5384 = vpack.c.b16 %v5266, %v5264
    %v5385 = vpack.c.b16 %v5267, %v5265
    %v5386 = vpack.c.b16 %v5270, %v5268
    %v5387 = vpack.c.b16 %v5271, %v5269
    %v5388 = vpack.c.b16 %v5274, %v5272
    %v5389 = vpack.c.b16 %v5275, %v5273
    %v5390 = vpack.c.b16 %v5278, %v5276
    %v5391 = vpack.c.b16 %v5279, %v5277
    %v5392 = vpack.c.b16 %v5282, %v5280
    %v5393 = vpack.c.b16 %v5283, %v5281
    %v5394 = vpack.c.b16 %v5286, %v5284
    %v5395 = vpack.c.b16 %v5287, %v5285
    %v5396 = vpack.c.b16 %v5290, %v5288
    %v5397 = vpack.c.b16 %v5291, %v5289
    %v5398 = vpack.c.b16 %v5294, %v5292
    %v5399 = vpack.c.b16 %v5295, %v5293
    %v5400 = vpack.c.b16 %v5298, %v5296
    %v5401 = vpack.c.b16 %v5299, %v5297
    %v5402 = vpack.c.b16 %v5302, %v5300
    %v5403 = vpack.c.b16 %v5303, %v5301
    %v5404 = vpack.c.b16 %v5306, %v5304
    %v5405 = vpack.c.b16 %v5307, %v5305
    %v5406 = vpack.c.b16 %v5310, %v5308
    %v5407 = vpack.c.b16 %v5311, %v5309
    %v5408 = vpack.c.b16 %v5314, %v5312
    %v5409 = vpack.c.b16 %v5315, %v5313
    %v5410 = vpack.c.b16 %v5318, %v5316
    %v5411 = vpack.c.b16 %v5319, %v5317
    %v5412 = vpack.c.b16 %v5322, %v5320
    %v5413 = vpack.c.b16 %v5323, %v5321
    %v5414 = vpack.c.b16 %v5326, %v5324
    %v5415 = vpack.c.b16 %v5327, %v5325
    %v5416 = vpack.c.b16 %v5330, %v5328
    %v5417 = vpack.c.b16 %v5331, %v5329
    %v5418 = vpack.c.b16 %v5334, %v5332
    %v5419 = vpack.c.b16 %v5335, %v5333
    %v5420 = vpack.c.b16 %v5338, %v5336
    %v5421 = vpack.c.b16 %v5339, %v5337
    %v5422 = vpack.c.b16 %v5342, %v5340
    %v5423 = vpack.c.b16 %v5343, %v5341
    %5504 = vmatpush.bf16.msra.mxu0 %v5358
    %5505 = vmatpush.bf16.msra.mxu0 %v5356
    %5506 = vmatpush.bf16.msra.mxu0 %v5354
    %5507 = vmatpush.bf16.msra.mxu0 %v5352
    %5508 = vmatpush.bf16.msra.mxu0 %v5350
    %5509 = vmatpush.bf16.msra.mxu0 %v5348
    %5510 = vmatpush.bf16.msra.mxu0 %v5346
    %5511 = vmatpush.bf16.msra.mxu0 %v5344
    %5512 = vmatmul.bf16.gmra.mxu0 %v4784
    %v5513 = vpop.f32.mrf.mxu0
    %v5514 = vadd.f32 0.0, %v5513
    %v5515 = vpop.f32.mrf.mxu0
    %v5516 = vadd.f32 0.0, %v5515
    %5517 = vmatmul.bf16.gmra.mxu0 %v4789
    %v5518 = vpop.f32.mrf.mxu0
    %v5519 = vadd.f32 0.0, %v5518
    %v5520 = vpop.f32.mrf.mxu0
    %v5521 = vadd.f32 0.0, %v5520
    %5522 = vmatmul.bf16.gmra.mxu0 %v4794
    %v5523 = vpop.f32.mrf.mxu0
    %v5524 = vadd.f32 0.0, %v5523
    %v5525 = vpop.f32.mrf.mxu0
    %v5526 = vadd.f32 0.0, %v5525
    %5527 = vmatmul.bf16.gmra.mxu0 %v4799
    %v5528 = vpop.f32.mrf.mxu0
    %v5529 = vadd.f32 0.0, %v5528
    %v5530 = vpop.f32.mrf.mxu0
    %v5531 = vadd.f32 0.0, %v5530
    %5532 = vmatmul.bf16.gmra.mxu0 %v4804
    %v5533 = vpop.f32.mrf.mxu0
    %v5534 = vadd.f32 0.0, %v5533
    %v5535 = vpop.f32.mrf.mxu0
    %v5536 = vadd.f32 0.0, %v5535
    %5537 = vmatmul.bf16.gmra.mxu0 %v4809
    %v5538 = vpop.f32.mrf.mxu0
    %v5539 = vadd.f32 0.0, %v5538
    %v5540 = vpop.f32.mrf.mxu0
    %v5541 = vadd.f32 0.0, %v5540
    %5542 = vmatmul.bf16.gmra.mxu0 %v4814
    %v5543 = vpop.f32.mrf.mxu0
    %v5544 = vadd.f32 0.0, %v5543
    %v5545 = vpop.f32.mrf.mxu0
    %v5546 = vadd.f32 0.0, %v5545
    %5547 = vmatmul.bf16.gmra.mxu0 %v4819
    %v5548 = vpop.f32.mrf.mxu0
    %v5549 = vadd.f32 0.0, %v5548
    %v5550 = vpop.f32.mrf.mxu0
    %v5551 = vadd.f32 0.0, %v5550
    %5552 = vmatmul.bf16.gmra.mxu0 %v4824
    %v5553 = vpop.f32.mrf.mxu0
    %v5554 = vadd.f32 0.0, %v5553
    %v5555 = vpop.f32.mrf.mxu0
    %v5556 = vadd.f32 0.0, %v5555
    %5557 = vmatmul.bf16.gmra.mxu0 %v4829
    %v5558 = vpop.f32.mrf.mxu0
    %v5559 = vadd.f32 0.0, %v5558
    %v5560 = vpop.f32.mrf.mxu0
    %v5561 = vadd.f32 0.0, %v5560
    %5562 = vmatmul.bf16.gmra.mxu0 %v4834
    %v5563 = vpop.f32.mrf.mxu0
    %v5564 = vadd.f32 0.0, %v5563
    %v5565 = vpop.f32.mrf.mxu0
    %v5566 = vadd.f32 0.0, %v5565
    %5567 = vmatmul.bf16.gmra.mxu0 %v4839
    %v5568 = vpop.f32.mrf.mxu0
    %v5569 = vadd.f32 0.0, %v5568
    %v5570 = vpop.f32.mrf.mxu0
    %v5571 = vadd.f32 0.0, %v5570
    %5572 = vmatmul.bf16.gmra.mxu0 %v4844
    %v5573 = vpop.f32.mrf.mxu0
    %v5574 = vadd.f32 0.0, %v5573
    %v5575 = vpop.f32.mrf.mxu0
    %v5576 = vadd.f32 0.0, %v5575
    %5577 = vmatmul.bf16.gmra.mxu0 %v4849
    %v5578 = vpop.f32.mrf.mxu0
    %v5579 = vadd.f32 0.0, %v5578
    %v5580 = vpop.f32.mrf.mxu0
    %v5581 = vadd.f32 0.0, %v5580
    %5582 = vmatmul.bf16.gmra.mxu0 %v4854
    %v5583 = vpop.f32.mrf.mxu0
    %v5584 = vadd.f32 0.0, %v5583
    %v5585 = vpop.f32.mrf.mxu0
    %v5586 = vadd.f32 0.0, %v5585
    %5587 = vmatmul.bf16.gmra.mxu0 %v4859
    %v5588 = vpop.f32.mrf.mxu0
    %v5589 = vadd.f32 0.0, %v5588
    %v5590 = vpop.f32.mrf.mxu0
    %v5591 = vadd.f32 0.0, %v5590
    %5592 = vmatmul.bf16.gmra.mxu0 %v4864
    %v5593 = vpop.f32.mrf.mxu0
    %v5594 = vadd.f32 0.0, %v5593
    %v5595 = vpop.f32.mrf.mxu0
    %v5596 = vadd.f32 0.0, %v5595
    %5597 = vmatmul.bf16.gmra.mxu0 %v4869
    %v5598 = vpop.f32.mrf.mxu0
    %v5599 = vadd.f32 0.0, %v5598
    %v5600 = vpop.f32.mrf.mxu0
    %v5601 = vadd.f32 0.0, %v5600
    %5602 = vmatmul.bf16.gmra.mxu0 %v4874
    %v5603 = vpop.f32.mrf.mxu0
    %v5604 = vadd.f32 0.0, %v5603
    %v5605 = vpop.f32.mrf.mxu0
    %v5606 = vadd.f32 0.0, %v5605
    %5607 = vmatmul.bf16.gmra.mxu0 %v4879
    %v5608 = vpop.f32.mrf.mxu0
    %v5609 = vadd.f32 0.0, %v5608
    %v5610 = vpop.f32.mrf.mxu0
    %v5611 = vadd.f32 0.0, %v5610
    %5612 = vmatmul.bf16.gmra.mxu0 %v4884
    %v5613 = vpop.f32.mrf.mxu0
    %v5614 = vadd.f32 0.0, %v5613
    %v5615 = vpop.f32.mrf.mxu0
    %v5616 = vadd.f32 0.0, %v5615
    %5617 = vmatmul.bf16.gmra.mxu0 %v4889
    %v5618 = vpop.f32.mrf.mxu0
    %v5619 = vadd.f32 0.0, %v5618
    %v5620 = vpop.f32.mrf.mxu0
    %v5621 = vadd.f32 0.0, %v5620
    %5622 = vmatmul.bf16.gmra.mxu0 %v4894
    %v5623 = vpop.f32.mrf.mxu0
    %v5624 = vadd.f32 0.0, %v5623
    %v5625 = vpop.f32.mrf.mxu0
    %v5626 = vadd.f32 0.0, %v5625
    %5627 = vmatmul.bf16.gmra.mxu0 %v4899
    %v5628 = vpop.f32.mrf.mxu0
    %v5629 = vadd.f32 0.0, %v5628
    %v5630 = vpop.f32.mrf.mxu0
    %v5631 = vadd.f32 0.0, %v5630
    %5632 = vmatmul.bf16.gmra.mxu0 %v4904
    %v5633 = vpop.f32.mrf.mxu0
    %v5634 = vadd.f32 0.0, %v5633
    %v5635 = vpop.f32.mrf.mxu0
    %v5636 = vadd.f32 0.0, %v5635
    %5637 = vmatmul.bf16.gmra.mxu0 %v4909
    %v5638 = vpop.f32.mrf.mxu0
    %v5639 = vadd.f32 0.0, %v5638
    %v5640 = vpop.f32.mrf.mxu0
    %v5641 = vadd.f32 0.0, %v5640
    %5642 = vmatmul.bf16.gmra.mxu0 %v4914
    %v5643 = vpop.f32.mrf.mxu0
    %v5644 = vadd.f32 0.0, %v5643
    %v5645 = vpop.f32.mrf.mxu0
    %v5646 = vadd.f32 0.0, %v5645
    %5647 = vmatmul.bf16.gmra.mxu0 %v4919
    %v5648 = vpop.f32.mrf.mxu0
    %v5649 = vadd.f32 0.0, %v5648
    %v5650 = vpop.f32.mrf.mxu0
    %v5651 = vadd.f32 0.0, %v5650
    %5652 = vmatmul.bf16.gmra.mxu0 %v4924
    %v5653 = vpop.f32.mrf.mxu0
    %v5654 = vadd.f32 0.0, %v5653
    %v5655 = vpop.f32.mrf.mxu0
    %v5656 = vadd.f32 0.0, %v5655
    %5657 = vmatmul.bf16.gmra.mxu0 %v4929
    %v5658 = vpop.f32.mrf.mxu0
    %v5659 = vadd.f32 0.0, %v5658
    %v5660 = vpop.f32.mrf.mxu0
    %v5661 = vadd.f32 0.0, %v5660
    %5662 = vmatmul.bf16.gmra.mxu0 %v4934
    %v5663 = vpop.f32.mrf.mxu0
    %v5664 = vadd.f32 0.0, %v5663
    %v5665 = vpop.f32.mrf.mxu0
    %v5666 = vadd.f32 0.0, %v5665
    %5667 = vmatmul.bf16.gmra.mxu0 %v4939
    %v5668 = vpop.f32.mrf.mxu0
    %v5669 = vadd.f32 0.0, %v5668
    %v5670 = vpop.f32.mrf.mxu0
    %v5671 = vadd.f32 0.0, %v5670
    %5672 = vdwg.mxu0
    %5673 = vmatpush.bf16.msra.mxu0 %v5374
    %5674 = vmatpush.bf16.msra.mxu0 %v5372
    %5675 = vmatpush.bf16.msra.mxu0 %v5370
    %5676 = vmatpush.bf16.msra.mxu0 %v5368
    %5677 = vmatpush.bf16.msra.mxu0 %v5366
    %5678 = vmatpush.bf16.msra.mxu0 %v5364
    %5679 = vmatpush.bf16.msra.mxu0 %v5362
    %5680 = vmatpush.bf16.msra.mxu0 %v5360
    %5681 = vmatmul.bf16.gmra.mxu0 %v4785
    %v5682 = vpop.f32.mrf.mxu0
    %v5683 = vadd.f32 %v5514, %v5682
    %v5684 = vpop.f32.mrf.mxu0
    %v5685 = vadd.f32 %v5516, %v5684
    %5686 = vmatmul.bf16.gmra.mxu0 %v4790
    %v5687 = vpop.f32.mrf.mxu0
    %v5688 = vadd.f32 %v5519, %v5687
    %v5689 = vpop.f32.mrf.mxu0
    %v5690 = vadd.f32 %v5521, %v5689
    %5691 = vmatmul.bf16.gmra.mxu0 %v4795
    %v5692 = vpop.f32.mrf.mxu0
    %v5693 = vadd.f32 %v5524, %v5692
    %v5694 = vpop.f32.mrf.mxu0
    %v5695 = vadd.f32 %v5526, %v5694
    %5696 = vmatmul.bf16.gmra.mxu0 %v4800
    %v5697 = vpop.f32.mrf.mxu0
    %v5698 = vadd.f32 %v5529, %v5697
    %v5699 = vpop.f32.mrf.mxu0
    %v5700 = vadd.f32 %v5531, %v5699
    %5701 = vmatmul.bf16.gmra.mxu0 %v4805
    %v5702 = vpop.f32.mrf.mxu0
    %v5703 = vadd.f32 %v5534, %v5702
    %v5704 = vpop.f32.mrf.mxu0
    %v5705 = vadd.f32 %v5536, %v5704
    %5706 = vmatmul.bf16.gmra.mxu0 %v4810
    %v5707 = vpop.f32.mrf.mxu0
    %v5708 = vadd.f32 %v5539, %v5707
    %v5709 = vpop.f32.mrf.mxu0
    %v5710 = vadd.f32 %v5541, %v5709
    %5711 = vmatmul.bf16.gmra.mxu0 %v4815
    %v5712 = vpop.f32.mrf.mxu0
    %v5713 = vadd.f32 %v5544, %v5712
    %v5714 = vpop.f32.mrf.mxu0
    %v5715 = vadd.f32 %v5546, %v5714
    %5716 = vmatmul.bf16.gmra.mxu0 %v4820
    %v5717 = vpop.f32.mrf.mxu0
    %v5718 = vadd.f32 %v5549, %v5717
    %v5719 = vpop.f32.mrf.mxu0
    %v5720 = vadd.f32 %v5551, %v5719
    %5721 = vmatmul.bf16.gmra.mxu0 %v4825
    %v5722 = vpop.f32.mrf.mxu0
    %v5723 = vadd.f32 %v5554, %v5722
    %v5724 = vpop.f32.mrf.mxu0
    %v5725 = vadd.f32 %v5556, %v5724
    %5726 = vmatmul.bf16.gmra.mxu0 %v4830
    %v5727 = vpop.f32.mrf.mxu0
    %v5728 = vadd.f32 %v5559, %v5727
    %v5729 = vpop.f32.mrf.mxu0
    %v5730 = vadd.f32 %v5561, %v5729
    %5731 = vmatmul.bf16.gmra.mxu0 %v4835
    %v5732 = vpop.f32.mrf.mxu0
    %v5733 = vadd.f32 %v5564, %v5732
    %v5734 = vpop.f32.mrf.mxu0
    %v5735 = vadd.f32 %v5566, %v5734
    %5736 = vmatmul.bf16.gmra.mxu0 %v4840
    %v5737 = vpop.f32.mrf.mxu0
    %v5738 = vadd.f32 %v5569, %v5737
    %v5739 = vpop.f32.mrf.mxu0
    %v5740 = vadd.f32 %v5571, %v5739
    %5741 = vmatmul.bf16.gmra.mxu0 %v4845
    %v5742 = vpop.f32.mrf.mxu0
    %v5743 = vadd.f32 %v5574, %v5742
    %v5744 = vpop.f32.mrf.mxu0
    %v5745 = vadd.f32 %v5576, %v5744
    %5746 = vmatmul.bf16.gmra.mxu0 %v4850
    %v5747 = vpop.f32.mrf.mxu0
    %v5748 = vadd.f32 %v5579, %v5747
    %v5749 = vpop.f32.mrf.mxu0
    %v5750 = vadd.f32 %v5581, %v5749
    %5751 = vmatmul.bf16.gmra.mxu0 %v4855
    %v5752 = vpop.f32.mrf.mxu0
    %v5753 = vadd.f32 %v5584, %v5752
    %v5754 = vpop.f32.mrf.mxu0
    %v5755 = vadd.f32 %v5586, %v5754
    %5756 = vmatmul.bf16.gmra.mxu0 %v4860
    %v5757 = vpop.f32.mrf.mxu0
    %v5758 = vadd.f32 %v5589, %v5757
    %v5759 = vpop.f32.mrf.mxu0
    %v5760 = vadd.f32 %v5591, %v5759
    %5761 = vmatmul.bf16.gmra.mxu0 %v4865
    %v5762 = vpop.f32.mrf.mxu0
    %v5763 = vadd.f32 %v5594, %v5762
    %v5764 = vpop.f32.mrf.mxu0
    %v5765 = vadd.f32 %v5596, %v5764
    %5766 = vmatmul.bf16.gmra.mxu0 %v4870
    %v5767 = vpop.f32.mrf.mxu0
    %v5768 = vadd.f32 %v5599, %v5767
    %v5769 = vpop.f32.mrf.mxu0
    %v5770 = vadd.f32 %v5601, %v5769
    %5771 = vmatmul.bf16.gmra.mxu0 %v4875
    %v5772 = vpop.f32.mrf.mxu0
    %v5773 = vadd.f32 %v5604, %v5772
    %v5774 = vpop.f32.mrf.mxu0
    %v5775 = vadd.f32 %v5606, %v5774
    %5776 = vmatmul.bf16.gmra.mxu0 %v4880
    %v5777 = vpop.f32.mrf.mxu0
    %v5778 = vadd.f32 %v5609, %v5777
    %v5779 = vpop.f32.mrf.mxu0
    %v5780 = vadd.f32 %v5611, %v5779
    %5781 = vmatmul.bf16.gmra.mxu0 %v4885
    %v5782 = vpop.f32.mrf.mxu0
    %v5783 = vadd.f32 %v5614, %v5782
    %v5784 = vpop.f32.mrf.mxu0
    %v5785 = vadd.f32 %v5616, %v5784
    %5786 = vmatmul.bf16.gmra.mxu0 %v4890
    %v5787 = vpop.f32.mrf.mxu0
    %v5788 = vadd.f32 %v5619, %v5787
    %v5789 = vpop.f32.mrf.mxu0
    %v5790 = vadd.f32 %v5621, %v5789
    %5791 = vmatmul.bf16.gmra.mxu0 %v4895
    %v5792 = vpop.f32.mrf.mxu0
    %v5793 = vadd.f32 %v5624, %v5792
    %v5794 = vpop.f32.mrf.mxu0
    %v5795 = vadd.f32 %v5626, %v5794
    %5796 = vmatmul.bf16.gmra.mxu0 %v4900
    %v5797 = vpop.f32.mrf.mxu0
    %v5798 = vadd.f32 %v5629, %v5797
    %v5799 = vpop.f32.mrf.mxu0
    %v5800 = vadd.f32 %v5631, %v5799
    %5801 = vmatmul.bf16.gmra.mxu0 %v4905
    %v5802 = vpop.f32.mrf.mxu0
    %v5803 = vadd.f32 %v5634, %v5802
    %v5804 = vpop.f32.mrf.mxu0
    %v5805 = vadd.f32 %v5636, %v5804
    %5806 = vmatmul.bf16.gmra.mxu0 %v4910
    %v5807 = vpop.f32.mrf.mxu0
    %v5808 = vadd.f32 %v5639, %v5807
    %v5809 = vpop.f32.mrf.mxu0
    %v5810 = vadd.f32 %v5641, %v5809
    %5811 = vmatmul.bf16.gmra.mxu0 %v4915
    %v5812 = vpop.f32.mrf.mxu0
    %v5813 = vadd.f32 %v5644, %v5812
    %v5814 = vpop.f32.mrf.mxu0
    %v5815 = vadd.f32 %v5646, %v5814
    %5816 = vmatmul.bf16.gmra.mxu0 %v4920
    %v5817 = vpop.f32.mrf.mxu0
    %v5818 = vadd.f32 %v5649, %v5817
    %v5819 = vpop.f32.mrf.mxu0
    %v5820 = vadd.f32 %v5651, %v5819
    %5821 = vmatmul.bf16.gmra.mxu0 %v4925
    %v5822 = vpop.f32.mrf.mxu0
    %v5823 = vadd.f32 %v5654, %v5822
    %v5824 = vpop.f32.mrf.mxu0
    %v5825 = vadd.f32 %v5656, %v5824
    %5826 = vmatmul.bf16.gmra.mxu0 %v4930
    %v5827 = vpop.f32.mrf.mxu0
    %v5828 = vadd.f32 %v5659, %v5827
    %v5829 = vpop.f32.mrf.mxu0
    %v5830 = vadd.f32 %v5661, %v5829
    %5831 = vmatmul.bf16.gmra.mxu0 %v4935
    %v5832 = vpop.f32.mrf.mxu0
    %v5833 = vadd.f32 %v5664, %v5832
    %v5834 = vpop.f32.mrf.mxu0
    %v5835 = vadd.f32 %v5666, %v5834
    %5836 = vmatmul.bf16.gmra.mxu0 %v4940
    %v5837 = vpop.f32.mrf.mxu0
    %v5838 = vadd.f32 %v5669, %v5837
    %v5839 = vpop.f32.mrf.mxu0
    %v5840 = vadd.f32 %v5671, %v5839
    %5841 = vdwg.mxu0
    %5842 = vmatpush.bf16.msra.mxu0 %v5390
    %5843 = vmatpush.bf16.msra.mxu0 %v5388
    %5844 = vmatpush.bf16.msra.mxu0 %v5386
    %5845 = vmatpush.bf16.msra.mxu0 %v5384
    %5846 = vmatpush.bf16.msra.mxu0 %v5382
    %5847 = vmatpush.bf16.msra.mxu0 %v5380
    %5848 = vmatpush.bf16.msra.mxu0 %v5378
    %5849 = vmatpush.bf16.msra.mxu0 %v5376
    %5850 = vmatmul.bf16.gmra.mxu0 %v4786
    %v5851 = vpop.f32.mrf.mxu0
    %v5852 = vadd.f32 %v5683, %v5851
    %v5853 = vpop.f32.mrf.mxu0
    %v5854 = vadd.f32 %v5685, %v5853
    %5855 = vmatmul.bf16.gmra.mxu0 %v4791
    %v5856 = vpop.f32.mrf.mxu0
    %v5857 = vadd.f32 %v5688, %v5856
    %v5858 = vpop.f32.mrf.mxu0
    %v5859 = vadd.f32 %v5690, %v5858
    %5860 = vmatmul.bf16.gmra.mxu0 %v4796
    %v5861 = vpop.f32.mrf.mxu0
    %v5862 = vadd.f32 %v5693, %v5861
    %v5863 = vpop.f32.mrf.mxu0
    %v5864 = vadd.f32 %v5695, %v5863
    %5865 = vmatmul.bf16.gmra.mxu0 %v4801
    %v5866 = vpop.f32.mrf.mxu0
    %v5867 = vadd.f32 %v5698, %v5866
    %v5868 = vpop.f32.mrf.mxu0
    %v5869 = vadd.f32 %v5700, %v5868
    %5870 = vmatmul.bf16.gmra.mxu0 %v4806
    %v5871 = vpop.f32.mrf.mxu0
    %v5872 = vadd.f32 %v5703, %v5871
    %v5873 = vpop.f32.mrf.mxu0
    %v5874 = vadd.f32 %v5705, %v5873
    %5875 = vmatmul.bf16.gmra.mxu0 %v4811
    %v5876 = vpop.f32.mrf.mxu0
    %v5877 = vadd.f32 %v5708, %v5876
    %v5878 = vpop.f32.mrf.mxu0
    %v5879 = vadd.f32 %v5710, %v5878
    %5880 = vmatmul.bf16.gmra.mxu0 %v4816
    %v5881 = vpop.f32.mrf.mxu0
    %v5882 = vadd.f32 %v5713, %v5881
    %v5883 = vpop.f32.mrf.mxu0
    %v5884 = vadd.f32 %v5715, %v5883
    %5885 = vmatmul.bf16.gmra.mxu0 %v4821
    %v5886 = vpop.f32.mrf.mxu0
    %v5887 = vadd.f32 %v5718, %v5886
    %v5888 = vpop.f32.mrf.mxu0
    %v5889 = vadd.f32 %v5720, %v5888
    %5890 = vmatmul.bf16.gmra.mxu0 %v4826
    %v5891 = vpop.f32.mrf.mxu0
    %v5892 = vadd.f32 %v5723, %v5891
    %v5893 = vpop.f32.mrf.mxu0
    %v5894 = vadd.f32 %v5725, %v5893
    %5895 = vmatmul.bf16.gmra.mxu0 %v4831
    %v5896 = vpop.f32.mrf.mxu0
    %v5897 = vadd.f32 %v5728, %v5896
    %v5898 = vpop.f32.mrf.mxu0
    %v5899 = vadd.f32 %v5730, %v5898
    %5900 = vmatmul.bf16.gmra.mxu0 %v4836
    %v5901 = vpop.f32.mrf.mxu0
    %v5902 = vadd.f32 %v5733, %v5901
    %v5903 = vpop.f32.mrf.mxu0
    %v5904 = vadd.f32 %v5735, %v5903
    %5905 = vmatmul.bf16.gmra.mxu0 %v4841
    %v5906 = vpop.f32.mrf.mxu0
    %v5907 = vadd.f32 %v5738, %v5906
    %v5908 = vpop.f32.mrf.mxu0
    %v5909 = vadd.f32 %v5740, %v5908
    %5910 = vmatmul.bf16.gmra.mxu0 %v4846
    %v5911 = vpop.f32.mrf.mxu0
    %v5912 = vadd.f32 %v5743, %v5911
    %v5913 = vpop.f32.mrf.mxu0
    %v5914 = vadd.f32 %v5745, %v5913
    %5915 = vmatmul.bf16.gmra.mxu0 %v4851
    %v5916 = vpop.f32.mrf.mxu0
    %v5917 = vadd.f32 %v5748, %v5916
    %v5918 = vpop.f32.mrf.mxu0
    %v5919 = vadd.f32 %v5750, %v5918
    %5920 = vmatmul.bf16.gmra.mxu0 %v4856
    %v5921 = vpop.f32.mrf.mxu0
    %v5922 = vadd.f32 %v5753, %v5921
    %v5923 = vpop.f32.mrf.mxu0
    %v5924 = vadd.f32 %v5755, %v5923
    %5925 = vmatmul.bf16.gmra.mxu0 %v4861
    %v5926 = vpop.f32.mrf.mxu0
    %v5927 = vadd.f32 %v5758, %v5926
    %v5928 = vpop.f32.mrf.mxu0
    %v5929 = vadd.f32 %v5760, %v5928
    %5930 = vmatmul.bf16.gmra.mxu0 %v4866
    %v5931 = vpop.f32.mrf.mxu0
    %v5932 = vadd.f32 %v5763, %v5931
    %v5933 = vpop.f32.mrf.mxu0
    %v5934 = vadd.f32 %v5765, %v5933
    %5935 = vmatmul.bf16.gmra.mxu0 %v4871
    %v5936 = vpop.f32.mrf.mxu0
    %v5937 = vadd.f32 %v5768, %v5936
    %v5938 = vpop.f32.mrf.mxu0
    %v5939 = vadd.f32 %v5770, %v5938
    %5940 = vmatmul.bf16.gmra.mxu0 %v4876
    %v5941 = vpop.f32.mrf.mxu0
    %v5942 = vadd.f32 %v5773, %v5941
    %v5943 = vpop.f32.mrf.mxu0
    %v5944 = vadd.f32 %v5775, %v5943
    %5945 = vmatmul.bf16.gmra.mxu0 %v4881
    %v5946 = vpop.f32.mrf.mxu0
    %v5947 = vadd.f32 %v5778, %v5946
    %v5948 = vpop.f32.mrf.mxu0
    %v5949 = vadd.f32 %v5780, %v5948
    %5950 = vmatmul.bf16.gmra.mxu0 %v4886
    %v5951 = vpop.f32.mrf.mxu0
    %v5952 = vadd.f32 %v5783, %v5951
    %v5953 = vpop.f32.mrf.mxu0
    %v5954 = vadd.f32 %v5785, %v5953
    %5955 = vmatmul.bf16.gmra.mxu0 %v4891
    %v5956 = vpop.f32.mrf.mxu0
    %v5957 = vadd.f32 %v5788, %v5956
    %v5958 = vpop.f32.mrf.mxu0
    %v5959 = vadd.f32 %v5790, %v5958
    %5960 = vmatmul.bf16.gmra.mxu0 %v4896
    %v5961 = vpop.f32.mrf.mxu0
    %v5962 = vadd.f32 %v5793, %v5961
    %v5963 = vpop.f32.mrf.mxu0
    %v5964 = vadd.f32 %v5795, %v5963
    %5965 = vmatmul.bf16.gmra.mxu0 %v4901
    %v5966 = vpop.f32.mrf.mxu0
    %v5967 = vadd.f32 %v5798, %v5966
    %v5968 = vpop.f32.mrf.mxu0
    %v5969 = vadd.f32 %v5800, %v5968
    %5970 = vmatmul.bf16.gmra.mxu0 %v4906
    %v5971 = vpop.f32.mrf.mxu0
    %v5972 = vadd.f32 %v5803, %v5971
    %v5973 = vpop.f32.mrf.mxu0
    %v5974 = vadd.f32 %v5805, %v5973
    %5975 = vmatmul.bf16.gmra.mxu0 %v4911
    %v5976 = vpop.f32.mrf.mxu0
    %v5977 = vadd.f32 %v5808, %v5976
    %v5978 = vpop.f32.mrf.mxu0
    %v5979 = vadd.f32 %v5810, %v5978
    %5980 = vmatmul.bf16.gmra.mxu0 %v4916
    %v5981 = vpop.f32.mrf.mxu0
    %v5982 = vadd.f32 %v5813, %v5981
    %v5983 = vpop.f32.mrf.mxu0
    %v5984 = vadd.f32 %v5815, %v5983
    %5985 = vmatmul.bf16.gmra.mxu0 %v4921
    %v5986 = vpop.f32.mrf.mxu0
    %v5987 = vadd.f32 %v5818, %v5986
    %v5988 = vpop.f32.mrf.mxu0
    %v5989 = vadd.f32 %v5820, %v5988
    %5990 = vmatmul.bf16.gmra.mxu0 %v4926
    %v5991 = vpop.f32.mrf.mxu0
    %v5992 = vadd.f32 %v5823, %v5991
    %v5993 = vpop.f32.mrf.mxu0
    %v5994 = vadd.f32 %v5825, %v5993
    %5995 = vmatmul.bf16.gmra.mxu0 %v4931
    %v5996 = vpop.f32.mrf.mxu0
    %v5997 = vadd.f32 %v5828, %v5996
    %v5998 = vpop.f32.mrf.mxu0
    %v5999 = vadd.f32 %v5830, %v5998
    %6000 = vmatmul.bf16.gmra.mxu0 %v4936
    %v6001 = vpop.f32.mrf.mxu0
    %v6002 = vadd.f32 %v5833, %v6001
    %v6003 = vpop.f32.mrf.mxu0
    %v6004 = vadd.f32 %v5835, %v6003
    %6005 = vmatmul.bf16.gmra.mxu0 %v4941
    %v6006 = vpop.f32.mrf.mxu0
    %v6007 = vadd.f32 %v5838, %v6006
    %v6008 = vpop.f32.mrf.mxu0
    %v6009 = vadd.f32 %v5840, %v6008
    %6010 = vdwg.mxu0
    %6011 = vmatpush.bf16.msra.mxu0 %v5406
    %6012 = vmatpush.bf16.msra.mxu0 %v5404
    %6013 = vmatpush.bf16.msra.mxu0 %v5402
    %6014 = vmatpush.bf16.msra.mxu0 %v5400
    %6015 = vmatpush.bf16.msra.mxu0 %v5398
    %6016 = vmatpush.bf16.msra.mxu0 %v5396
    %6017 = vmatpush.bf16.msra.mxu0 %v5394
    %6018 = vmatpush.bf16.msra.mxu0 %v5392
    %6019 = vmatmul.bf16.gmra.mxu0 %v4787
    %v6020 = vpop.f32.mrf.mxu0
    %v6021 = vadd.f32 %v5852, %v6020
    %v6022 = vpop.f32.mrf.mxu0
    %v6023 = vadd.f32 %v5854, %v6022
    %6024 = vmatmul.bf16.gmra.mxu0 %v4792
    %v6025 = vpop.f32.mrf.mxu0
    %v6026 = vadd.f32 %v5857, %v6025
    %v6027 = vpop.f32.mrf.mxu0
    %v6028 = vadd.f32 %v5859, %v6027
    %6029 = vmatmul.bf16.gmra.mxu0 %v4797
    %v6030 = vpop.f32.mrf.mxu0
    %v6031 = vadd.f32 %v5862, %v6030
    %v6032 = vpop.f32.mrf.mxu0
    %v6033 = vadd.f32 %v5864, %v6032
    %6034 = vmatmul.bf16.gmra.mxu0 %v4802
    %v6035 = vpop.f32.mrf.mxu0
    %v6036 = vadd.f32 %v5867, %v6035
    %v6037 = vpop.f32.mrf.mxu0
    %v6038 = vadd.f32 %v5869, %v6037
    %6039 = vmatmul.bf16.gmra.mxu0 %v4807
    %v6040 = vpop.f32.mrf.mxu0
    %v6041 = vadd.f32 %v5872, %v6040
    %v6042 = vpop.f32.mrf.mxu0
    %v6043 = vadd.f32 %v5874, %v6042
    %6044 = vmatmul.bf16.gmra.mxu0 %v4812
    %v6045 = vpop.f32.mrf.mxu0
    %v6046 = vadd.f32 %v5877, %v6045
    %v6047 = vpop.f32.mrf.mxu0
    %v6048 = vadd.f32 %v5879, %v6047
    %6049 = vmatmul.bf16.gmra.mxu0 %v4817
    %v6050 = vpop.f32.mrf.mxu0
    %v6051 = vadd.f32 %v5882, %v6050
    %v6052 = vpop.f32.mrf.mxu0
    %v6053 = vadd.f32 %v5884, %v6052
    %6054 = vmatmul.bf16.gmra.mxu0 %v4822
    %v6055 = vpop.f32.mrf.mxu0
    %v6056 = vadd.f32 %v5887, %v6055
    %v6057 = vpop.f32.mrf.mxu0
    %v6058 = vadd.f32 %v5889, %v6057
    %6059 = vmatmul.bf16.gmra.mxu0 %v4827
    %v6060 = vpop.f32.mrf.mxu0
    %v6061 = vadd.f32 %v5892, %v6060
    %v6062 = vpop.f32.mrf.mxu0
    %v6063 = vadd.f32 %v5894, %v6062
    %6064 = vmatmul.bf16.gmra.mxu0 %v4832
    %v6065 = vpop.f32.mrf.mxu0
    %v6066 = vadd.f32 %v5897, %v6065
    %v6067 = vpop.f32.mrf.mxu0
    %v6068 = vadd.f32 %v5899, %v6067
    %6069 = vmatmul.bf16.gmra.mxu0 %v4837
    %v6070 = vpop.f32.mrf.mxu0
    %v6071 = vadd.f32 %v5902, %v6070
    %v6072 = vpop.f32.mrf.mxu0
    %v6073 = vadd.f32 %v5904, %v6072
    %6074 = vmatmul.bf16.gmra.mxu0 %v4842
    %v6075 = vpop.f32.mrf.mxu0
    %v6076 = vadd.f32 %v5907, %v6075
    %v6077 = vpop.f32.mrf.mxu0
    %v6078 = vadd.f32 %v5909, %v6077
    %6079 = vmatmul.bf16.gmra.mxu0 %v4847
    %v6080 = vpop.f32.mrf.mxu0
    %v6081 = vadd.f32 %v5912, %v6080
    %v6082 = vpop.f32.mrf.mxu0
    %v6083 = vadd.f32 %v5914, %v6082
    %6084 = vmatmul.bf16.gmra.mxu0 %v4852
    %v6085 = vpop.f32.mrf.mxu0
    %v6086 = vadd.f32 %v5917, %v6085
    %v6087 = vpop.f32.mrf.mxu0
    %v6088 = vadd.f32 %v5919, %v6087
    %6089 = vmatmul.bf16.gmra.mxu0 %v4857
    %v6090 = vpop.f32.mrf.mxu0
    %v6091 = vadd.f32 %v5922, %v6090
    %v6092 = vpop.f32.mrf.mxu0
    %v6093 = vadd.f32 %v5924, %v6092
    %6094 = vmatmul.bf16.gmra.mxu0 %v4862
    %v6095 = vpop.f32.mrf.mxu0
    %v6096 = vadd.f32 %v5927, %v6095
    %v6097 = vpop.f32.mrf.mxu0
    %v6098 = vadd.f32 %v5929, %v6097
    %6099 = vmatmul.bf16.gmra.mxu0 %v4867
    %v6100 = vpop.f32.mrf.mxu0
    %v6101 = vadd.f32 %v5932, %v6100
    %v6102 = vpop.f32.mrf.mxu0
    %v6103 = vadd.f32 %v5934, %v6102
    %6104 = vmatmul.bf16.gmra.mxu0 %v4872
    %v6105 = vpop.f32.mrf.mxu0
    %v6106 = vadd.f32 %v5937, %v6105
    %v6107 = vpop.f32.mrf.mxu0
    %v6108 = vadd.f32 %v5939, %v6107
    %6109 = vmatmul.bf16.gmra.mxu0 %v4877
    %v6110 = vpop.f32.mrf.mxu0
    %v6111 = vadd.f32 %v5942, %v6110
    %v6112 = vpop.f32.mrf.mxu0
    %v6113 = vadd.f32 %v5944, %v6112
    %6114 = vmatmul.bf16.gmra.mxu0 %v4882
    %v6115 = vpop.f32.mrf.mxu0
    %v6116 = vadd.f32 %v5947, %v6115
    %v6117 = vpop.f32.mrf.mxu0
    %v6118 = vadd.f32 %v5949, %v6117
    %6119 = vmatmul.bf16.gmra.mxu0 %v4887
    %v6120 = vpop.f32.mrf.mxu0
    %v6121 = vadd.f32 %v5952, %v6120
    %v6122 = vpop.f32.mrf.mxu0
    %v6123 = vadd.f32 %v5954, %v6122
    %6124 = vmatmul.bf16.gmra.mxu0 %v4892
    %v6125 = vpop.f32.mrf.mxu0
    %v6126 = vadd.f32 %v5957, %v6125
    %v6127 = vpop.f32.mrf.mxu0
    %v6128 = vadd.f32 %v5959, %v6127
    %6129 = vmatmul.bf16.gmra.mxu0 %v4897
    %v6130 = vpop.f32.mrf.mxu0
    %v6131 = vadd.f32 %v5962, %v6130
    %v6132 = vpop.f32.mrf.mxu0
    %v6133 = vadd.f32 %v5964, %v6132
    %6134 = vmatmul.bf16.gmra.mxu0 %v4902
    %v6135 = vpop.f32.mrf.mxu0
    %v6136 = vadd.f32 %v5967, %v6135
    %v6137 = vpop.f32.mrf.mxu0
    %v6138 = vadd.f32 %v5969, %v6137
    %6139 = vmatmul.bf16.gmra.mxu0 %v4907
    %v6140 = vpop.f32.mrf.mxu0
    %v6141 = vadd.f32 %v5972, %v6140
    %v6142 = vpop.f32.mrf.mxu0
    %v6143 = vadd.f32 %v5974, %v6142
    %6144 = vmatmul.bf16.gmra.mxu0 %v4912
    %v6145 = vpop.f32.mrf.mxu0
    %v6146 = vadd.f32 %v5977, %v6145
    %v6147 = vpop.f32.mrf.mxu0
    %v6148 = vadd.f32 %v5979, %v6147
    %6149 = vmatmul.bf16.gmra.mxu0 %v4917
    %v6150 = vpop.f32.mrf.mxu0
    %v6151 = vadd.f32 %v5982, %v6150
    %v6152 = vpop.f32.mrf.mxu0
    %v6153 = vadd.f32 %v5984, %v6152
    %6154 = vmatmul.bf16.gmra.mxu0 %v4922
    %v6155 = vpop.f32.mrf.mxu0
    %v6156 = vadd.f32 %v5987, %v6155
    %v6157 = vpop.f32.mrf.mxu0
    %v6158 = vadd.f32 %v5989, %v6157
    %6159 = vmatmul.bf16.gmra.mxu0 %v4927
    %v6160 = vpop.f32.mrf.mxu0
    %v6161 = vadd.f32 %v5992, %v6160
    %v6162 = vpop.f32.mrf.mxu0
    %v6163 = vadd.f32 %v5994, %v6162
    %6164 = vmatmul.bf16.gmra.mxu0 %v4932
    %v6165 = vpop.f32.mrf.mxu0
    %v6166 = vadd.f32 %v5997, %v6165
    %v6167 = vpop.f32.mrf.mxu0
    %v6168 = vadd.f32 %v5999, %v6167
    %6169 = vmatmul.bf16.gmra.mxu0 %v4937
    %v6170 = vpop.f32.mrf.mxu0
    %v6171 = vadd.f32 %v6002, %v6170
    %v6172 = vpop.f32.mrf.mxu0
    %v6173 = vadd.f32 %v6004, %v6172
    %6174 = vmatmul.bf16.gmra.mxu0 %v4942
    %v6175 = vpop.f32.mrf.mxu0
    %v6176 = vadd.f32 %v6007, %v6175
    %v6177 = vpop.f32.mrf.mxu0
    %v6178 = vadd.f32 %v6009, %v6177
    %6179 = vdwg.mxu0
    %6180 = vmatpush.bf16.msra.mxu0 %v5422
    %6181 = vmatpush.bf16.msra.mxu0 %v5420
    %6182 = vmatpush.bf16.msra.mxu0 %v5418
    %6183 = vmatpush.bf16.msra.mxu0 %v5416
    %6184 = vmatpush.bf16.msra.mxu0 %v5414
    %6185 = vmatpush.bf16.msra.mxu0 %v5412
    %6186 = vmatpush.bf16.msra.mxu0 %v5410
    %6187 = vmatpush.bf16.msra.mxu0 %v5408
    %6188 = vmatmul.bf16.gmra.mxu0 %v4788
    %v6189 = vpop.f32.mrf.mxu0
    %v6190 = vadd.f32 %v6021, %v6189
    %v6191 = vpop.f32.mrf.mxu0
    %v6192 = vadd.f32 %v6023, %v6191
    %6193 = vmatmul.bf16.gmra.mxu0 %v4793
    %v6194 = vpop.f32.mrf.mxu0
    %v6195 = vadd.f32 %v6026, %v6194
    %v6196 = vpop.f32.mrf.mxu0
    %v6197 = vadd.f32 %v6028, %v6196
    %6198 = vmatmul.bf16.gmra.mxu0 %v4798
    %v6199 = vpop.f32.mrf.mxu0
    %v6200 = vadd.f32 %v6031, %v6199
    %v6201 = vpop.f32.mrf.mxu0
    %v6202 = vadd.f32 %v6033, %v6201
    %6203 = vmatmul.bf16.gmra.mxu0 %v4803
    %v6204 = vpop.f32.mrf.mxu0
    %v6205 = vadd.f32 %v6036, %v6204
    %v6206 = vpop.f32.mrf.mxu0
    %v6207 = vadd.f32 %v6038, %v6206
    %6208 = vmatmul.bf16.gmra.mxu0 %v4808
    %v6209 = vpop.f32.mrf.mxu0
    %v6210 = vadd.f32 %v6041, %v6209
    %v6211 = vpop.f32.mrf.mxu0
    %v6212 = vadd.f32 %v6043, %v6211
    %6213 = vmatmul.bf16.gmra.mxu0 %v4813
    %v6214 = vpop.f32.mrf.mxu0
    %v6215 = vadd.f32 %v6046, %v6214
    %v6216 = vpop.f32.mrf.mxu0
    %v6217 = vadd.f32 %v6048, %v6216
    %6218 = vmatmul.bf16.gmra.mxu0 %v4818
    %v6219 = vpop.f32.mrf.mxu0
    %v6220 = vadd.f32 %v6051, %v6219
    %v6221 = vpop.f32.mrf.mxu0
    %v6222 = vadd.f32 %v6053, %v6221
    %6223 = vmatmul.bf16.gmra.mxu0 %v4823
    %v6224 = vpop.f32.mrf.mxu0
    %v6225 = vadd.f32 %v6056, %v6224
    %v6226 = vpop.f32.mrf.mxu0
    %v6227 = vadd.f32 %v6058, %v6226
    %6228 = vmatmul.bf16.gmra.mxu0 %v4828
    %v6229 = vpop.f32.mrf.mxu0
    %v6230 = vadd.f32 %v6061, %v6229
    %v6231 = vpop.f32.mrf.mxu0
    %v6232 = vadd.f32 %v6063, %v6231
    %6233 = vmatmul.bf16.gmra.mxu0 %v4833
    %v6234 = vpop.f32.mrf.mxu0
    %v6235 = vadd.f32 %v6066, %v6234
    %v6236 = vpop.f32.mrf.mxu0
    %v6237 = vadd.f32 %v6068, %v6236
    %6238 = vmatmul.bf16.gmra.mxu0 %v4838
    %v6239 = vpop.f32.mrf.mxu0
    %v6240 = vadd.f32 %v6071, %v6239
    %v6241 = vpop.f32.mrf.mxu0
    %v6242 = vadd.f32 %v6073, %v6241
    %6243 = vmatmul.bf16.gmra.mxu0 %v4843
    %v6244 = vpop.f32.mrf.mxu0
    %v6245 = vadd.f32 %v6076, %v6244
    %v6246 = vpop.f32.mrf.mxu0
    %v6247 = vadd.f32 %v6078, %v6246
    %6248 = vmatmul.bf16.gmra.mxu0 %v4848
    %v6249 = vpop.f32.mrf.mxu0
    %v6250 = vadd.f32 %v6081, %v6249
    %v6251 = vpop.f32.mrf.mxu0
    %v6252 = vadd.f32 %v6083, %v6251
    %6253 = vmatmul.bf16.gmra.mxu0 %v4853
    %v6254 = vpop.f32.mrf.mxu0
    %v6255 = vadd.f32 %v6086, %v6254
    %v6256 = vpop.f32.mrf.mxu0
    %v6257 = vadd.f32 %v6088, %v6256
    %6258 = vmatmul.bf16.gmra.mxu0 %v4858
    %v6259 = vpop.f32.mrf.mxu0
    %v6260 = vadd.f32 %v6091, %v6259
    %v6261 = vpop.f32.mrf.mxu0
    %v6262 = vadd.f32 %v6093, %v6261
    %6263 = vmatmul.bf16.gmra.mxu0 %v4863
    %v6264 = vpop.f32.mrf.mxu0
    %v6265 = vadd.f32 %v6096, %v6264
    %v6266 = vpop.f32.mrf.mxu0
    %v6267 = vadd.f32 %v6098, %v6266
    %6268 = vmatmul.bf16.gmra.mxu0 %v4868
    %v6269 = vpop.f32.mrf.mxu0
    %v6270 = vadd.f32 %v6101, %v6269
    %v6271 = vpop.f32.mrf.mxu0
    %v6272 = vadd.f32 %v6103, %v6271
    %6273 = vmatmul.bf16.gmra.mxu0 %v4873
    %v6274 = vpop.f32.mrf.mxu0
    %v6275 = vadd.f32 %v6106, %v6274
    %v6276 = vpop.f32.mrf.mxu0
    %v6277 = vadd.f32 %v6108, %v6276
    %6278 = vmatmul.bf16.gmra.mxu0 %v4878
    %v6279 = vpop.f32.mrf.mxu0
    %v6280 = vadd.f32 %v6111, %v6279
    %v6281 = vpop.f32.mrf.mxu0
    %v6282 = vadd.f32 %v6113, %v6281
    %6283 = vmatmul.bf16.gmra.mxu0 %v4883
    %v6284 = vpop.f32.mrf.mxu0
    %v6285 = vadd.f32 %v6116, %v6284
    %v6286 = vpop.f32.mrf.mxu0
    %v6287 = vadd.f32 %v6118, %v6286
    %6288 = vmatmul.bf16.gmra.mxu0 %v4888
    %v6289 = vpop.f32.mrf.mxu0
    %v6290 = vadd.f32 %v6121, %v6289
    %v6291 = vpop.f32.mrf.mxu0
    %v6292 = vadd.f32 %v6123, %v6291
    %6293 = vmatmul.bf16.gmra.mxu0 %v4893
    %v6294 = vpop.f32.mrf.mxu0
    %v6295 = vadd.f32 %v6126, %v6294
    %v6296 = vpop.f32.mrf.mxu0
    %v6297 = vadd.f32 %v6128, %v6296
    %6298 = vmatmul.bf16.gmra.mxu0 %v4898
    %v6299 = vpop.f32.mrf.mxu0
    %v6300 = vadd.f32 %v6131, %v6299
    %v6301 = vpop.f32.mrf.mxu0
    %v6302 = vadd.f32 %v6133, %v6301
    %6303 = vmatmul.bf16.gmra.mxu0 %v4903
    %v6304 = vpop.f32.mrf.mxu0
    %v6305 = vadd.f32 %v6136, %v6304
    %v6306 = vpop.f32.mrf.mxu0
    %v6307 = vadd.f32 %v6138, %v6306
    %6308 = vmatmul.bf16.gmra.mxu0 %v4908
    %v6309 = vpop.f32.mrf.mxu0
    %v6310 = vadd.f32 %v6141, %v6309
    %v6311 = vpop.f32.mrf.mxu0
    %v6312 = vadd.f32 %v6143, %v6311
    %6313 = vmatmul.bf16.gmra.mxu0 %v4913
    %v6314 = vpop.f32.mrf.mxu0
    %v6315 = vadd.f32 %v6146, %v6314
    %v6316 = vpop.f32.mrf.mxu0
    %v6317 = vadd.f32 %v6148, %v6316
    %6318 = vmatmul.bf16.gmra.mxu0 %v4918
    %v6319 = vpop.f32.mrf.mxu0
    %v6320 = vadd.f32 %v6151, %v6319
    %v6321 = vpop.f32.mrf.mxu0
    %v6322 = vadd.f32 %v6153, %v6321
    %6323 = vmatmul.bf16.gmra.mxu0 %v4923
    %v6324 = vpop.f32.mrf.mxu0
    %v6325 = vadd.f32 %v6156, %v6324
    %v6326 = vpop.f32.mrf.mxu0
    %v6327 = vadd.f32 %v6158, %v6326
    %6328 = vmatmul.bf16.gmra.mxu0 %v4928
    %v6329 = vpop.f32.mrf.mxu0
    %v6330 = vadd.f32 %v6161, %v6329
    %v6331 = vpop.f32.mrf.mxu0
    %v6332 = vadd.f32 %v6163, %v6331
    %6333 = vmatmul.bf16.gmra.mxu0 %v4933
    %v6334 = vpop.f32.mrf.mxu0
    %v6335 = vadd.f32 %v6166, %v6334
    %v6336 = vpop.f32.mrf.mxu0
    %v6337 = vadd.f32 %v6168, %v6336
    %6338 = vmatmul.bf16.gmra.mxu0 %v4938
    %v6339 = vpop.f32.mrf.mxu0
    %v6340 = vadd.f32 %v6171, %v6339
    %v6341 = vpop.f32.mrf.mxu0
    %v6342 = vadd.f32 %v6173, %v6341
    %6343 = vmatmul.bf16.gmra.mxu0 %v4943
    %v6344 = vpop.f32.mrf.mxu0
    %v6345 = vadd.f32 %v6176, %v6344
    %v6346 = vpop.f32.mrf.mxu0
    %v6347 = vadd.f32 %v6178, %v6346
    %6348 = vdwg.mxu0
    %6349 = vmatpush.bf16.msra.mxu0 %v5359
    %6350 = vmatpush.bf16.msra.mxu0 %v5357
    %6351 = vmatpush.bf16.msra.mxu0 %v5355
    %6352 = vmatpush.bf16.msra.mxu0 %v5353
    %6353 = vmatpush.bf16.msra.mxu0 %v5351
    %6354 = vmatpush.bf16.msra.mxu0 %v5349
    %6355 = vmatpush.bf16.msra.mxu0 %v5347
    %6356 = vmatpush.bf16.msra.mxu0 %v5345
    %6357 = vmatmul.bf16.gmra.mxu0 %v4784
    %v6358 = vpop.f32.mrf.mxu0
    %v6359 = vadd.f32 0.0, %v6358
    %v6360 = vpop.f32.mrf.mxu0
    %v6361 = vadd.f32 0.0, %v6360
    %6362 = vmatmul.bf16.gmra.mxu0 %v4789
    %v6363 = vpop.f32.mrf.mxu0
    %v6364 = vadd.f32 0.0, %v6363
    %v6365 = vpop.f32.mrf.mxu0
    %v6366 = vadd.f32 0.0, %v6365
    %6367 = vmatmul.bf16.gmra.mxu0 %v4794
    %v6368 = vpop.f32.mrf.mxu0
    %v6369 = vadd.f32 0.0, %v6368
    %v6370 = vpop.f32.mrf.mxu0
    %v6371 = vadd.f32 0.0, %v6370
    %6372 = vmatmul.bf16.gmra.mxu0 %v4799
    %v6373 = vpop.f32.mrf.mxu0
    %v6374 = vadd.f32 0.0, %v6373
    %v6375 = vpop.f32.mrf.mxu0
    %v6376 = vadd.f32 0.0, %v6375
    %6377 = vmatmul.bf16.gmra.mxu0 %v4804
    %v6378 = vpop.f32.mrf.mxu0
    %v6379 = vadd.f32 0.0, %v6378
    %v6380 = vpop.f32.mrf.mxu0
    %v6381 = vadd.f32 0.0, %v6380
    %6382 = vmatmul.bf16.gmra.mxu0 %v4809
    %v6383 = vpop.f32.mrf.mxu0
    %v6384 = vadd.f32 0.0, %v6383
    %v6385 = vpop.f32.mrf.mxu0
    %v6386 = vadd.f32 0.0, %v6385
    %6387 = vmatmul.bf16.gmra.mxu0 %v4814
    %v6388 = vpop.f32.mrf.mxu0
    %v6389 = vadd.f32 0.0, %v6388
    %v6390 = vpop.f32.mrf.mxu0
    %v6391 = vadd.f32 0.0, %v6390
    %6392 = vmatmul.bf16.gmra.mxu0 %v4819
    %v6393 = vpop.f32.mrf.mxu0
    %v6394 = vadd.f32 0.0, %v6393
    %v6395 = vpop.f32.mrf.mxu0
    %v6396 = vadd.f32 0.0, %v6395
    %6397 = vmatmul.bf16.gmra.mxu0 %v4824
    %v6398 = vpop.f32.mrf.mxu0
    %v6399 = vadd.f32 0.0, %v6398
    %v6400 = vpop.f32.mrf.mxu0
    %v6401 = vadd.f32 0.0, %v6400
    %6402 = vmatmul.bf16.gmra.mxu0 %v4829
    %v6403 = vpop.f32.mrf.mxu0
    %v6404 = vadd.f32 0.0, %v6403
    %v6405 = vpop.f32.mrf.mxu0
    %v6406 = vadd.f32 0.0, %v6405
    %6407 = vmatmul.bf16.gmra.mxu0 %v4834
    %v6408 = vpop.f32.mrf.mxu0
    %v6409 = vadd.f32 0.0, %v6408
    %v6410 = vpop.f32.mrf.mxu0
    %v6411 = vadd.f32 0.0, %v6410
    %6412 = vmatmul.bf16.gmra.mxu0 %v4839
    %v6413 = vpop.f32.mrf.mxu0
    %v6414 = vadd.f32 0.0, %v6413
    %v6415 = vpop.f32.mrf.mxu0
    %v6416 = vadd.f32 0.0, %v6415
    %6417 = vmatmul.bf16.gmra.mxu0 %v4844
    %v6418 = vpop.f32.mrf.mxu0
    %v6419 = vadd.f32 0.0, %v6418
    %v6420 = vpop.f32.mrf.mxu0
    %v6421 = vadd.f32 0.0, %v6420
    %6422 = vmatmul.bf16.gmra.mxu0 %v4849
    %v6423 = vpop.f32.mrf.mxu0
    %v6424 = vadd.f32 0.0, %v6423
    %v6425 = vpop.f32.mrf.mxu0
    %v6426 = vadd.f32 0.0, %v6425
    %6427 = vmatmul.bf16.gmra.mxu0 %v4854
    %v6428 = vpop.f32.mrf.mxu0
    %v6429 = vadd.f32 0.0, %v6428
    %v6430 = vpop.f32.mrf.mxu0
    %v6431 = vadd.f32 0.0, %v6430
    %6432 = vmatmul.bf16.gmra.mxu0 %v4859
    %v6433 = vpop.f32.mrf.mxu0
    %v6434 = vadd.f32 0.0, %v6433
    %v6435 = vpop.f32.mrf.mxu0
    %v6436 = vadd.f32 0.0, %v6435
    %6437 = vmatmul.bf16.gmra.mxu0 %v4864
    %v6438 = vpop.f32.mrf.mxu0
    %v6439 = vadd.f32 0.0, %v6438
    %v6440 = vpop.f32.mrf.mxu0
    %v6441 = vadd.f32 0.0, %v6440
    %6442 = vmatmul.bf16.gmra.mxu0 %v4869
    %v6443 = vpop.f32.mrf.mxu0
    %v6444 = vadd.f32 0.0, %v6443
    %v6445 = vpop.f32.mrf.mxu0
    %v6446 = vadd.f32 0.0, %v6445
    %6447 = vmatmul.bf16.gmra.mxu0 %v4874
    %v6448 = vpop.f32.mrf.mxu0
    %v6449 = vadd.f32 0.0, %v6448
    %v6450 = vpop.f32.mrf.mxu0
    %v6451 = vadd.f32 0.0, %v6450
    %6452 = vmatmul.bf16.gmra.mxu0 %v4879
    %v6453 = vpop.f32.mrf.mxu0
    %v6454 = vadd.f32 0.0, %v6453
    %v6455 = vpop.f32.mrf.mxu0
    %v6456 = vadd.f32 0.0, %v6455
    %6457 = vmatmul.bf16.gmra.mxu0 %v4884
    %v6458 = vpop.f32.mrf.mxu0
    %v6459 = vadd.f32 0.0, %v6458
    %v6460 = vpop.f32.mrf.mxu0
    %v6461 = vadd.f32 0.0, %v6460
    %6462 = vmatmul.bf16.gmra.mxu0 %v4889
    %v6463 = vpop.f32.mrf.mxu0
    %v6464 = vadd.f32 0.0, %v6463
    %v6465 = vpop.f32.mrf.mxu0
    %v6466 = vadd.f32 0.0, %v6465
    %6467 = vmatmul.bf16.gmra.mxu0 %v4894
    %v6468 = vpop.f32.mrf.mxu0
    %v6469 = vadd.f32 0.0, %v6468
    %v6470 = vpop.f32.mrf.mxu0
    %v6471 = vadd.f32 0.0, %v6470
    %6472 = vmatmul.bf16.gmra.mxu0 %v4899
    %v6473 = vpop.f32.mrf.mxu0
    %v6474 = vadd.f32 0.0, %v6473
    %v6475 = vpop.f32.mrf.mxu0
    %v6476 = vadd.f32 0.0, %v6475
    %6477 = vmatmul.bf16.gmra.mxu0 %v4904
    %v6478 = vpop.f32.mrf.mxu0
    %v6479 = vadd.f32 0.0, %v6478
    %v6480 = vpop.f32.mrf.mxu0
    %v6481 = vadd.f32 0.0, %v6480
    %6482 = vmatmul.bf16.gmra.mxu0 %v4909
    %v6483 = vpop.f32.mrf.mxu0
    %v6484 = vadd.f32 0.0, %v6483
    %v6485 = vpop.f32.mrf.mxu0
    %v6486 = vadd.f32 0.0, %v6485
    %6487 = vmatmul.bf16.gmra.mxu0 %v4914
    %v6488 = vpop.f32.mrf.mxu0
    %v6489 = vadd.f32 0.0, %v6488
    %v6490 = vpop.f32.mrf.mxu0
    %v6491 = vadd.f32 0.0, %v6490
    %6492 = vmatmul.bf16.gmra.mxu0 %v4919
    %v6493 = vpop.f32.mrf.mxu0
    %v6494 = vadd.f32 0.0, %v6493
    %v6495 = vpop.f32.mrf.mxu0
    %v6496 = vadd.f32 0.0, %v6495
    %6497 = vmatmul.bf16.gmra.mxu0 %v4924
    %v6498 = vpop.f32.mrf.mxu0
    %v6499 = vadd.f32 0.0, %v6498
    %v6500 = vpop.f32.mrf.mxu0
    %v6501 = vadd.f32 0.0, %v6500
    %6502 = vmatmul.bf16.gmra.mxu0 %v4929
    %v6503 = vpop.f32.mrf.mxu0
    %v6504 = vadd.f32 0.0, %v6503
    %v6505 = vpop.f32.mrf.mxu0
    %v6506 = vadd.f32 0.0, %v6505
    %6507 = vmatmul.bf16.gmra.mxu0 %v4934
    %v6508 = vpop.f32.mrf.mxu0
    %v6509 = vadd.f32 0.0, %v6508
    %v6510 = vpop.f32.mrf.mxu0
    %v6511 = vadd.f32 0.0, %v6510
    %6512 = vmatmul.bf16.gmra.mxu0 %v4939
    %v6513 = vpop.f32.mrf.mxu0
    %v6514 = vadd.f32 0.0, %v6513
    %v6515 = vpop.f32.mrf.mxu0
    %v6516 = vadd.f32 0.0, %v6515
    %6517 = vdwg.mxu0
    %6518 = vmatpush.bf16.msra.mxu0 %v5375
    %6519 = vmatpush.bf16.msra.mxu0 %v5373
    %6520 = vmatpush.bf16.msra.mxu0 %v5371
    %6521 = vmatpush.bf16.msra.mxu0 %v5369
    %6522 = vmatpush.bf16.msra.mxu0 %v5367
    %6523 = vmatpush.bf16.msra.mxu0 %v5365
    %6524 = vmatpush.bf16.msra.mxu0 %v5363
    %6525 = vmatpush.bf16.msra.mxu0 %v5361
    %6526 = vmatmul.bf16.gmra.mxu0 %v4785
    %v6527 = vpop.f32.mrf.mxu0
    %v6528 = vadd.f32 %v6359, %v6527
    %v6529 = vpop.f32.mrf.mxu0
    %v6530 = vadd.f32 %v6361, %v6529
    %6531 = vmatmul.bf16.gmra.mxu0 %v4790
    %v6532 = vpop.f32.mrf.mxu0
    %v6533 = vadd.f32 %v6364, %v6532
    %v6534 = vpop.f32.mrf.mxu0
    %v6535 = vadd.f32 %v6366, %v6534
    %6536 = vmatmul.bf16.gmra.mxu0 %v4795
    %v6537 = vpop.f32.mrf.mxu0
    %v6538 = vadd.f32 %v6369, %v6537
    %v6539 = vpop.f32.mrf.mxu0
    %v6540 = vadd.f32 %v6371, %v6539
    %6541 = vmatmul.bf16.gmra.mxu0 %v4800
    %v6542 = vpop.f32.mrf.mxu0
    %v6543 = vadd.f32 %v6374, %v6542
    %v6544 = vpop.f32.mrf.mxu0
    %v6545 = vadd.f32 %v6376, %v6544
    %6546 = vmatmul.bf16.gmra.mxu0 %v4805
    %v6547 = vpop.f32.mrf.mxu0
    %v6548 = vadd.f32 %v6379, %v6547
    %v6549 = vpop.f32.mrf.mxu0
    %v6550 = vadd.f32 %v6381, %v6549
    %6551 = vmatmul.bf16.gmra.mxu0 %v4810
    %v6552 = vpop.f32.mrf.mxu0
    %v6553 = vadd.f32 %v6384, %v6552
    %v6554 = vpop.f32.mrf.mxu0
    %v6555 = vadd.f32 %v6386, %v6554
    %6556 = vmatmul.bf16.gmra.mxu0 %v4815
    %v6557 = vpop.f32.mrf.mxu0
    %v6558 = vadd.f32 %v6389, %v6557
    %v6559 = vpop.f32.mrf.mxu0
    %v6560 = vadd.f32 %v6391, %v6559
    %6561 = vmatmul.bf16.gmra.mxu0 %v4820
    %v6562 = vpop.f32.mrf.mxu0
    %v6563 = vadd.f32 %v6394, %v6562
    %v6564 = vpop.f32.mrf.mxu0
    %v6565 = vadd.f32 %v6396, %v6564
    %6566 = vmatmul.bf16.gmra.mxu0 %v4825
    %v6567 = vpop.f32.mrf.mxu0
    %v6568 = vadd.f32 %v6399, %v6567
    %v6569 = vpop.f32.mrf.mxu0
    %v6570 = vadd.f32 %v6401, %v6569
    %6571 = vmatmul.bf16.gmra.mxu0 %v4830
    %v6572 = vpop.f32.mrf.mxu0
    %v6573 = vadd.f32 %v6404, %v6572
    %v6574 = vpop.f32.mrf.mxu0
    %v6575 = vadd.f32 %v6406, %v6574
    %6576 = vmatmul.bf16.gmra.mxu0 %v4835
    %v6577 = vpop.f32.mrf.mxu0
    %v6578 = vadd.f32 %v6409, %v6577
    %v6579 = vpop.f32.mrf.mxu0
    %v6580 = vadd.f32 %v6411, %v6579
    %6581 = vmatmul.bf16.gmra.mxu0 %v4840
    %v6582 = vpop.f32.mrf.mxu0
    %v6583 = vadd.f32 %v6414, %v6582
    %v6584 = vpop.f32.mrf.mxu0
    %v6585 = vadd.f32 %v6416, %v6584
    %6586 = vmatmul.bf16.gmra.mxu0 %v4845
    %v6587 = vpop.f32.mrf.mxu0
    %v6588 = vadd.f32 %v6419, %v6587
    %v6589 = vpop.f32.mrf.mxu0
    %v6590 = vadd.f32 %v6421, %v6589
    %6591 = vmatmul.bf16.gmra.mxu0 %v4850
    %v6592 = vpop.f32.mrf.mxu0
    %v6593 = vadd.f32 %v6424, %v6592
    %v6594 = vpop.f32.mrf.mxu0
    %v6595 = vadd.f32 %v6426, %v6594
    %6596 = vmatmul.bf16.gmra.mxu0 %v4855
    %v6597 = vpop.f32.mrf.mxu0
    %v6598 = vadd.f32 %v6429, %v6597
    %v6599 = vpop.f32.mrf.mxu0
    %v6600 = vadd.f32 %v6431, %v6599
    %6601 = vmatmul.bf16.gmra.mxu0 %v4860
    %v6602 = vpop.f32.mrf.mxu0
    %v6603 = vadd.f32 %v6434, %v6602
    %v6604 = vpop.f32.mrf.mxu0
    %v6605 = vadd.f32 %v6436, %v6604
    %6606 = vmatmul.bf16.gmra.mxu0 %v4865
    %v6607 = vpop.f32.mrf.mxu0
    %v6608 = vadd.f32 %v6439, %v6607
    %v6609 = vpop.f32.mrf.mxu0
    %v6610 = vadd.f32 %v6441, %v6609
    %6611 = vmatmul.bf16.gmra.mxu0 %v4870
    %v6612 = vpop.f32.mrf.mxu0
    %v6613 = vadd.f32 %v6444, %v6612
    %v6614 = vpop.f32.mrf.mxu0
    %v6615 = vadd.f32 %v6446, %v6614
    %6616 = vmatmul.bf16.gmra.mxu0 %v4875
    %v6617 = vpop.f32.mrf.mxu0
    %v6618 = vadd.f32 %v6449, %v6617
    %v6619 = vpop.f32.mrf.mxu0
    %v6620 = vadd.f32 %v6451, %v6619
    %6621 = vmatmul.bf16.gmra.mxu0 %v4880
    %v6622 = vpop.f32.mrf.mxu0
    %v6623 = vadd.f32 %v6454, %v6622
    %v6624 = vpop.f32.mrf.mxu0
    %v6625 = vadd.f32 %v6456, %v6624
    %6626 = vmatmul.bf16.gmra.mxu0 %v4885
    %v6627 = vpop.f32.mrf.mxu0
    %v6628 = vadd.f32 %v6459, %v6627
    %v6629 = vpop.f32.mrf.mxu0
    %v6630 = vadd.f32 %v6461, %v6629
    %6631 = vmatmul.bf16.gmra.mxu0 %v4890
    %v6632 = vpop.f32.mrf.mxu0
    %v6633 = vadd.f32 %v6464, %v6632
    %v6634 = vpop.f32.mrf.mxu0
    %v6635 = vadd.f32 %v6466, %v6634
    %6636 = vmatmul.bf16.gmra.mxu0 %v4895
    %v6637 = vpop.f32.mrf.mxu0
    %v6638 = vadd.f32 %v6469, %v6637
    %v6639 = vpop.f32.mrf.mxu0
    %v6640 = vadd.f32 %v6471, %v6639
    %6641 = vmatmul.bf16.gmra.mxu0 %v4900
    %v6642 = vpop.f32.mrf.mxu0
    %v6643 = vadd.f32 %v6474, %v6642
    %v6644 = vpop.f32.mrf.mxu0
    %v6645 = vadd.f32 %v6476, %v6644
    %6646 = vmatmul.bf16.gmra.mxu0 %v4905
    %v6647 = vpop.f32.mrf.mxu0
    %v6648 = vadd.f32 %v6479, %v6647
    %v6649 = vpop.f32.mrf.mxu0
    %v6650 = vadd.f32 %v6481, %v6649
    %6651 = vmatmul.bf16.gmra.mxu0 %v4910
    %v6652 = vpop.f32.mrf.mxu0
    %v6653 = vadd.f32 %v6484, %v6652
    %v6654 = vpop.f32.mrf.mxu0
    %v6655 = vadd.f32 %v6486, %v6654
    %6656 = vmatmul.bf16.gmra.mxu0 %v4915
    %v6657 = vpop.f32.mrf.mxu0
    %v6658 = vadd.f32 %v6489, %v6657
    %v6659 = vpop.f32.mrf.mxu0
    %v6660 = vadd.f32 %v6491, %v6659
    %6661 = vmatmul.bf16.gmra.mxu0 %v4920
    %v6662 = vpop.f32.mrf.mxu0
    %v6663 = vadd.f32 %v6494, %v6662
    %v6664 = vpop.f32.mrf.mxu0
    %v6665 = vadd.f32 %v6496, %v6664
    %6666 = vmatmul.bf16.gmra.mxu0 %v4925
    %v6667 = vpop.f32.mrf.mxu0
    %v6668 = vadd.f32 %v6499, %v6667
    %v6669 = vpop.f32.mrf.mxu0
    %v6670 = vadd.f32 %v6501, %v6669
    %6671 = vmatmul.bf16.gmra.mxu0 %v4930
    %v6672 = vpop.f32.mrf.mxu0
    %v6673 = vadd.f32 %v6504, %v6672
    %v6674 = vpop.f32.mrf.mxu0
    %v6675 = vadd.f32 %v6506, %v6674
    %6676 = vmatmul.bf16.gmra.mxu0 %v4935
    %v6677 = vpop.f32.mrf.mxu0
    %v6678 = vadd.f32 %v6509, %v6677
    %v6679 = vpop.f32.mrf.mxu0
    %v6680 = vadd.f32 %v6511, %v6679
    %6681 = vmatmul.bf16.gmra.mxu0 %v4940
    %v6682 = vpop.f32.mrf.mxu0
    %v6683 = vadd.f32 %v6514, %v6682
    %v6684 = vpop.f32.mrf.mxu0
    %v6685 = vadd.f32 %v6516, %v6684
    %6686 = vdwg.mxu0
    %6687 = vmatpush.bf16.msra.mxu0 %v5391
    %6688 = vmatpush.bf16.msra.mxu0 %v5389
    %6689 = vmatpush.bf16.msra.mxu0 %v5387
    %6690 = vmatpush.bf16.msra.mxu0 %v5385
    %6691 = vmatpush.bf16.msra.mxu0 %v5383
    %6692 = vmatpush.bf16.msra.mxu0 %v5381
    %6693 = vmatpush.bf16.msra.mxu0 %v5379
    %6694 = vmatpush.bf16.msra.mxu0 %v5377
    %6695 = vmatmul.bf16.gmra.mxu0 %v4786
    %v6696 = vpop.f32.mrf.mxu0
    %v6697 = vadd.f32 %v6528, %v6696
    %v6698 = vpop.f32.mrf.mxu0
    %v6699 = vadd.f32 %v6530, %v6698
    %6700 = vmatmul.bf16.gmra.mxu0 %v4791
    %v6701 = vpop.f32.mrf.mxu0
    %v6702 = vadd.f32 %v6533, %v6701
    %v6703 = vpop.f32.mrf.mxu0
    %v6704 = vadd.f32 %v6535, %v6703
    %6705 = vmatmul.bf16.gmra.mxu0 %v4796
    %v6706 = vpop.f32.mrf.mxu0
    %v6707 = vadd.f32 %v6538, %v6706
    %v6708 = vpop.f32.mrf.mxu0
    %v6709 = vadd.f32 %v6540, %v6708
    %6710 = vmatmul.bf16.gmra.mxu0 %v4801
    %v6711 = vpop.f32.mrf.mxu0
    %v6712 = vadd.f32 %v6543, %v6711
    %v6713 = vpop.f32.mrf.mxu0
    %v6714 = vadd.f32 %v6545, %v6713
    %6715 = vmatmul.bf16.gmra.mxu0 %v4806
    %v6716 = vpop.f32.mrf.mxu0
    %v6717 = vadd.f32 %v6548, %v6716
    %v6718 = vpop.f32.mrf.mxu0
    %v6719 = vadd.f32 %v6550, %v6718
    %6720 = vmatmul.bf16.gmra.mxu0 %v4811
    %v6721 = vpop.f32.mrf.mxu0
    %v6722 = vadd.f32 %v6553, %v6721
    %v6723 = vpop.f32.mrf.mxu0
    %v6724 = vadd.f32 %v6555, %v6723
    %6725 = vmatmul.bf16.gmra.mxu0 %v4816
    %v6726 = vpop.f32.mrf.mxu0
    %v6727 = vadd.f32 %v6558, %v6726
    %v6728 = vpop.f32.mrf.mxu0
    %v6729 = vadd.f32 %v6560, %v6728
    %6730 = vmatmul.bf16.gmra.mxu0 %v4821
    %v6731 = vpop.f32.mrf.mxu0
    %v6732 = vadd.f32 %v6563, %v6731
    %v6733 = vpop.f32.mrf.mxu0
    %v6734 = vadd.f32 %v6565, %v6733
    %6735 = vmatmul.bf16.gmra.mxu0 %v4826
    %v6736 = vpop.f32.mrf.mxu0
    %v6737 = vadd.f32 %v6568, %v6736
    %v6738 = vpop.f32.mrf.mxu0
    %v6739 = vadd.f32 %v6570, %v6738
    %6740 = vmatmul.bf16.gmra.mxu0 %v4831
    %v6741 = vpop.f32.mrf.mxu0
    %v6742 = vadd.f32 %v6573, %v6741
    %v6743 = vpop.f32.mrf.mxu0
    %v6744 = vadd.f32 %v6575, %v6743
    %6745 = vmatmul.bf16.gmra.mxu0 %v4836
    %v6746 = vpop.f32.mrf.mxu0
    %v6747 = vadd.f32 %v6578, %v6746
    %v6748 = vpop.f32.mrf.mxu0
    %v6749 = vadd.f32 %v6580, %v6748
    %6750 = vmatmul.bf16.gmra.mxu0 %v4841
    %v6751 = vpop.f32.mrf.mxu0
    %v6752 = vadd.f32 %v6583, %v6751
    %v6753 = vpop.f32.mrf.mxu0
    %v6754 = vadd.f32 %v6585, %v6753
    %6755 = vmatmul.bf16.gmra.mxu0 %v4846
    %v6756 = vpop.f32.mrf.mxu0
    %v6757 = vadd.f32 %v6588, %v6756
    %v6758 = vpop.f32.mrf.mxu0
    %v6759 = vadd.f32 %v6590, %v6758
    %6760 = vmatmul.bf16.gmra.mxu0 %v4851
    %v6761 = vpop.f32.mrf.mxu0
    %v6762 = vadd.f32 %v6593, %v6761
    %v6763 = vpop.f32.mrf.mxu0
    %v6764 = vadd.f32 %v6595, %v6763
    %6765 = vmatmul.bf16.gmra.mxu0 %v4856
    %v6766 = vpop.f32.mrf.mxu0
    %v6767 = vadd.f32 %v6598, %v6766
    %v6768 = vpop.f32.mrf.mxu0
    %v6769 = vadd.f32 %v6600, %v6768
    %6770 = vmatmul.bf16.gmra.mxu0 %v4861
    %v6771 = vpop.f32.mrf.mxu0
    %v6772 = vadd.f32 %v6603, %v6771
    %v6773 = vpop.f32.mrf.mxu0
    %v6774 = vadd.f32 %v6605, %v6773
    %6775 = vmatmul.bf16.gmra.mxu0 %v4866
    %v6776 = vpop.f32.mrf.mxu0
    %v6777 = vadd.f32 %v6608, %v6776
    %v6778 = vpop.f32.mrf.mxu0
    %v6779 = vadd.f32 %v6610, %v6778
    %6780 = vmatmul.bf16.gmra.mxu0 %v4871
    %v6781 = vpop.f32.mrf.mxu0
    %v6782 = vadd.f32 %v6613, %v6781
    %v6783 = vpop.f32.mrf.mxu0
    %v6784 = vadd.f32 %v6615, %v6783
    %6785 = vmatmul.bf16.gmra.mxu0 %v4876
    %v6786 = vpop.f32.mrf.mxu0
    %v6787 = vadd.f32 %v6618, %v6786
    %v6788 = vpop.f32.mrf.mxu0
    %v6789 = vadd.f32 %v6620, %v6788
    %6790 = vmatmul.bf16.gmra.mxu0 %v4881
    %v6791 = vpop.f32.mrf.mxu0
    %v6792 = vadd.f32 %v6623, %v6791
    %v6793 = vpop.f32.mrf.mxu0
    %v6794 = vadd.f32 %v6625, %v6793
    %6795 = vmatmul.bf16.gmra.mxu0 %v4886
    %v6796 = vpop.f32.mrf.mxu0
    %v6797 = vadd.f32 %v6628, %v6796
    %v6798 = vpop.f32.mrf.mxu0
    %v6799 = vadd.f32 %v6630, %v6798
    %6800 = vmatmul.bf16.gmra.mxu0 %v4891
    %v6801 = vpop.f32.mrf.mxu0
    %v6802 = vadd.f32 %v6633, %v6801
    %v6803 = vpop.f32.mrf.mxu0
    %v6804 = vadd.f32 %v6635, %v6803
    %6805 = vmatmul.bf16.gmra.mxu0 %v4896
    %v6806 = vpop.f32.mrf.mxu0
    %v6807 = vadd.f32 %v6638, %v6806
    %v6808 = vpop.f32.mrf.mxu0
    %v6809 = vadd.f32 %v6640, %v6808
    %6810 = vmatmul.bf16.gmra.mxu0 %v4901
    %v6811 = vpop.f32.mrf.mxu0
    %v6812 = vadd.f32 %v6643, %v6811
    %v6813 = vpop.f32.mrf.mxu0
    %v6814 = vadd.f32 %v6645, %v6813
    %6815 = vmatmul.bf16.gmra.mxu0 %v4906
    %v6816 = vpop.f32.mrf.mxu0
    %v6817 = vadd.f32 %v6648, %v6816
    %v6818 = vpop.f32.mrf.mxu0
    %v6819 = vadd.f32 %v6650, %v6818
    %6820 = vmatmul.bf16.gmra.mxu0 %v4911
    %v6821 = vpop.f32.mrf.mxu0
    %v6822 = vadd.f32 %v6653, %v6821
    %v6823 = vpop.f32.mrf.mxu0
    %v6824 = vadd.f32 %v6655, %v6823
    %6825 = vmatmul.bf16.gmra.mxu0 %v4916
    %v6826 = vpop.f32.mrf.mxu0
    %v6827 = vadd.f32 %v6658, %v6826
    %v6828 = vpop.f32.mrf.mxu0
    %v6829 = vadd.f32 %v6660, %v6828
    %6830 = vmatmul.bf16.gmra.mxu0 %v4921
    %v6831 = vpop.f32.mrf.mxu0
    %v6832 = vadd.f32 %v6663, %v6831
    %v6833 = vpop.f32.mrf.mxu0
    %v6834 = vadd.f32 %v6665, %v6833
    %6835 = vmatmul.bf16.gmra.mxu0 %v4926
    %v6836 = vpop.f32.mrf.mxu0
    %v6837 = vadd.f32 %v6668, %v6836
    %v6838 = vpop.f32.mrf.mxu0
    %v6839 = vadd.f32 %v6670, %v6838
    %6840 = vmatmul.bf16.gmra.mxu0 %v4931
    %v6841 = vpop.f32.mrf.mxu0
    %v6842 = vadd.f32 %v6673, %v6841
    %v6843 = vpop.f32.mrf.mxu0
    %v6844 = vadd.f32 %v6675, %v6843
    %6845 = vmatmul.bf16.gmra.mxu0 %v4936
    %v6846 = vpop.f32.mrf.mxu0
    %v6847 = vadd.f32 %v6678, %v6846
    %v6848 = vpop.f32.mrf.mxu0
    %v6849 = vadd.f32 %v6680, %v6848
    %6850 = vmatmul.bf16.gmra.mxu0 %v4941
    %v6851 = vpop.f32.mrf.mxu0
    %v6852 = vadd.f32 %v6683, %v6851
    %v6853 = vpop.f32.mrf.mxu0
    %v6854 = vadd.f32 %v6685, %v6853
    %6855 = vdwg.mxu0
    %6856 = vmatpush.bf16.msra.mxu0 %v5407
    %6857 = vmatpush.bf16.msra.mxu0 %v5405
    %6858 = vmatpush.bf16.msra.mxu0 %v5403
    %6859 = vmatpush.bf16.msra.mxu0 %v5401
    %6860 = vmatpush.bf16.msra.mxu0 %v5399
    %6861 = vmatpush.bf16.msra.mxu0 %v5397
    %6862 = vmatpush.bf16.msra.mxu0 %v5395
    %6863 = vmatpush.bf16.msra.mxu0 %v5393
    %6864 = vmatmul.bf16.gmra.mxu0 %v4787
    %v6865 = vpop.f32.mrf.mxu0
    %v6866 = vadd.f32 %v6697, %v6865
    %v6867 = vpop.f32.mrf.mxu0
    %v6868 = vadd.f32 %v6699, %v6867
    %6869 = vmatmul.bf16.gmra.mxu0 %v4792
    %v6870 = vpop.f32.mrf.mxu0
    %v6871 = vadd.f32 %v6702, %v6870
    %v6872 = vpop.f32.mrf.mxu0
    %v6873 = vadd.f32 %v6704, %v6872
    %6874 = vmatmul.bf16.gmra.mxu0 %v4797
    %v6875 = vpop.f32.mrf.mxu0
    %v6876 = vadd.f32 %v6707, %v6875
    %v6877 = vpop.f32.mrf.mxu0
    %v6878 = vadd.f32 %v6709, %v6877
    %6879 = vmatmul.bf16.gmra.mxu0 %v4802
    %v6880 = vpop.f32.mrf.mxu0
    %v6881 = vadd.f32 %v6712, %v6880
    %v6882 = vpop.f32.mrf.mxu0
    %v6883 = vadd.f32 %v6714, %v6882
    %6884 = vmatmul.bf16.gmra.mxu0 %v4807
    %v6885 = vpop.f32.mrf.mxu0
    %v6886 = vadd.f32 %v6717, %v6885
    %v6887 = vpop.f32.mrf.mxu0
    %v6888 = vadd.f32 %v6719, %v6887
    %6889 = vmatmul.bf16.gmra.mxu0 %v4812
    %v6890 = vpop.f32.mrf.mxu0
    %v6891 = vadd.f32 %v6722, %v6890
    %v6892 = vpop.f32.mrf.mxu0
    %v6893 = vadd.f32 %v6724, %v6892
    %6894 = vmatmul.bf16.gmra.mxu0 %v4817
    %v6895 = vpop.f32.mrf.mxu0
    %v6896 = vadd.f32 %v6727, %v6895
    %v6897 = vpop.f32.mrf.mxu0
    %v6898 = vadd.f32 %v6729, %v6897
    %6899 = vmatmul.bf16.gmra.mxu0 %v4822
    %v6900 = vpop.f32.mrf.mxu0
    %v6901 = vadd.f32 %v6732, %v6900
    %v6902 = vpop.f32.mrf.mxu0
    %v6903 = vadd.f32 %v6734, %v6902
    %6904 = vmatmul.bf16.gmra.mxu0 %v4827
    %v6905 = vpop.f32.mrf.mxu0
    %v6906 = vadd.f32 %v6737, %v6905
    %v6907 = vpop.f32.mrf.mxu0
    %v6908 = vadd.f32 %v6739, %v6907
    %6909 = vmatmul.bf16.gmra.mxu0 %v4832
    %v6910 = vpop.f32.mrf.mxu0
    %v6911 = vadd.f32 %v6742, %v6910
    %v6912 = vpop.f32.mrf.mxu0
    %v6913 = vadd.f32 %v6744, %v6912
    %6914 = vmatmul.bf16.gmra.mxu0 %v4837
    %v6915 = vpop.f32.mrf.mxu0
    %v6916 = vadd.f32 %v6747, %v6915
    %v6917 = vpop.f32.mrf.mxu0
    %v6918 = vadd.f32 %v6749, %v6917
    %6919 = vmatmul.bf16.gmra.mxu0 %v4842
    %v6920 = vpop.f32.mrf.mxu0
    %v6921 = vadd.f32 %v6752, %v6920
    %v6922 = vpop.f32.mrf.mxu0
    %v6923 = vadd.f32 %v6754, %v6922
    %6924 = vmatmul.bf16.gmra.mxu0 %v4847
    %v6925 = vpop.f32.mrf.mxu0
    %v6926 = vadd.f32 %v6757, %v6925
    %v6927 = vpop.f32.mrf.mxu0
    %v6928 = vadd.f32 %v6759, %v6927
    %6929 = vmatmul.bf16.gmra.mxu0 %v4852
    %v6930 = vpop.f32.mrf.mxu0
    %v6931 = vadd.f32 %v6762, %v6930
    %v6932 = vpop.f32.mrf.mxu0
    %v6933 = vadd.f32 %v6764, %v6932
    %6934 = vmatmul.bf16.gmra.mxu0 %v4857
    %v6935 = vpop.f32.mrf.mxu0
    %v6936 = vadd.f32 %v6767, %v6935
    %v6937 = vpop.f32.mrf.mxu0
    %v6938 = vadd.f32 %v6769, %v6937
    %6939 = vmatmul.bf16.gmra.mxu0 %v4862
    %v6940 = vpop.f32.mrf.mxu0
    %v6941 = vadd.f32 %v6772, %v6940
    %v6942 = vpop.f32.mrf.mxu0
    %v6943 = vadd.f32 %v6774, %v6942
    %6944 = vmatmul.bf16.gmra.mxu0 %v4867
    %v6945 = vpop.f32.mrf.mxu0
    %v6946 = vadd.f32 %v6777, %v6945
    %v6947 = vpop.f32.mrf.mxu0
    %v6948 = vadd.f32 %v6779, %v6947
    %6949 = vmatmul.bf16.gmra.mxu0 %v4872
    %v6950 = vpop.f32.mrf.mxu0
    %v6951 = vadd.f32 %v6782, %v6950
    %v6952 = vpop.f32.mrf.mxu0
    %v6953 = vadd.f32 %v6784, %v6952
    %6954 = vmatmul.bf16.gmra.mxu0 %v4877
    %v6955 = vpop.f32.mrf.mxu0
    %v6956 = vadd.f32 %v6787, %v6955
    %v6957 = vpop.f32.mrf.mxu0
    %v6958 = vadd.f32 %v6789, %v6957
    %6959 = vmatmul.bf16.gmra.mxu0 %v4882
    %v6960 = vpop.f32.mrf.mxu0
    %v6961 = vadd.f32 %v6792, %v6960
    %v6962 = vpop.f32.mrf.mxu0
    %v6963 = vadd.f32 %v6794, %v6962
    %6964 = vmatmul.bf16.gmra.mxu0 %v4887
    %v6965 = vpop.f32.mrf.mxu0
    %v6966 = vadd.f32 %v6797, %v6965
    %v6967 = vpop.f32.mrf.mxu0
    %v6968 = vadd.f32 %v6799, %v6967
    %6969 = vmatmul.bf16.gmra.mxu0 %v4892
    %v6970 = vpop.f32.mrf.mxu0
    %v6971 = vadd.f32 %v6802, %v6970
    %v6972 = vpop.f32.mrf.mxu0
    %v6973 = vadd.f32 %v6804, %v6972
    %6974 = vmatmul.bf16.gmra.mxu0 %v4897
    %v6975 = vpop.f32.mrf.mxu0
    %v6976 = vadd.f32 %v6807, %v6975
    %v6977 = vpop.f32.mrf.mxu0
    %v6978 = vadd.f32 %v6809, %v6977
    %6979 = vmatmul.bf16.gmra.mxu0 %v4902
    %v6980 = vpop.f32.mrf.mxu0
    %v6981 = vadd.f32 %v6812, %v6980
    %v6982 = vpop.f32.mrf.mxu0
    %v6983 = vadd.f32 %v6814, %v6982
    %6984 = vmatmul.bf16.gmra.mxu0 %v4907
    %v6985 = vpop.f32.mrf.mxu0
    %v6986 = vadd.f32 %v6817, %v6985
    %v6987 = vpop.f32.mrf.mxu0
    %v6988 = vadd.f32 %v6819, %v6987
    %6989 = vmatmul.bf16.gmra.mxu0 %v4912
    %v6990 = vpop.f32.mrf.mxu0
    %v6991 = vadd.f32 %v6822, %v6990
    %v6992 = vpop.f32.mrf.mxu0
    %v6993 = vadd.f32 %v6824, %v6992
    %6994 = vmatmul.bf16.gmra.mxu0 %v4917
    %v6995 = vpop.f32.mrf.mxu0
    %v6996 = vadd.f32 %v6827, %v6995
    %v6997 = vpop.f32.mrf.mxu0
    %v6998 = vadd.f32 %v6829, %v6997
    %6999 = vmatmul.bf16.gmra.mxu0 %v4922
    %v7000 = vpop.f32.mrf.mxu0
    %v7001 = vadd.f32 %v6832, %v7000
    %v7002 = vpop.f32.mrf.mxu0
    %v7003 = vadd.f32 %v6834, %v7002
    %7004 = vmatmul.bf16.gmra.mxu0 %v4927
    %v7005 = vpop.f32.mrf.mxu0
    %v7006 = vadd.f32 %v6837, %v7005
    %v7007 = vpop.f32.mrf.mxu0
    %v7008 = vadd.f32 %v6839, %v7007
    %7009 = vmatmul.bf16.gmra.mxu0 %v4932
    %v7010 = vpop.f32.mrf.mxu0
    %v7011 = vadd.f32 %v6842, %v7010
    %v7012 = vpop.f32.mrf.mxu0
    %v7013 = vadd.f32 %v6844, %v7012
    %7014 = vmatmul.bf16.gmra.mxu0 %v4937
    %v7015 = vpop.f32.mrf.mxu0
    %v7016 = vadd.f32 %v6847, %v7015
    %v7017 = vpop.f32.mrf.mxu0
    %v7018 = vadd.f32 %v6849, %v7017
    %7019 = vmatmul.bf16.gmra.mxu0 %v4942
    %v7020 = vpop.f32.mrf.mxu0
    %v7021 = vadd.f32 %v6852, %v7020
    %v7022 = vpop.f32.mrf.mxu0
    %v7023 = vadd.f32 %v6854, %v7022
    %7024 = vdwg.mxu0
    %7025 = vmatpush.bf16.msra.mxu0 %v5423
    %7026 = vmatpush.bf16.msra.mxu0 %v5421
    %7027 = vmatpush.bf16.msra.mxu0 %v5419
    %7028 = vmatpush.bf16.msra.mxu0 %v5417
    %7029 = vmatpush.bf16.msra.mxu0 %v5415
    %7030 = vmatpush.bf16.msra.mxu0 %v5413
    %7031 = vmatpush.bf16.msra.mxu0 %v5411
    %7032 = vmatpush.bf16.msra.mxu0 %v5409
    %7033 = vmatmul.bf16.gmra.mxu0 %v4788
    %v7034 = vpop.f32.mrf.mxu0
    %v7035 = vadd.f32 %v6866, %v7034
    %v7036 = vpop.f32.mrf.mxu0
    %v7037 = vadd.f32 %v6868, %v7036
    %7038 = vmatmul.bf16.gmra.mxu0 %v4793
    %v7039 = vpop.f32.mrf.mxu0
    %v7040 = vadd.f32 %v6871, %v7039
    %v7041 = vpop.f32.mrf.mxu0
    %v7042 = vadd.f32 %v6873, %v7041
    %7043 = vmatmul.bf16.gmra.mxu0 %v4798
    %v7044 = vpop.f32.mrf.mxu0
    %v7045 = vadd.f32 %v6876, %v7044
    %v7046 = vpop.f32.mrf.mxu0
    %v7047 = vadd.f32 %v6878, %v7046
    %7048 = vmatmul.bf16.gmra.mxu0 %v4803
    %v7049 = vpop.f32.mrf.mxu0
    %v7050 = vadd.f32 %v6881, %v7049
    %v7051 = vpop.f32.mrf.mxu0
    %v7052 = vadd.f32 %v6883, %v7051
    %7053 = vmatmul.bf16.gmra.mxu0 %v4808
    %v7054 = vpop.f32.mrf.mxu0
    %v7055 = vadd.f32 %v6886, %v7054
    %v7056 = vpop.f32.mrf.mxu0
    %v7057 = vadd.f32 %v6888, %v7056
    %7058 = vmatmul.bf16.gmra.mxu0 %v4813
    %v7059 = vpop.f32.mrf.mxu0
    %v7060 = vadd.f32 %v6891, %v7059
    %v7061 = vpop.f32.mrf.mxu0
    %v7062 = vadd.f32 %v6893, %v7061
    %7063 = vmatmul.bf16.gmra.mxu0 %v4818
    %v7064 = vpop.f32.mrf.mxu0
    %v7065 = vadd.f32 %v6896, %v7064
    %v7066 = vpop.f32.mrf.mxu0
    %v7067 = vadd.f32 %v6898, %v7066
    %7068 = vmatmul.bf16.gmra.mxu0 %v4823
    %v7069 = vpop.f32.mrf.mxu0
    %v7070 = vadd.f32 %v6901, %v7069
    %v7071 = vpop.f32.mrf.mxu0
    %v7072 = vadd.f32 %v6903, %v7071
    %7073 = vmatmul.bf16.gmra.mxu0 %v4828
    %v7074 = vpop.f32.mrf.mxu0
    %v7075 = vadd.f32 %v6906, %v7074
    %v7076 = vpop.f32.mrf.mxu0
    %v7077 = vadd.f32 %v6908, %v7076
    %7078 = vmatmul.bf16.gmra.mxu0 %v4833
    %v7079 = vpop.f32.mrf.mxu0
    %v7080 = vadd.f32 %v6911, %v7079
    %v7081 = vpop.f32.mrf.mxu0
    %v7082 = vadd.f32 %v6913, %v7081
    %7083 = vmatmul.bf16.gmra.mxu0 %v4838
    %v7084 = vpop.f32.mrf.mxu0
    %v7085 = vadd.f32 %v6916, %v7084
    %v7086 = vpop.f32.mrf.mxu0
    %v7087 = vadd.f32 %v6918, %v7086
    %7088 = vmatmul.bf16.gmra.mxu0 %v4843
    %v7089 = vpop.f32.mrf.mxu0
    %v7090 = vadd.f32 %v6921, %v7089
    %v7091 = vpop.f32.mrf.mxu0
    %v7092 = vadd.f32 %v6923, %v7091
    %7093 = vmatmul.bf16.gmra.mxu0 %v4848
    %v7094 = vpop.f32.mrf.mxu0
    %v7095 = vadd.f32 %v6926, %v7094
    %v7096 = vpop.f32.mrf.mxu0
    %v7097 = vadd.f32 %v6928, %v7096
    %7098 = vmatmul.bf16.gmra.mxu0 %v4853
    %v7099 = vpop.f32.mrf.mxu0
    %v7100 = vadd.f32 %v6931, %v7099
    %v7101 = vpop.f32.mrf.mxu0
    %v7102 = vadd.f32 %v6933, %v7101
    %7103 = vmatmul.bf16.gmra.mxu0 %v4858
    %v7104 = vpop.f32.mrf.mxu0
    %v7105 = vadd.f32 %v6936, %v7104
    %v7106 = vpop.f32.mrf.mxu0
    %v7107 = vadd.f32 %v6938, %v7106
    %7108 = vmatmul.bf16.gmra.mxu0 %v4863
    %v7109 = vpop.f32.mrf.mxu0
    %v7110 = vadd.f32 %v6941, %v7109
    %v7111 = vpop.f32.mrf.mxu0
    %v7112 = vadd.f32 %v6943, %v7111
    %7113 = vmatmul.bf16.gmra.mxu0 %v4868
    %v7114 = vpop.f32.mrf.mxu0
    %v7115 = vadd.f32 %v6946, %v7114
    %v7116 = vpop.f32.mrf.mxu0
    %v7117 = vadd.f32 %v6948, %v7116
    %7118 = vmatmul.bf16.gmra.mxu0 %v4873
    %v7119 = vpop.f32.mrf.mxu0
    %v7120 = vadd.f32 %v6951, %v7119
    %v7121 = vpop.f32.mrf.mxu0
    %v7122 = vadd.f32 %v6953, %v7121
    %7123 = vmatmul.bf16.gmra.mxu0 %v4878
    %v7124 = vpop.f32.mrf.mxu0
    %v7125 = vadd.f32 %v6956, %v7124
    %v7126 = vpop.f32.mrf.mxu0
    %v7127 = vadd.f32 %v6958, %v7126
    %7128 = vmatmul.bf16.gmra.mxu0 %v4883
    %v7129 = vpop.f32.mrf.mxu0
    %v7130 = vadd.f32 %v6961, %v7129
    %v7131 = vpop.f32.mrf.mxu0
    %v7132 = vadd.f32 %v6963, %v7131
    %7133 = vmatmul.bf16.gmra.mxu0 %v4888
    %v7134 = vpop.f32.mrf.mxu0
    %v7135 = vadd.f32 %v6966, %v7134
    %v7136 = vpop.f32.mrf.mxu0
    %v7137 = vadd.f32 %v6968, %v7136
    %7138 = vmatmul.bf16.gmra.mxu0 %v4893
    %v7139 = vpop.f32.mrf.mxu0
    %v7140 = vadd.f32 %v6971, %v7139
    %v7141 = vpop.f32.mrf.mxu0
    %v7142 = vadd.f32 %v6973, %v7141
    %7143 = vmatmul.bf16.gmra.mxu0 %v4898
    %v7144 = vpop.f32.mrf.mxu0
    %v7145 = vadd.f32 %v6976, %v7144
    %v7146 = vpop.f32.mrf.mxu0
    %v7147 = vadd.f32 %v6978, %v7146
    %7148 = vmatmul.bf16.gmra.mxu0 %v4903
    %v7149 = vpop.f32.mrf.mxu0
    %v7150 = vadd.f32 %v6981, %v7149
    %v7151 = vpop.f32.mrf.mxu0
    %v7152 = vadd.f32 %v6983, %v7151
    %7153 = vmatmul.bf16.gmra.mxu0 %v4908
    %v7154 = vpop.f32.mrf.mxu0
    %v7155 = vadd.f32 %v6986, %v7154
    %v7156 = vpop.f32.mrf.mxu0
    %v7157 = vadd.f32 %v6988, %v7156
    %7158 = vmatmul.bf16.gmra.mxu0 %v4913
    %v7159 = vpop.f32.mrf.mxu0
    %v7160 = vadd.f32 %v6991, %v7159
    %v7161 = vpop.f32.mrf.mxu0
    %v7162 = vadd.f32 %v6993, %v7161
    %7163 = vmatmul.bf16.gmra.mxu0 %v4918
    %v7164 = vpop.f32.mrf.mxu0
    %v7165 = vadd.f32 %v6996, %v7164
    %v7166 = vpop.f32.mrf.mxu0
    %v7167 = vadd.f32 %v6998, %v7166
    %7168 = vmatmul.bf16.gmra.mxu0 %v4923
    %v7169 = vpop.f32.mrf.mxu0
    %v7170 = vadd.f32 %v7001, %v7169
    %v7171 = vpop.f32.mrf.mxu0
    %v7172 = vadd.f32 %v7003, %v7171
    %7173 = vmatmul.bf16.gmra.mxu0 %v4928
    %v7174 = vpop.f32.mrf.mxu0
    %v7175 = vadd.f32 %v7006, %v7174
    %v7176 = vpop.f32.mrf.mxu0
    %v7177 = vadd.f32 %v7008, %v7176
    %7178 = vmatmul.bf16.gmra.mxu0 %v4933
    %v7179 = vpop.f32.mrf.mxu0
    %v7180 = vadd.f32 %v7011, %v7179
    %v7181 = vpop.f32.mrf.mxu0
    %v7182 = vadd.f32 %v7013, %v7181
    %7183 = vmatmul.bf16.gmra.mxu0 %v4938
    %v7184 = vpop.f32.mrf.mxu0
    %v7185 = vadd.f32 %v7016, %v7184
    %v7186 = vpop.f32.mrf.mxu0
    %v7187 = vadd.f32 %v7018, %v7186
    %7188 = vmatmul.bf16.gmra.mxu0 %v4943
    %v7189 = vpop.f32.mrf.mxu0
    %v7190 = vadd.f32 %v7021, %v7189
    %v7191 = vpop.f32.mrf.mxu0
    %v7192 = vadd.f32 %v7023, %v7191
    %7193 = vdwg.mxu0
    %v7194 = vld [vmem:[%s6] sm:$0x3]
    %v7196 = vperm.slane %v7194, 0
    %v7197 = vperm.slane %v7194, 1
    %v7200 = vmul.f32 %v6190, %v7196
    %v7201 = vmul.f32 %v7035, %v7197
    %v7202 = vmul.f32 %v6192, %v7196
    %v7203 = vmul.f32 %v7037, %v7197
    %v7204 = vmul.f32 %v6195, %v7196
    %v7205 = vmul.f32 %v7040, %v7197
    %v7206 = vmul.f32 %v6197, %v7196
    %v7207 = vmul.f32 %v7042, %v7197
    %v7208 = vmul.f32 %v6200, %v7196
    %v7209 = vmul.f32 %v7045, %v7197
    %v7210 = vmul.f32 %v6202, %v7196
    %v7211 = vmul.f32 %v7047, %v7197
    %v7212 = vmul.f32 %v6205, %v7196
    %v7213 = vmul.f32 %v7050, %v7197
    %v7214 = vmul.f32 %v6207, %v7196
    %v7215 = vmul.f32 %v7052, %v7197
    %v7216 = vmul.f32 %v6210, %v7196
    %v7217 = vmul.f32 %v7055, %v7197
    %v7218 = vmul.f32 %v6212, %v7196
    %v7219 = vmul.f32 %v7057, %v7197
    %v7220 = vmul.f32 %v6215, %v7196
    %v7221 = vmul.f32 %v7060, %v7197
    %v7222 = vmul.f32 %v6217, %v7196
    %v7223 = vmul.f32 %v7062, %v7197
    %v7224 = vmul.f32 %v6220, %v7196
    %v7225 = vmul.f32 %v7065, %v7197
    %v7226 = vmul.f32 %v6222, %v7196
    %v7227 = vmul.f32 %v7067, %v7197
    %v7228 = vmul.f32 %v6225, %v7196
    %v7229 = vmul.f32 %v7070, %v7197
    %v7230 = vmul.f32 %v6227, %v7196
    %v7231 = vmul.f32 %v7072, %v7197
    %v7232 = vmul.f32 %v6230, %v7196
    %v7233 = vmul.f32 %v7075, %v7197
    %v7234 = vmul.f32 %v6232, %v7196
    %v7235 = vmul.f32 %v7077, %v7197
    %v7236 = vmul.f32 %v6235, %v7196
    %v7237 = vmul.f32 %v7080, %v7197
    %v7238 = vmul.f32 %v6237, %v7196
    %v7239 = vmul.f32 %v7082, %v7197
    %v7240 = vmul.f32 %v6240, %v7196
    %v7241 = vmul.f32 %v7085, %v7197
    %v7242 = vmul.f32 %v6242, %v7196
    %v7243 = vmul.f32 %v7087, %v7197
    %v7244 = vmul.f32 %v6245, %v7196
    %v7245 = vmul.f32 %v7090, %v7197
    %v7246 = vmul.f32 %v6247, %v7196
    %v7247 = vmul.f32 %v7092, %v7197
    %v7248 = vmul.f32 %v6250, %v7196
    %v7249 = vmul.f32 %v7095, %v7197
    %v7250 = vmul.f32 %v6252, %v7196
    %v7251 = vmul.f32 %v7097, %v7197
    %v7252 = vmul.f32 %v6255, %v7196
    %v7253 = vmul.f32 %v7100, %v7197
    %v7254 = vmul.f32 %v6257, %v7196
    %v7255 = vmul.f32 %v7102, %v7197
    %v7256 = vmul.f32 %v6260, %v7196
    %v7257 = vmul.f32 %v7105, %v7197
    %v7258 = vmul.f32 %v6262, %v7196
    %v7259 = vmul.f32 %v7107, %v7197
    %v7260 = vmul.f32 %v6265, %v7196
    %v7261 = vmul.f32 %v7110, %v7197
    %v7262 = vmul.f32 %v6267, %v7196
    %v7263 = vmul.f32 %v7112, %v7197
    %v7264 = vmul.f32 %v6270, %v7196
    %v7265 = vmul.f32 %v7115, %v7197
    %v7266 = vmul.f32 %v6272, %v7196
    %v7267 = vmul.f32 %v7117, %v7197
    %v7268 = vmul.f32 %v6275, %v7196
    %v7269 = vmul.f32 %v7120, %v7197
    %v7270 = vmul.f32 %v6277, %v7196
    %v7271 = vmul.f32 %v7122, %v7197
    %v7272 = vmul.f32 %v6280, %v7196
    %v7273 = vmul.f32 %v7125, %v7197
    %v7274 = vmul.f32 %v6282, %v7196
    %v7275 = vmul.f32 %v7127, %v7197
    %v7276 = vmul.f32 %v6285, %v7196
    %v7277 = vmul.f32 %v7130, %v7197
    %v7278 = vmul.f32 %v6287, %v7196
    %v7279 = vmul.f32 %v7132, %v7197
    %v7280 = vmul.f32 %v6290, %v7196
    %v7281 = vmul.f32 %v7135, %v7197
    %v7282 = vmul.f32 %v6292, %v7196
    %v7283 = vmul.f32 %v7137, %v7197
    %v7284 = vmul.f32 %v6295, %v7196
    %v7285 = vmul.f32 %v7140, %v7197
    %v7286 = vmul.f32 %v6297, %v7196
    %v7287 = vmul.f32 %v7142, %v7197
    %v7288 = vmul.f32 %v6300, %v7196
    %v7289 = vmul.f32 %v7145, %v7197
    %v7290 = vmul.f32 %v6302, %v7196
    %v7291 = vmul.f32 %v7147, %v7197
    %v7292 = vmul.f32 %v6305, %v7196
    %v7293 = vmul.f32 %v7150, %v7197
    %v7294 = vmul.f32 %v6307, %v7196
    %v7295 = vmul.f32 %v7152, %v7197
    %v7296 = vmul.f32 %v6310, %v7196
    %v7297 = vmul.f32 %v7155, %v7197
    %v7298 = vmul.f32 %v6312, %v7196
    %v7299 = vmul.f32 %v7157, %v7197
    %v7300 = vmul.f32 %v6315, %v7196
    %v7301 = vmul.f32 %v7160, %v7197
    %v7302 = vmul.f32 %v6317, %v7196
    %v7303 = vmul.f32 %v7162, %v7197
    %v7304 = vmul.f32 %v6320, %v7196
    %v7305 = vmul.f32 %v7165, %v7197
    %v7306 = vmul.f32 %v6322, %v7196
    %v7307 = vmul.f32 %v7167, %v7197
    %v7308 = vmul.f32 %v6325, %v7196
    %v7309 = vmul.f32 %v7170, %v7197
    %v7310 = vmul.f32 %v6327, %v7196
    %v7311 = vmul.f32 %v7172, %v7197
    %v7312 = vmul.f32 %v6330, %v7196
    %v7313 = vmul.f32 %v7175, %v7197
    %v7314 = vmul.f32 %v6332, %v7196
    %v7315 = vmul.f32 %v7177, %v7197
    %v7316 = vmul.f32 %v6335, %v7196
    %v7317 = vmul.f32 %v7180, %v7197
    %v7318 = vmul.f32 %v6337, %v7196
    %v7319 = vmul.f32 %v7182, %v7197
    %v7320 = vmul.f32 %v6340, %v7196
    %v7321 = vmul.f32 %v7185, %v7197
    %v7322 = vmul.f32 %v6342, %v7196
    %v7323 = vmul.f32 %v7187, %v7197
    %v7324 = vmul.f32 %v6345, %v7196
    %v7325 = vmul.f32 %v7190, %v7197
    %v7326 = vmul.f32 %v6347, %v7196
    %v7327 = vmul.f32 %v7192, %v7197
    %v7328 = vld [vmem:[%s7] sm:$0x3]
    %v7330 = vperm.slane %v7328, 0
    %v7331 = vperm.slane %v7328, 1
    %v7334 = vadd.f32 %v7200, %v7330
    %v7335 = vadd.f32 %v7201, %v7331
    %v7336 = vadd.f32 %v7202, %v7330
    %v7337 = vadd.f32 %v7203, %v7331
    %v7338 = vadd.f32 %v7204, %v7330
    %v7339 = vadd.f32 %v7205, %v7331
    %v7340 = vadd.f32 %v7206, %v7330
    %v7341 = vadd.f32 %v7207, %v7331
    %v7342 = vadd.f32 %v7208, %v7330
    %v7343 = vadd.f32 %v7209, %v7331
    %v7344 = vadd.f32 %v7210, %v7330
    %v7345 = vadd.f32 %v7211, %v7331
    %v7346 = vadd.f32 %v7212, %v7330
    %v7347 = vadd.f32 %v7213, %v7331
    %v7348 = vadd.f32 %v7214, %v7330
    %v7349 = vadd.f32 %v7215, %v7331
    %v7350 = vadd.f32 %v7216, %v7330
    %v7351 = vadd.f32 %v7217, %v7331
    %v7352 = vadd.f32 %v7218, %v7330
    %v7353 = vadd.f32 %v7219, %v7331
    %v7354 = vadd.f32 %v7220, %v7330
    %v7355 = vadd.f32 %v7221, %v7331
    %v7356 = vadd.f32 %v7222, %v7330
    %v7357 = vadd.f32 %v7223, %v7331
    %v7358 = vadd.f32 %v7224, %v7330
    %v7359 = vadd.f32 %v7225, %v7331
    %v7360 = vadd.f32 %v7226, %v7330
    %v7361 = vadd.f32 %v7227, %v7331
    %v7362 = vadd.f32 %v7228, %v7330
    %v7363 = vadd.f32 %v7229, %v7331
    %v7364 = vadd.f32 %v7230, %v7330
    %v7365 = vadd.f32 %v7231, %v7331
    %v7366 = vadd.f32 %v7232, %v7330
    %v7367 = vadd.f32 %v7233, %v7331
    %v7368 = vadd.f32 %v7234, %v7330
    %v7369 = vadd.f32 %v7235, %v7331
    %v7370 = vadd.f32 %v7236, %v7330
    %v7371 = vadd.f32 %v7237, %v7331
    %v7372 = vadd.f32 %v7238, %v7330
    %v7373 = vadd.f32 %v7239, %v7331
    %v7374 = vadd.f32 %v7240, %v7330
    %v7375 = vadd.f32 %v7241, %v7331
    %v7376 = vadd.f32 %v7242, %v7330
    %v7377 = vadd.f32 %v7243, %v7331
    %v7378 = vadd.f32 %v7244, %v7330
    %v7379 = vadd.f32 %v7245, %v7331
    %v7380 = vadd.f32 %v7246, %v7330
    %v7381 = vadd.f32 %v7247, %v7331
    %v7382 = vadd.f32 %v7248, %v7330
    %v7383 = vadd.f32 %v7249, %v7331
    %v7384 = vadd.f32 %v7250, %v7330
    %v7385 = vadd.f32 %v7251, %v7331
    %v7386 = vadd.f32 %v7252, %v7330
    %v7387 = vadd.f32 %v7253, %v7331
    %v7388 = vadd.f32 %v7254, %v7330
    %v7389 = vadd.f32 %v7255, %v7331
    %v7390 = vadd.f32 %v7256, %v7330
    %v7391 = vadd.f32 %v7257, %v7331
    %v7392 = vadd.f32 %v7258, %v7330
    %v7393 = vadd.f32 %v7259, %v7331
    %v7394 = vadd.f32 %v7260, %v7330
    %v7395 = vadd.f32 %v7261, %v7331
    %v7396 = vadd.f32 %v7262, %v7330
    %v7397 = vadd.f32 %v7263, %v7331
    %v7398 = vadd.f32 %v7264, %v7330
    %v7399 = vadd.f32 %v7265, %v7331
    %v7400 = vadd.f32 %v7266, %v7330
    %v7401 = vadd.f32 %v7267, %v7331
    %v7402 = vadd.f32 %v7268, %v7330
    %v7403 = vadd.f32 %v7269, %v7331
    %v7404 = vadd.f32 %v7270, %v7330
    %v7405 = vadd.f32 %v7271, %v7331
    %v7406 = vadd.f32 %v7272, %v7330
    %v7407 = vadd.f32 %v7273, %v7331
    %v7408 = vadd.f32 %v7274, %v7330
    %v7409 = vadd.f32 %v7275, %v7331
    %v7410 = vadd.f32 %v7276, %v7330
    %v7411 = vadd.f32 %v7277, %v7331
    %v7412 = vadd.f32 %v7278, %v7330
    %v7413 = vadd.f32 %v7279, %v7331
    %v7414 = vadd.f32 %v7280, %v7330
    %v7415 = vadd.f32 %v7281, %v7331
    %v7416 = vadd.f32 %v7282, %v7330
    %v7417 = vadd.f32 %v7283, %v7331
    %v7418 = vadd.f32 %v7284, %v7330
    %v7419 = vadd.f32 %v7285, %v7331
    %v7420 = vadd.f32 %v7286, %v7330
    %v7421 = vadd.f32 %v7287, %v7331
    %v7422 = vadd.f32 %v7288, %v7330
    %v7423 = vadd.f32 %v7289, %v7331
    %v7424 = vadd.f32 %v7290, %v7330
    %v7425 = vadd.f32 %v7291, %v7331
    %v7426 = vadd.f32 %v7292, %v7330
    %v7427 = vadd.f32 %v7293, %v7331
    %v7428 = vadd.f32 %v7294, %v7330
    %v7429 = vadd.f32 %v7295, %v7331
    %v7430 = vadd.f32 %v7296, %v7330
    %v7431 = vadd.f32 %v7297, %v7331
    %v7432 = vadd.f32 %v7298, %v7330
    %v7433 = vadd.f32 %v7299, %v7331
    %v7434 = vadd.f32 %v7300, %v7330
    %v7435 = vadd.f32 %v7301, %v7331
    %v7436 = vadd.f32 %v7302, %v7330
    %v7437 = vadd.f32 %v7303, %v7331
    %v7438 = vadd.f32 %v7304, %v7330
    %v7439 = vadd.f32 %v7305, %v7331
    %v7440 = vadd.f32 %v7306, %v7330
    %v7441 = vadd.f32 %v7307, %v7331
    %v7442 = vadd.f32 %v7308, %v7330
    %v7443 = vadd.f32 %v7309, %v7331
    %v7444 = vadd.f32 %v7310, %v7330
    %v7445 = vadd.f32 %v7311, %v7331
    %v7446 = vadd.f32 %v7312, %v7330
    %v7447 = vadd.f32 %v7313, %v7331
    %v7448 = vadd.f32 %v7314, %v7330
    %v7449 = vadd.f32 %v7315, %v7331
    %v7450 = vadd.f32 %v7316, %v7330
    %v7451 = vadd.f32 %v7317, %v7331
    %v7452 = vadd.f32 %v7318, %v7330
    %v7453 = vadd.f32 %v7319, %v7331
    %v7454 = vadd.f32 %v7320, %v7330
    %v7455 = vadd.f32 %v7321, %v7331
    %v7456 = vadd.f32 %v7322, %v7330
    %v7457 = vadd.f32 %v7323, %v7331
    %v7458 = vadd.f32 %v7324, %v7330
    %v7459 = vadd.f32 %v7325, %v7331
    %v7460 = vadd.f32 %v7326, %v7330
    %v7461 = vadd.f32 %v7327, %v7331
    %v7462 = vmax.f32 %v7334, 0.0
    %v7463 = vmax.f32 %v7335, 0.0
    %v7464 = vmax.f32 %v7336, 0.0
    %v7465 = vmax.f32 %v7337, 0.0
    %v7466 = vmax.f32 %v7338, 0.0
    %v7467 = vmax.f32 %v7339, 0.0
    %v7468 = vmax.f32 %v7340, 0.0
    %v7469 = vmax.f32 %v7341, 0.0
    %v7470 = vmax.f32 %v7342, 0.0
    %v7471 = vmax.f32 %v7343, 0.0
    %v7472 = vmax.f32 %v7344, 0.0
    %v7473 = vmax.f32 %v7345, 0.0
    %v7474 = vmax.f32 %v7346, 0.0
    %v7475 = vmax.f32 %v7347, 0.0
    %v7476 = vmax.f32 %v7348, 0.0
    %v7477 = vmax.f32 %v7349, 0.0
    %v7478 = vmax.f32 %v7350, 0.0
    %v7479 = vmax.f32 %v7351, 0.0
    %v7480 = vmax.f32 %v7352, 0.0
    %v7481 = vmax.f32 %v7353, 0.0
    %v7482 = vmax.f32 %v7354, 0.0
    %v7483 = vmax.f32 %v7355, 0.0
    %v7484 = vmax.f32 %v7356, 0.0
    %v7485 = vmax.f32 %v7357, 0.0
    %v7486 = vmax.f32 %v7358, 0.0
    %v7487 = vmax.f32 %v7359, 0.0
    %v7488 = vmax.f32 %v7360, 0.0
    %v7489 = vmax.f32 %v7361, 0.0
    %v7490 = vmax.f32 %v7362, 0.0
    %v7491 = vmax.f32 %v7363, 0.0
    %v7492 = vmax.f32 %v7364, 0.0
    %v7493 = vmax.f32 %v7365, 0.0
    %v7494 = vmax.f32 %v7366, 0.0
    %v7495 = vmax.f32 %v7367, 0.0
    %v7496 = vmax.f32 %v7368, 0.0
    %v7497 = vmax.f32 %v7369, 0.0
    %v7498 = vmax.f32 %v7370, 0.0
    %v7499 = vmax.f32 %v7371, 0.0
    %v7500 = vmax.f32 %v7372, 0.0
    %v7501 = vmax.f32 %v7373, 0.0
    %v7502 = vmax.f32 %v7374, 0.0
    %v7503 = vmax.f32 %v7375, 0.0
    %v7504 = vmax.f32 %v7376, 0.0
    %v7505 = vmax.f32 %v7377, 0.0
    %v7506 = vmax.f32 %v7378, 0.0
    %v7507 = vmax.f32 %v7379, 0.0
    %v7508 = vmax.f32 %v7380, 0.0
    %v7509 = vmax.f32 %v7381, 0.0
    %v7510 = vmax.f32 %v7382, 0.0
    %v7511 = vmax.f32 %v7383, 0.0
    %v7512 = vmax.f32 %v7384, 0.0
    %v7513 = vmax.f32 %v7385, 0.0
    %v7514 = vmax.f32 %v7386, 0.0
    %v7515 = vmax.f32 %v7387, 0.0
    %v7516 = vmax.f32 %v7388, 0.0
    %v7517 = vmax.f32 %v7389, 0.0
    %v7518 = vmax.f32 %v7390, 0.0
    %v7519 = vmax.f32 %v7391, 0.0
    %v7520 = vmax.f32 %v7392, 0.0
    %v7521 = vmax.f32 %v7393, 0.0
    %v7522 = vmax.f32 %v7394, 0.0
    %v7523 = vmax.f32 %v7395, 0.0
    %v7524 = vmax.f32 %v7396, 0.0
    %v7525 = vmax.f32 %v7397, 0.0
    %v7526 = vmax.f32 %v7398, 0.0
    %v7527 = vmax.f32 %v7399, 0.0
    %v7528 = vmax.f32 %v7400, 0.0
    %v7529 = vmax.f32 %v7401, 0.0
    %v7530 = vmax.f32 %v7402, 0.0
    %v7531 = vmax.f32 %v7403, 0.0
    %v7532 = vmax.f32 %v7404, 0.0
    %v7533 = vmax.f32 %v7405, 0.0
    %v7534 = vmax.f32 %v7406, 0.0
    %v7535 = vmax.f32 %v7407, 0.0
    %v7536 = vmax.f32 %v7408, 0.0
    %v7537 = vmax.f32 %v7409, 0.0
    %v7538 = vmax.f32 %v7410, 0.0
    %v7539 = vmax.f32 %v7411, 0.0
    %v7540 = vmax.f32 %v7412, 0.0
    %v7541 = vmax.f32 %v7413, 0.0
    %v7542 = vmax.f32 %v7414, 0.0
    %v7543 = vmax.f32 %v7415, 0.0
    %v7544 = vmax.f32 %v7416, 0.0
    %v7545 = vmax.f32 %v7417, 0.0
    %v7546 = vmax.f32 %v7418, 0.0
    %v7547 = vmax.f32 %v7419, 0.0
    %v7548 = vmax.f32 %v7420, 0.0
    %v7549 = vmax.f32 %v7421, 0.0
    %v7550 = vmax.f32 %v7422, 0.0
    %v7551 = vmax.f32 %v7423, 0.0
    %v7552 = vmax.f32 %v7424, 0.0
    %v7553 = vmax.f32 %v7425, 0.0
    %v7554 = vmax.f32 %v7426, 0.0
    %v7555 = vmax.f32 %v7427, 0.0
    %v7556 = vmax.f32 %v7428, 0.0
    %v7557 = vmax.f32 %v7429, 0.0
    %v7558 = vmax.f32 %v7430, 0.0
    %v7559 = vmax.f32 %v7431, 0.0
    %v7560 = vmax.f32 %v7432, 0.0
    %v7561 = vmax.f32 %v7433, 0.0
    %v7562 = vmax.f32 %v7434, 0.0
    %v7563 = vmax.f32 %v7435, 0.0
    %v7564 = vmax.f32 %v7436, 0.0
    %v7565 = vmax.f32 %v7437, 0.0
    %v7566 = vmax.f32 %v7438, 0.0
    %v7567 = vmax.f32 %v7439, 0.0
    %v7568 = vmax.f32 %v7440, 0.0
    %v7569 = vmax.f32 %v7441, 0.0
    %v7570 = vmax.f32 %v7442, 0.0
    %v7571 = vmax.f32 %v7443, 0.0
    %v7572 = vmax.f32 %v7444, 0.0
    %v7573 = vmax.f32 %v7445, 0.0
    %v7574 = vmax.f32 %v7446, 0.0
    %v7575 = vmax.f32 %v7447, 0.0
    %v7576 = vmax.f32 %v7448, 0.0
    %v7577 = vmax.f32 %v7449, 0.0
    %v7578 = vmax.f32 %v7450, 0.0
    %v7579 = vmax.f32 %v7451, 0.0
    %v7580 = vmax.f32 %v7452, 0.0
    %v7581 = vmax.f32 %v7453, 0.0
    %v7582 = vmax.f32 %v7454, 0.0
    %v7583 = vmax.f32 %v7455, 0.0
    %v7584 = vmax.f32 %v7456, 0.0
    %v7585 = vmax.f32 %v7457, 0.0
    %v7586 = vmax.f32 %v7458, 0.0
    %v7587 = vmax.f32 %v7459, 0.0
    %v7588 = vmax.f32 %v7460, 0.0
    %v7589 = vmax.f32 %v7461, 0.0
    %v7590 = vmul.f32 %v7462, %v835
    %v7591 = vmul.f32 %v7463, %v835
    %v7592 = vmul.f32 %v7464, %v840
    %v7593 = vmul.f32 %v7465, %v840
    %v7594 = vmul.f32 %v7466, %v845
    %v7595 = vmul.f32 %v7467, %v845
    %v7596 = vmul.f32 %v7468, %v850
    %v7597 = vmul.f32 %v7469, %v850
    %v7598 = vmul.f32 %v7470, %v855
    %v7599 = vmul.f32 %v7471, %v855
    %v7600 = vmul.f32 %v7472, %v860
    %v7601 = vmul.f32 %v7473, %v860
    %v7602 = vmul.f32 %v7474, %v865
    %v7603 = vmul.f32 %v7475, %v865
    %v7604 = vmul.f32 %v7476, %v870
    %v7605 = vmul.f32 %v7477, %v870
    %v7606 = vmul.f32 %v7478, %v875
    %v7607 = vmul.f32 %v7479, %v875
    %v7608 = vmul.f32 %v7480, %v880
    %v7609 = vmul.f32 %v7481, %v880
    %v7610 = vmul.f32 %v7482, %v885
    %v7611 = vmul.f32 %v7483, %v885
    %v7612 = vmul.f32 %v7484, %v890
    %v7613 = vmul.f32 %v7485, %v890
    %v7614 = vmul.f32 %v7486, %v895
    %v7615 = vmul.f32 %v7487, %v895
    %v7616 = vmul.f32 %v7488, %v900
    %v7617 = vmul.f32 %v7489, %v900
    %v7618 = vmul.f32 %v7490, %v905
    %v7619 = vmul.f32 %v7491, %v905
    %v7620 = vmul.f32 %v7492, %v910
    %v7621 = vmul.f32 %v7493, %v910
    %v7622 = vmul.f32 %v7494, %v915
    %v7623 = vmul.f32 %v7495, %v915
    %v7624 = vmul.f32 %v7496, %v920
    %v7625 = vmul.f32 %v7497, %v920
    %v7626 = vmul.f32 %v7498, %v925
    %v7627 = vmul.f32 %v7499, %v925
    %v7628 = vmul.f32 %v7500, %v930
    %v7629 = vmul.f32 %v7501, %v930
    %v7630 = vmul.f32 %v7502, %v935
    %v7631 = vmul.f32 %v7503, %v935
    %v7632 = vmul.f32 %v7504, %v940
    %v7633 = vmul.f32 %v7505, %v940
    %v7634 = vmul.f32 %v7506, %v945
    %v7635 = vmul.f32 %v7507, %v945
    %v7636 = vmul.f32 %v7508, %v950
    %v7637 = vmul.f32 %v7509, %v950
    %v7638 = vmul.f32 %v7510, %v955
    %v7639 = vmul.f32 %v7511, %v955
    %v7640 = vmul.f32 %v7512, %v960
    %v7641 = vmul.f32 %v7513, %v960
    %v7642 = vmul.f32 %v7514, %v965
    %v7643 = vmul.f32 %v7515, %v965
    %v7644 = vmul.f32 %v7516, %v970
    %v7645 = vmul.f32 %v7517, %v970
    %v7646 = vmul.f32 %v7518, %v975
    %v7647 = vmul.f32 %v7519, %v975
    %v7648 = vmul.f32 %v7520, %v980
    %v7649 = vmul.f32 %v7521, %v980
    %v7650 = vmul.f32 %v7522, %v985
    %v7651 = vmul.f32 %v7523, %v985
    %v7652 = vmul.f32 %v7524, %v990
    %v7653 = vmul.f32 %v7525, %v990
    %v7654 = vmul.f32 %v7526, %v995
    %v7655 = vmul.f32 %v7527, %v995
    %v7656 = vmul.f32 %v7528, %v1000
    %v7657 = vmul.f32 %v7529, %v1000
    %v7658 = vmul.f32 %v7530, %v1005
    %v7659 = vmul.f32 %v7531, %v1005
    %v7660 = vmul.f32 %v7532, %v1010
    %v7661 = vmul.f32 %v7533, %v1010
    %v7662 = vmul.f32 %v7534, %v1015
    %v7663 = vmul.f32 %v7535, %v1015
    %v7664 = vmul.f32 %v7536, %v1020
    %v7665 = vmul.f32 %v7537, %v1020
    %v7666 = vmul.f32 %v7538, %v1025
    %v7667 = vmul.f32 %v7539, %v1025
    %v7668 = vmul.f32 %v7540, %v1030
    %v7669 = vmul.f32 %v7541, %v1030
    %v7670 = vmul.f32 %v7542, %v1035
    %v7671 = vmul.f32 %v7543, %v1035
    %v7672 = vmul.f32 %v7544, %v1040
    %v7673 = vmul.f32 %v7545, %v1040
    %v7674 = vmul.f32 %v7546, %v1045
    %v7675 = vmul.f32 %v7547, %v1045
    %v7676 = vmul.f32 %v7548, %v1050
    %v7677 = vmul.f32 %v7549, %v1050
    %v7678 = vmul.f32 %v7550, %v1055
    %v7679 = vmul.f32 %v7551, %v1055
    %v7680 = vmul.f32 %v7552, %v1060
    %v7681 = vmul.f32 %v7553, %v1060
    %v7682 = vmul.f32 %v7554, %v1065
    %v7683 = vmul.f32 %v7555, %v1065
    %v7684 = vmul.f32 %v7556, %v1070
    %v7685 = vmul.f32 %v7557, %v1070
    %v7686 = vmul.f32 %v7558, %v1075
    %v7687 = vmul.f32 %v7559, %v1075
    %v7688 = vmul.f32 %v7560, %v1080
    %v7689 = vmul.f32 %v7561, %v1080
    %v7690 = vmul.f32 %v7562, %v1085
    %v7691 = vmul.f32 %v7563, %v1085
    %v7692 = vmul.f32 %v7564, %v1090
    %v7693 = vmul.f32 %v7565, %v1090
    %v7694 = vmul.f32 %v7566, %v1095
    %v7695 = vmul.f32 %v7567, %v1095
    %v7696 = vmul.f32 %v7568, %v1100
    %v7697 = vmul.f32 %v7569, %v1100
    %v7698 = vmul.f32 %v7570, %v1105
    %v7699 = vmul.f32 %v7571, %v1105
    %v7700 = vmul.f32 %v7572, %v1110
    %v7701 = vmul.f32 %v7573, %v1110
    %v7702 = vmul.f32 %v7574, %v1115
    %v7703 = vmul.f32 %v7575, %v1115
    %v7704 = vmul.f32 %v7576, %v1120
    %v7705 = vmul.f32 %v7577, %v1120
    %v7706 = vmul.f32 %v7578, %v1125
    %v7707 = vmul.f32 %v7579, %v1125
    %v7708 = vmul.f32 %v7580, %v1130
    %v7709 = vmul.f32 %v7581, %v1130
    %v7710 = vmul.f32 %v7582, %v1135
    %v7711 = vmul.f32 %v7583, %v1135
    %v7712 = vmul.f32 %v7584, %v1140
    %v7713 = vmul.f32 %v7585, %v1140
    %v7714 = vmul.f32 %v7586, %v1145
    %v7715 = vmul.f32 %v7587, %v1145
    %v7716 = vmul.f32 %v7588, %v1150
    %v7717 = vmul.f32 %v7589, %v1150
    %7718 = vst [vmem:[#allocation3] sm:$0xff] 0
    %7719 = vst [vmem:[#allocation3 + $0x8] sm:$0xff] 0
    %7720 = vst [vmem:[#allocation3 + $0x210] sm:$0xff] 0
    %7721 = vst [vmem:[#allocation3 + $0x218] sm:$0xff] 0
    %v7722 = vpack.c.bf16 %v7591, %v7590
    %v7723 = vpack.c.bf16 %v7593, %v7592
    %v7724 = vpack.c.bf16 %v7595, %v7594
    %v7725 = vpack.c.bf16 %v7597, %v7596
    %v7726 = vpack.c.bf16 %v7599, %v7598
    %v7727 = vpack.c.bf16 %v7601, %v7600
    %v7728 = vpack.c.bf16 %v7603, %v7602
    %v7729 = vpack.c.bf16 %v7605, %v7604
    %v7730 = vpack.c.bf16 %v7607, %v7606
    %v7731 = vpack.c.bf16 %v7609, %v7608
    %v7732 = vpack.c.bf16 %v7611, %v7610
    %v7733 = vpack.c.bf16 %v7613, %v7612
    %v7734 = vpack.c.bf16 %v7615, %v7614
    %v7735 = vpack.c.bf16 %v7617, %v7616
    %v7736 = vpack.c.bf16 %v7619, %v7618
    %v7737 = vpack.c.bf16 %v7621, %v7620
    %v7738 = vpack.c.bf16 %v7623, %v7622
    %v7739 = vpack.c.bf16 %v7625, %v7624
    %v7740 = vpack.c.bf16 %v7627, %v7626
    %v7741 = vpack.c.bf16 %v7629, %v7628
    %v7742 = vpack.c.bf16 %v7631, %v7630
    %v7743 = vpack.c.bf16 %v7633, %v7632
    %v7744 = vpack.c.bf16 %v7635, %v7634
    %v7745 = vpack.c.bf16 %v7637, %v7636
    %v7746 = vpack.c.bf16 %v7639, %v7638
    %v7747 = vpack.c.bf16 %v7641, %v7640
    %v7748 = vpack.c.bf16 %v7643, %v7642
    %v7749 = vpack.c.bf16 %v7645, %v7644
    %v7750 = vpack.c.bf16 %v7647, %v7646
    %v7751 = vpack.c.bf16 %v7649, %v7648
    %v7752 = vpack.c.bf16 %v7651, %v7650
    %v7753 = vpack.c.bf16 %v7653, %v7652
    %v7754 = vpack.c.bf16 %v7655, %v7654
    %v7755 = vpack.c.bf16 %v7657, %v7656
    %v7756 = vpack.c.bf16 %v7659, %v7658
    %v7757 = vpack.c.bf16 %v7661, %v7660
    %v7758 = vpack.c.bf16 %v7663, %v7662
    %v7759 = vpack.c.bf16 %v7665, %v7664
    %v7760 = vpack.c.bf16 %v7667, %v7666
    %v7761 = vpack.c.bf16 %v7669, %v7668
    %v7762 = vpack.c.bf16 %v7671, %v7670
    %v7763 = vpack.c.bf16 %v7673, %v7672
    %v7764 = vpack.c.bf16 %v7675, %v7674
    %v7765 = vpack.c.bf16 %v7677, %v7676
    %v7766 = vpack.c.bf16 %v7679, %v7678
    %v7767 = vpack.c.bf16 %v7681, %v7680
    %v7768 = vpack.c.bf16 %v7683, %v7682
    %v7769 = vpack.c.bf16 %v7685, %v7684
    %v7770 = vpack.c.bf16 %v7687, %v7686
    %v7771 = vpack.c.bf16 %v7689, %v7688
    %v7772 = vpack.c.bf16 %v7691, %v7690
    %v7773 = vpack.c.bf16 %v7693, %v7692
    %v7774 = vpack.c.bf16 %v7695, %v7694
    %v7775 = vpack.c.bf16 %v7697, %v7696
    %v7776 = vpack.c.bf16 %v7699, %v7698
    %v7777 = vpack.c.bf16 %v7701, %v7700
    %v7778 = vpack.c.bf16 %v7703, %v7702
    %v7779 = vpack.c.bf16 %v7705, %v7704
    %v7780 = vpack.c.bf16 %v7707, %v7706
    %v7781 = vpack.c.bf16 %v7709, %v7708
    %v7782 = vpack.c.bf16 %v7711, %v7710
    %v7783 = vpack.c.bf16 %v7713, %v7712
    %v7784 = vpack.c.bf16 %v7715, %v7714
    %v7785 = vpack.c.bf16 %v7717, %v7716
    %7786 = vst [vmem:[#allocation3 + $0x10] sm:$0xff] %v7722
    %7787 = vst [vmem:[#allocation3 + $0x18] sm:$0xff] %v7723
    %7788 = vst [vmem:[#allocation3 + $0x20] sm:$0xff] %v7724
    %7789 = vst [vmem:[#allocation3 + $0x28] sm:$0xff] %v7725
    %7790 = vst [vmem:[#allocation3 + $0x30] sm:$0xff] %v7726
    %7791 = vst [vmem:[#allocation3 + $0x38] sm:$0xff] %v7727
    %7792 = vst [vmem:[#allocation3 + $0x40] sm:$0xff] %v7728
    %7793 = vst [vmem:[#allocation3 + $0x48] sm:$0xff] %v7729
    %7794 = vst [vmem:[#allocation3 + $0x50] sm:$0xff] %v7730
    %7795 = vst [vmem:[#allocation3 + $0x58] sm:$0xff] %v7731
    %7796 = vst [vmem:[#allocation3 + $0x60] sm:$0xff] %v7732
    %7797 = vst [vmem:[#allocation3 + $0x68] sm:$0xff] %v7733
    %7798 = vst [vmem:[#allocation3 + $0x70] sm:$0xff] %v7734
    %7799 = vst [vmem:[#allocation3 + $0x78] sm:$0xff] %v7735
    %7800 = vst [vmem:[#allocation3 + $0x80] sm:$0xff] %v7736
    %7801 = vst [vmem:[#allocation3 + $0x88] sm:$0xff] %v7737
    %7802 = vst [vmem:[#allocation3 + $0x90] sm:$0xff] %v7738
    %7803 = vst [vmem:[#allocation3 + $0x98] sm:$0xff] %v7739
    %7804 = vst [vmem:[#allocation3 + $0xa0] sm:$0xff] %v7740
    %7805 = vst [vmem:[#allocation3 + $0xa8] sm:$0xff] %v7741
    %7806 = vst [vmem:[#allocation3 + $0xb0] sm:$0xff] %v7742
    %7807 = vst [vmem:[#allocation3 + $0xb8] sm:$0xff] %v7743
    %7808 = vst [vmem:[#allocation3 + $0xc0] sm:$0xff] %v7744
    %7809 = vst [vmem:[#allocation3 + $0xc8] sm:$0xff] %v7745
    %7810 = vst [vmem:[#allocation3 + $0xd0] sm:$0xff] %v7746
    %7811 = vst [vmem:[#allocation3 + $0xd8] sm:$0xff] %v7747
    %7812 = vst [vmem:[#allocation3 + $0xe0] sm:$0xff] %v7748
    %7813 = vst [vmem:[#allocation3 + $0xe8] sm:$0xff] %v7749
    %7814 = vst [vmem:[#allocation3 + $0xf0] sm:$0xff] %v7750
    %7815 = vst [vmem:[#allocation3 + $0xf8] sm:$0xff] %v7751
    %7816 = vst [vmem:[#allocation3 + $0x100] sm:$0xff] %v7752
    %7817 = vst [vmem:[#allocation3 + $0x108] sm:$0xff] %v7753
    %7818 = vst [vmem:[#allocation3 + $0x110] sm:$0xff] %v7754
    %7819 = vst [vmem:[#allocation3 + $0x118] sm:$0xff] %v7755
    %7820 = vst [vmem:[#allocation3 + $0x120] sm:$0xff] %v7756
    %7821 = vst [vmem:[#allocation3 + $0x128] sm:$0xff] %v7757
    %7822 = vst [vmem:[#allocation3 + $0x130] sm:$0xff] %v7758
    %7823 = vst [vmem:[#allocation3 + $0x138] sm:$0xff] %v7759
    %7824 = vst [vmem:[#allocation3 + $0x140] sm:$0xff] %v7760
    %7825 = vst [vmem:[#allocation3 + $0x148] sm:$0xff] %v7761
    %7826 = vst [vmem:[#allocation3 + $0x150] sm:$0xff] %v7762
    %7827 = vst [vmem:[#allocation3 + $0x158] sm:$0xff] %v7763
    %7828 = vst [vmem:[#allocation3 + $0x160] sm:$0xff] %v7764
    %7829 = vst [vmem:[#allocation3 + $0x168] sm:$0xff] %v7765
    %7830 = vst [vmem:[#allocation3 + $0x170] sm:$0xff] %v7766
    %7831 = vst [vmem:[#allocation3 + $0x178] sm:$0xff] %v7767
    %7832 = vst [vmem:[#allocation3 + $0x180] sm:$0xff] %v7768
    %7833 = vst [vmem:[#allocation3 + $0x188] sm:$0xff] %v7769
    %7834 = vst [vmem:[#allocation3 + $0x190] sm:$0xff] %v7770
    %7835 = vst [vmem:[#allocation3 + $0x198] sm:$0xff] %v7771
    %7836 = vst [vmem:[#allocation3 + $0x1a0] sm:$0xff] %v7772
    %7837 = vst [vmem:[#allocation3 + $0x1a8] sm:$0xff] %v7773
    %7838 = vst [vmem:[#allocation3 + $0x1b0] sm:$0xff] %v7774
    %7839 = vst [vmem:[#allocation3 + $0x1b8] sm:$0xff] %v7775
    %7840 = vst [vmem:[#allocation3 + $0x1c0] sm:$0xff] %v7776
    %7841 = vst [vmem:[#allocation3 + $0x1c8] sm:$0xff] %v7777
    %7842 = vst [vmem:[#allocation3 + $0x1d0] sm:$0xff] %v7778
    %7843 = vst [vmem:[#allocation3 + $0x1d8] sm:$0xff] %v7779
    %7844 = vst [vmem:[#allocation3 + $0x1e0] sm:$0xff] %v7780
    %7845 = vst [vmem:[#allocation3 + $0x1e8] sm:$0xff] %v7781
    %7846 = vst [vmem:[#allocation3 + $0x1f0] sm:$0xff] %v7782
    %7847 = vst [vmem:[#allocation3 + $0x1f8] sm:$0xff] %v7783
    %7848 = vst [vmem:[#allocation3 + $0x200] sm:$0xff] %v7784
    %7849 = vst [vmem:[#allocation3 + $0x208] sm:$0xff] %v7785
    %v7850 = vld [vmem:[#allocation3 + $0x8] sm:$0x88]
    %v7851 = vld [vmem:[#allocation3 + $0x10] sm:$0xff]
    %v7852 = vld [vmem:[#allocation3 + $0x18] sm:$0xff]
    %v7853 = vld [vmem:[#allocation3 + $0x20] sm:$0xff]
    %v7854 = vld [vmem:[#allocation3 + $0x28] sm:$0xff]
    %v7855 = vld [vmem:[#allocation3 + $0x30] sm:$0xff]
    %v7856 = vld [vmem:[#allocation3 + $0x38] sm:$0xff]
    %v7857 = vld [vmem:[#allocation3 + $0x40] sm:$0xff]
    %v7858 = vld [vmem:[#allocation3 + $0x48] sm:$0xff]
    %v7859 = vld [vmem:[#allocation3 + $0x50] sm:$0xff]
    %v7860 = vld [vmem:[#allocation3 + $0x58] sm:$0xff]
    %v7861 = vld [vmem:[#allocation3 + $0x60] sm:$0xff]
    %v7862 = vld [vmem:[#allocation3 + $0x68] sm:$0xff]
    %v7863 = vld [vmem:[#allocation3 + $0x70] sm:$0xff]
    %v7864 = vld [vmem:[#allocation3 + $0x78] sm:$0xff]
    %v7865 = vld [vmem:[#allocation3 + $0x80] sm:$0xff]
    %v7866 = vld [vmem:[#allocation3 + $0x88] sm:$0xff]
    %v7867 = vld [vmem:[#allocation3 + $0x90] sm:$0xff]
    %v7868 = vld [vmem:[#allocation3 + $0x98] sm:$0xff]
    %v7869 = vld [vmem:[#allocation3 + $0xa0] sm:$0xff]
    %v7870 = vld [vmem:[#allocation3 + $0xa8] sm:$0xff]
    %v7871 = vld [vmem:[#allocation3 + $0xb0] sm:$0xff]
    %v7872 = vld [vmem:[#allocation3 + $0xb8] sm:$0xff]
    %v7873 = vld [vmem:[#allocation3 + $0xc0] sm:$0xff]
    %v7874 = vld [vmem:[#allocation3 + $0xc8] sm:$0xff]
    %v7875 = vld [vmem:[#allocation3 + $0xd0] sm:$0xff]
    %v7876 = vld [vmem:[#allocation3 + $0xd8] sm:$0xff]
    %v7877 = vld [vmem:[#allocation3 + $0xe0] sm:$0xff]
    %v7878 = vld [vmem:[#allocation3 + $0xe8] sm:$0xff]
    %v7879 = vld [vmem:[#allocation3 + $0xf0] sm:$0xff]
    %v7880 = vld [vmem:[#allocation3 + $0xf8] sm:$0xff]
    %v7881 = vld [vmem:[#allocation3 + $0x100] sm:$0xff]
    %v7882 = vld [vmem:[#allocation3 + $0x108] sm:$0xff]
    %v7883 = vld [vmem:[#allocation3 + $0x110] sm:$0xff]
    %v7884 = vld [vmem:[#allocation3 + $0x118] sm:$0xff]
    %v7885 = vld [vmem:[#allocation3 + $0x120] sm:$0xff]
    %v7886 = vld [vmem:[#allocation3 + $0x128] sm:$0xff]
    %v7887 = vld [vmem:[#allocation3 + $0x130] sm:$0xff]
    %v7888 = vld [vmem:[#allocation3 + $0x138] sm:$0xff]
    %v7889 = vld [vmem:[#allocation3 + $0x140] sm:$0xff]
    %v7890 = vld [vmem:[#allocation3 + $0x148] sm:$0xff]
    %v7891 = vld [vmem:[#allocation3 + $0x150] sm:$0xff]
    %v7892 = vld [vmem:[#allocation3 + $0x158] sm:$0xff]
    %v7893 = vld [vmem:[#allocation3 + $0x160] sm:$0xff]
    %v7894 = vld [vmem:[#allocation3 + $0x168] sm:$0xff]
    %v7895 = vld [vmem:[#allocation3 + $0x170] sm:$0xff]
    %v7896 = vld [vmem:[#allocation3 + $0x178] sm:$0xff]
    %v7897 = vld [vmem:[#allocation3 + $0x180] sm:$0xff]
    %v7898 = vld [vmem:[#allocation3 + $0x188] sm:$0xff]
    %v7899 = vld [vmem:[#allocation3 + $0x190] sm:$0xff]
    %v7900 = vld [vmem:[#allocation3 + $0x198] sm:$0xff]
    %v7901 = vld [vmem:[#allocation3 + $0x1a0] sm:$0xff]
    %v7902 = vld [vmem:[#allocation3 + $0x1a8] sm:$0xff]
    %v7903 = vld [vmem:[#allocation3 + $0x1b0] sm:$0xff]
    %v7904 = vld [vmem:[#allocation3 + $0x1b8] sm:$0xff]
    %v7905 = vld [vmem:[#allocation3 + $0x1c0] sm:$0xff]
    %v7906 = vld [vmem:[#allocation3 + $0x1c8] sm:$0xff]
    %v7907 = vld [vmem:[#allocation3 + $0x1d0] sm:$0xff]
    %v7908 = vld [vmem:[#allocation3 + $0x1d8] sm:$0xff]
    %v7909 = vld [vmem:[#allocation3 + $0x1e0] sm:$0xff]
    %v7910 = vld [vmem:[#allocation3 + $0x1e8] sm:$0xff]
    %v7911 = vld [vmem:[#allocation3 + $0x1f0] sm:$0xff]
    %v7912 = vld [vmem:[#allocation3 + $0x1f8] sm:$0xff]
    %v7913 = vld [vmem:[#allocation3 + $0x200] sm:$0xff]
    %v7914 = vld [vmem:[#allocation3 + $0x208] sm:$0xff]
    %v7915 = vld [vmem:[#allocation5] sm:$0xf]
    %v7916 = vld [vmem:[#allocation5 + $0x4] sm:$0xf]
    %v7917 = vld [vmem:[#allocation5 + $0x8] sm:$0xf]
    %v7918 = vld [vmem:[#allocation5 + $0xc] sm:$0xf]
    %v7919 = vld [vmem:[#allocation5 + $0x10] sm:$0xf]
    %v7920 = vld [vmem:[#allocation5 + $0x14] sm:$0xf]
    %v7921 = vld [vmem:[#allocation5 + $0x18] sm:$0xf]
    %v7922 = vld [vmem:[#allocation5 + $0x1c] sm:$0xf]
    %v7923 = vld [vmem:[#allocation5 + $0x20] sm:$0xf]
    %v7924 = vld [vmem:[#allocation5 + $0x24] sm:$0xf]
    %v7925 = vld [vmem:[#allocation5 + $0x28] sm:$0xf]
    %v7926 = vld [vmem:[#allocation5 + $0x2c] sm:$0xf]
    %v7927 = vld [vmem:[#allocation5 + $0x30] sm:$0xf]
    %v7928 = vld [vmem:[#allocation5 + $0x34] sm:$0xf]
    %v7929 = vld [vmem:[#allocation5 + $0x38] sm:$0xf]
    %v7930 = vld [vmem:[#allocation5 + $0x3c] sm:$0xf]
    %v7931 = vld [vmem:[#allocation5 + $0x40] sm:$0xf]
    %v7932 = vld [vmem:[#allocation5 + $0x44] sm:$0xf]
    %v7933 = vld [vmem:[#allocation5 + $0x48] sm:$0xf]
    %v7934 = vld [vmem:[#allocation5 + $0x4c] sm:$0xf]
    %v7935 = vld [vmem:[#allocation5 + $0x50] sm:$0xf]
    %v7936 = vld [vmem:[#allocation5 + $0x54] sm:$0xf]
    %v7937 = vld [vmem:[#allocation5 + $0x58] sm:$0xf]
    %v7938 = vld [vmem:[#allocation5 + $0x5c] sm:$0xf]
    %v7939 = vld [vmem:[#allocation5 + $0x60] sm:$0xf]
    %v7940 = vld [vmem:[#allocation5 + $0x64] sm:$0xf]
    %v7941 = vld [vmem:[#allocation5 + $0x68] sm:$0xf]
    %v7942 = vld [vmem:[#allocation5 + $0x6c] sm:$0xf]
    %v7943 = vld [vmem:[#allocation5 + $0x70] sm:$0xf]
    %v7944 = vld [vmem:[#allocation5 + $0x74] sm:$0xf]
    %v7945 = vld [vmem:[#allocation5 + $0x78] sm:$0xf]
    %v7946 = vld [vmem:[#allocation5 + $0x7c] sm:$0xf]
    %s7947 = scalar_lea.vmem [#allocation5], 128
    %v7948 = vld [vmem:[%s7947] sm:$0xf]
    %v7949 = vld [vmem:[%s7947 + $0x4] sm:$0xf]
    %v7950 = vld [vmem:[%s7947 + $0x8] sm:$0xf]
    %v7951 = vld [vmem:[%s7947 + $0xc] sm:$0xf]
    %v7952 = vld [vmem:[%s7947 + $0x10] sm:$0xf]
    %v7953 = vld [vmem:[%s7947 + $0x14] sm:$0xf]
    %v7954 = vld [vmem:[%s7947 + $0x18] sm:$0xf]
    %v7955 = vld [vmem:[%s7947 + $0x1c] sm:$0xf]
    %v7956 = vld [vmem:[%s7947 + $0x20] sm:$0xf]
    %v7957 = vld [vmem:[%s7947 + $0x24] sm:$0xf]
    %v7958 = vld [vmem:[%s7947 + $0x28] sm:$0xf]
    %v7959 = vld [vmem:[%s7947 + $0x2c] sm:$0xf]
    %v7960 = vld [vmem:[%s7947 + $0x30] sm:$0xf]
    %v7961 = vld [vmem:[%s7947 + $0x34] sm:$0xf]
    %v7962 = vld [vmem:[%s7947 + $0x38] sm:$0xf]
    %v7963 = vld [vmem:[%s7947 + $0x3c] sm:$0xf]
    %v7964 = vld [vmem:[%s7947 + $0x40] sm:$0xf]
    %v7965 = vld [vmem:[%s7947 + $0x44] sm:$0xf]
    %v7966 = vld [vmem:[%s7947 + $0x48] sm:$0xf]
    %v7967 = vld [vmem:[%s7947 + $0x4c] sm:$0xf]
    %v7968 = vld [vmem:[%s7947 + $0x50] sm:$0xf]
    %v7969 = vld [vmem:[%s7947 + $0x54] sm:$0xf]
    %v7970 = vld [vmem:[%s7947 + $0x58] sm:$0xf]
    %v7971 = vld [vmem:[%s7947 + $0x5c] sm:$0xf]
    %v7972 = vld [vmem:[%s7947 + $0x60] sm:$0xf]
    %v7973 = vld [vmem:[%s7947 + $0x64] sm:$0xf]
    %v7974 = vld [vmem:[%s7947 + $0x68] sm:$0xf]
    %v7975 = vld [vmem:[%s7947 + $0x6c] sm:$0xf]
    %v7976 = vld [vmem:[%s7947 + $0x70] sm:$0xf]
    %v7977 = vld [vmem:[%s7947 + $0x74] sm:$0xf]
    %v7978 = vld [vmem:[%s7947 + $0x78] sm:$0xf]
    %v7979 = vld [vmem:[%s7947 + $0x7c] sm:$0xf]
    %v8044 = vunpack.c.l.b16 %v7851
    %v8045 = vunpack.c.h.b16 %v7851
    %v8046 = vunpack.c.l.b16 %v7852
    %v8047 = vunpack.c.h.b16 %v7852
    %v8048 = vunpack.c.l.b16 %v7853
    %v8049 = vunpack.c.h.b16 %v7853
    %v8050 = vunpack.c.l.b16 %v7854
    %v8051 = vunpack.c.h.b16 %v7854
    %v8052 = vunpack.c.l.b16 %v7855
    %v8053 = vunpack.c.h.b16 %v7855
    %v8054 = vunpack.c.l.b16 %v7856
    %v8055 = vunpack.c.h.b16 %v7856
    %v8056 = vunpack.c.l.b16 %v7857
    %v8057 = vunpack.c.h.b16 %v7857
    %v8058 = vunpack.c.l.b16 %v7858
    %v8059 = vunpack.c.h.b16 %v7858
    %v8060 = vunpack.c.l.b16 %v7859
    %v8061 = vunpack.c.h.b16 %v7859
    %v8062 = vunpack.c.l.b16 %v7860
    %v8063 = vunpack.c.h.b16 %v7860
    %v8064 = vunpack.c.l.b16 %v7861
    %v8065 = vunpack.c.h.b16 %v7861
    %v8066 = vunpack.c.l.b16 %v7862
    %v8067 = vunpack.c.h.b16 %v7862
    %v8068 = vunpack.c.l.b16 %v7863
    %v8069 = vunpack.c.h.b16 %v7863
    %v8070 = vunpack.c.l.b16 %v7864
    %v8071 = vunpack.c.h.b16 %v7864
    %v8072 = vunpack.c.l.b16 %v7865
    %v8073 = vunpack.c.h.b16 %v7865
    %v8074 = vunpack.c.l.b16 %v7866
    %v8075 = vunpack.c.h.b16 %v7866
    %v8076 = vunpack.c.l.b16 %v7867
    %v8077 = vunpack.c.h.b16 %v7867
    %v8078 = vunpack.c.l.b16 %v7868
    %v8079 = vunpack.c.h.b16 %v7868
    %v8080 = vunpack.c.l.b16 %v7869
    %v8081 = vunpack.c.h.b16 %v7869
    %v8082 = vunpack.c.l.b16 %v7870
    %v8083 = vunpack.c.h.b16 %v7870
    %v8084 = vunpack.c.l.b16 %v7871
    %v8085 = vunpack.c.h.b16 %v7871
    %v8086 = vunpack.c.l.b16 %v7872
    %v8087 = vunpack.c.h.b16 %v7872
    %v8088 = vunpack.c.l.b16 %v7873
    %v8089 = vunpack.c.h.b16 %v7873
    %v8090 = vunpack.c.l.b16 %v7874
    %v8091 = vunpack.c.h.b16 %v7874
    %v8092 = vunpack.c.l.b16 %v7875
    %v8093 = vunpack.c.h.b16 %v7875
    %v8094 = vunpack.c.l.b16 %v7876
    %v8095 = vunpack.c.h.b16 %v7876
    %v8096 = vunpack.c.l.b16 %v7877
    %v8097 = vunpack.c.h.b16 %v7877
    %v8098 = vunpack.c.l.b16 %v7878
    %v8099 = vunpack.c.h.b16 %v7878
    %v8100 = vunpack.c.l.b16 %v7879
    %v8101 = vunpack.c.h.b16 %v7879
    %v8102 = vunpack.c.l.b16 %v7880
    %v8103 = vunpack.c.h.b16 %v7880
    %v8104 = vunpack.c.l.b16 %v7881
    %v8105 = vunpack.c.h.b16 %v7881
    %v8106 = vunpack.c.l.b16 %v7882
    %v8107 = vunpack.c.h.b16 %v7882
    %v8108 = vunpack.c.l.b16 %v7883
    %v8109 = vunpack.c.h.b16 %v7883
    %v8110 = vunpack.c.l.b16 %v7884
    %v8111 = vunpack.c.h.b16 %v7884
    %v8112 = vunpack.c.l.b16 %v7885
    %v8113 = vunpack.c.h.b16 %v7885
    %v8114 = vunpack.c.l.b16 %v7886
    %v8115 = vunpack.c.h.b16 %v7886
    %v8116 = vunpack.c.l.b16 %v7887
    %v8117 = vunpack.c.h.b16 %v7887
    %v8118 = vunpack.c.l.b16 %v7888
    %v8119 = vunpack.c.h.b16 %v7888
    %v8120 = vunpack.c.l.b16 %v7889
    %v8121 = vunpack.c.h.b16 %v7889
    %v8122 = vunpack.c.l.b16 %v7890
    %v8123 = vunpack.c.h.b16 %v7890
    %v8124 = vunpack.c.l.b16 %v7891
    %v8125 = vunpack.c.h.b16 %v7891
    %v8126 = vunpack.c.l.b16 %v7892
    %v8127 = vunpack.c.h.b16 %v7892
    %v8128 = vunpack.c.l.b16 %v7893
    %v8129 = vunpack.c.h.b16 %v7893
    %v8130 = vunpack.c.l.b16 %v7894
    %v8131 = vunpack.c.h.b16 %v7894
    %v8132 = vunpack.c.l.b16 %v7895
    %v8133 = vunpack.c.h.b16 %v7895
    %v8134 = vunpack.c.l.b16 %v7896
    %v8135 = vunpack.c.h.b16 %v7896
    %v8136 = vunpack.c.l.b16 %v7897
    %v8137 = vunpack.c.h.b16 %v7897
    %v8138 = vunpack.c.l.b16 %v7898
    %v8139 = vunpack.c.h.b16 %v7898
    %v8140 = vunpack.c.l.b16 %v7899
    %v8141 = vunpack.c.h.b16 %v7899
    %v8142 = vunpack.c.l.b16 %v7900
    %v8143 = vunpack.c.h.b16 %v7900
    %v8144 = vunpack.c.l.b16 %v7901
    %v8145 = vunpack.c.h.b16 %v7901
    %v8146 = vunpack.c.l.b16 %v7902
    %v8147 = vunpack.c.h.b16 %v7902
    %v8148 = vunpack.c.l.b16 %v7903
    %v8149 = vunpack.c.h.b16 %v7903
    %v8150 = vunpack.c.l.b16 %v7904
    %v8151 = vunpack.c.h.b16 %v7904
    %v8152 = vunpack.c.l.b16 %v7905
    %v8153 = vunpack.c.h.b16 %v7905
    %v8154 = vunpack.c.l.b16 %v7906
    %v8155 = vunpack.c.h.b16 %v7906
    %v8156 = vunpack.c.l.b16 %v7907
    %v8157 = vunpack.c.h.b16 %v7907
    %v8158 = vunpack.c.l.b16 %v7908
    %v8159 = vunpack.c.h.b16 %v7908
    %v8160 = vunpack.c.l.b16 %v7909
    %v8161 = vunpack.c.h.b16 %v7909
    %v8162 = vunpack.c.l.b16 %v7910
    %v8163 = vunpack.c.h.b16 %v7910
    %v8164 = vunpack.c.l.b16 %v7911
    %v8165 = vunpack.c.h.b16 %v7911
    %v8166 = vunpack.c.l.b16 %v7912
    %v8167 = vunpack.c.h.b16 %v7912
    %v8168 = vunpack.c.l.b16 %v7913
    %v8169 = vunpack.c.h.b16 %v7913
    %v8170 = vunpack.c.l.b16 %v7914
    %v8171 = vunpack.c.h.b16 %v7914
    %v8172 = vpack.c.b16 %v8046, %v8044
    %v8173 = vpack.c.b16 %v8047, %v8045
    %v8174 = vpack.c.b16 %v8050, %v8048
    %v8175 = vpack.c.b16 %v8051, %v8049
    %v8176 = vpack.c.b16 %v8054, %v8052
    %v8177 = vpack.c.b16 %v8055, %v8053
    %v8178 = vpack.c.b16 %v8058, %v8056
    %v8179 = vpack.c.b16 %v8059, %v8057
    %v8180 = vpack.c.b16 %v8062, %v8060
    %v8181 = vpack.c.b16 %v8063, %v8061
    %v8182 = vpack.c.b16 %v8066, %v8064
    %v8183 = vpack.c.b16 %v8067, %v8065
    %v8184 = vpack.c.b16 %v8070, %v8068
    %v8185 = vpack.c.b16 %v8071, %v8069
    %v8186 = vpack.c.b16 %v8074, %v8072
    %v8187 = vpack.c.b16 %v8075, %v8073
    %v8188 = vpack.c.b16 %v8078, %v8076
    %v8189 = vpack.c.b16 %v8079, %v8077
    %v8190 = vpack.c.b16 %v8082, %v8080
    %v8191 = vpack.c.b16 %v8083, %v8081
    %v8192 = vpack.c.b16 %v8086, %v8084
    %v8193 = vpack.c.b16 %v8087, %v8085
    %v8194 = vpack.c.b16 %v8090, %v8088
    %v8195 = vpack.c.b16 %v8091, %v8089
    %v8196 = vpack.c.b16 %v8094, %v8092
    %v8197 = vpack.c.b16 %v8095, %v8093
    %v8198 = vpack.c.b16 %v8098, %v8096
    %v8199 = vpack.c.b16 %v8099, %v8097
    %v8200 = vpack.c.b16 %v8102, %v8100
    %v8201 = vpack.c.b16 %v8103, %v8101
    %v8202 = vpack.c.b16 %v8106, %v8104
    %v8203 = vpack.c.b16 %v8107, %v8105
    %v8204 = vpack.c.b16 %v8110, %v8108
    %v8205 = vpack.c.b16 %v8111, %v8109
    %v8206 = vpack.c.b16 %v8114, %v8112
    %v8207 = vpack.c.b16 %v8115, %v8113
    %v8208 = vpack.c.b16 %v8118, %v8116
    %v8209 = vpack.c.b16 %v8119, %v8117
    %v8210 = vpack.c.b16 %v8122, %v8120
    %v8211 = vpack.c.b16 %v8123, %v8121
    %v8212 = vpack.c.b16 %v8126, %v8124
    %v8213 = vpack.c.b16 %v8127, %v8125
    %v8214 = vpack.c.b16 %v8130, %v8128
    %v8215 = vpack.c.b16 %v8131, %v8129
    %v8216 = vpack.c.b16 %v8134, %v8132
    %v8217 = vpack.c.b16 %v8135, %v8133
    %v8218 = vpack.c.b16 %v8138, %v8136
    %v8219 = vpack.c.b16 %v8139, %v8137
    %v8220 = vpack.c.b16 %v8142, %v8140
    %v8221 = vpack.c.b16 %v8143, %v8141
    %v8222 = vpack.c.b16 %v8146, %v8144
    %v8223 = vpack.c.b16 %v8147, %v8145
    %v8224 = vpack.c.b16 %v8150, %v8148
    %v8225 = vpack.c.b16 %v8151, %v8149
    %v8226 = vpack.c.b16 %v8154, %v8152
    %v8227 = vpack.c.b16 %v8155, %v8153
    %v8228 = vpack.c.b16 %v8158, %v8156
    %v8229 = vpack.c.b16 %v8159, %v8157
    %v8230 = vpack.c.b16 %v8162, %v8160
    %v8231 = vpack.c.b16 %v8163, %v8161
    %v8232 = vpack.c.b16 %v8166, %v8164
    %v8233 = vpack.c.b16 %v8167, %v8165
    %v8234 = vpack.c.b16 %v8170, %v8168
    %v8235 = vpack.c.b16 %v8171, %v8169
    %v8332 = vunpack.c.l.b16 %v7948
    %v8333 = vunpack.c.l.b16 %v7949
    %v8334 = vunpack.c.l.b16 %v7950
    %v8335 = vunpack.c.l.b16 %v7951
    %v8336 = vunpack.c.l.b16 %v7952
    %v8337 = vunpack.c.l.b16 %v7953
    %v8338 = vunpack.c.l.b16 %v7954
    %v8339 = vunpack.c.l.b16 %v7955
    %v8340 = vunpack.c.l.b16 %v7956
    %v8341 = vunpack.c.l.b16 %v7957
    %v8342 = vunpack.c.l.b16 %v7958
    %v8343 = vunpack.c.l.b16 %v7959
    %v8344 = vunpack.c.l.b16 %v7960
    %v8345 = vunpack.c.l.b16 %v7961
    %v8346 = vunpack.c.l.b16 %v7962
    %v8347 = vunpack.c.l.b16 %v7963
    %v8348 = vunpack.c.l.b16 %v7964
    %v8349 = vunpack.c.l.b16 %v7965
    %v8350 = vunpack.c.l.b16 %v7966
    %v8351 = vunpack.c.l.b16 %v7967
    %v8352 = vunpack.c.l.b16 %v7968
    %v8353 = vunpack.c.l.b16 %v7969
    %v8354 = vunpack.c.l.b16 %v7970
    %v8355 = vunpack.c.l.b16 %v7971
    %v8356 = vunpack.c.l.b16 %v7972
    %v8357 = vunpack.c.l.b16 %v7973
    %v8358 = vunpack.c.l.b16 %v7974
    %v8359 = vunpack.c.l.b16 %v7975
    %v8360 = vunpack.c.l.b16 %v7976
    %v8361 = vunpack.c.l.b16 %v7977
    %v8362 = vunpack.c.l.b16 %v7978
    %v8363 = vunpack.c.l.b16 %v7979
    %v8364 = vpack.c.b16 %v8333, %v8332
    %v8365 = vpack.c.b16 %v8335, %v8334
    %v8366 = vpack.c.b16 %v8337, %v8336
    %v8367 = vpack.c.b16 %v8339, %v8338
    %v8368 = vpack.c.b16 %v8341, %v8340
    %v8369 = vpack.c.b16 %v8343, %v8342
    %v8370 = vpack.c.b16 %v8345, %v8344
    %v8371 = vpack.c.b16 %v8347, %v8346
    %v8372 = vpack.c.b16 %v8349, %v8348
    %v8373 = vpack.c.b16 %v8351, %v8350
    %v8374 = vpack.c.b16 %v8353, %v8352
    %v8375 = vpack.c.b16 %v8355, %v8354
    %v8376 = vpack.c.b16 %v8357, %v8356
    %v8377 = vpack.c.b16 %v8359, %v8358
    %v8378 = vpack.c.b16 %v8361, %v8360
    %v8379 = vpack.c.b16 %v8363, %v8362
    %8396 = vmatpush.bf16.msra.mxu0 %v8371
    %8397 = vmatpush.bf16.msra.mxu0 %v8370
    %8398 = vmatpush.bf16.msra.mxu0 %v8369
    %8399 = vmatpush.bf16.msra.mxu0 %v8368
    %8400 = vmatpush.bf16.msra.mxu0 %v8367
    %8401 = vmatpush.bf16.msra.mxu0 %v8366
    %8402 = vmatpush.bf16.msra.mxu0 %v8365
    %8403 = vmatpush.bf16.msra.mxu0 %v8364
    %8404 = vmatmul.bf16.gmra.mxu0 %v8172
    %v8405 = vpop.f32.mrf.mxu0
    %v8406 = vadd.f32 0.0, %v8405
    %v8407 = vpop.f32.mrf.mxu0
    %v8408 = vadd.f32 0.0, %v8407
    %8409 = vmatmul.bf16.gmra.mxu0 %v8174
    %v8410 = vpop.f32.mrf.mxu0
    %v8411 = vadd.f32 0.0, %v8410
    %v8412 = vpop.f32.mrf.mxu0
    %v8413 = vadd.f32 0.0, %v8412
    %8414 = vmatmul.bf16.gmra.mxu0 %v8176
    %v8415 = vpop.f32.mrf.mxu0
    %v8416 = vadd.f32 0.0, %v8415
    %v8417 = vpop.f32.mrf.mxu0
    %v8418 = vadd.f32 0.0, %v8417
    %8419 = vmatmul.bf16.gmra.mxu0 %v8178
    %v8420 = vpop.f32.mrf.mxu0
    %v8421 = vadd.f32 0.0, %v8420
    %v8422 = vpop.f32.mrf.mxu0
    %v8423 = vadd.f32 0.0, %v8422
    %8424 = vmatmul.bf16.gmra.mxu0 %v8180
    %v8425 = vpop.f32.mrf.mxu0
    %v8426 = vadd.f32 0.0, %v8425
    %v8427 = vpop.f32.mrf.mxu0
    %v8428 = vadd.f32 0.0, %v8427
    %8429 = vmatmul.bf16.gmra.mxu0 %v8182
    %v8430 = vpop.f32.mrf.mxu0
    %v8431 = vadd.f32 0.0, %v8430
    %v8432 = vpop.f32.mrf.mxu0
    %v8433 = vadd.f32 0.0, %v8432
    %8434 = vmatmul.bf16.gmra.mxu0 %v8184
    %v8435 = vpop.f32.mrf.mxu0
    %v8436 = vadd.f32 0.0, %v8435
    %v8437 = vpop.f32.mrf.mxu0
    %v8438 = vadd.f32 0.0, %v8437
    %8439 = vmatmul.bf16.gmra.mxu0 %v8186
    %v8440 = vpop.f32.mrf.mxu0
    %v8441 = vadd.f32 0.0, %v8440
    %v8442 = vpop.f32.mrf.mxu0
    %v8443 = vadd.f32 0.0, %v8442
    %8444 = vmatmul.bf16.gmra.mxu0 %v8188
    %v8445 = vpop.f32.mrf.mxu0
    %v8446 = vadd.f32 0.0, %v8445
    %v8447 = vpop.f32.mrf.mxu0
    %v8448 = vadd.f32 0.0, %v8447
    %8449 = vmatmul.bf16.gmra.mxu0 %v8190
    %v8450 = vpop.f32.mrf.mxu0
    %v8451 = vadd.f32 0.0, %v8450
    %v8452 = vpop.f32.mrf.mxu0
    %v8453 = vadd.f32 0.0, %v8452
    %8454 = vmatmul.bf16.gmra.mxu0 %v8192
    %v8455 = vpop.f32.mrf.mxu0
    %v8456 = vadd.f32 0.0, %v8455
    %v8457 = vpop.f32.mrf.mxu0
    %v8458 = vadd.f32 0.0, %v8457
    %8459 = vmatmul.bf16.gmra.mxu0 %v8194
    %v8460 = vpop.f32.mrf.mxu0
    %v8461 = vadd.f32 0.0, %v8460
    %v8462 = vpop.f32.mrf.mxu0
    %v8463 = vadd.f32 0.0, %v8462
    %8464 = vmatmul.bf16.gmra.mxu0 %v8196
    %v8465 = vpop.f32.mrf.mxu0
    %v8466 = vadd.f32 0.0, %v8465
    %v8467 = vpop.f32.mrf.mxu0
    %v8468 = vadd.f32 0.0, %v8467
    %8469 = vmatmul.bf16.gmra.mxu0 %v8198
    %v8470 = vpop.f32.mrf.mxu0
    %v8471 = vadd.f32 0.0, %v8470
    %v8472 = vpop.f32.mrf.mxu0
    %v8473 = vadd.f32 0.0, %v8472
    %8474 = vmatmul.bf16.gmra.mxu0 %v8200
    %v8475 = vpop.f32.mrf.mxu0
    %v8476 = vadd.f32 0.0, %v8475
    %v8477 = vpop.f32.mrf.mxu0
    %v8478 = vadd.f32 0.0, %v8477
    %8479 = vmatmul.bf16.gmra.mxu0 %v8202
    %v8480 = vpop.f32.mrf.mxu0
    %v8481 = vadd.f32 0.0, %v8480
    %v8482 = vpop.f32.mrf.mxu0
    %v8483 = vadd.f32 0.0, %v8482
    %8484 = vmatmul.bf16.gmra.mxu0 %v8204
    %v8485 = vpop.f32.mrf.mxu0
    %v8486 = vadd.f32 0.0, %v8485
    %v8487 = vpop.f32.mrf.mxu0
    %v8488 = vadd.f32 0.0, %v8487
    %8489 = vmatmul.bf16.gmra.mxu0 %v8206
    %v8490 = vpop.f32.mrf.mxu0
    %v8491 = vadd.f32 0.0, %v8490
    %v8492 = vpop.f32.mrf.mxu0
    %v8493 = vadd.f32 0.0, %v8492
    %8494 = vmatmul.bf16.gmra.mxu0 %v8208
    %v8495 = vpop.f32.mrf.mxu0
    %v8496 = vadd.f32 0.0, %v8495
    %v8497 = vpop.f32.mrf.mxu0
    %v8498 = vadd.f32 0.0, %v8497
    %8499 = vmatmul.bf16.gmra.mxu0 %v8210
    %v8500 = vpop.f32.mrf.mxu0
    %v8501 = vadd.f32 0.0, %v8500
    %v8502 = vpop.f32.mrf.mxu0
    %v8503 = vadd.f32 0.0, %v8502
    %8504 = vmatmul.bf16.gmra.mxu0 %v8212
    %v8505 = vpop.f32.mrf.mxu0
    %v8506 = vadd.f32 0.0, %v8505
    %v8507 = vpop.f32.mrf.mxu0
    %v8508 = vadd.f32 0.0, %v8507
    %8509 = vmatmul.bf16.gmra.mxu0 %v8214
    %v8510 = vpop.f32.mrf.mxu0
    %v8511 = vadd.f32 0.0, %v8510
    %v8512 = vpop.f32.mrf.mxu0
    %v8513 = vadd.f32 0.0, %v8512
    %8514 = vmatmul.bf16.gmra.mxu0 %v8216
    %v8515 = vpop.f32.mrf.mxu0
    %v8516 = vadd.f32 0.0, %v8515
    %v8517 = vpop.f32.mrf.mxu0
    %v8518 = vadd.f32 0.0, %v8517
    %8519 = vmatmul.bf16.gmra.mxu0 %v8218
    %v8520 = vpop.f32.mrf.mxu0
    %v8521 = vadd.f32 0.0, %v8520
    %v8522 = vpop.f32.mrf.mxu0
    %v8523 = vadd.f32 0.0, %v8522
    %8524 = vmatmul.bf16.gmra.mxu0 %v8220
    %v8525 = vpop.f32.mrf.mxu0
    %v8526 = vadd.f32 0.0, %v8525
    %v8527 = vpop.f32.mrf.mxu0
    %v8528 = vadd.f32 0.0, %v8527
    %8529 = vmatmul.bf16.gmra.mxu0 %v8222
    %v8530 = vpop.f32.mrf.mxu0
    %v8531 = vadd.f32 0.0, %v8530
    %v8532 = vpop.f32.mrf.mxu0
    %v8533 = vadd.f32 0.0, %v8532
    %8534 = vmatmul.bf16.gmra.mxu0 %v8224
    %v8535 = vpop.f32.mrf.mxu0
    %v8536 = vadd.f32 0.0, %v8535
    %v8537 = vpop.f32.mrf.mxu0
    %v8538 = vadd.f32 0.0, %v8537
    %8539 = vmatmul.bf16.gmra.mxu0 %v8226
    %v8540 = vpop.f32.mrf.mxu0
    %v8541 = vadd.f32 0.0, %v8540
    %v8542 = vpop.f32.mrf.mxu0
    %v8543 = vadd.f32 0.0, %v8542
    %8544 = vmatmul.bf16.gmra.mxu0 %v8228
    %v8545 = vpop.f32.mrf.mxu0
    %v8546 = vadd.f32 0.0, %v8545
    %v8547 = vpop.f32.mrf.mxu0
    %v8548 = vadd.f32 0.0, %v8547
    %8549 = vmatmul.bf16.gmra.mxu0 %v8230
    %v8550 = vpop.f32.mrf.mxu0
    %v8551 = vadd.f32 0.0, %v8550
    %v8552 = vpop.f32.mrf.mxu0
    %v8553 = vadd.f32 0.0, %v8552
    %8554 = vmatmul.bf16.gmra.mxu0 %v8232
    %v8555 = vpop.f32.mrf.mxu0
    %v8556 = vadd.f32 0.0, %v8555
    %v8557 = vpop.f32.mrf.mxu0
    %v8558 = vadd.f32 0.0, %v8557
    %8559 = vmatmul.bf16.gmra.mxu0 %v8234
    %v8560 = vpop.f32.mrf.mxu0
    %v8561 = vadd.f32 0.0, %v8560
    %v8562 = vpop.f32.mrf.mxu0
    %v8563 = vadd.f32 0.0, %v8562
    %8564 = vdwg.mxu0
    %8565 = vmatpush.bf16.msra.mxu0 %v8379
    %8566 = vmatpush.bf16.msra.mxu0 %v8378
    %8567 = vmatpush.bf16.msra.mxu0 %v8377
    %8568 = vmatpush.bf16.msra.mxu0 %v8376
    %8569 = vmatpush.bf16.msra.mxu0 %v8375
    %8570 = vmatpush.bf16.msra.mxu0 %v8374
    %8571 = vmatpush.bf16.msra.mxu0 %v8373
    %8572 = vmatpush.bf16.msra.mxu0 %v8372
    %8573 = vmatmul.bf16.gmra.mxu0 %v8173
    %v8574 = vpop.f32.mrf.mxu0
    %v8575 = vadd.f32 %v8406, %v8574
    %v8576 = vpop.f32.mrf.mxu0
    %v8577 = vadd.f32 %v8408, %v8576
    %8578 = vmatmul.bf16.gmra.mxu0 %v8175
    %v8579 = vpop.f32.mrf.mxu0
    %v8580 = vadd.f32 %v8411, %v8579
    %v8581 = vpop.f32.mrf.mxu0
    %v8582 = vadd.f32 %v8413, %v8581
    %8583 = vmatmul.bf16.gmra.mxu0 %v8177
    %v8584 = vpop.f32.mrf.mxu0
    %v8585 = vadd.f32 %v8416, %v8584
    %v8586 = vpop.f32.mrf.mxu0
    %v8587 = vadd.f32 %v8418, %v8586
    %8588 = vmatmul.bf16.gmra.mxu0 %v8179
    %v8589 = vpop.f32.mrf.mxu0
    %v8590 = vadd.f32 %v8421, %v8589
    %v8591 = vpop.f32.mrf.mxu0
    %v8592 = vadd.f32 %v8423, %v8591
    %8593 = vmatmul.bf16.gmra.mxu0 %v8181
    %v8594 = vpop.f32.mrf.mxu0
    %v8595 = vadd.f32 %v8426, %v8594
    %v8596 = vpop.f32.mrf.mxu0
    %v8597 = vadd.f32 %v8428, %v8596
    %8598 = vmatmul.bf16.gmra.mxu0 %v8183
    %v8599 = vpop.f32.mrf.mxu0
    %v8600 = vadd.f32 %v8431, %v8599
    %v8601 = vpop.f32.mrf.mxu0
    %v8602 = vadd.f32 %v8433, %v8601
    %8603 = vmatmul.bf16.gmra.mxu0 %v8185
    %v8604 = vpop.f32.mrf.mxu0
    %v8605 = vadd.f32 %v8436, %v8604
    %v8606 = vpop.f32.mrf.mxu0
    %v8607 = vadd.f32 %v8438, %v8606
    %8608 = vmatmul.bf16.gmra.mxu0 %v8187
    %v8609 = vpop.f32.mrf.mxu0
    %v8610 = vadd.f32 %v8441, %v8609
    %v8611 = vpop.f32.mrf.mxu0
    %v8612 = vadd.f32 %v8443, %v8611
    %8613 = vmatmul.bf16.gmra.mxu0 %v8189
    %v8614 = vpop.f32.mrf.mxu0
    %v8615 = vadd.f32 %v8446, %v8614
    %v8616 = vpop.f32.mrf.mxu0
    %v8617 = vadd.f32 %v8448, %v8616
    %8618 = vmatmul.bf16.gmra.mxu0 %v8191
    %v8619 = vpop.f32.mrf.mxu0
    %v8620 = vadd.f32 %v8451, %v8619
    %v8621 = vpop.f32.mrf.mxu0
    %v8622 = vadd.f32 %v8453, %v8621
    %8623 = vmatmul.bf16.gmra.mxu0 %v8193
    %v8624 = vpop.f32.mrf.mxu0
    %v8625 = vadd.f32 %v8456, %v8624
    %v8626 = vpop.f32.mrf.mxu0
    %v8627 = vadd.f32 %v8458, %v8626
    %8628 = vmatmul.bf16.gmra.mxu0 %v8195
    %v8629 = vpop.f32.mrf.mxu0
    %v8630 = vadd.f32 %v8461, %v8629
    %v8631 = vpop.f32.mrf.mxu0
    %v8632 = vadd.f32 %v8463, %v8631
    %8633 = vmatmul.bf16.gmra.mxu0 %v8197
    %v8634 = vpop.f32.mrf.mxu0
    %v8635 = vadd.f32 %v8466, %v8634
    %v8636 = vpop.f32.mrf.mxu0
    %v8637 = vadd.f32 %v8468, %v8636
    %8638 = vmatmul.bf16.gmra.mxu0 %v8199
    %v8639 = vpop.f32.mrf.mxu0
    %v8640 = vadd.f32 %v8471, %v8639
    %v8641 = vpop.f32.mrf.mxu0
    %v8642 = vadd.f32 %v8473, %v8641
    %8643 = vmatmul.bf16.gmra.mxu0 %v8201
    %v8644 = vpop.f32.mrf.mxu0
    %v8645 = vadd.f32 %v8476, %v8644
    %v8646 = vpop.f32.mrf.mxu0
    %v8647 = vadd.f32 %v8478, %v8646
    %8648 = vmatmul.bf16.gmra.mxu0 %v8203
    %v8649 = vpop.f32.mrf.mxu0
    %v8650 = vadd.f32 %v8481, %v8649
    %v8651 = vpop.f32.mrf.mxu0
    %v8652 = vadd.f32 %v8483, %v8651
    %8653 = vmatmul.bf16.gmra.mxu0 %v8205
    %v8654 = vpop.f32.mrf.mxu0
    %v8655 = vadd.f32 %v8486, %v8654
    %v8656 = vpop.f32.mrf.mxu0
    %v8657 = vadd.f32 %v8488, %v8656
    %8658 = vmatmul.bf16.gmra.mxu0 %v8207
    %v8659 = vpop.f32.mrf.mxu0
    %v8660 = vadd.f32 %v8491, %v8659
    %v8661 = vpop.f32.mrf.mxu0
    %v8662 = vadd.f32 %v8493, %v8661
    %8663 = vmatmul.bf16.gmra.mxu0 %v8209
    %v8664 = vpop.f32.mrf.mxu0
    %v8665 = vadd.f32 %v8496, %v8664
    %v8666 = vpop.f32.mrf.mxu0
    %v8667 = vadd.f32 %v8498, %v8666
    %8668 = vmatmul.bf16.gmra.mxu0 %v8211
    %v8669 = vpop.f32.mrf.mxu0
    %v8670 = vadd.f32 %v8501, %v8669
    %v8671 = vpop.f32.mrf.mxu0
    %v8672 = vadd.f32 %v8503, %v8671
    %8673 = vmatmul.bf16.gmra.mxu0 %v8213
    %v8674 = vpop.f32.mrf.mxu0
    %v8675 = vadd.f32 %v8506, %v8674
    %v8676 = vpop.f32.mrf.mxu0
    %v8677 = vadd.f32 %v8508, %v8676
    %8678 = vmatmul.bf16.gmra.mxu0 %v8215
    %v8679 = vpop.f32.mrf.mxu0
    %v8680 = vadd.f32 %v8511, %v8679
    %v8681 = vpop.f32.mrf.mxu0
    %v8682 = vadd.f32 %v8513, %v8681
    %8683 = vmatmul.bf16.gmra.mxu0 %v8217
    %v8684 = vpop.f32.mrf.mxu0
    %v8685 = vadd.f32 %v8516, %v8684
    %v8686 = vpop.f32.mrf.mxu0
    %v8687 = vadd.f32 %v8518, %v8686
    %8688 = vmatmul.bf16.gmra.mxu0 %v8219
    %v8689 = vpop.f32.mrf.mxu0
    %v8690 = vadd.f32 %v8521, %v8689
    %v8691 = vpop.f32.mrf.mxu0
    %v8692 = vadd.f32 %v8523, %v8691
    %8693 = vmatmul.bf16.gmra.mxu0 %v8221
    %v8694 = vpop.f32.mrf.mxu0
    %v8695 = vadd.f32 %v8526, %v8694
    %v8696 = vpop.f32.mrf.mxu0
    %v8697 = vadd.f32 %v8528, %v8696
    %8698 = vmatmul.bf16.gmra.mxu0 %v8223
    %v8699 = vpop.f32.mrf.mxu0
    %v8700 = vadd.f32 %v8531, %v8699
    %v8701 = vpop.f32.mrf.mxu0
    %v8702 = vadd.f32 %v8533, %v8701
    %8703 = vmatmul.bf16.gmra.mxu0 %v8225
    %v8704 = vpop.f32.mrf.mxu0
    %v8705 = vadd.f32 %v8536, %v8704
    %v8706 = vpop.f32.mrf.mxu0
    %v8707 = vadd.f32 %v8538, %v8706
    %8708 = vmatmul.bf16.gmra.mxu0 %v8227
    %v8709 = vpop.f32.mrf.mxu0
    %v8710 = vadd.f32 %v8541, %v8709
    %v8711 = vpop.f32.mrf.mxu0
    %v8712 = vadd.f32 %v8543, %v8711
    %8713 = vmatmul.bf16.gmra.mxu0 %v8229
    %v8714 = vpop.f32.mrf.mxu0
    %v8715 = vadd.f32 %v8546, %v8714
    %v8716 = vpop.f32.mrf.mxu0
    %v8717 = vadd.f32 %v8548, %v8716
    %8718 = vmatmul.bf16.gmra.mxu0 %v8231
    %v8719 = vpop.f32.mrf.mxu0
    %v8720 = vadd.f32 %v8551, %v8719
    %v8721 = vpop.f32.mrf.mxu0
    %v8722 = vadd.f32 %v8553, %v8721
    %8723 = vmatmul.bf16.gmra.mxu0 %v8233
    %v8724 = vpop.f32.mrf.mxu0
    %v8725 = vadd.f32 %v8556, %v8724
    %v8726 = vpop.f32.mrf.mxu0
    %v8727 = vadd.f32 %v8558, %v8726
    %8728 = vmatmul.bf16.gmra.mxu0 %v8235
    %v8729 = vpop.f32.mrf.mxu0
    %v8730 = vadd.f32 %v8561, %v8729
    %v8731 = vpop.f32.mrf.mxu0
    %v8732 = vadd.f32 %v8563, %v8731
    %8733 = vdwg.mxu0
    %v8735 = vunpack.c.l.b16 %v7850
    %v8736 = vunpack.c.h.b16 %v7850
    %v8737 = vpack.c.b16 %v8044, %v8735
    %v8738 = vpack.c.b16 %v8045, %v8736
    %v8739 = vpack.c.b16 %v8048, %v8046
    %v8740 = vpack.c.b16 %v8049, %v8047
    %v8741 = vpack.c.b16 %v8052, %v8050
    %v8742 = vpack.c.b16 %v8053, %v8051
    %v8743 = vpack.c.b16 %v8056, %v8054
    %v8744 = vpack.c.b16 %v8057, %v8055
    %v8745 = vpack.c.b16 %v8060, %v8058
    %v8746 = vpack.c.b16 %v8061, %v8059
    %v8747 = vpack.c.b16 %v8064, %v8062
    %v8748 = vpack.c.b16 %v8065, %v8063
    %v8749 = vpack.c.b16 %v8068, %v8066
    %v8750 = vpack.c.b16 %v8069, %v8067
    %v8751 = vpack.c.b16 %v8072, %v8070
    %v8752 = vpack.c.b16 %v8073, %v8071
    %v8753 = vpack.c.b16 %v8076, %v8074
    %v8754 = vpack.c.b16 %v8077, %v8075
    %v8755 = vpack.c.b16 %v8080, %v8078
    %v8756 = vpack.c.b16 %v8081, %v8079
    %v8757 = vpack.c.b16 %v8084, %v8082
    %v8758 = vpack.c.b16 %v8085, %v8083
    %v8759 = vpack.c.b16 %v8088, %v8086
    %v8760 = vpack.c.b16 %v8089, %v8087
    %v8761 = vpack.c.b16 %v8092, %v8090
    %v8762 = vpack.c.b16 %v8093, %v8091
    %v8763 = vpack.c.b16 %v8096, %v8094
    %v8764 = vpack.c.b16 %v8097, %v8095
    %v8765 = vpack.c.b16 %v8100, %v8098
    %v8766 = vpack.c.b16 %v8101, %v8099
    %v8767 = vpack.c.b16 %v8104, %v8102
    %v8768 = vpack.c.b16 %v8105, %v8103
    %v8769 = vpack.c.b16 %v8108, %v8106
    %v8770 = vpack.c.b16 %v8109, %v8107
    %v8771 = vpack.c.b16 %v8112, %v8110
    %v8772 = vpack.c.b16 %v8113, %v8111
    %v8773 = vpack.c.b16 %v8116, %v8114
    %v8774 = vpack.c.b16 %v8117, %v8115
    %v8775 = vpack.c.b16 %v8120, %v8118
    %v8776 = vpack.c.b16 %v8121, %v8119
    %v8777 = vpack.c.b16 %v8124, %v8122
    %v8778 = vpack.c.b16 %v8125, %v8123
    %v8779 = vpack.c.b16 %v8128, %v8126
    %v8780 = vpack.c.b16 %v8129, %v8127
    %v8781 = vpack.c.b16 %v8132, %v8130
    %v8782 = vpack.c.b16 %v8133, %v8131
    %v8783 = vpack.c.b16 %v8136, %v8134
    %v8784 = vpack.c.b16 %v8137, %v8135
    %v8785 = vpack.c.b16 %v8140, %v8138
    %v8786 = vpack.c.b16 %v8141, %v8139
    %v8787 = vpack.c.b16 %v8144, %v8142
    %v8788 = vpack.c.b16 %v8145, %v8143
    %v8789 = vpack.c.b16 %v8148, %v8146
    %v8790 = vpack.c.b16 %v8149, %v8147
    %v8791 = vpack.c.b16 %v8152, %v8150
    %v8792 = vpack.c.b16 %v8153, %v8151
    %v8793 = vpack.c.b16 %v8156, %v8154
    %v8794 = vpack.c.b16 %v8157, %v8155
    %v8795 = vpack.c.b16 %v8160, %v8158
    %v8796 = vpack.c.b16 %v8161, %v8159
    %v8797 = vpack.c.b16 %v8164, %v8162
    %v8798 = vpack.c.b16 %v8165, %v8163
    %v8799 = vpack.c.b16 %v8168, %v8166
    %v8800 = vpack.c.b16 %v8169, %v8167
    %v8801 = vpack.c.b16 %v8170, %v8170
    %v8802 = vpack.c.b16 %v8171, %v8171
    %vm8803 = vsmask.f32 4352
    %v8805 = vshrl.u32 %v8737, 16
    %v8807 = vrot.slane %v8805, 3
    %v8808 = vshll.u32 %v8737, 16
    %v8810 = vrot.slane %v8808, 4
    %v8811 = vor.u32 %v8807, %v8810
    %v8813 = vshrl.u32 %v8739, 16
    %v8815 = vrot.slane %v8813, 3
    %v8816 = vshll.u32 %v8739, 16
    %v8818 = vrot.slane %v8816, 4
    %v8819 = vor.u32 %v8815, %v8818
    %v8820 = vsel %vm8803, %v8811, %v8819
    %v8822 = vshrl.u32 %v8738, 16
    %v8824 = vrot.slane %v8822, 3
    %v8825 = vshll.u32 %v8738, 16
    %v8827 = vrot.slane %v8825, 4
    %v8828 = vor.u32 %v8824, %v8827
    %v8830 = vshrl.u32 %v8740, 16
    %v8832 = vrot.slane %v8830, 3
    %v8833 = vshll.u32 %v8740, 16
    %v8835 = vrot.slane %v8833, 4
    %v8836 = vor.u32 %v8832, %v8835
    %v8837 = vsel %vm8803, %v8828, %v8836
    %v8839 = vshrl.u32 %v8741, 16
    %v8841 = vrot.slane %v8839, 3
    %v8842 = vshll.u32 %v8741, 16
    %v8844 = vrot.slane %v8842, 4
    %v8845 = vor.u32 %v8841, %v8844
    %v8846 = vsel %vm8803, %v8819, %v8845
    %v8848 = vshrl.u32 %v8742, 16
    %v8850 = vrot.slane %v8848, 3
    %v8851 = vshll.u32 %v8742, 16
    %v8853 = vrot.slane %v8851, 4
    %v8854 = vor.u32 %v8850, %v8853
    %v8855 = vsel %vm8803, %v8836, %v8854
    %v8857 = vshrl.u32 %v8743, 16
    %v8859 = vrot.slane %v8857, 3
    %v8860 = vshll.u32 %v8743, 16
    %v8862 = vrot.slane %v8860, 4
    %v8863 = vor.u32 %v8859, %v8862
    %v8864 = vsel %vm8803, %v8845, %v8863
    %v8866 = vshrl.u32 %v8744, 16
    %v8868 = vrot.slane %v8866, 3
    %v8869 = vshll.u32 %v8744, 16
    %v8871 = vrot.slane %v8869, 4
    %v8872 = vor.u32 %v8868, %v8871
    %v8873 = vsel %vm8803, %v8854, %v8872
    %v8875 = vshrl.u32 %v8745, 16
    %v8877 = vrot.slane %v8875, 3
    %v8878 = vshll.u32 %v8745, 16
    %v8880 = vrot.slane %v8878, 4
    %v8881 = vor.u32 %v8877, %v8880
    %v8882 = vsel %vm8803, %v8863, %v8881
    %v8884 = vshrl.u32 %v8746, 16
    %v8886 = vrot.slane %v8884, 3
    %v8887 = vshll.u32 %v8746, 16
    %v8889 = vrot.slane %v8887, 4
    %v8890 = vor.u32 %v8886, %v8889
    %v8891 = vsel %vm8803, %v8872, %v8890
    %v8893 = vshrl.u32 %v8747, 16
    %v8895 = vrot.slane %v8893, 3
    %v8896 = vshll.u32 %v8747, 16
    %v8898 = vrot.slane %v8896, 4
    %v8899 = vor.u32 %v8895, %v8898
    %v8900 = vsel %vm8803, %v8881, %v8899
    %v8902 = vshrl.u32 %v8748, 16
    %v8904 = vrot.slane %v8902, 3
    %v8905 = vshll.u32 %v8748, 16
    %v8907 = vrot.slane %v8905, 4
    %v8908 = vor.u32 %v8904, %v8907
    %v8909 = vsel %vm8803, %v8890, %v8908
    %v8911 = vshrl.u32 %v8749, 16
    %v8913 = vrot.slane %v8911, 3
    %v8914 = vshll.u32 %v8749, 16
    %v8916 = vrot.slane %v8914, 4
    %v8917 = vor.u32 %v8913, %v8916
    %v8918 = vsel %vm8803, %v8899, %v8917
    %v8920 = vshrl.u32 %v8750, 16
    %v8922 = vrot.slane %v8920, 3
    %v8923 = vshll.u32 %v8750, 16
    %v8925 = vrot.slane %v8923, 4
    %v8926 = vor.u32 %v8922, %v8925
    %v8927 = vsel %vm8803, %v8908, %v8926
    %v8929 = vshrl.u32 %v8751, 16
    %v8931 = vrot.slane %v8929, 3
    %v8932 = vshll.u32 %v8751, 16
    %v8934 = vrot.slane %v8932, 4
    %v8935 = vor.u32 %v8931, %v8934
    %v8936 = vsel %vm8803, %v8917, %v8935
    %v8938 = vshrl.u32 %v8752, 16
    %v8940 = vrot.slane %v8938, 3
    %v8941 = vshll.u32 %v8752, 16
    %v8943 = vrot.slane %v8941, 4
    %v8944 = vor.u32 %v8940, %v8943
    %v8945 = vsel %vm8803, %v8926, %v8944
    %v8947 = vshrl.u32 %v8753, 16
    %v8949 = vrot.slane %v8947, 3
    %v8950 = vshll.u32 %v8753, 16
    %v8952 = vrot.slane %v8950, 4
    %v8953 = vor.u32 %v8949, %v8952
    %v8954 = vsel %vm8803, %v8935, %v8953
    %v8956 = vshrl.u32 %v8754, 16
    %v8958 = vrot.slane %v8956, 3
    %v8959 = vshll.u32 %v8754, 16
    %v8961 = vrot.slane %v8959, 4
    %v8962 = vor.u32 %v8958, %v8961
    %v8963 = vsel %vm8803, %v8944, %v8962
    %v8965 = vshrl.u32 %v8755, 16
    %v8967 = vrot.slane %v8965, 3
    %v8968 = vshll.u32 %v8755, 16
    %v8970 = vrot.slane %v8968, 4
    %v8971 = vor.u32 %v8967, %v8970
    %v8972 = vsel %vm8803, %v8953, %v8971
    %v8974 = vshrl.u32 %v8756, 16
    %v8976 = vrot.slane %v8974, 3
    %v8977 = vshll.u32 %v8756, 16
    %v8979 = vrot.slane %v8977, 4
    %v8980 = vor.u32 %v8976, %v8979
    %v8981 = vsel %vm8803, %v8962, %v8980
    %v8983 = vshrl.u32 %v8757, 16
    %v8985 = vrot.slane %v8983, 3
    %v8986 = vshll.u32 %v8757, 16
    %v8988 = vrot.slane %v8986, 4
    %v8989 = vor.u32 %v8985, %v8988
    %v8990 = vsel %vm8803, %v8971, %v8989
    %v8992 = vshrl.u32 %v8758, 16
    %v8994 = vrot.slane %v8992, 3
    %v8995 = vshll.u32 %v8758, 16
    %v8997 = vrot.slane %v8995, 4
    %v8998 = vor.u32 %v8994, %v8997
    %v8999 = vsel %vm8803, %v8980, %v8998
    %v9001 = vshrl.u32 %v8759, 16
    %v9003 = vrot.slane %v9001, 3
    %v9004 = vshll.u32 %v8759, 16
    %v9006 = vrot.slane %v9004, 4
    %v9007 = vor.u32 %v9003, %v9006
    %v9008 = vsel %vm8803, %v8989, %v9007
    %v9010 = vshrl.u32 %v8760, 16
    %v9012 = vrot.slane %v9010, 3
    %v9013 = vshll.u32 %v8760, 16
    %v9015 = vrot.slane %v9013, 4
    %v9016 = vor.u32 %v9012, %v9015
    %v9017 = vsel %vm8803, %v8998, %v9016
    %v9019 = vshrl.u32 %v8761, 16
    %v9021 = vrot.slane %v9019, 3
    %v9022 = vshll.u32 %v8761, 16
    %v9024 = vrot.slane %v9022, 4
    %v9025 = vor.u32 %v9021, %v9024
    %v9026 = vsel %vm8803, %v9007, %v9025
    %v9028 = vshrl.u32 %v8762, 16
    %v9030 = vrot.slane %v9028, 3
    %v9031 = vshll.u32 %v8762, 16
    %v9033 = vrot.slane %v9031, 4
    %v9034 = vor.u32 %v9030, %v9033
    %v9035 = vsel %vm8803, %v9016, %v9034
    %v9037 = vshrl.u32 %v8763, 16
    %v9039 = vrot.slane %v9037, 3
    %v9040 = vshll.u32 %v8763, 16
    %v9042 = vrot.slane %v9040, 4
    %v9043 = vor.u32 %v9039, %v9042
    %v9044 = vsel %vm8803, %v9025, %v9043
    %v9046 = vshrl.u32 %v8764, 16
    %v9048 = vrot.slane %v9046, 3
    %v9049 = vshll.u32 %v8764, 16
    %v9051 = vrot.slane %v9049, 4
    %v9052 = vor.u32 %v9048, %v9051
    %v9053 = vsel %vm8803, %v9034, %v9052
    %v9055 = vshrl.u32 %v8765, 16
    %v9057 = vrot.slane %v9055, 3
    %v9058 = vshll.u32 %v8765, 16
    %v9060 = vrot.slane %v9058, 4
    %v9061 = vor.u32 %v9057, %v9060
    %v9062 = vsel %vm8803, %v9043, %v9061
    %v9064 = vshrl.u32 %v8766, 16
    %v9066 = vrot.slane %v9064, 3
    %v9067 = vshll.u32 %v8766, 16
    %v9069 = vrot.slane %v9067, 4
    %v9070 = vor.u32 %v9066, %v9069
    %v9071 = vsel %vm8803, %v9052, %v9070
    %v9073 = vshrl.u32 %v8767, 16
    %v9075 = vrot.slane %v9073, 3
    %v9076 = vshll.u32 %v8767, 16
    %v9078 = vrot.slane %v9076, 4
    %v9079 = vor.u32 %v9075, %v9078
    %v9080 = vsel %vm8803, %v9061, %v9079
    %v9082 = vshrl.u32 %v8768, 16
    %v9084 = vrot.slane %v9082, 3
    %v9085 = vshll.u32 %v8768, 16
    %v9087 = vrot.slane %v9085, 4
    %v9088 = vor.u32 %v9084, %v9087
    %v9089 = vsel %vm8803, %v9070, %v9088
    %v9091 = vshrl.u32 %v8769, 16
    %v9093 = vrot.slane %v9091, 3
    %v9094 = vshll.u32 %v8769, 16
    %v9096 = vrot.slane %v9094, 4
    %v9097 = vor.u32 %v9093, %v9096
    %v9098 = vsel %vm8803, %v9079, %v9097
    %v9100 = vshrl.u32 %v8770, 16
    %v9102 = vrot.slane %v9100, 3
    %v9103 = vshll.u32 %v8770, 16
    %v9105 = vrot.slane %v9103, 4
    %v9106 = vor.u32 %v9102, %v9105
    %v9107 = vsel %vm8803, %v9088, %v9106
    %v9109 = vshrl.u32 %v8771, 16
    %v9111 = vrot.slane %v9109, 3
    %v9112 = vshll.u32 %v8771, 16
    %v9114 = vrot.slane %v9112, 4
    %v9115 = vor.u32 %v9111, %v9114
    %v9116 = vsel %vm8803, %v9097, %v9115
    %v9118 = vshrl.u32 %v8772, 16
    %v9120 = vrot.slane %v9118, 3
    %v9121 = vshll.u32 %v8772, 16
    %v9123 = vrot.slane %v9121, 4
    %v9124 = vor.u32 %v9120, %v9123
    %v9125 = vsel %vm8803, %v9106, %v9124
    %v9127 = vshrl.u32 %v8773, 16
    %v9129 = vrot.slane %v9127, 3
    %v9130 = vshll.u32 %v8773, 16
    %v9132 = vrot.slane %v9130, 4
    %v9133 = vor.u32 %v9129, %v9132
    %v9134 = vsel %vm8803, %v9115, %v9133
    %v9136 = vshrl.u32 %v8774, 16
    %v9138 = vrot.slane %v9136, 3
    %v9139 = vshll.u32 %v8774, 16
    %v9141 = vrot.slane %v9139, 4
    %v9142 = vor.u32 %v9138, %v9141
    %v9143 = vsel %vm8803, %v9124, %v9142
    %v9145 = vshrl.u32 %v8775, 16
    %v9147 = vrot.slane %v9145, 3
    %v9148 = vshll.u32 %v8775, 16
    %v9150 = vrot.slane %v9148, 4
    %v9151 = vor.u32 %v9147, %v9150
    %v9152 = vsel %vm8803, %v9133, %v9151
    %v9154 = vshrl.u32 %v8776, 16
    %v9156 = vrot.slane %v9154, 3
    %v9157 = vshll.u32 %v8776, 16
    %v9159 = vrot.slane %v9157, 4
    %v9160 = vor.u32 %v9156, %v9159
    %v9161 = vsel %vm8803, %v9142, %v9160
    %v9163 = vshrl.u32 %v8777, 16
    %v9165 = vrot.slane %v9163, 3
    %v9166 = vshll.u32 %v8777, 16
    %v9168 = vrot.slane %v9166, 4
    %v9169 = vor.u32 %v9165, %v9168
    %v9170 = vsel %vm8803, %v9151, %v9169
    %v9172 = vshrl.u32 %v8778, 16
    %v9174 = vrot.slane %v9172, 3
    %v9175 = vshll.u32 %v8778, 16
    %v9177 = vrot.slane %v9175, 4
    %v9178 = vor.u32 %v9174, %v9177
    %v9179 = vsel %vm8803, %v9160, %v9178
    %v9181 = vshrl.u32 %v8779, 16
    %v9183 = vrot.slane %v9181, 3
    %v9184 = vshll.u32 %v8779, 16
    %v9186 = vrot.slane %v9184, 4
    %v9187 = vor.u32 %v9183, %v9186
    %v9188 = vsel %vm8803, %v9169, %v9187
    %v9190 = vshrl.u32 %v8780, 16
    %v9192 = vrot.slane %v9190, 3
    %v9193 = vshll.u32 %v8780, 16
    %v9195 = vrot.slane %v9193, 4
    %v9196 = vor.u32 %v9192, %v9195
    %v9197 = vsel %vm8803, %v9178, %v9196
    %v9199 = vshrl.u32 %v8781, 16
    %v9201 = vrot.slane %v9199, 3
    %v9202 = vshll.u32 %v8781, 16
    %v9204 = vrot.slane %v9202, 4
    %v9205 = vor.u32 %v9201, %v9204
    %v9206 = vsel %vm8803, %v9187, %v9205
    %v9208 = vshrl.u32 %v8782, 16
    %v9210 = vrot.slane %v9208, 3
    %v9211 = vshll.u32 %v8782, 16
    %v9213 = vrot.slane %v9211, 4
    %v9214 = vor.u32 %v9210, %v9213
    %v9215 = vsel %vm8803, %v9196, %v9214
    %v9217 = vshrl.u32 %v8783, 16
    %v9219 = vrot.slane %v9217, 3
    %v9220 = vshll.u32 %v8783, 16
    %v9222 = vrot.slane %v9220, 4
    %v9223 = vor.u32 %v9219, %v9222
    %v9224 = vsel %vm8803, %v9205, %v9223
    %v9226 = vshrl.u32 %v8784, 16
    %v9228 = vrot.slane %v9226, 3
    %v9229 = vshll.u32 %v8784, 16
    %v9231 = vrot.slane %v9229, 4
    %v9232 = vor.u32 %v9228, %v9231
    %v9233 = vsel %vm8803, %v9214, %v9232
    %v9235 = vshrl.u32 %v8785, 16
    %v9237 = vrot.slane %v9235, 3
    %v9238 = vshll.u32 %v8785, 16
    %v9240 = vrot.slane %v9238, 4
    %v9241 = vor.u32 %v9237, %v9240
    %v9242 = vsel %vm8803, %v9223, %v9241
    %v9244 = vshrl.u32 %v8786, 16
    %v9246 = vrot.slane %v9244, 3
    %v9247 = vshll.u32 %v8786, 16
    %v9249 = vrot.slane %v9247, 4
    %v9250 = vor.u32 %v9246, %v9249
    %v9251 = vsel %vm8803, %v9232, %v9250
    %v9253 = vshrl.u32 %v8787, 16
    %v9255 = vrot.slane %v9253, 3
    %v9256 = vshll.u32 %v8787, 16
    %v9258 = vrot.slane %v9256, 4
    %v9259 = vor.u32 %v9255, %v9258
    %v9260 = vsel %vm8803, %v9241, %v9259
    %v9262 = vshrl.u32 %v8788, 16
    %v9264 = vrot.slane %v9262, 3
    %v9265 = vshll.u32 %v8788, 16
    %v9267 = vrot.slane %v9265, 4
    %v9268 = vor.u32 %v9264, %v9267
    %v9269 = vsel %vm8803, %v9250, %v9268
    %v9271 = vshrl.u32 %v8789, 16
    %v9273 = vrot.slane %v9271, 3
    %v9274 = vshll.u32 %v8789, 16
    %v9276 = vrot.slane %v9274, 4
    %v9277 = vor.u32 %v9273, %v9276
    %v9278 = vsel %vm8803, %v9259, %v9277
    %v9280 = vshrl.u32 %v8790, 16
    %v9282 = vrot.slane %v9280, 3
    %v9283 = vshll.u32 %v8790, 16
    %v9285 = vrot.slane %v9283, 4
    %v9286 = vor.u32 %v9282, %v9285
    %v9287 = vsel %vm8803, %v9268, %v9286
    %v9289 = vshrl.u32 %v8791, 16
    %v9291 = vrot.slane %v9289, 3
    %v9292 = vshll.u32 %v8791, 16
    %v9294 = vrot.slane %v9292, 4
    %v9295 = vor.u32 %v9291, %v9294
    %v9296 = vsel %vm8803, %v9277, %v9295
    %v9298 = vshrl.u32 %v8792, 16
    %v9300 = vrot.slane %v9298, 3
    %v9301 = vshll.u32 %v8792, 16
    %v9303 = vrot.slane %v9301, 4
    %v9304 = vor.u32 %v9300, %v9303
    %v9305 = vsel %vm8803, %v9286, %v9304
    %v9307 = vshrl.u32 %v8793, 16
    %v9309 = vrot.slane %v9307, 3
    %v9310 = vshll.u32 %v8793, 16
    %v9312 = vrot.slane %v9310, 4
    %v9313 = vor.u32 %v9309, %v9312
    %v9314 = vsel %vm8803, %v9295, %v9313
    %v9316 = vshrl.u32 %v8794, 16
    %v9318 = vrot.slane %v9316, 3
    %v9319 = vshll.u32 %v8794, 16
    %v9321 = vrot.slane %v9319, 4
    %v9322 = vor.u32 %v9318, %v9321
    %v9323 = vsel %vm8803, %v9304, %v9322
    %v9325 = vshrl.u32 %v8795, 16
    %v9327 = vrot.slane %v9325, 3
    %v9328 = vshll.u32 %v8795, 16
    %v9330 = vrot.slane %v9328, 4
    %v9331 = vor.u32 %v9327, %v9330
    %v9332 = vsel %vm8803, %v9313, %v9331
    %v9334 = vshrl.u32 %v8796, 16
    %v9336 = vrot.slane %v9334, 3
    %v9337 = vshll.u32 %v8796, 16
    %v9339 = vrot.slane %v9337, 4
    %v9340 = vor.u32 %v9336, %v9339
    %v9341 = vsel %vm8803, %v9322, %v9340
    %v9343 = vshrl.u32 %v8797, 16
    %v9345 = vrot.slane %v9343, 3
    %v9346 = vshll.u32 %v8797, 16
    %v9348 = vrot.slane %v9346, 4
    %v9349 = vor.u32 %v9345, %v9348
    %v9350 = vsel %vm8803, %v9331, %v9349
    %v9352 = vshrl.u32 %v8798, 16
    %v9354 = vrot.slane %v9352, 3
    %v9355 = vshll.u32 %v8798, 16
    %v9357 = vrot.slane %v9355, 4
    %v9358 = vor.u32 %v9354, %v9357
    %v9359 = vsel %vm8803, %v9340, %v9358
    %v9361 = vshrl.u32 %v8799, 16
    %v9363 = vrot.slane %v9361, 3
    %v9364 = vshll.u32 %v8799, 16
    %v9366 = vrot.slane %v9364, 4
    %v9367 = vor.u32 %v9363, %v9366
    %v9368 = vsel %vm8803, %v9349, %v9367
    %v9370 = vshrl.u32 %v8800, 16
    %v9372 = vrot.slane %v9370, 3
    %v9373 = vshll.u32 %v8800, 16
    %v9375 = vrot.slane %v9373, 4
    %v9376 = vor.u32 %v9372, %v9375
    %v9377 = vsel %vm8803, %v9358, %v9376
    %v9379 = vshrl.u32 %v8801, 16
    %v9381 = vrot.slane %v9379, 3
    %v9382 = vshll.u32 %v8801, 16
    %v9384 = vrot.slane %v9382, 4
    %v9385 = vor.u32 %v9381, %v9384
    %v9386 = vsel %vm8803, %v9367, %v9385
    %v9388 = vshrl.u32 %v8802, 16
    %v9390 = vrot.slane %v9388, 3
    %v9391 = vshll.u32 %v8802, 16
    %v9393 = vrot.slane %v9391, 4
    %v9394 = vor.u32 %v9390, %v9393
    %v9395 = vsel %vm8803, %v9376, %v9394
    %v9492 = vunpack.c.l.b16 %v7915
    %v9493 = vunpack.c.l.b16 %v7916
    %v9494 = vunpack.c.l.b16 %v7917
    %v9495 = vunpack.c.l.b16 %v7918
    %v9496 = vunpack.c.l.b16 %v7919
    %v9497 = vunpack.c.l.b16 %v7920
    %v9498 = vunpack.c.l.b16 %v7921
    %v9499 = vunpack.c.l.b16 %v7922
    %v9500 = vunpack.c.l.b16 %v7923
    %v9501 = vunpack.c.l.b16 %v7924
    %v9502 = vunpack.c.l.b16 %v7925
    %v9503 = vunpack.c.l.b16 %v7926
    %v9504 = vunpack.c.l.b16 %v7927
    %v9505 = vunpack.c.l.b16 %v7928
    %v9506 = vunpack.c.l.b16 %v7929
    %v9507 = vunpack.c.l.b16 %v7930
    %v9508 = vunpack.c.l.b16 %v7931
    %v9509 = vunpack.c.l.b16 %v7932
    %v9510 = vunpack.c.l.b16 %v7933
    %v9511 = vunpack.c.l.b16 %v7934
    %v9512 = vunpack.c.l.b16 %v7935
    %v9513 = vunpack.c.l.b16 %v7936
    %v9514 = vunpack.c.l.b16 %v7937
    %v9515 = vunpack.c.l.b16 %v7938
    %v9516 = vunpack.c.l.b16 %v7939
    %v9517 = vunpack.c.l.b16 %v7940
    %v9518 = vunpack.c.l.b16 %v7941
    %v9519 = vunpack.c.l.b16 %v7942
    %v9520 = vunpack.c.l.b16 %v7943
    %v9521 = vunpack.c.l.b16 %v7944
    %v9522 = vunpack.c.l.b16 %v7945
    %v9523 = vunpack.c.l.b16 %v7946
    %v9524 = vpack.c.b16 %v9493, %v9492
    %v9525 = vpack.c.b16 %v9495, %v9494
    %v9526 = vpack.c.b16 %v9497, %v9496
    %v9527 = vpack.c.b16 %v9499, %v9498
    %v9528 = vpack.c.b16 %v9501, %v9500
    %v9529 = vpack.c.b16 %v9503, %v9502
    %v9530 = vpack.c.b16 %v9505, %v9504
    %v9531 = vpack.c.b16 %v9507, %v9506
    %v9532 = vpack.c.b16 %v9509, %v9508
    %v9533 = vpack.c.b16 %v9511, %v9510
    %v9534 = vpack.c.b16 %v9513, %v9512
    %v9535 = vpack.c.b16 %v9515, %v9514
    %v9536 = vpack.c.b16 %v9517, %v9516
    %v9537 = vpack.c.b16 %v9519, %v9518
    %v9538 = vpack.c.b16 %v9521, %v9520
    %v9539 = vpack.c.b16 %v9523, %v9522
    %9556 = vmatpush.bf16.msra.mxu0 %v9531
    %9557 = vmatpush.bf16.msra.mxu0 %v9530
    %9558 = vmatpush.bf16.msra.mxu0 %v9529
    %9559 = vmatpush.bf16.msra.mxu0 %v9528
    %9560 = vmatpush.bf16.msra.mxu0 %v9527
    %9561 = vmatpush.bf16.msra.mxu0 %v9526
    %9562 = vmatpush.bf16.msra.mxu0 %v9525
    %9563 = vmatpush.bf16.msra.mxu0 %v9524
    %9564 = vmatmul.bf16.gmra.mxu0 %v8820
    %v9565 = vpop.f32.mrf.mxu0
    %v9566 = vadd.f32 %v8575, %v9565
    %v9567 = vpop.f32.mrf.mxu0
    %v9568 = vadd.f32 %v8577, %v9567
    %9569 = vmatmul.bf16.gmra.mxu0 %v8846
    %v9570 = vpop.f32.mrf.mxu0
    %v9571 = vadd.f32 %v8580, %v9570
    %v9572 = vpop.f32.mrf.mxu0
    %v9573 = vadd.f32 %v8582, %v9572
    %9574 = vmatmul.bf16.gmra.mxu0 %v8864
    %v9575 = vpop.f32.mrf.mxu0
    %v9576 = vadd.f32 %v8585, %v9575
    %v9577 = vpop.f32.mrf.mxu0
    %v9578 = vadd.f32 %v8587, %v9577
    %9579 = vmatmul.bf16.gmra.mxu0 %v8882
    %v9580 = vpop.f32.mrf.mxu0
    %v9581 = vadd.f32 %v8590, %v9580
    %v9582 = vpop.f32.mrf.mxu0
    %v9583 = vadd.f32 %v8592, %v9582
    %9584 = vmatmul.bf16.gmra.mxu0 %v8900
    %v9585 = vpop.f32.mrf.mxu0
    %v9586 = vadd.f32 %v8595, %v9585
    %v9587 = vpop.f32.mrf.mxu0
    %v9588 = vadd.f32 %v8597, %v9587
    %9589 = vmatmul.bf16.gmra.mxu0 %v8918
    %v9590 = vpop.f32.mrf.mxu0
    %v9591 = vadd.f32 %v8600, %v9590
    %v9592 = vpop.f32.mrf.mxu0
    %v9593 = vadd.f32 %v8602, %v9592
    %9594 = vmatmul.bf16.gmra.mxu0 %v8936
    %v9595 = vpop.f32.mrf.mxu0
    %v9596 = vadd.f32 %v8605, %v9595
    %v9597 = vpop.f32.mrf.mxu0
    %v9598 = vadd.f32 %v8607, %v9597
    %9599 = vmatmul.bf16.gmra.mxu0 %v8954
    %v9600 = vpop.f32.mrf.mxu0
    %v9601 = vadd.f32 %v8610, %v9600
    %v9602 = vpop.f32.mrf.mxu0
    %v9603 = vadd.f32 %v8612, %v9602
    %9604 = vmatmul.bf16.gmra.mxu0 %v8972
    %v9605 = vpop.f32.mrf.mxu0
    %v9606 = vadd.f32 %v8615, %v9605
    %v9607 = vpop.f32.mrf.mxu0
    %v9608 = vadd.f32 %v8617, %v9607
    %9609 = vmatmul.bf16.gmra.mxu0 %v8990
    %v9610 = vpop.f32.mrf.mxu0
    %v9611 = vadd.f32 %v8620, %v9610
    %v9612 = vpop.f32.mrf.mxu0
    %v9613 = vadd.f32 %v8622, %v9612
    %9614 = vmatmul.bf16.gmra.mxu0 %v9008
    %v9615 = vpop.f32.mrf.mxu0
    %v9616 = vadd.f32 %v8625, %v9615
    %v9617 = vpop.f32.mrf.mxu0
    %v9618 = vadd.f32 %v8627, %v9617
    %9619 = vmatmul.bf16.gmra.mxu0 %v9026
    %v9620 = vpop.f32.mrf.mxu0
    %v9621 = vadd.f32 %v8630, %v9620
    %v9622 = vpop.f32.mrf.mxu0
    %v9623 = vadd.f32 %v8632, %v9622
    %9624 = vmatmul.bf16.gmra.mxu0 %v9044
    %v9625 = vpop.f32.mrf.mxu0
    %v9626 = vadd.f32 %v8635, %v9625
    %v9627 = vpop.f32.mrf.mxu0
    %v9628 = vadd.f32 %v8637, %v9627
    %9629 = vmatmul.bf16.gmra.mxu0 %v9062
    %v9630 = vpop.f32.mrf.mxu0
    %v9631 = vadd.f32 %v8640, %v9630
    %v9632 = vpop.f32.mrf.mxu0
    %v9633 = vadd.f32 %v8642, %v9632
    %9634 = vmatmul.bf16.gmra.mxu0 %v9080
    %v9635 = vpop.f32.mrf.mxu0
    %v9636 = vadd.f32 %v8645, %v9635
    %v9637 = vpop.f32.mrf.mxu0
    %v9638 = vadd.f32 %v8647, %v9637
    %9639 = vmatmul.bf16.gmra.mxu0 %v9098
    %v9640 = vpop.f32.mrf.mxu0
    %v9641 = vadd.f32 %v8650, %v9640
    %v9642 = vpop.f32.mrf.mxu0
    %v9643 = vadd.f32 %v8652, %v9642
    %9644 = vmatmul.bf16.gmra.mxu0 %v9116
    %v9645 = vpop.f32.mrf.mxu0
    %v9646 = vadd.f32 %v8655, %v9645
    %v9647 = vpop.f32.mrf.mxu0
    %v9648 = vadd.f32 %v8657, %v9647
    %9649 = vmatmul.bf16.gmra.mxu0 %v9134
    %v9650 = vpop.f32.mrf.mxu0
    %v9651 = vadd.f32 %v8660, %v9650
    %v9652 = vpop.f32.mrf.mxu0
    %v9653 = vadd.f32 %v8662, %v9652
    %9654 = vmatmul.bf16.gmra.mxu0 %v9152
    %v9655 = vpop.f32.mrf.mxu0
    %v9656 = vadd.f32 %v8665, %v9655
    %v9657 = vpop.f32.mrf.mxu0
    %v9658 = vadd.f32 %v8667, %v9657
    %9659 = vmatmul.bf16.gmra.mxu0 %v9170
    %v9660 = vpop.f32.mrf.mxu0
    %v9661 = vadd.f32 %v8670, %v9660
    %v9662 = vpop.f32.mrf.mxu0
    %v9663 = vadd.f32 %v8672, %v9662
    %9664 = vmatmul.bf16.gmra.mxu0 %v9188
    %v9665 = vpop.f32.mrf.mxu0
    %v9666 = vadd.f32 %v8675, %v9665
    %v9667 = vpop.f32.mrf.mxu0
    %v9668 = vadd.f32 %v8677, %v9667
    %9669 = vmatmul.bf16.gmra.mxu0 %v9206
    %v9670 = vpop.f32.mrf.mxu0
    %v9671 = vadd.f32 %v8680, %v9670
    %v9672 = vpop.f32.mrf.mxu0
    %v9673 = vadd.f32 %v8682, %v9672
    %9674 = vmatmul.bf16.gmra.mxu0 %v9224
    %v9675 = vpop.f32.mrf.mxu0
    %v9676 = vadd.f32 %v8685, %v9675
    %v9677 = vpop.f32.mrf.mxu0
    %v9678 = vadd.f32 %v8687, %v9677
    %9679 = vmatmul.bf16.gmra.mxu0 %v9242
    %v9680 = vpop.f32.mrf.mxu0
    %v9681 = vadd.f32 %v8690, %v9680
    %v9682 = vpop.f32.mrf.mxu0
    %v9683 = vadd.f32 %v8692, %v9682
    %9684 = vmatmul.bf16.gmra.mxu0 %v9260
    %v9685 = vpop.f32.mrf.mxu0
    %v9686 = vadd.f32 %v8695, %v9685
    %v9687 = vpop.f32.mrf.mxu0
    %v9688 = vadd.f32 %v8697, %v9687
    %9689 = vmatmul.bf16.gmra.mxu0 %v9278
    %v9690 = vpop.f32.mrf.mxu0
    %v9691 = vadd.f32 %v8700, %v9690
    %v9692 = vpop.f32.mrf.mxu0
    %v9693 = vadd.f32 %v8702, %v9692
    %9694 = vmatmul.bf16.gmra.mxu0 %v9296
    %v9695 = vpop.f32.mrf.mxu0
    %v9696 = vadd.f32 %v8705, %v9695
    %v9697 = vpop.f32.mrf.mxu0
    %v9698 = vadd.f32 %v8707, %v9697
    %9699 = vmatmul.bf16.gmra.mxu0 %v9314
    %v9700 = vpop.f32.mrf.mxu0
    %v9701 = vadd.f32 %v8710, %v9700
    %v9702 = vpop.f32.mrf.mxu0
    %v9703 = vadd.f32 %v8712, %v9702
    %9704 = vmatmul.bf16.gmra.mxu0 %v9332
    %v9705 = vpop.f32.mrf.mxu0
    %v9706 = vadd.f32 %v8715, %v9705
    %v9707 = vpop.f32.mrf.mxu0
    %v9708 = vadd.f32 %v8717, %v9707
    %9709 = vmatmul.bf16.gmra.mxu0 %v9350
    %v9710 = vpop.f32.mrf.mxu0
    %v9711 = vadd.f32 %v8720, %v9710
    %v9712 = vpop.f32.mrf.mxu0
    %v9713 = vadd.f32 %v8722, %v9712
    %9714 = vmatmul.bf16.gmra.mxu0 %v9368
    %v9715 = vpop.f32.mrf.mxu0
    %v9716 = vadd.f32 %v8725, %v9715
    %v9717 = vpop.f32.mrf.mxu0
    %v9718 = vadd.f32 %v8727, %v9717
    %9719 = vmatmul.bf16.gmra.mxu0 %v9386
    %v9720 = vpop.f32.mrf.mxu0
    %v9721 = vadd.f32 %v8730, %v9720
    %v9722 = vpop.f32.mrf.mxu0
    %v9723 = vadd.f32 %v8732, %v9722
    %9724 = vdwg.mxu0
    %9725 = vmatpush.bf16.msra.mxu0 %v9539
    %9726 = vmatpush.bf16.msra.mxu0 %v9538
    %9727 = vmatpush.bf16.msra.mxu0 %v9537
    %9728 = vmatpush.bf16.msra.mxu0 %v9536
    %9729 = vmatpush.bf16.msra.mxu0 %v9535
    %9730 = vmatpush.bf16.msra.mxu0 %v9534
    %9731 = vmatpush.bf16.msra.mxu0 %v9533
    %9732 = vmatpush.bf16.msra.mxu0 %v9532
    %9733 = vmatmul.bf16.gmra.mxu0 %v8837
    %v9734 = vpop.f32.mrf.mxu0
    %v9735 = vadd.f32 %v9566, %v9734
    %v9736 = vpop.f32.mrf.mxu0
    %v9737 = vadd.f32 %v9568, %v9736
    %9738 = vmatmul.bf16.gmra.mxu0 %v8855
    %v9739 = vpop.f32.mrf.mxu0
    %v9740 = vadd.f32 %v9571, %v9739
    %v9741 = vpop.f32.mrf.mxu0
    %v9742 = vadd.f32 %v9573, %v9741
    %9743 = vmatmul.bf16.gmra.mxu0 %v8873
    %v9744 = vpop.f32.mrf.mxu0
    %v9745 = vadd.f32 %v9576, %v9744
    %v9746 = vpop.f32.mrf.mxu0
    %v9747 = vadd.f32 %v9578, %v9746
    %9748 = vmatmul.bf16.gmra.mxu0 %v8891
    %v9749 = vpop.f32.mrf.mxu0
    %v9750 = vadd.f32 %v9581, %v9749
    %v9751 = vpop.f32.mrf.mxu0
    %v9752 = vadd.f32 %v9583, %v9751
    %9753 = vmatmul.bf16.gmra.mxu0 %v8909
    %v9754 = vpop.f32.mrf.mxu0
    %v9755 = vadd.f32 %v9586, %v9754
    %v9756 = vpop.f32.mrf.mxu0
    %v9757 = vadd.f32 %v9588, %v9756
    %9758 = vmatmul.bf16.gmra.mxu0 %v8927
    %v9759 = vpop.f32.mrf.mxu0
    %v9760 = vadd.f32 %v9591, %v9759
    %v9761 = vpop.f32.mrf.mxu0
    %v9762 = vadd.f32 %v9593, %v9761
    %9763 = vmatmul.bf16.gmra.mxu0 %v8945
    %v9764 = vpop.f32.mrf.mxu0
    %v9765 = vadd.f32 %v9596, %v9764
    %v9766 = vpop.f32.mrf.mxu0
    %v9767 = vadd.f32 %v9598, %v9766
    %9768 = vmatmul.bf16.gmra.mxu0 %v8963
    %v9769 = vpop.f32.mrf.mxu0
    %v9770 = vadd.f32 %v9601, %v9769
    %v9771 = vpop.f32.mrf.mxu0
    %v9772 = vadd.f32 %v9603, %v9771
    %9773 = vmatmul.bf16.gmra.mxu0 %v8981
    %v9774 = vpop.f32.mrf.mxu0
    %v9775 = vadd.f32 %v9606, %v9774
    %v9776 = vpop.f32.mrf.mxu0
    %v9777 = vadd.f32 %v9608, %v9776
    %9778 = vmatmul.bf16.gmra.mxu0 %v8999
    %v9779 = vpop.f32.mrf.mxu0
    %v9780 = vadd.f32 %v9611, %v9779
    %v9781 = vpop.f32.mrf.mxu0
    %v9782 = vadd.f32 %v9613, %v9781
    %9783 = vmatmul.bf16.gmra.mxu0 %v9017
    %v9784 = vpop.f32.mrf.mxu0
    %v9785 = vadd.f32 %v9616, %v9784
    %v9786 = vpop.f32.mrf.mxu0
    %v9787 = vadd.f32 %v9618, %v9786
    %9788 = vmatmul.bf16.gmra.mxu0 %v9035
    %v9789 = vpop.f32.mrf.mxu0
    %v9790 = vadd.f32 %v9621, %v9789
    %v9791 = vpop.f32.mrf.mxu0
    %v9792 = vadd.f32 %v9623, %v9791
    %9793 = vmatmul.bf16.gmra.mxu0 %v9053
    %v9794 = vpop.f32.mrf.mxu0
    %v9795 = vadd.f32 %v9626, %v9794
    %v9796 = vpop.f32.mrf.mxu0
    %v9797 = vadd.f32 %v9628, %v9796
    %9798 = vmatmul.bf16.gmra.mxu0 %v9071
    %v9799 = vpop.f32.mrf.mxu0
    %v9800 = vadd.f32 %v9631, %v9799
    %v9801 = vpop.f32.mrf.mxu0
    %v9802 = vadd.f32 %v9633, %v9801
    %9803 = vmatmul.bf16.gmra.mxu0 %v9089
    %v9804 = vpop.f32.mrf.mxu0
    %v9805 = vadd.f32 %v9636, %v9804
    %v9806 = vpop.f32.mrf.mxu0
    %v9807 = vadd.f32 %v9638, %v9806
    %9808 = vmatmul.bf16.gmra.mxu0 %v9107
    %v9809 = vpop.f32.mrf.mxu0
    %v9810 = vadd.f32 %v9641, %v9809
    %v9811 = vpop.f32.mrf.mxu0
    %v9812 = vadd.f32 %v9643, %v9811
    %9813 = vmatmul.bf16.gmra.mxu0 %v9125
    %v9814 = vpop.f32.mrf.mxu0
    %v9815 = vadd.f32 %v9646, %v9814
    %v9816 = vpop.f32.mrf.mxu0
    %v9817 = vadd.f32 %v9648, %v9816
    %9818 = vmatmul.bf16.gmra.mxu0 %v9143
    %v9819 = vpop.f32.mrf.mxu0
    %v9820 = vadd.f32 %v9651, %v9819
    %v9821 = vpop.f32.mrf.mxu0
    %v9822 = vadd.f32 %v9653, %v9821
    %9823 = vmatmul.bf16.gmra.mxu0 %v9161
    %v9824 = vpop.f32.mrf.mxu0
    %v9825 = vadd.f32 %v9656, %v9824
    %v9826 = vpop.f32.mrf.mxu0
    %v9827 = vadd.f32 %v9658, %v9826
    %9828 = vmatmul.bf16.gmra.mxu0 %v9179
    %v9829 = vpop.f32.mrf.mxu0
    %v9830 = vadd.f32 %v9661, %v9829
    %v9831 = vpop.f32.mrf.mxu0
    %v9832 = vadd.f32 %v9663, %v9831
    %9833 = vmatmul.bf16.gmra.mxu0 %v9197
    %v9834 = vpop.f32.mrf.mxu0
    %v9835 = vadd.f32 %v9666, %v9834
    %v9836 = vpop.f32.mrf.mxu0
    %v9837 = vadd.f32 %v9668, %v9836
    %9838 = vmatmul.bf16.gmra.mxu0 %v9215
    %v9839 = vpop.f32.mrf.mxu0
    %v9840 = vadd.f32 %v9671, %v9839
    %v9841 = vpop.f32.mrf.mxu0
    %v9842 = vadd.f32 %v9673, %v9841
    %9843 = vmatmul.bf16.gmra.mxu0 %v9233
    %v9844 = vpop.f32.mrf.mxu0
    %v9845 = vadd.f32 %v9676, %v9844
    %v9846 = vpop.f32.mrf.mxu0
    %v9847 = vadd.f32 %v9678, %v9846
    %9848 = vmatmul.bf16.gmra.mxu0 %v9251
    %v9849 = vpop.f32.mrf.mxu0
    %v9850 = vadd.f32 %v9681, %v9849
    %v9851 = vpop.f32.mrf.mxu0
    %v9852 = vadd.f32 %v9683, %v9851
    %9853 = vmatmul.bf16.gmra.mxu0 %v9269
    %v9854 = vpop.f32.mrf.mxu0
    %v9855 = vadd.f32 %v9686, %v9854
    %v9856 = vpop.f32.mrf.mxu0
    %v9857 = vadd.f32 %v9688, %v9856
    %9858 = vmatmul.bf16.gmra.mxu0 %v9287
    %v9859 = vpop.f32.mrf.mxu0
    %v9860 = vadd.f32 %v9691, %v9859
    %v9861 = vpop.f32.mrf.mxu0
    %v9862 = vadd.f32 %v9693, %v9861
    %9863 = vmatmul.bf16.gmra.mxu0 %v9305
    %v9864 = vpop.f32.mrf.mxu0
    %v9865 = vadd.f32 %v9696, %v9864
    %v9866 = vpop.f32.mrf.mxu0
    %v9867 = vadd.f32 %v9698, %v9866
    %9868 = vmatmul.bf16.gmra.mxu0 %v9323
    %v9869 = vpop.f32.mrf.mxu0
    %v9870 = vadd.f32 %v9701, %v9869
    %v9871 = vpop.f32.mrf.mxu0
    %v9872 = vadd.f32 %v9703, %v9871
    %9873 = vmatmul.bf16.gmra.mxu0 %v9341
    %v9874 = vpop.f32.mrf.mxu0
    %v9875 = vadd.f32 %v9706, %v9874
    %v9876 = vpop.f32.mrf.mxu0
    %v9877 = vadd.f32 %v9708, %v9876
    %9878 = vmatmul.bf16.gmra.mxu0 %v9359
    %v9879 = vpop.f32.mrf.mxu0
    %v9880 = vadd.f32 %v9711, %v9879
    %v9881 = vpop.f32.mrf.mxu0
    %v9882 = vadd.f32 %v9713, %v9881
    %9883 = vmatmul.bf16.gmra.mxu0 %v9377
    %v9884 = vpop.f32.mrf.mxu0
    %v9885 = vadd.f32 %v9716, %v9884
    %v9886 = vpop.f32.mrf.mxu0
    %v9887 = vadd.f32 %v9718, %v9886
    %9888 = vmatmul.bf16.gmra.mxu0 %v9395
    %v9889 = vpop.f32.mrf.mxu0
    %v9890 = vadd.f32 %v9721, %v9889
    %v9891 = vpop.f32.mrf.mxu0
    %v9892 = vadd.f32 %v9723, %v9891
    %9893 = vdwg.mxu0
    %v9894 = vld [vmem:[#allocation3 + $0x10] sm:$0xff]
    %v9895 = vld [vmem:[#allocation3 + $0x18] sm:$0xff]
    %v9896 = vld [vmem:[#allocation3 + $0x20] sm:$0xff]
    %v9897 = vld [vmem:[#allocation3 + $0x28] sm:$0xff]
    %v9898 = vld [vmem:[#allocation3 + $0x30] sm:$0xff]
    %v9899 = vld [vmem:[#allocation3 + $0x38] sm:$0xff]
    %v9900 = vld [vmem:[#allocation3 + $0x40] sm:$0xff]
    %v9901 = vld [vmem:[#allocation3 + $0x48] sm:$0xff]
    %v9902 = vld [vmem:[#allocation3 + $0x50] sm:$0xff]
    %v9903 = vld [vmem:[#allocation3 + $0x58] sm:$0xff]
    %v9904 = vld [vmem:[#allocation3 + $0x60] sm:$0xff]
    %v9905 = vld [vmem:[#allocation3 + $0x68] sm:$0xff]
    %v9906 = vld [vmem:[#allocation3 + $0x70] sm:$0xff]
    %v9907 = vld [vmem:[#allocation3 + $0x78] sm:$0xff]
    %v9908 = vld [vmem:[#allocation3 + $0x80] sm:$0xff]
    %v9909 = vld [vmem:[#allocation3 + $0x88] sm:$0xff]
    %v9910 = vld [vmem:[#allocation3 + $0x90] sm:$0xff]
    %v9911 = vld [vmem:[#allocation3 + $0x98] sm:$0xff]
    %v9912 = vld [vmem:[#allocation3 + $0xa0] sm:$0xff]
    %v9913 = vld [vmem:[#allocation3 + $0xa8] sm:$0xff]
    %v9914 = vld [vmem:[#allocation3 + $0xb0] sm:$0xff]
    %v9915 = vld [vmem:[#allocation3 + $0xb8] sm:$0xff]
    %v9916 = vld [vmem:[#allocation3 + $0xc0] sm:$0xff]
    %v9917 = vld [vmem:[#allocation3 + $0xc8] sm:$0xff]
    %v9918 = vld [vmem:[#allocation3 + $0xd0] sm:$0xff]
    %v9919 = vld [vmem:[#allocation3 + $0xd8] sm:$0xff]
    %v9920 = vld [vmem:[#allocation3 + $0xe0] sm:$0xff]
    %v9921 = vld [vmem:[#allocation3 + $0xe8] sm:$0xff]
    %v9922 = vld [vmem:[#allocation3 + $0xf0] sm:$0xff]
    %v9923 = vld [vmem:[#allocation3 + $0xf8] sm:$0xff]
    %v9924 = vld [vmem:[#allocation3 + $0x100] sm:$0xff]
    %v9925 = vld [vmem:[#allocation3 + $0x108] sm:$0xff]
    %v9926 = vld [vmem:[#allocation3 + $0x110] sm:$0xff]
    %v9927 = vld [vmem:[#allocation3 + $0x118] sm:$0xff]
    %v9928 = vld [vmem:[#allocation3 + $0x120] sm:$0xff]
    %v9929 = vld [vmem:[#allocation3 + $0x128] sm:$0xff]
    %v9930 = vld [vmem:[#allocation3 + $0x130] sm:$0xff]
    %v9931 = vld [vmem:[#allocation3 + $0x138] sm:$0xff]
    %v9932 = vld [vmem:[#allocation3 + $0x140] sm:$0xff]
    %v9933 = vld [vmem:[#allocation3 + $0x148] sm:$0xff]
    %v9934 = vld [vmem:[#allocation3 + $0x150] sm:$0xff]
    %v9935 = vld [vmem:[#allocation3 + $0x158] sm:$0xff]
    %v9936 = vld [vmem:[#allocation3 + $0x160] sm:$0xff]
    %v9937 = vld [vmem:[#allocation3 + $0x168] sm:$0xff]
    %v9938 = vld [vmem:[#allocation3 + $0x170] sm:$0xff]
    %v9939 = vld [vmem:[#allocation3 + $0x178] sm:$0xff]
    %v9940 = vld [vmem:[#allocation3 + $0x180] sm:$0xff]
    %v9941 = vld [vmem:[#allocation3 + $0x188] sm:$0xff]
    %v9942 = vld [vmem:[#allocation3 + $0x190] sm:$0xff]
    %v9943 = vld [vmem:[#allocation3 + $0x198] sm:$0xff]
    %v9944 = vld [vmem:[#allocation3 + $0x1a0] sm:$0xff]
    %v9945 = vld [vmem:[#allocation3 + $0x1a8] sm:$0xff]
    %v9946 = vld [vmem:[#allocation3 + $0x1b0] sm:$0xff]
    %v9947 = vld [vmem:[#allocation3 + $0x1b8] sm:$0xff]
    %v9948 = vld [vmem:[#allocation3 + $0x1c0] sm:$0xff]
    %v9949 = vld [vmem:[#allocation3 + $0x1c8] sm:$0xff]
    %v9950 = vld [vmem:[#allocation3 + $0x1d0] sm:$0xff]
    %v9951 = vld [vmem:[#allocation3 + $0x1d8] sm:$0xff]
    %v9952 = vld [vmem:[#allocation3 + $0x1e0] sm:$0xff]
    %v9953 = vld [vmem:[#allocation3 + $0x1e8] sm:$0xff]
    %v9954 = vld [vmem:[#allocation3 + $0x1f0] sm:$0xff]
    %v9955 = vld [vmem:[#allocation3 + $0x1f8] sm:$0xff]
    %v9956 = vld [vmem:[#allocation3 + $0x200] sm:$0xff]
    %v9957 = vld [vmem:[#allocation3 + $0x208] sm:$0xff]
    %v9958 = vld [vmem:[#allocation3 + $0x210] sm:$0x11]
    %s9959 = scalar_lea.vmem [#allocation5], 256
    %v9960 = vld [vmem:[%s9959] sm:$0xf]
    %v9961 = vld [vmem:[%s9959 + $0x4] sm:$0xf]
    %v9962 = vld [vmem:[%s9959 + $0x8] sm:$0xf]
    %v9963 = vld [vmem:[%s9959 + $0xc] sm:$0xf]
    %v9964 = vld [vmem:[%s9959 + $0x10] sm:$0xf]
    %v9965 = vld [vmem:[%s9959 + $0x14] sm:$0xf]
    %v9966 = vld [vmem:[%s9959 + $0x18] sm:$0xf]
    %v9967 = vld [vmem:[%s9959 + $0x1c] sm:$0xf]
    %v9968 = vld [vmem:[%s9959 + $0x20] sm:$0xf]
    %v9969 = vld [vmem:[%s9959 + $0x24] sm:$0xf]
    %v9970 = vld [vmem:[%s9959 + $0x28] sm:$0xf]
    %v9971 = vld [vmem:[%s9959 + $0x2c] sm:$0xf]
    %v9972 = vld [vmem:[%s9959 + $0x30] sm:$0xf]
    %v9973 = vld [vmem:[%s9959 + $0x34] sm:$0xf]
    %v9974 = vld [vmem:[%s9959 + $0x38] sm:$0xf]
    %v9975 = vld [vmem:[%s9959 + $0x3c] sm:$0xf]
    %v9976 = vld [vmem:[%s9959 + $0x40] sm:$0xf]
    %v9977 = vld [vmem:[%s9959 + $0x44] sm:$0xf]
    %v9978 = vld [vmem:[%s9959 + $0x48] sm:$0xf]
    %v9979 = vld [vmem:[%s9959 + $0x4c] sm:$0xf]
    %v9980 = vld [vmem:[%s9959 + $0x50] sm:$0xf]
    %v9981 = vld [vmem:[%s9959 + $0x54] sm:$0xf]
    %v9982 = vld [vmem:[%s9959 + $0x58] sm:$0xf]
    %v9983 = vld [vmem:[%s9959 + $0x5c] sm:$0xf]
    %v9984 = vld [vmem:[%s9959 + $0x60] sm:$0xf]
    %v9985 = vld [vmem:[%s9959 + $0x64] sm:$0xf]
    %v9986 = vld [vmem:[%s9959 + $0x68] sm:$0xf]
    %v9987 = vld [vmem:[%s9959 + $0x6c] sm:$0xf]
    %v9988 = vld [vmem:[%s9959 + $0x70] sm:$0xf]
    %v9989 = vld [vmem:[%s9959 + $0x74] sm:$0xf]
    %v9990 = vld [vmem:[%s9959 + $0x78] sm:$0xf]
    %v9991 = vld [vmem:[%s9959 + $0x7c] sm:$0xf]
    %v10057 = vunpack.c.l.b16 %v9894
    %v10058 = vunpack.c.h.b16 %v9894
    %v10059 = vunpack.c.l.b16 %v9895
    %v10060 = vunpack.c.h.b16 %v9895
    %v10061 = vunpack.c.l.b16 %v9896
    %v10062 = vunpack.c.h.b16 %v9896
    %v10063 = vunpack.c.l.b16 %v9897
    %v10064 = vunpack.c.h.b16 %v9897
    %v10065 = vunpack.c.l.b16 %v9898
    %v10066 = vunpack.c.h.b16 %v9898
    %v10067 = vunpack.c.l.b16 %v9899
    %v10068 = vunpack.c.h.b16 %v9899
    %v10069 = vunpack.c.l.b16 %v9900
    %v10070 = vunpack.c.h.b16 %v9900
    %v10071 = vunpack.c.l.b16 %v9901
    %v10072 = vunpack.c.h.b16 %v9901
    %v10073 = vunpack.c.l.b16 %v9902
    %v10074 = vunpack.c.h.b16 %v9902
    %v10075 = vunpack.c.l.b16 %v9903
    %v10076 = vunpack.c.h.b16 %v9903
    %v10077 = vunpack.c.l.b16 %v9904
    %v10078 = vunpack.c.h.b16 %v9904
    %v10079 = vunpack.c.l.b16 %v9905
    %v10080 = vunpack.c.h.b16 %v9905
    %v10081 = vunpack.c.l.b16 %v9906
    %v10082 = vunpack.c.h.b16 %v9906
    %v10083 = vunpack.c.l.b16 %v9907
    %v10084 = vunpack.c.h.b16 %v9907
    %v10085 = vunpack.c.l.b16 %v9908
    %v10086 = vunpack.c.h.b16 %v9908
    %v10087 = vunpack.c.l.b16 %v9909
    %v10088 = vunpack.c.h.b16 %v9909
    %v10089 = vunpack.c.l.b16 %v9910
    %v10090 = vunpack.c.h.b16 %v9910
    %v10091 = vunpack.c.l.b16 %v9911
    %v10092 = vunpack.c.h.b16 %v9911
    %v10093 = vunpack.c.l.b16 %v9912
    %v10094 = vunpack.c.h.b16 %v9912
    %v10095 = vunpack.c.l.b16 %v9913
    %v10096 = vunpack.c.h.b16 %v9913
    %v10097 = vunpack.c.l.b16 %v9914
    %v10098 = vunpack.c.h.b16 %v9914
    %v10099 = vunpack.c.l.b16 %v9915
    %v10100 = vunpack.c.h.b16 %v9915
    %v10101 = vunpack.c.l.b16 %v9916
    %v10102 = vunpack.c.h.b16 %v9916
    %v10103 = vunpack.c.l.b16 %v9917
    %v10104 = vunpack.c.h.b16 %v9917
    %v10105 = vunpack.c.l.b16 %v9918
    %v10106 = vunpack.c.h.b16 %v9918
    %v10107 = vunpack.c.l.b16 %v9919
    %v10108 = vunpack.c.h.b16 %v9919
    %v10109 = vunpack.c.l.b16 %v9920
    %v10110 = vunpack.c.h.b16 %v9920
    %v10111 = vunpack.c.l.b16 %v9921
    %v10112 = vunpack.c.h.b16 %v9921
    %v10113 = vunpack.c.l.b16 %v9922
    %v10114 = vunpack.c.h.b16 %v9922
    %v10115 = vunpack.c.l.b16 %v9923
    %v10116 = vunpack.c.h.b16 %v9923
    %v10117 = vunpack.c.l.b16 %v9924
    %v10118 = vunpack.c.h.b16 %v9924
    %v10119 = vunpack.c.l.b16 %v9925
    %v10120 = vunpack.c.h.b16 %v9925
    %v10121 = vunpack.c.l.b16 %v9926
    %v10122 = vunpack.c.h.b16 %v9926
    %v10123 = vunpack.c.l.b16 %v9927
    %v10124 = vunpack.c.h.b16 %v9927
    %v10125 = vunpack.c.l.b16 %v9928
    %v10126 = vunpack.c.h.b16 %v9928
    %v10127 = vunpack.c.l.b16 %v9929
    %v10128 = vunpack.c.h.b16 %v9929
    %v10129 = vunpack.c.l.b16 %v9930
    %v10130 = vunpack.c.h.b16 %v9930
    %v10131 = vunpack.c.l.b16 %v9931
    %v10132 = vunpack.c.h.b16 %v9931
    %v10133 = vunpack.c.l.b16 %v9932
    %v10134 = vunpack.c.h.b16 %v9932
    %v10135 = vunpack.c.l.b16 %v9933
    %v10136 = vunpack.c.h.b16 %v9933
    %v10137 = vunpack.c.l.b16 %v9934
    %v10138 = vunpack.c.h.b16 %v9934
    %v10139 = vunpack.c.l.b16 %v9935
    %v10140 = vunpack.c.h.b16 %v9935
    %v10141 = vunpack.c.l.b16 %v9936
    %v10142 = vunpack.c.h.b16 %v9936
    %v10143 = vunpack.c.l.b16 %v9937
    %v10144 = vunpack.c.h.b16 %v9937
    %v10145 = vunpack.c.l.b16 %v9938
    %v10146 = vunpack.c.h.b16 %v9938
    %v10147 = vunpack.c.l.b16 %v9939
    %v10148 = vunpack.c.h.b16 %v9939
    %v10149 = vunpack.c.l.b16 %v9940
    %v10150 = vunpack.c.h.b16 %v9940
    %v10151 = vunpack.c.l.b16 %v9941
    %v10152 = vunpack.c.h.b16 %v9941
    %v10153 = vunpack.c.l.b16 %v9942
    %v10154 = vunpack.c.h.b16 %v9942
    %v10155 = vunpack.c.l.b16 %v9943
    %v10156 = vunpack.c.h.b16 %v9943
    %v10157 = vunpack.c.l.b16 %v9944
    %v10158 = vunpack.c.h.b16 %v9944
    %v10159 = vunpack.c.l.b16 %v9945
    %v10160 = vunpack.c.h.b16 %v9945
    %v10161 = vunpack.c.l.b16 %v9946
    %v10162 = vunpack.c.h.b16 %v9946
    %v10163 = vunpack.c.l.b16 %v9947
    %v10164 = vunpack.c.h.b16 %v9947
    %v10165 = vunpack.c.l.b16 %v9948
    %v10166 = vunpack.c.h.b16 %v9948
    %v10167 = vunpack.c.l.b16 %v9949
    %v10168 = vunpack.c.h.b16 %v9949
    %v10169 = vunpack.c.l.b16 %v9950
    %v10170 = vunpack.c.h.b16 %v9950
    %v10171 = vunpack.c.l.b16 %v9951
    %v10172 = vunpack.c.h.b16 %v9951
    %v10173 = vunpack.c.l.b16 %v9952
    %v10174 = vunpack.c.h.b16 %v9952
    %v10175 = vunpack.c.l.b16 %v9953
    %v10176 = vunpack.c.h.b16 %v9953
    %v10177 = vunpack.c.l.b16 %v9954
    %v10178 = vunpack.c.h.b16 %v9954
    %v10179 = vunpack.c.l.b16 %v9955
    %v10180 = vunpack.c.h.b16 %v9955
    %v10181 = vunpack.c.l.b16 %v9956
    %v10182 = vunpack.c.h.b16 %v9956
    %v10183 = vunpack.c.l.b16 %v9957
    %v10184 = vunpack.c.h.b16 %v9957
    %v10185 = vunpack.c.l.b16 %v9958
    %v10186 = vunpack.c.h.b16 %v9958
    %v10187 = vpack.c.b16 %v10059, %v10057
    %v10188 = vpack.c.b16 %v10060, %v10058
    %v10189 = vpack.c.b16 %v10063, %v10061
    %v10190 = vpack.c.b16 %v10064, %v10062
    %v10191 = vpack.c.b16 %v10067, %v10065
    %v10192 = vpack.c.b16 %v10068, %v10066
    %v10193 = vpack.c.b16 %v10071, %v10069
    %v10194 = vpack.c.b16 %v10072, %v10070
    %v10195 = vpack.c.b16 %v10075, %v10073
    %v10196 = vpack.c.b16 %v10076, %v10074
    %v10197 = vpack.c.b16 %v10079, %v10077
    %v10198 = vpack.c.b16 %v10080, %v10078
    %v10199 = vpack.c.b16 %v10083, %v10081
    %v10200 = vpack.c.b16 %v10084, %v10082
    %v10201 = vpack.c.b16 %v10087, %v10085
    %v10202 = vpack.c.b16 %v10088, %v10086
    %v10203 = vpack.c.b16 %v10091, %v10089
    %v10204 = vpack.c.b16 %v10092, %v10090
    %v10205 = vpack.c.b16 %v10095, %v10093
    %v10206 = vpack.c.b16 %v10096, %v10094
    %v10207 = vpack.c.b16 %v10099, %v10097
    %v10208 = vpack.c.b16 %v10100, %v10098
    %v10209 = vpack.c.b16 %v10103, %v10101
    %v10210 = vpack.c.b16 %v10104, %v10102
    %v10211 = vpack.c.b16 %v10107, %v10105
    %v10212 = vpack.c.b16 %v10108, %v10106
    %v10213 = vpack.c.b16 %v10111, %v10109
    %v10214 = vpack.c.b16 %v10112, %v10110
    %v10215 = vpack.c.b16 %v10115, %v10113
    %v10216 = vpack.c.b16 %v10116, %v10114
    %v10217 = vpack.c.b16 %v10119, %v10117
    %v10218 = vpack.c.b16 %v10120, %v10118
    %v10219 = vpack.c.b16 %v10123, %v10121
    %v10220 = vpack.c.b16 %v10124, %v10122
    %v10221 = vpack.c.b16 %v10127, %v10125
    %v10222 = vpack.c.b16 %v10128, %v10126
    %v10223 = vpack.c.b16 %v10131, %v10129
    %v10224 = vpack.c.b16 %v10132, %v10130
    %v10225 = vpack.c.b16 %v10135, %v10133
    %v10226 = vpack.c.b16 %v10136, %v10134
    %v10227 = vpack.c.b16 %v10139, %v10137
    %v10228 = vpack.c.b16 %v10140, %v10138
    %v10229 = vpack.c.b16 %v10143, %v10141
    %v10230 = vpack.c.b16 %v10144, %v10142
    %v10231 = vpack.c.b16 %v10147, %v10145
    %v10232 = vpack.c.b16 %v10148, %v10146
    %v10233 = vpack.c.b16 %v10151, %v10149
    %v10234 = vpack.c.b16 %v10152, %v10150
    %v10235 = vpack.c.b16 %v10155, %v10153
    %v10236 = vpack.c.b16 %v10156, %v10154
    %v10237 = vpack.c.b16 %v10159, %v10157
    %v10238 = vpack.c.b16 %v10160, %v10158
    %v10239 = vpack.c.b16 %v10163, %v10161
    %v10240 = vpack.c.b16 %v10164, %v10162
    %v10241 = vpack.c.b16 %v10167, %v10165
    %v10242 = vpack.c.b16 %v10168, %v10166
    %v10243 = vpack.c.b16 %v10171, %v10169
    %v10244 = vpack.c.b16 %v10172, %v10170
    %v10245 = vpack.c.b16 %v10175, %v10173
    %v10246 = vpack.c.b16 %v10176, %v10174
    %v10247 = vpack.c.b16 %v10179, %v10177
    %v10248 = vpack.c.b16 %v10180, %v10178
    %v10249 = vpack.c.b16 %v10183, %v10181
    %v10250 = vpack.c.b16 %v10184, %v10182
    %v10251 = vpack.c.b16 %v10185, %v10185
    %v10252 = vpack.c.b16 %v10186, %v10186
    %vm10253 = vsmask.f32 7424
    %v10255 = vshrl.u32 %v10187, 16
    %v10257 = vshll.u32 %v10187, 16
    %v10259 = vrot.slane %v10257, 1
    %v10260 = vor.u32 %v10255, %v10259
    %v10262 = vshll.u32 %v10189, 16
    %v10264 = vrot.slane %v10262, 1
    %v10265 = vsel %vm10253, %v10260, %v10264
    %v10267 = vshrl.u32 %v10188, 16
    %v10269 = vshll.u32 %v10188, 16
    %v10271 = vrot.slane %v10269, 1
    %v10272 = vor.u32 %v10267, %v10271
    %v10274 = vshll.u32 %v10190, 16
    %v10276 = vrot.slane %v10274, 1
    %v10277 = vsel %vm10253, %v10272, %v10276
    %v10278 = vshrl.u32 %v10189, 16
    %v10280 = vor.u32 %v10278, %v10264
    %v10282 = vshll.u32 %v10191, 16
    %v10284 = vrot.slane %v10282, 1
    %v10285 = vsel %vm10253, %v10280, %v10284
    %v10286 = vshrl.u32 %v10190, 16
    %v10288 = vor.u32 %v10286, %v10276
    %v10290 = vshll.u32 %v10192, 16
    %v10292 = vrot.slane %v10290, 1
    %v10293 = vsel %vm10253, %v10288, %v10292
    %v10294 = vshrl.u32 %v10191, 16
    %v10296 = vor.u32 %v10294, %v10284
    %v10298 = vshll.u32 %v10193, 16
    %v10300 = vrot.slane %v10298, 1
    %v10301 = vsel %vm10253, %v10296, %v10300
    %v10302 = vshrl.u32 %v10192, 16
    %v10304 = vor.u32 %v10302, %v10292
    %v10306 = vshll.u32 %v10194, 16
    %v10308 = vrot.slane %v10306, 1
    %v10309 = vsel %vm10253, %v10304, %v10308
    %v10310 = vshrl.u32 %v10193, 16
    %v10312 = vor.u32 %v10310, %v10300
    %v10314 = vshll.u32 %v10195, 16
    %v10316 = vrot.slane %v10314, 1
    %v10317 = vsel %vm10253, %v10312, %v10316
    %v10318 = vshrl.u32 %v10194, 16
    %v10320 = vor.u32 %v10318, %v10308
    %v10322 = vshll.u32 %v10196, 16
    %v10324 = vrot.slane %v10322, 1
    %v10325 = vsel %vm10253, %v10320, %v10324
    %v10326 = vshrl.u32 %v10195, 16
    %v10328 = vor.u32 %v10326, %v10316
    %v10330 = vshll.u32 %v10197, 16
    %v10332 = vrot.slane %v10330, 1
    %v10333 = vsel %vm10253, %v10328, %v10332
    %v10334 = vshrl.u32 %v10196, 16
    %v10336 = vor.u32 %v10334, %v10324
    %v10338 = vshll.u32 %v10198, 16
    %v10340 = vrot.slane %v10338, 1
    %v10341 = vsel %vm10253, %v10336, %v10340
    %v10342 = vshrl.u32 %v10197, 16
    %v10344 = vor.u32 %v10342, %v10332
    %v10346 = vshll.u32 %v10199, 16
    %v10348 = vrot.slane %v10346, 1
    %v10349 = vsel %vm10253, %v10344, %v10348
    %v10350 = vshrl.u32 %v10198, 16
    %v10352 = vor.u32 %v10350, %v10340
    %v10354 = vshll.u32 %v10200, 16
    %v10356 = vrot.slane %v10354, 1
    %v10357 = vsel %vm10253, %v10352, %v10356
    %v10358 = vshrl.u32 %v10199, 16
    %v10360 = vor.u32 %v10358, %v10348
    %v10362 = vshll.u32 %v10201, 16
    %v10364 = vrot.slane %v10362, 1
    %v10365 = vsel %vm10253, %v10360, %v10364
    %v10366 = vshrl.u32 %v10200, 16
    %v10368 = vor.u32 %v10366, %v10356
    %v10370 = vshll.u32 %v10202, 16
    %v10372 = vrot.slane %v10370, 1
    %v10373 = vsel %vm10253, %v10368, %v10372
    %v10374 = vshrl.u32 %v10201, 16
    %v10376 = vor.u32 %v10374, %v10364
    %v10378 = vshll.u32 %v10203, 16
    %v10380 = vrot.slane %v10378, 1
    %v10381 = vsel %vm10253, %v10376, %v10380
    %v10382 = vshrl.u32 %v10202, 16
    %v10384 = vor.u32 %v10382, %v10372
    %v10386 = vshll.u32 %v10204, 16
    %v10388 = vrot.slane %v10386, 1
    %v10389 = vsel %vm10253, %v10384, %v10388
    %v10390 = vshrl.u32 %v10203, 16
    %v10392 = vor.u32 %v10390, %v10380
    %v10394 = vshll.u32 %v10205, 16
    %v10396 = vrot.slane %v10394, 1
    %v10397 = vsel %vm10253, %v10392, %v10396
    %v10398 = vshrl.u32 %v10204, 16
    %v10400 = vor.u32 %v10398, %v10388
    %v10402 = vshll.u32 %v10206, 16
    %v10404 = vrot.slane %v10402, 1
    %v10405 = vsel %vm10253, %v10400, %v10404
    %v10406 = vshrl.u32 %v10205, 16
    %v10408 = vor.u32 %v10406, %v10396
    %v10410 = vshll.u32 %v10207, 16
    %v10412 = vrot.slane %v10410, 1
    %v10413 = vsel %vm10253, %v10408, %v10412
    %v10414 = vshrl.u32 %v10206, 16
    %v10416 = vor.u32 %v10414, %v10404
    %v10418 = vshll.u32 %v10208, 16
    %v10420 = vrot.slane %v10418, 1
    %v10421 = vsel %vm10253, %v10416, %v10420
    %v10422 = vshrl.u32 %v10207, 16
    %v10424 = vor.u32 %v10422, %v10412
    %v10426 = vshll.u32 %v10209, 16
    %v10428 = vrot.slane %v10426, 1
    %v10429 = vsel %vm10253, %v10424, %v10428
    %v10430 = vshrl.u32 %v10208, 16
    %v10432 = vor.u32 %v10430, %v10420
    %v10434 = vshll.u32 %v10210, 16
    %v10436 = vrot.slane %v10434, 1
    %v10437 = vsel %vm10253, %v10432, %v10436
    %v10438 = vshrl.u32 %v10209, 16
    %v10440 = vor.u32 %v10438, %v10428
    %v10442 = vshll.u32 %v10211, 16
    %v10444 = vrot.slane %v10442, 1
    %v10445 = vsel %vm10253, %v10440, %v10444
    %v10446 = vshrl.u32 %v10210, 16
    %v10448 = vor.u32 %v10446, %v10436
    %v10450 = vshll.u32 %v10212, 16
    %v10452 = vrot.slane %v10450, 1
    %v10453 = vsel %vm10253, %v10448, %v10452
    %v10454 = vshrl.u32 %v10211, 16
    %v10456 = vor.u32 %v10454, %v10444
    %v10458 = vshll.u32 %v10213, 16
    %v10460 = vrot.slane %v10458, 1
    %v10461 = vsel %vm10253, %v10456, %v10460
    %v10462 = vshrl.u32 %v10212, 16
    %v10464 = vor.u32 %v10462, %v10452
    %v10466 = vshll.u32 %v10214, 16
    %v10468 = vrot.slane %v10466, 1
    %v10469 = vsel %vm10253, %v10464, %v10468
    %v10470 = vshrl.u32 %v10213, 16
    %v10472 = vor.u32 %v10470, %v10460
    %v10474 = vshll.u32 %v10215, 16
    %v10476 = vrot.slane %v10474, 1
    %v10477 = vsel %vm10253, %v10472, %v10476
    %v10478 = vshrl.u32 %v10214, 16
    %v10480 = vor.u32 %v10478, %v10468
    %v10482 = vshll.u32 %v10216, 16
    %v10484 = vrot.slane %v10482, 1
    %v10485 = vsel %vm10253, %v10480, %v10484
    %v10486 = vshrl.u32 %v10215, 16
    %v10488 = vor.u32 %v10486, %v10476
    %v10490 = vshll.u32 %v10217, 16
    %v10492 = vrot.slane %v10490, 1
    %v10493 = vsel %vm10253, %v10488, %v10492
    %v10494 = vshrl.u32 %v10216, 16
    %v10496 = vor.u32 %v10494, %v10484
    %v10498 = vshll.u32 %v10218, 16
    %v10500 = vrot.slane %v10498, 1
    %v10501 = vsel %vm10253, %v10496, %v10500
    %v10502 = vshrl.u32 %v10217, 16
    %v10504 = vor.u32 %v10502, %v10492
    %v10506 = vshll.u32 %v10219, 16
    %v10508 = vrot.slane %v10506, 1
    %v10509 = vsel %vm10253, %v10504, %v10508
    %v10510 = vshrl.u32 %v10218, 16
    %v10512 = vor.u32 %v10510, %v10500
    %v10514 = vshll.u32 %v10220, 16
    %v10516 = vrot.slane %v10514, 1
    %v10517 = vsel %vm10253, %v10512, %v10516
    %v10518 = vshrl.u32 %v10219, 16
    %v10520 = vor.u32 %v10518, %v10508
    %v10522 = vshll.u32 %v10221, 16
    %v10524 = vrot.slane %v10522, 1
    %v10525 = vsel %vm10253, %v10520, %v10524
    %v10526 = vshrl.u32 %v10220, 16
    %v10528 = vor.u32 %v10526, %v10516
    %v10530 = vshll.u32 %v10222, 16
    %v10532 = vrot.slane %v10530, 1
    %v10533 = vsel %vm10253, %v10528, %v10532
    %v10534 = vshrl.u32 %v10221, 16
    %v10536 = vor.u32 %v10534, %v10524
    %v10538 = vshll.u32 %v10223, 16
    %v10540 = vrot.slane %v10538, 1
    %v10541 = vsel %vm10253, %v10536, %v10540
    %v10542 = vshrl.u32 %v10222, 16
    %v10544 = vor.u32 %v10542, %v10532
    %v10546 = vshll.u32 %v10224, 16
    %v10548 = vrot.slane %v10546, 1
    %v10549 = vsel %vm10253, %v10544, %v10548
    %v10550 = vshrl.u32 %v10223, 16
    %v10552 = vor.u32 %v10550, %v10540
    %v10554 = vshll.u32 %v10225, 16
    %v10556 = vrot.slane %v10554, 1
    %v10557 = vsel %vm10253, %v10552, %v10556
    %v10558 = vshrl.u32 %v10224, 16
    %v10560 = vor.u32 %v10558, %v10548
    %v10562 = vshll.u32 %v10226, 16
    %v10564 = vrot.slane %v10562, 1
    %v10565 = vsel %vm10253, %v10560, %v10564
    %v10566 = vshrl.u32 %v10225, 16
    %v10568 = vor.u32 %v10566, %v10556
    %v10570 = vshll.u32 %v10227, 16
    %v10572 = vrot.slane %v10570, 1
    %v10573 = vsel %vm10253, %v10568, %v10572
    %v10574 = vshrl.u32 %v10226, 16
    %v10576 = vor.u32 %v10574, %v10564
    %v10578 = vshll.u32 %v10228, 16
    %v10580 = vrot.slane %v10578, 1
    %v10581 = vsel %vm10253, %v10576, %v10580
    %v10582 = vshrl.u32 %v10227, 16
    %v10584 = vor.u32 %v10582, %v10572
    %v10586 = vshll.u32 %v10229, 16
    %v10588 = vrot.slane %v10586, 1
    %v10589 = vsel %vm10253, %v10584, %v10588
    %v10590 = vshrl.u32 %v10228, 16
    %v10592 = vor.u32 %v10590, %v10580
    %v10594 = vshll.u32 %v10230, 16
    %v10596 = vrot.slane %v10594, 1
    %v10597 = vsel %vm10253, %v10592, %v10596
    %v10598 = vshrl.u32 %v10229, 16
    %v10600 = vor.u32 %v10598, %v10588
    %v10602 = vshll.u32 %v10231, 16
    %v10604 = vrot.slane %v10602, 1
    %v10605 = vsel %vm10253, %v10600, %v10604
    %v10606 = vshrl.u32 %v10230, 16
    %v10608 = vor.u32 %v10606, %v10596
    %v10610 = vshll.u32 %v10232, 16
    %v10612 = vrot.slane %v10610, 1
    %v10613 = vsel %vm10253, %v10608, %v10612
    %v10614 = vshrl.u32 %v10231, 16
    %v10616 = vor.u32 %v10614, %v10604
    %v10618 = vshll.u32 %v10233, 16
    %v10620 = vrot.slane %v10618, 1
    %v10621 = vsel %vm10253, %v10616, %v10620
    %v10622 = vshrl.u32 %v10232, 16
    %v10624 = vor.u32 %v10622, %v10612
    %v10626 = vshll.u32 %v10234, 16
    %v10628 = vrot.slane %v10626, 1
    %v10629 = vsel %vm10253, %v10624, %v10628
    %v10630 = vshrl.u32 %v10233, 16
    %v10632 = vor.u32 %v10630, %v10620
    %v10634 = vshll.u32 %v10235, 16
    %v10636 = vrot.slane %v10634, 1
    %v10637 = vsel %vm10253, %v10632, %v10636
    %v10638 = vshrl.u32 %v10234, 16
    %v10640 = vor.u32 %v10638, %v10628
    %v10642 = vshll.u32 %v10236, 16
    %v10644 = vrot.slane %v10642, 1
    %v10645 = vsel %vm10253, %v10640, %v10644
    %v10646 = vshrl.u32 %v10235, 16
    %v10648 = vor.u32 %v10646, %v10636
    %v10650 = vshll.u32 %v10237, 16
    %v10652 = vrot.slane %v10650, 1
    %v10653 = vsel %vm10253, %v10648, %v10652
    %v10654 = vshrl.u32 %v10236, 16
    %v10656 = vor.u32 %v10654, %v10644
    %v10658 = vshll.u32 %v10238, 16
    %v10660 = vrot.slane %v10658, 1
    %v10661 = vsel %vm10253, %v10656, %v10660
    %v10662 = vshrl.u32 %v10237, 16
    %v10664 = vor.u32 %v10662, %v10652
    %v10666 = vshll.u32 %v10239, 16
    %v10668 = vrot.slane %v10666, 1
    %v10669 = vsel %vm10253, %v10664, %v10668
    %v10670 = vshrl.u32 %v10238, 16
    %v10672 = vor.u32 %v10670, %v10660
    %v10674 = vshll.u32 %v10240, 16
    %v10676 = vrot.slane %v10674, 1
    %v10677 = vsel %vm10253, %v10672, %v10676
    %v10678 = vshrl.u32 %v10239, 16
    %v10680 = vor.u32 %v10678, %v10668
    %v10682 = vshll.u32 %v10241, 16
    %v10684 = vrot.slane %v10682, 1
    %v10685 = vsel %vm10253, %v10680, %v10684
    %v10686 = vshrl.u32 %v10240, 16
    %v10688 = vor.u32 %v10686, %v10676
    %v10690 = vshll.u32 %v10242, 16
    %v10692 = vrot.slane %v10690, 1
    %v10693 = vsel %vm10253, %v10688, %v10692
    %v10694 = vshrl.u32 %v10241, 16
    %v10696 = vor.u32 %v10694, %v10684
    %v10698 = vshll.u32 %v10243, 16
    %v10700 = vrot.slane %v10698, 1
    %v10701 = vsel %vm10253, %v10696, %v10700
    %v10702 = vshrl.u32 %v10242, 16
    %v10704 = vor.u32 %v10702, %v10692
    %v10706 = vshll.u32 %v10244, 16
    %v10708 = vrot.slane %v10706, 1
    %v10709 = vsel %vm10253, %v10704, %v10708
    %v10710 = vshrl.u32 %v10243, 16
    %v10712 = vor.u32 %v10710, %v10700
    %v10714 = vshll.u32 %v10245, 16
    %v10716 = vrot.slane %v10714, 1
    %v10717 = vsel %vm10253, %v10712, %v10716
    %v10718 = vshrl.u32 %v10244, 16
    %v10720 = vor.u32 %v10718, %v10708
    %v10722 = vshll.u32 %v10246, 16
    %v10724 = vrot.slane %v10722, 1
    %v10725 = vsel %vm10253, %v10720, %v10724
    %v10726 = vshrl.u32 %v10245, 16
    %v10728 = vor.u32 %v10726, %v10716
    %v10730 = vshll.u32 %v10247, 16
    %v10732 = vrot.slane %v10730, 1
    %v10733 = vsel %vm10253, %v10728, %v10732
    %v10734 = vshrl.u32 %v10246, 16
    %v10736 = vor.u32 %v10734, %v10724
    %v10738 = vshll.u32 %v10248, 16
    %v10740 = vrot.slane %v10738, 1
    %v10741 = vsel %vm10253, %v10736, %v10740
    %v10742 = vshrl.u32 %v10247, 16
    %v10744 = vor.u32 %v10742, %v10732
    %v10746 = vshll.u32 %v10249, 16
    %v10748 = vrot.slane %v10746, 1
    %v10749 = vsel %vm10253, %v10744, %v10748
    %v10750 = vshrl.u32 %v10248, 16
    %v10752 = vor.u32 %v10750, %v10740
    %v10754 = vshll.u32 %v10250, 16
    %v10756 = vrot.slane %v10754, 1
    %v10757 = vsel %vm10253, %v10752, %v10756
    %v10758 = vshrl.u32 %v10249, 16
    %v10760 = vor.u32 %v10758, %v10748
    %v10762 = vshll.u32 %v10251, 16
    %v10764 = vrot.slane %v10762, 1
    %v10765 = vsel %vm10253, %v10760, %v10764
    %v10766 = vshrl.u32 %v10250, 16
    %v10768 = vor.u32 %v10766, %v10756
    %v10770 = vshll.u32 %v10252, 16
    %v10772 = vrot.slane %v10770, 1
    %v10773 = vsel %vm10253, %v10768, %v10772
    %v10870 = vunpack.c.l.b16 %v9960
    %v10871 = vunpack.c.l.b16 %v9961
    %v10872 = vunpack.c.l.b16 %v9962
    %v10873 = vunpack.c.l.b16 %v9963
    %v10874 = vunpack.c.l.b16 %v9964
    %v10875 = vunpack.c.l.b16 %v9965
    %v10876 = vunpack.c.l.b16 %v9966
    %v10877 = vunpack.c.l.b16 %v9967
    %v10878 = vunpack.c.l.b16 %v9968
    %v10879 = vunpack.c.l.b16 %v9969
    %v10880 = vunpack.c.l.b16 %v9970
    %v10881 = vunpack.c.l.b16 %v9971
    %v10882 = vunpack.c.l.b16 %v9972
    %v10883 = vunpack.c.l.b16 %v9973
    %v10884 = vunpack.c.l.b16 %v9974
    %v10885 = vunpack.c.l.b16 %v9975
    %v10886 = vunpack.c.l.b16 %v9976
    %v10887 = vunpack.c.l.b16 %v9977
    %v10888 = vunpack.c.l.b16 %v9978
    %v10889 = vunpack.c.l.b16 %v9979
    %v10890 = vunpack.c.l.b16 %v9980
    %v10891 = vunpack.c.l.b16 %v9981
    %v10892 = vunpack.c.l.b16 %v9982
    %v10893 = vunpack.c.l.b16 %v9983
    %v10894 = vunpack.c.l.b16 %v9984
    %v10895 = vunpack.c.l.b16 %v9985
    %v10896 = vunpack.c.l.b16 %v9986
    %v10897 = vunpack.c.l.b16 %v9987
    %v10898 = vunpack.c.l.b16 %v9988
    %v10899 = vunpack.c.l.b16 %v9989
    %v10900 = vunpack.c.l.b16 %v9990
    %v10901 = vunpack.c.l.b16 %v9991
    %v10902 = vpack.c.b16 %v10871, %v10870
    %v10903 = vpack.c.b16 %v10873, %v10872
    %v10904 = vpack.c.b16 %v10875, %v10874
    %v10905 = vpack.c.b16 %v10877, %v10876
    %v10906 = vpack.c.b16 %v10879, %v10878
    %v10907 = vpack.c.b16 %v10881, %v10880
    %v10908 = vpack.c.b16 %v10883, %v10882
    %v10909 = vpack.c.b16 %v10885, %v10884
    %v10910 = vpack.c.b16 %v10887, %v10886
    %v10911 = vpack.c.b16 %v10889, %v10888
    %v10912 = vpack.c.b16 %v10891, %v10890
    %v10913 = vpack.c.b16 %v10893, %v10892
    %v10914 = vpack.c.b16 %v10895, %v10894
    %v10915 = vpack.c.b16 %v10897, %v10896
    %v10916 = vpack.c.b16 %v10899, %v10898
    %v10917 = vpack.c.b16 %v10901, %v10900
    %10934 = vmatpush.bf16.msra.mxu0 %v10909
    %10935 = vmatpush.bf16.msra.mxu0 %v10908
    %10936 = vmatpush.bf16.msra.mxu0 %v10907
    %10937 = vmatpush.bf16.msra.mxu0 %v10906
    %10938 = vmatpush.bf16.msra.mxu0 %v10905
    %10939 = vmatpush.bf16.msra.mxu0 %v10904
    %10940 = vmatpush.bf16.msra.mxu0 %v10903
    %10941 = vmatpush.bf16.msra.mxu0 %v10902
    %10942 = vmatmul.bf16.gmra.mxu0 %v10265
    %v10943 = vpop.f32.mrf.mxu0
    %v10944 = vadd.f32 0.0, %v10943
    %v10945 = vpop.f32.mrf.mxu0
    %v10946 = vadd.f32 0.0, %v10945
    %10947 = vmatmul.bf16.gmra.mxu0 %v10285
    %v10948 = vpop.f32.mrf.mxu0
    %v10949 = vadd.f32 0.0, %v10948
    %v10950 = vpop.f32.mrf.mxu0
    %v10951 = vadd.f32 0.0, %v10950
    %10952 = vmatmul.bf16.gmra.mxu0 %v10301
    %v10953 = vpop.f32.mrf.mxu0
    %v10954 = vadd.f32 0.0, %v10953
    %v10955 = vpop.f32.mrf.mxu0
    %v10956 = vadd.f32 0.0, %v10955
    %10957 = vmatmul.bf16.gmra.mxu0 %v10317
    %v10958 = vpop.f32.mrf.mxu0
    %v10959 = vadd.f32 0.0, %v10958
    %v10960 = vpop.f32.mrf.mxu0
    %v10961 = vadd.f32 0.0, %v10960
    %10962 = vmatmul.bf16.gmra.mxu0 %v10333
    %v10963 = vpop.f32.mrf.mxu0
    %v10964 = vadd.f32 0.0, %v10963
    %v10965 = vpop.f32.mrf.mxu0
    %v10966 = vadd.f32 0.0, %v10965
    %10967 = vmatmul.bf16.gmra.mxu0 %v10349
    %v10968 = vpop.f32.mrf.mxu0
    %v10969 = vadd.f32 0.0, %v10968
    %v10970 = vpop.f32.mrf.mxu0
    %v10971 = vadd.f32 0.0, %v10970
    %10972 = vmatmul.bf16.gmra.mxu0 %v10365
    %v10973 = vpop.f32.mrf.mxu0
    %v10974 = vadd.f32 0.0, %v10973
    %v10975 = vpop.f32.mrf.mxu0
    %v10976 = vadd.f32 0.0, %v10975
    %10977 = vmatmul.bf16.gmra.mxu0 %v10381
    %v10978 = vpop.f32.mrf.mxu0
    %v10979 = vadd.f32 0.0, %v10978
    %v10980 = vpop.f32.mrf.mxu0
    %v10981 = vadd.f32 0.0, %v10980
    %10982 = vmatmul.bf16.gmra.mxu0 %v10397
    %v10983 = vpop.f32.mrf.mxu0
    %v10984 = vadd.f32 0.0, %v10983
    %v10985 = vpop.f32.mrf.mxu0
    %v10986 = vadd.f32 0.0, %v10985
    %10987 = vmatmul.bf16.gmra.mxu0 %v10413
    %v10988 = vpop.f32.mrf.mxu0
    %v10989 = vadd.f32 0.0, %v10988
    %v10990 = vpop.f32.mrf.mxu0
    %v10991 = vadd.f32 0.0, %v10990
    %10992 = vmatmul.bf16.gmra.mxu0 %v10429
    %v10993 = vpop.f32.mrf.mxu0
    %v10994 = vadd.f32 0.0, %v10993
    %v10995 = vpop.f32.mrf.mxu0
    %v10996 = vadd.f32 0.0, %v10995
    %10997 = vmatmul.bf16.gmra.mxu0 %v10445
    %v10998 = vpop.f32.mrf.mxu0
    %v10999 = vadd.f32 0.0, %v10998
    %v11000 = vpop.f32.mrf.mxu0
    %v11001 = vadd.f32 0.0, %v11000
    %11002 = vmatmul.bf16.gmra.mxu0 %v10461
    %v11003 = vpop.f32.mrf.mxu0
    %v11004 = vadd.f32 0.0, %v11003
    %v11005 = vpop.f32.mrf.mxu0
    %v11006 = vadd.f32 0.0, %v11005
    %11007 = vmatmul.bf16.gmra.mxu0 %v10477
    %v11008 = vpop.f32.mrf.mxu0
    %v11009 = vadd.f32 0.0, %v11008
    %v11010 = vpop.f32.mrf.mxu0
    %v11011 = vadd.f32 0.0, %v11010
    %11012 = vmatmul.bf16.gmra.mxu0 %v10493
    %v11013 = vpop.f32.mrf.mxu0
    %v11014 = vadd.f32 0.0, %v11013
    %v11015 = vpop.f32.mrf.mxu0
    %v11016 = vadd.f32 0.0, %v11015
    %11017 = vmatmul.bf16.gmra.mxu0 %v10509
    %v11018 = vpop.f32.mrf.mxu0
    %v11019 = vadd.f32 0.0, %v11018
    %v11020 = vpop.f32.mrf.mxu0
    %v11021 = vadd.f32 0.0, %v11020
    %11022 = vmatmul.bf16.gmra.mxu0 %v10525
    %v11023 = vpop.f32.mrf.mxu0
    %v11024 = vadd.f32 0.0, %v11023
    %v11025 = vpop.f32.mrf.mxu0
    %v11026 = vadd.f32 0.0, %v11025
    %11027 = vmatmul.bf16.gmra.mxu0 %v10541
    %v11028 = vpop.f32.mrf.mxu0
    %v11029 = vadd.f32 0.0, %v11028
    %v11030 = vpop.f32.mrf.mxu0
    %v11031 = vadd.f32 0.0, %v11030
    %11032 = vmatmul.bf16.gmra.mxu0 %v10557
    %v11033 = vpop.f32.mrf.mxu0
    %v11034 = vadd.f32 0.0, %v11033
    %v11035 = vpop.f32.mrf.mxu0
    %v11036 = vadd.f32 0.0, %v11035
    %11037 = vmatmul.bf16.gmra.mxu0 %v10573
    %v11038 = vpop.f32.mrf.mxu0
    %v11039 = vadd.f32 0.0, %v11038
    %v11040 = vpop.f32.mrf.mxu0
    %v11041 = vadd.f32 0.0, %v11040
    %11042 = vmatmul.bf16.gmra.mxu0 %v10589
    %v11043 = vpop.f32.mrf.mxu0
    %v11044 = vadd.f32 0.0, %v11043
    %v11045 = vpop.f32.mrf.mxu0
    %v11046 = vadd.f32 0.0, %v11045
    %11047 = vmatmul.bf16.gmra.mxu0 %v10605
    %v11048 = vpop.f32.mrf.mxu0
    %v11049 = vadd.f32 0.0, %v11048
    %v11050 = vpop.f32.mrf.mxu0
    %v11051 = vadd.f32 0.0, %v11050
    %11052 = vmatmul.bf16.gmra.mxu0 %v10621
    %v11053 = vpop.f32.mrf.mxu0
    %v11054 = vadd.f32 0.0, %v11053
    %v11055 = vpop.f32.mrf.mxu0
    %v11056 = vadd.f32 0.0, %v11055
    %11057 = vmatmul.bf16.gmra.mxu0 %v10637
    %v11058 = vpop.f32.mrf.mxu0
    %v11059 = vadd.f32 0.0, %v11058
    %v11060 = vpop.f32.mrf.mxu0
    %v11061 = vadd.f32 0.0, %v11060
    %11062 = vmatmul.bf16.gmra.mxu0 %v10653
    %v11063 = vpop.f32.mrf.mxu0
    %v11064 = vadd.f32 0.0, %v11063
    %v11065 = vpop.f32.mrf.mxu0
    %v11066 = vadd.f32 0.0, %v11065
    %11067 = vmatmul.bf16.gmra.mxu0 %v10669
    %v11068 = vpop.f32.mrf.mxu0
    %v11069 = vadd.f32 0.0, %v11068
    %v11070 = vpop.f32.mrf.mxu0
    %v11071 = vadd.f32 0.0, %v11070
    %11072 = vmatmul.bf16.gmra.mxu0 %v10685
    %v11073 = vpop.f32.mrf.mxu0
    %v11074 = vadd.f32 0.0, %v11073
    %v11075 = vpop.f32.mrf.mxu0
    %v11076 = vadd.f32 0.0, %v11075
    %11077 = vmatmul.bf16.gmra.mxu0 %v10701
    %v11078 = vpop.f32.mrf.mxu0
    %v11079 = vadd.f32 0.0, %v11078
    %v11080 = vpop.f32.mrf.mxu0
    %v11081 = vadd.f32 0.0, %v11080
    %11082 = vmatmul.bf16.gmra.mxu0 %v10717
    %v11083 = vpop.f32.mrf.mxu0
    %v11084 = vadd.f32 0.0, %v11083
    %v11085 = vpop.f32.mrf.mxu0
    %v11086 = vadd.f32 0.0, %v11085
    %11087 = vmatmul.bf16.gmra.mxu0 %v10733
    %v11088 = vpop.f32.mrf.mxu0
    %v11089 = vadd.f32 0.0, %v11088
    %v11090 = vpop.f32.mrf.mxu0
    %v11091 = vadd.f32 0.0, %v11090
    %11092 = vmatmul.bf16.gmra.mxu0 %v10749
    %v11093 = vpop.f32.mrf.mxu0
    %v11094 = vadd.f32 0.0, %v11093
    %v11095 = vpop.f32.mrf.mxu0
    %v11096 = vadd.f32 0.0, %v11095
    %11097 = vmatmul.bf16.gmra.mxu0 %v10765
    %v11098 = vpop.f32.mrf.mxu0
    %v11099 = vadd.f32 0.0, %v11098
    %v11100 = vpop.f32.mrf.mxu0
    %v11101 = vadd.f32 0.0, %v11100
    %11102 = vdwg.mxu0
    %11103 = vmatpush.bf16.msra.mxu0 %v10917
    %11104 = vmatpush.bf16.msra.mxu0 %v10916
    %11105 = vmatpush.bf16.msra.mxu0 %v10915
    %11106 = vmatpush.bf16.msra.mxu0 %v10914
    %11107 = vmatpush.bf16.msra.mxu0 %v10913
    %11108 = vmatpush.bf16.msra.mxu0 %v10912
    %11109 = vmatpush.bf16.msra.mxu0 %v10911
    %11110 = vmatpush.bf16.msra.mxu0 %v10910
    %11111 = vmatmul.bf16.gmra.mxu0 %v10277
    %v11112 = vpop.f32.mrf.mxu0
    %v11113 = vadd.f32 %v10944, %v11112
    %v11114 = vpop.f32.mrf.mxu0
    %v11115 = vadd.f32 %v10946, %v11114
    %11116 = vmatmul.bf16.gmra.mxu0 %v10293
    %v11117 = vpop.f32.mrf.mxu0
    %v11118 = vadd.f32 %v10949, %v11117
    %v11119 = vpop.f32.mrf.mxu0
    %v11120 = vadd.f32 %v10951, %v11119
    %11121 = vmatmul.bf16.gmra.mxu0 %v10309
    %v11122 = vpop.f32.mrf.mxu0
    %v11123 = vadd.f32 %v10954, %v11122
    %v11124 = vpop.f32.mrf.mxu0
    %v11125 = vadd.f32 %v10956, %v11124
    %11126 = vmatmul.bf16.gmra.mxu0 %v10325
    %v11127 = vpop.f32.mrf.mxu0
    %v11128 = vadd.f32 %v10959, %v11127
    %v11129 = vpop.f32.mrf.mxu0
    %v11130 = vadd.f32 %v10961, %v11129
    %11131 = vmatmul.bf16.gmra.mxu0 %v10341
    %v11132 = vpop.f32.mrf.mxu0
    %v11133 = vadd.f32 %v10964, %v11132
    %v11134 = vpop.f32.mrf.mxu0
    %v11135 = vadd.f32 %v10966, %v11134
    %11136 = vmatmul.bf16.gmra.mxu0 %v10357
    %v11137 = vpop.f32.mrf.mxu0
    %v11138 = vadd.f32 %v10969, %v11137
    %v11139 = vpop.f32.mrf.mxu0
    %v11140 = vadd.f32 %v10971, %v11139
    %11141 = vmatmul.bf16.gmra.mxu0 %v10373
    %v11142 = vpop.f32.mrf.mxu0
    %v11143 = vadd.f32 %v10974, %v11142
    %v11144 = vpop.f32.mrf.mxu0
    %v11145 = vadd.f32 %v10976, %v11144
    %11146 = vmatmul.bf16.gmra.mxu0 %v10389
    %v11147 = vpop.f32.mrf.mxu0
    %v11148 = vadd.f32 %v10979, %v11147
    %v11149 = vpop.f32.mrf.mxu0
    %v11150 = vadd.f32 %v10981, %v11149
    %11151 = vmatmul.bf16.gmra.mxu0 %v10405
    %v11152 = vpop.f32.mrf.mxu0
    %v11153 = vadd.f32 %v10984, %v11152
    %v11154 = vpop.f32.mrf.mxu0
    %v11155 = vadd.f32 %v10986, %v11154
    %11156 = vmatmul.bf16.gmra.mxu0 %v10421
    %v11157 = vpop.f32.mrf.mxu0
    %v11158 = vadd.f32 %v10989, %v11157
    %v11159 = vpop.f32.mrf.mxu0
    %v11160 = vadd.f32 %v10991, %v11159
    %11161 = vmatmul.bf16.gmra.mxu0 %v10437
    %v11162 = vpop.f32.mrf.mxu0
    %v11163 = vadd.f32 %v10994, %v11162
    %v11164 = vpop.f32.mrf.mxu0
    %v11165 = vadd.f32 %v10996, %v11164
    %11166 = vmatmul.bf16.gmra.mxu0 %v10453
    %v11167 = vpop.f32.mrf.mxu0
    %v11168 = vadd.f32 %v10999, %v11167
    %v11169 = vpop.f32.mrf.mxu0
    %v11170 = vadd.f32 %v11001, %v11169
    %11171 = vmatmul.bf16.gmra.mxu0 %v10469
    %v11172 = vpop.f32.mrf.mxu0
    %v11173 = vadd.f32 %v11004, %v11172
    %v11174 = vpop.f32.mrf.mxu0
    %v11175 = vadd.f32 %v11006, %v11174
    %11176 = vmatmul.bf16.gmra.mxu0 %v10485
    %v11177 = vpop.f32.mrf.mxu0
    %v11178 = vadd.f32 %v11009, %v11177
    %v11179 = vpop.f32.mrf.mxu0
    %v11180 = vadd.f32 %v11011, %v11179
    %11181 = vmatmul.bf16.gmra.mxu0 %v10501
    %v11182 = vpop.f32.mrf.mxu0
    %v11183 = vadd.f32 %v11014, %v11182
    %v11184 = vpop.f32.mrf.mxu0
    %v11185 = vadd.f32 %v11016, %v11184
    %11186 = vmatmul.bf16.gmra.mxu0 %v10517
    %v11187 = vpop.f32.mrf.mxu0
    %v11188 = vadd.f32 %v11019, %v11187
    %v11189 = vpop.f32.mrf.mxu0
    %v11190 = vadd.f32 %v11021, %v11189
    %11191 = vmatmul.bf16.gmra.mxu0 %v10533
    %v11192 = vpop.f32.mrf.mxu0
    %v11193 = vadd.f32 %v11024, %v11192
    %v11194 = vpop.f32.mrf.mxu0
    %v11195 = vadd.f32 %v11026, %v11194
    %11196 = vmatmul.bf16.gmra.mxu0 %v10549
    %v11197 = vpop.f32.mrf.mxu0
    %v11198 = vadd.f32 %v11029, %v11197
    %v11199 = vpop.f32.mrf.mxu0
    %v11200 = vadd.f32 %v11031, %v11199
    %11201 = vmatmul.bf16.gmra.mxu0 %v10565
    %v11202 = vpop.f32.mrf.mxu0
    %v11203 = vadd.f32 %v11034, %v11202
    %v11204 = vpop.f32.mrf.mxu0
    %v11205 = vadd.f32 %v11036, %v11204
    %11206 = vmatmul.bf16.gmra.mxu0 %v10581
    %v11207 = vpop.f32.mrf.mxu0
    %v11208 = vadd.f32 %v11039, %v11207
    %v11209 = vpop.f32.mrf.mxu0
    %v11210 = vadd.f32 %v11041, %v11209
    %11211 = vmatmul.bf16.gmra.mxu0 %v10597
    %v11212 = vpop.f32.mrf.mxu0
    %v11213 = vadd.f32 %v11044, %v11212
    %v11214 = vpop.f32.mrf.mxu0
    %v11215 = vadd.f32 %v11046, %v11214
    %11216 = vmatmul.bf16.gmra.mxu0 %v10613
    %v11217 = vpop.f32.mrf.mxu0
    %v11218 = vadd.f32 %v11049, %v11217
    %v11219 = vpop.f32.mrf.mxu0
    %v11220 = vadd.f32 %v11051, %v11219
    %11221 = vmatmul.bf16.gmra.mxu0 %v10629
    %v11222 = vpop.f32.mrf.mxu0
    %v11223 = vadd.f32 %v11054, %v11222
    %v11224 = vpop.f32.mrf.mxu0
    %v11225 = vadd.f32 %v11056, %v11224
    %11226 = vmatmul.bf16.gmra.mxu0 %v10645
    %v11227 = vpop.f32.mrf.mxu0
    %v11228 = vadd.f32 %v11059, %v11227
    %v11229 = vpop.f32.mrf.mxu0
    %v11230 = vadd.f32 %v11061, %v11229
    %11231 = vmatmul.bf16.gmra.mxu0 %v10661
    %v11232 = vpop.f32.mrf.mxu0
    %v11233 = vadd.f32 %v11064, %v11232
    %v11234 = vpop.f32.mrf.mxu0
    %v11235 = vadd.f32 %v11066, %v11234
    %11236 = vmatmul.bf16.gmra.mxu0 %v10677
    %v11237 = vpop.f32.mrf.mxu0
    %v11238 = vadd.f32 %v11069, %v11237
    %v11239 = vpop.f32.mrf.mxu0
    %v11240 = vadd.f32 %v11071, %v11239
    %11241 = vmatmul.bf16.gmra.mxu0 %v10693
    %v11242 = vpop.f32.mrf.mxu0
    %v11243 = vadd.f32 %v11074, %v11242
    %v11244 = vpop.f32.mrf.mxu0
    %v11245 = vadd.f32 %v11076, %v11244
    %11246 = vmatmul.bf16.gmra.mxu0 %v10709
    %v11247 = vpop.f32.mrf.mxu0
    %v11248 = vadd.f32 %v11079, %v11247
    %v11249 = vpop.f32.mrf.mxu0
    %v11250 = vadd.f32 %v11081, %v11249
    %11251 = vmatmul.bf16.gmra.mxu0 %v10725
    %v11252 = vpop.f32.mrf.mxu0
    %v11253 = vadd.f32 %v11084, %v11252
    %v11254 = vpop.f32.mrf.mxu0
    %v11255 = vadd.f32 %v11086, %v11254
    %11256 = vmatmul.bf16.gmra.mxu0 %v10741
    %v11257 = vpop.f32.mrf.mxu0
    %v11258 = vadd.f32 %v11089, %v11257
    %v11259 = vpop.f32.mrf.mxu0
    %v11260 = vadd.f32 %v11091, %v11259
    %11261 = vmatmul.bf16.gmra.mxu0 %v10757
    %v11262 = vpop.f32.mrf.mxu0
    %v11263 = vadd.f32 %v11094, %v11262
    %v11264 = vpop.f32.mrf.mxu0
    %v11265 = vadd.f32 %v11096, %v11264
    %11266 = vmatmul.bf16.gmra.mxu0 %v10773
    %v11267 = vpop.f32.mrf.mxu0
    %v11268 = vadd.f32 %v11099, %v11267
    %v11269 = vpop.f32.mrf.mxu0
    %v11270 = vadd.f32 %v11101, %v11269
    %11271 = vdwg.mxu0
    %v11272 = vadd.f32 %v9735, %v11113
    %v11273 = vadd.f32 %v9737, %v11115
    %v11274 = vadd.f32 %v9740, %v11118
    %v11275 = vadd.f32 %v9742, %v11120
    %v11276 = vadd.f32 %v9745, %v11123
    %v11277 = vadd.f32 %v9747, %v11125
    %v11278 = vadd.f32 %v9750, %v11128
    %v11279 = vadd.f32 %v9752, %v11130
    %v11280 = vadd.f32 %v9755, %v11133
    %v11281 = vadd.f32 %v9757, %v11135
    %v11282 = vadd.f32 %v9760, %v11138
    %v11283 = vadd.f32 %v9762, %v11140
    %v11284 = vadd.f32 %v9765, %v11143
    %v11285 = vadd.f32 %v9767, %v11145
    %v11286 = vadd.f32 %v9770, %v11148
    %v11287 = vadd.f32 %v9772, %v11150
    %v11288 = vadd.f32 %v9775, %v11153
    %v11289 = vadd.f32 %v9777, %v11155
    %v11290 = vadd.f32 %v9780, %v11158
    %v11291 = vadd.f32 %v9782, %v11160
    %v11292 = vadd.f32 %v9785, %v11163
    %v11293 = vadd.f32 %v9787, %v11165
    %v11294 = vadd.f32 %v9790, %v11168
    %v11295 = vadd.f32 %v9792, %v11170
    %v11296 = vadd.f32 %v9795, %v11173
    %v11297 = vadd.f32 %v9797, %v11175
    %v11298 = vadd.f32 %v9800, %v11178
    %v11299 = vadd.f32 %v9802, %v11180
    %v11300 = vadd.f32 %v9805, %v11183
    %v11301 = vadd.f32 %v9807, %v11185
    %v11302 = vadd.f32 %v9810, %v11188
    %v11303 = vadd.f32 %v9812, %v11190
    %v11304 = vadd.f32 %v9815, %v11193
    %v11305 = vadd.f32 %v9817, %v11195
    %v11306 = vadd.f32 %v9820, %v11198
    %v11307 = vadd.f32 %v9822, %v11200
    %v11308 = vadd.f32 %v9825, %v11203
    %v11309 = vadd.f32 %v9827, %v11205
    %v11310 = vadd.f32 %v9830, %v11208
    %v11311 = vadd.f32 %v9832, %v11210
    %v11312 = vadd.f32 %v9835, %v11213
    %v11313 = vadd.f32 %v9837, %v11215
    %v11314 = vadd.f32 %v9840, %v11218
    %v11315 = vadd.f32 %v9842, %v11220
    %v11316 = vadd.f32 %v9845, %v11223
    %v11317 = vadd.f32 %v9847, %v11225
    %v11318 = vadd.f32 %v9850, %v11228
    %v11319 = vadd.f32 %v9852, %v11230
    %v11320 = vadd.f32 %v9855, %v11233
    %v11321 = vadd.f32 %v9857, %v11235
    %v11322 = vadd.f32 %v9860, %v11238
    %v11323 = vadd.f32 %v9862, %v11240
    %v11324 = vadd.f32 %v9865, %v11243
    %v11325 = vadd.f32 %v9867, %v11245
    %v11326 = vadd.f32 %v9870, %v11248
    %v11327 = vadd.f32 %v9872, %v11250
    %v11328 = vadd.f32 %v9875, %v11253
    %v11329 = vadd.f32 %v9877, %v11255
    %v11330 = vadd.f32 %v9880, %v11258
    %v11331 = vadd.f32 %v9882, %v11260
    %v11332 = vadd.f32 %v9885, %v11263
    %v11333 = vadd.f32 %v9887, %v11265
    %v11334 = vadd.f32 %v9890, %v11268
    %v11335 = vadd.f32 %v9892, %v11270
    %v11336 = vld [vmem:[%s9] sm:$0x1]
    %v11338 = vperm.slane %v11336, 0
    %v11340 = vmul.f32 %v11272, %v11338
    %v11341 = vmul.f32 %v11273, %v11338
    %v11342 = vmul.f32 %v11274, %v11338
    %v11343 = vmul.f32 %v11275, %v11338
    %v11344 = vmul.f32 %v11276, %v11338
    %v11345 = vmul.f32 %v11277, %v11338
    %v11346 = vmul.f32 %v11278, %v11338
    %v11347 = vmul.f32 %v11279, %v11338
    %v11348 = vmul.f32 %v11280, %v11338
    %v11349 = vmul.f32 %v11281, %v11338
    %v11350 = vmul.f32 %v11282, %v11338
    %v11351 = vmul.f32 %v11283, %v11338
    %v11352 = vmul.f32 %v11284, %v11338
    %v11353 = vmul.f32 %v11285, %v11338
    %v11354 = vmul.f32 %v11286, %v11338
    %v11355 = vmul.f32 %v11287, %v11338
    %v11356 = vmul.f32 %v11288, %v11338
    %v11357 = vmul.f32 %v11289, %v11338
    %v11358 = vmul.f32 %v11290, %v11338
    %v11359 = vmul.f32 %v11291, %v11338
    %v11360 = vmul.f32 %v11292, %v11338
    %v11361 = vmul.f32 %v11293, %v11338
    %v11362 = vmul.f32 %v11294, %v11338
    %v11363 = vmul.f32 %v11295, %v11338
    %v11364 = vmul.f32 %v11296, %v11338
    %v11365 = vmul.f32 %v11297, %v11338
    %v11366 = vmul.f32 %v11298, %v11338
    %v11367 = vmul.f32 %v11299, %v11338
    %v11368 = vmul.f32 %v11300, %v11338
    %v11369 = vmul.f32 %v11301, %v11338
    %v11370 = vmul.f32 %v11302, %v11338
    %v11371 = vmul.f32 %v11303, %v11338
    %v11372 = vmul.f32 %v11304, %v11338
    %v11373 = vmul.f32 %v11305, %v11338
    %v11374 = vmul.f32 %v11306, %v11338
    %v11375 = vmul.f32 %v11307, %v11338
    %v11376 = vmul.f32 %v11308, %v11338
    %v11377 = vmul.f32 %v11309, %v11338
    %v11378 = vmul.f32 %v11310, %v11338
    %v11379 = vmul.f32 %v11311, %v11338
    %v11380 = vmul.f32 %v11312, %v11338
    %v11381 = vmul.f32 %v11313, %v11338
    %v11382 = vmul.f32 %v11314, %v11338
    %v11383 = vmul.f32 %v11315, %v11338
    %v11384 = vmul.f32 %v11316, %v11338
    %v11385 = vmul.f32 %v11317, %v11338
    %v11386 = vmul.f32 %v11318, %v11338
    %v11387 = vmul.f32 %v11319, %v11338
    %v11388 = vmul.f32 %v11320, %v11338
    %v11389 = vmul.f32 %v11321, %v11338
    %v11390 = vmul.f32 %v11322, %v11338
    %v11391 = vmul.f32 %v11323, %v11338
    %v11392 = vmul.f32 %v11324, %v11338
    %v11393 = vmul.f32 %v11325, %v11338
    %v11394 = vmul.f32 %v11326, %v11338
    %v11395 = vmul.f32 %v11327, %v11338
    %v11396 = vmul.f32 %v11328, %v11338
    %v11397 = vmul.f32 %v11329, %v11338
    %v11398 = vmul.f32 %v11330, %v11338
    %v11399 = vmul.f32 %v11331, %v11338
    %v11400 = vmul.f32 %v11332, %v11338
    %v11401 = vmul.f32 %v11333, %v11338
    %v11402 = vmul.f32 %v11334, %v11338
    %v11403 = vmul.f32 %v11335, %v11338
    %v11404 = vld [vmem:[%s10] sm:$0x1]
    %v11406 = vperm.slane %v11404, 0
    %v11408 = vadd.f32 %v11340, %v11406
    %v11409 = vadd.f32 %v11341, %v11406
    %v11410 = vadd.f32 %v11342, %v11406
    %v11411 = vadd.f32 %v11343, %v11406
    %v11412 = vadd.f32 %v11344, %v11406
    %v11413 = vadd.f32 %v11345, %v11406
    %v11414 = vadd.f32 %v11346, %v11406
    %v11415 = vadd.f32 %v11347, %v11406
    %v11416 = vadd.f32 %v11348, %v11406
    %v11417 = vadd.f32 %v11349, %v11406
    %v11418 = vadd.f32 %v11350, %v11406
    %v11419 = vadd.f32 %v11351, %v11406
    %v11420 = vadd.f32 %v11352, %v11406
    %v11421 = vadd.f32 %v11353, %v11406
    %v11422 = vadd.f32 %v11354, %v11406
    %v11423 = vadd.f32 %v11355, %v11406
    %v11424 = vadd.f32 %v11356, %v11406
    %v11425 = vadd.f32 %v11357, %v11406
    %v11426 = vadd.f32 %v11358, %v11406
    %v11427 = vadd.f32 %v11359, %v11406
    %v11428 = vadd.f32 %v11360, %v11406
    %v11429 = vadd.f32 %v11361, %v11406
    %v11430 = vadd.f32 %v11362, %v11406
    %v11431 = vadd.f32 %v11363, %v11406
    %v11432 = vadd.f32 %v11364, %v11406
    %v11433 = vadd.f32 %v11365, %v11406
    %v11434 = vadd.f32 %v11366, %v11406
    %v11435 = vadd.f32 %v11367, %v11406
    %v11436 = vadd.f32 %v11368, %v11406
    %v11437 = vadd.f32 %v11369, %v11406
    %v11438 = vadd.f32 %v11370, %v11406
    %v11439 = vadd.f32 %v11371, %v11406
    %v11440 = vadd.f32 %v11372, %v11406
    %v11441 = vadd.f32 %v11373, %v11406
    %v11442 = vadd.f32 %v11374, %v11406
    %v11443 = vadd.f32 %v11375, %v11406
    %v11444 = vadd.f32 %v11376, %v11406
    %v11445 = vadd.f32 %v11377, %v11406
    %v11446 = vadd.f32 %v11378, %v11406
    %v11447 = vadd.f32 %v11379, %v11406
    %v11448 = vadd.f32 %v11380, %v11406
    %v11449 = vadd.f32 %v11381, %v11406
    %v11450 = vadd.f32 %v11382, %v11406
    %v11451 = vadd.f32 %v11383, %v11406
    %v11452 = vadd.f32 %v11384, %v11406
    %v11453 = vadd.f32 %v11385, %v11406
    %v11454 = vadd.f32 %v11386, %v11406
    %v11455 = vadd.f32 %v11387, %v11406
    %v11456 = vadd.f32 %v11388, %v11406
    %v11457 = vadd.f32 %v11389, %v11406
    %v11458 = vadd.f32 %v11390, %v11406
    %v11459 = vadd.f32 %v11391, %v11406
    %v11460 = vadd.f32 %v11392, %v11406
    %v11461 = vadd.f32 %v11393, %v11406
    %v11462 = vadd.f32 %v11394, %v11406
    %v11463 = vadd.f32 %v11395, %v11406
    %v11464 = vadd.f32 %v11396, %v11406
    %v11465 = vadd.f32 %v11397, %v11406
    %v11466 = vadd.f32 %v11398, %v11406
    %v11467 = vadd.f32 %v11399, %v11406
    %v11468 = vadd.f32 %v11400, %v11406
    %v11469 = vadd.f32 %v11401, %v11406
    %v11470 = vadd.f32 %v11402, %v11406
    %v11471 = vadd.f32 %v11403, %v11406
    %v11472 = vmax.f32 %v11408, 0.0
    %v11473 = vmax.f32 %v11409, 0.0
    %v11474 = vmax.f32 %v11410, 0.0
    %v11475 = vmax.f32 %v11411, 0.0
    %v11476 = vmax.f32 %v11412, 0.0
    %v11477 = vmax.f32 %v11413, 0.0
    %v11478 = vmax.f32 %v11414, 0.0
    %v11479 = vmax.f32 %v11415, 0.0
    %v11480 = vmax.f32 %v11416, 0.0
    %v11481 = vmax.f32 %v11417, 0.0
    %v11482 = vmax.f32 %v11418, 0.0
    %v11483 = vmax.f32 %v11419, 0.0
    %v11484 = vmax.f32 %v11420, 0.0
    %v11485 = vmax.f32 %v11421, 0.0
    %v11486 = vmax.f32 %v11422, 0.0
    %v11487 = vmax.f32 %v11423, 0.0
    %v11488 = vmax.f32 %v11424, 0.0
    %v11489 = vmax.f32 %v11425, 0.0
    %v11490 = vmax.f32 %v11426, 0.0
    %v11491 = vmax.f32 %v11427, 0.0
    %v11492 = vmax.f32 %v11428, 0.0
    %v11493 = vmax.f32 %v11429, 0.0
    %v11494 = vmax.f32 %v11430, 0.0
    %v11495 = vmax.f32 %v11431, 0.0
    %v11496 = vmax.f32 %v11432, 0.0
    %v11497 = vmax.f32 %v11433, 0.0
    %v11498 = vmax.f32 %v11434, 0.0
    %v11499 = vmax.f32 %v11435, 0.0
    %v11500 = vmax.f32 %v11436, 0.0
    %v11501 = vmax.f32 %v11437, 0.0
    %v11502 = vmax.f32 %v11438, 0.0
    %v11503 = vmax.f32 %v11439, 0.0
    %v11504 = vmax.f32 %v11440, 0.0
    %v11505 = vmax.f32 %v11441, 0.0
    %v11506 = vmax.f32 %v11442, 0.0
    %v11507 = vmax.f32 %v11443, 0.0
    %v11508 = vmax.f32 %v11444, 0.0
    %v11509 = vmax.f32 %v11445, 0.0
    %v11510 = vmax.f32 %v11446, 0.0
    %v11511 = vmax.f32 %v11447, 0.0
    %v11512 = vmax.f32 %v11448, 0.0
    %v11513 = vmax.f32 %v11449, 0.0
    %v11514 = vmax.f32 %v11450, 0.0
    %v11515 = vmax.f32 %v11451, 0.0
    %v11516 = vmax.f32 %v11452, 0.0
    %v11517 = vmax.f32 %v11453, 0.0
    %v11518 = vmax.f32 %v11454, 0.0
    %v11519 = vmax.f32 %v11455, 0.0
    %v11520 = vmax.f32 %v11456, 0.0
    %v11521 = vmax.f32 %v11457, 0.0
    %v11522 = vmax.f32 %v11458, 0.0
    %v11523 = vmax.f32 %v11459, 0.0
    %v11524 = vmax.f32 %v11460, 0.0
    %v11525 = vmax.f32 %v11461, 0.0
    %v11526 = vmax.f32 %v11462, 0.0
    %v11527 = vmax.f32 %v11463, 0.0
    %v11528 = vmax.f32 %v11464, 0.0
    %v11529 = vmax.f32 %v11465, 0.0
    %v11530 = vmax.f32 %v11466, 0.0
    %v11531 = vmax.f32 %v11467, 0.0
    %v11532 = vmax.f32 %v11468, 0.0
    %v11533 = vmax.f32 %v11469, 0.0
    %v11534 = vmax.f32 %v11470, 0.0
    %v11535 = vmax.f32 %v11471, 0.0
    %v11536 = vmul.f32 %v11472, %v835
    %v11537 = vmul.f32 %v11473, %v840
    %v11538 = vmul.f32 %v11474, %v845
    %v11539 = vmul.f32 %v11475, %v850
    %v11540 = vmul.f32 %v11476, %v855
    %v11541 = vmul.f32 %v11477, %v860
    %v11542 = vmul.f32 %v11478, %v865
    %v11543 = vmul.f32 %v11479, %v870
    %v11544 = vmul.f32 %v11480, %v875
    %v11545 = vmul.f32 %v11481, %v880
    %v11546 = vmul.f32 %v11482, %v885
    %v11547 = vmul.f32 %v11483, %v890
    %v11548 = vmul.f32 %v11484, %v895
    %v11549 = vmul.f32 %v11485, %v900
    %v11550 = vmul.f32 %v11486, %v905
    %v11551 = vmul.f32 %v11487, %v910
    %v11552 = vmul.f32 %v11488, %v915
    %v11553 = vmul.f32 %v11489, %v920
    %v11554 = vmul.f32 %v11490, %v925
    %v11555 = vmul.f32 %v11491, %v930
    %v11556 = vmul.f32 %v11492, %v935
    %v11557 = vmul.f32 %v11493, %v940
    %v11558 = vmul.f32 %v11494, %v945
    %v11559 = vmul.f32 %v11495, %v950
    %v11560 = vmul.f32 %v11496, %v955
    %v11561 = vmul.f32 %v11497, %v960
    %v11562 = vmul.f32 %v11498, %v965
    %v11563 = vmul.f32 %v11499, %v970
    %v11564 = vmul.f32 %v11500, %v975
    %v11565 = vmul.f32 %v11501, %v980
    %v11566 = vmul.f32 %v11502, %v985
    %v11567 = vmul.f32 %v11503, %v990
    %v11568 = vmul.f32 %v11504, %v995
    %v11569 = vmul.f32 %v11505, %v1000
    %v11570 = vmul.f32 %v11506, %v1005
    %v11571 = vmul.f32 %v11507, %v1010
    %v11572 = vmul.f32 %v11508, %v1015
    %v11573 = vmul.f32 %v11509, %v1020
    %v11574 = vmul.f32 %v11510, %v1025
    %v11575 = vmul.f32 %v11511, %v1030
    %v11576 = vmul.f32 %v11512, %v1035
    %v11577 = vmul.f32 %v11513, %v1040
    %v11578 = vmul.f32 %v11514, %v1045
    %v11579 = vmul.f32 %v11515, %v1050
    %v11580 = vmul.f32 %v11516, %v1055
    %v11581 = vmul.f32 %v11517, %v1060
    %v11582 = vmul.f32 %v11518, %v1065
    %v11583 = vmul.f32 %v11519, %v1070
    %v11584 = vmul.f32 %v11520, %v1075
    %v11585 = vmul.f32 %v11521, %v1080
    %v11586 = vmul.f32 %v11522, %v1085
    %v11587 = vmul.f32 %v11523, %v1090
    %v11588 = vmul.f32 %v11524, %v1095
    %v11589 = vmul.f32 %v11525, %v1100
    %v11590 = vmul.f32 %v11526, %v1105
    %v11591 = vmul.f32 %v11527, %v1110
    %v11592 = vmul.f32 %v11528, %v1115
    %v11593 = vmul.f32 %v11529, %v1120
    %v11594 = vmul.f32 %v11530, %v1125
    %v11595 = vmul.f32 %v11531, %v1130
    %v11596 = vmul.f32 %v11532, %v1135
    %v11597 = vmul.f32 %v11533, %v1140
    %v11598 = vmul.f32 %v11534, %v1145
    %v11599 = vmul.f32 %v11535, %v1150
    %v11600 = vadd.f32 %v11536, %v11537
    %v11601 = vadd.f32 %v11600, %v11538
    %v11602 = vadd.f32 %v11601, %v11539
    %v11603 = vrot.slane %v11602, 4
    %v11604 = vadd.f32 %v11602, %v11603
    %v11605 = vrot.slane %v11604, 2
    %v11606 = vadd.f32 %v11604, %v11605
    %v11607 = vrot.slane %v11606, 1
    %v11608 = vadd.f32 %v11606, %v11607
    %v11609 = vadd.f32 %v11540, %v11541
    %v11610 = vadd.f32 %v11609, %v11542
    %v11611 = vadd.f32 %v11610, %v11543
    %v11612 = vrot.slane %v11611, 4
    %v11613 = vadd.f32 %v11611, %v11612
    %v11614 = vrot.slane %v11613, 2
    %v11615 = vadd.f32 %v11613, %v11614
    %v11616 = vrot.slane %v11615, 1
    %v11617 = vadd.f32 %v11615, %v11616
    %v11618 = vadd.f32 %v11544, %v11545
    %v11619 = vadd.f32 %v11618, %v11546
    %v11620 = vadd.f32 %v11619, %v11547
    %v11621 = vrot.slane %v11620, 4
    %v11622 = vadd.f32 %v11620, %v11621
    %v11623 = vrot.slane %v11622, 2
    %v11624 = vadd.f32 %v11622, %v11623
    %v11625 = vrot.slane %v11624, 1
    %v11626 = vadd.f32 %v11624, %v11625
    %v11627 = vadd.f32 %v11548, %v11549
    %v11628 = vadd.f32 %v11627, %v11550
    %v11629 = vadd.f32 %v11628, %v11551
    %v11630 = vrot.slane %v11629, 4
    %v11631 = vadd.f32 %v11629, %v11630
    %v11632 = vrot.slane %v11631, 2
    %v11633 = vadd.f32 %v11631, %v11632
    %v11634 = vrot.slane %v11633, 1
    %v11635 = vadd.f32 %v11633, %v11634
    %v11636 = vadd.f32 %v11552, %v11553
    %v11637 = vadd.f32 %v11636, %v11554
    %v11638 = vadd.f32 %v11637, %v11555
    %v11639 = vrot.slane %v11638, 4
    %v11640 = vadd.f32 %v11638, %v11639
    %v11641 = vrot.slane %v11640, 2
    %v11642 = vadd.f32 %v11640, %v11641
    %v11643 = vrot.slane %v11642, 1
    %v11644 = vadd.f32 %v11642, %v11643
    %v11645 = vadd.f32 %v11556, %v11557
    %v11646 = vadd.f32 %v11645, %v11558
    %v11647 = vadd.f32 %v11646, %v11559
    %v11648 = vrot.slane %v11647, 4
    %v11649 = vadd.f32 %v11647, %v11648
    %v11650 = vrot.slane %v11649, 2
    %v11651 = vadd.f32 %v11649, %v11650
    %v11652 = vrot.slane %v11651, 1
    %v11653 = vadd.f32 %v11651, %v11652
    %v11654 = vadd.f32 %v11560, %v11561
    %v11655 = vadd.f32 %v11654, %v11562
    %v11656 = vadd.f32 %v11655, %v11563
    %v11657 = vrot.slane %v11656, 4
    %v11658 = vadd.f32 %v11656, %v11657
    %v11659 = vrot.slane %v11658, 2
    %v11660 = vadd.f32 %v11658, %v11659
    %v11661 = vrot.slane %v11660, 1
    %v11662 = vadd.f32 %v11660, %v11661
    %v11663 = vadd.f32 %v11564, %v11565
    %v11664 = vadd.f32 %v11663, %v11566
    %v11665 = vadd.f32 %v11664, %v11567
    %v11666 = vrot.slane %v11665, 4
    %v11667 = vadd.f32 %v11665, %v11666
    %v11668 = vrot.slane %v11667, 2
    %v11669 = vadd.f32 %v11667, %v11668
    %v11670 = vrot.slane %v11669, 1
    %v11671 = vadd.f32 %v11669, %v11670
    %v11672 = vadd.f32 %v11568, %v11569
    %v11673 = vadd.f32 %v11672, %v11570
    %v11674 = vadd.f32 %v11673, %v11571
    %v11675 = vrot.slane %v11674, 4
    %v11676 = vadd.f32 %v11674, %v11675
    %v11677 = vrot.slane %v11676, 2
    %v11678 = vadd.f32 %v11676, %v11677
    %v11679 = vrot.slane %v11678, 1
    %v11680 = vadd.f32 %v11678, %v11679
    %v11681 = vadd.f32 %v11572, %v11573
    %v11682 = vadd.f32 %v11681, %v11574
    %v11683 = vadd.f32 %v11682, %v11575
    %v11684 = vrot.slane %v11683, 4
    %v11685 = vadd.f32 %v11683, %v11684
    %v11686 = vrot.slane %v11685, 2
    %v11687 = vadd.f32 %v11685, %v11686
    %v11688 = vrot.slane %v11687, 1
    %v11689 = vadd.f32 %v11687, %v11688
    %v11690 = vadd.f32 %v11576, %v11577
    %v11691 = vadd.f32 %v11690, %v11578
    %v11692 = vadd.f32 %v11691, %v11579
    %v11693 = vrot.slane %v11692, 4
    %v11694 = vadd.f32 %v11692, %v11693
    %v11695 = vrot.slane %v11694, 2
    %v11696 = vadd.f32 %v11694, %v11695
    %v11697 = vrot.slane %v11696, 1
    %v11698 = vadd.f32 %v11696, %v11697
    %v11699 = vadd.f32 %v11580, %v11581
    %v11700 = vadd.f32 %v11699, %v11582
    %v11701 = vadd.f32 %v11700, %v11583
    %v11702 = vrot.slane %v11701, 4
    %v11703 = vadd.f32 %v11701, %v11702
    %v11704 = vrot.slane %v11703, 2
    %v11705 = vadd.f32 %v11703, %v11704
    %v11706 = vrot.slane %v11705, 1
    %v11707 = vadd.f32 %v11705, %v11706
    %v11708 = vadd.f32 %v11584, %v11585
    %v11709 = vadd.f32 %v11708, %v11586
    %v11710 = vadd.f32 %v11709, %v11587
    %v11711 = vrot.slane %v11710, 4
    %v11712 = vadd.f32 %v11710, %v11711
    %v11713 = vrot.slane %v11712, 2
    %v11714 = vadd.f32 %v11712, %v11713
    %v11715 = vrot.slane %v11714, 1
    %v11716 = vadd.f32 %v11714, %v11715
    %v11717 = vadd.f32 %v11588, %v11589
    %v11718 = vadd.f32 %v11717, %v11590
    %v11719 = vadd.f32 %v11718, %v11591
    %v11720 = vrot.slane %v11719, 4
    %v11721 = vadd.f32 %v11719, %v11720
    %v11722 = vrot.slane %v11721, 2
    %v11723 = vadd.f32 %v11721, %v11722
    %v11724 = vrot.slane %v11723, 1
    %v11725 = vadd.f32 %v11723, %v11724
    %v11726 = vadd.f32 %v11592, %v11593
    %v11727 = vadd.f32 %v11726, %v11594
    %v11728 = vadd.f32 %v11727, %v11595
    %v11729 = vrot.slane %v11728, 4
    %v11730 = vadd.f32 %v11728, %v11729
    %v11731 = vrot.slane %v11730, 2
    %v11732 = vadd.f32 %v11730, %v11731
    %v11733 = vrot.slane %v11732, 1
    %v11734 = vadd.f32 %v11732, %v11733
    %v11735 = vadd.f32 %v11596, %v11597
    %v11736 = vadd.f32 %v11735, %v11598
    %v11737 = vadd.f32 %v11736, %v11599
    %v11738 = vrot.slane %v11737, 4
    %v11739 = vadd.f32 %v11737, %v11738
    %v11740 = vrot.slane %v11739, 2
    %v11741 = vadd.f32 %v11739, %v11740
    %v11742 = vrot.slane %v11741, 1
    %v11743 = vadd.f32 %v11741, %v11742
    %v11744 = vmul.f32 %v11608, 0.0625
    %v11745 = vmul.f32 %v11617, 0.0625
    %v11746 = vmul.f32 %v11626, 0.0625
    %v11747 = vmul.f32 %v11635, 0.0625
    %v11748 = vmul.f32 %v11644, 0.0625
    %v11749 = vmul.f32 %v11653, 0.0625
    %v11750 = vmul.f32 %v11662, 0.0625
    %v11751 = vmul.f32 %v11671, 0.0625
    %v11752 = vmul.f32 %v11680, 0.0625
    %v11753 = vmul.f32 %v11689, 0.0625
    %v11754 = vmul.f32 %v11698, 0.0625
    %v11755 = vmul.f32 %v11707, 0.0625
    %v11756 = vmul.f32 %v11716, 0.0625
    %v11757 = vmul.f32 %v11725, 0.0625
    %v11758 = vmul.f32 %v11734, 0.0625
    %v11759 = vmul.f32 %v11743, 0.0625
    %v11760 = vpack.c.bf16 %v11744, %v11744
    %v11761 = vpack.c.bf16 %v11745, %v11745
    %v11762 = vpack.c.bf16 %v11746, %v11746
    %v11763 = vpack.c.bf16 %v11747, %v11747
    %v11764 = vpack.c.bf16 %v11748, %v11748
    %v11765 = vpack.c.bf16 %v11749, %v11749
    %v11766 = vpack.c.bf16 %v11750, %v11750
    %v11767 = vpack.c.bf16 %v11751, %v11751
    %v11768 = vpack.c.bf16 %v11752, %v11752
    %v11769 = vpack.c.bf16 %v11753, %v11753
    %v11770 = vpack.c.bf16 %v11754, %v11754
    %v11771 = vpack.c.bf16 %v11755, %v11755
    %v11772 = vpack.c.bf16 %v11756, %v11756
    %v11773 = vpack.c.bf16 %v11757, %v11757
    %v11774 = vpack.c.bf16 %v11758, %v11758
    %v11775 = vpack.c.bf16 %v11759, %v11759
    %v11776 = vld [vmem:[%s11] sm:$0xf]
    %v11777 = vld [vmem:[%s11 + $0x4] sm:$0xf]
    %v11778 = vld [vmem:[%s11 + $0x8] sm:$0xf]
    %v11779 = vld [vmem:[%s11 + $0xc] sm:$0xf]
    %v11780 = vld [vmem:[%s11 + $0x10] sm:$0xf]
    %v11781 = vld [vmem:[%s11 + $0x14] sm:$0xf]
    %v11782 = vld [vmem:[%s11 + $0x18] sm:$0xf]
    %v11783 = vld [vmem:[%s11 + $0x1c] sm:$0xf]
    %v11784 = vld [vmem:[%s11 + $0x20] sm:$0xf]
    %v11785 = vld [vmem:[%s11 + $0x24] sm:$0xf]
    %v11786 = vld [vmem:[%s11 + $0x28] sm:$0xf]
    %v11787 = vld [vmem:[%s11 + $0x2c] sm:$0xf]
    %v11788 = vld [vmem:[%s11 + $0x30] sm:$0xf]
    %v11789 = vld [vmem:[%s11 + $0x34] sm:$0xf]
    %v11790 = vld [vmem:[%s11 + $0x38] sm:$0xf]
    %v11791 = vld [vmem:[%s11 + $0x3c] sm:$0xf]
    %v11792 = vld [vmem:[%s12] sm:$0x1]
    %v11794 = vperm.slane %v11792, 0
    %v11812 = vunpack.c.l.b16 %v11760
    %v11813 = vunpack.c.l.b16 %v11761
    %v11814 = vunpack.c.l.b16 %v11762
    %v11815 = vunpack.c.l.b16 %v11763
    %v11816 = vunpack.c.l.b16 %v11764
    %v11817 = vunpack.c.l.b16 %v11765
    %v11818 = vunpack.c.l.b16 %v11766
    %v11819 = vunpack.c.l.b16 %v11767
    %v11820 = vunpack.c.l.b16 %v11768
    %v11821 = vunpack.c.l.b16 %v11769
    %v11822 = vunpack.c.l.b16 %v11770
    %v11823 = vunpack.c.l.b16 %v11771
    %v11824 = vunpack.c.l.b16 %v11772
    %v11825 = vunpack.c.l.b16 %v11773
    %v11826 = vunpack.c.l.b16 %v11774
    %v11827 = vunpack.c.l.b16 %v11775
    %vm11828 = vcmask 1041409
    %v11829 = vsel %vm11828, %v11813, %v11812
    %vm11830 = vcmask 1042434
    %v11831 = vsel %vm11830, %v11814, %v11829
    %vm11832 = vcmask 1043459
    %v11833 = vsel %vm11832, %v11815, %v11831
    %vm11834 = vcmask 1044484
    %v11835 = vsel %vm11834, %v11816, %v11833
    %vm11836 = vcmask 1045509
    %v11837 = vsel %vm11836, %v11817, %v11835
    %vm11838 = vcmask 1046534
    %v11839 = vsel %vm11838, %v11818, %v11837
    %vm11840 = vcmask 1047559
    %v11841 = vsel %vm11840, %v11819, %v11839
    %v11842 = vsel %vm11828, %v11821, %v11820
    %v11843 = vsel %vm11830, %v11822, %v11842
    %v11844 = vsel %vm11832, %v11823, %v11843
    %v11845 = vsel %vm11834, %v11824, %v11844
    %v11846 = vsel %vm11836, %v11825, %v11845
    %v11847 = vsel %vm11838, %v11826, %v11846
    %v11848 = vsel %vm11840, %v11827, %v11847
    %v11849 = vpack.c.b16 %v11848, %v11841
    %v11867 = vunpack.c.l.b16 %v11776
    %v11868 = vunpack.c.l.b16 %v11777
    %v11869 = vunpack.c.l.b16 %v11778
    %v11870 = vunpack.c.l.b16 %v11779
    %v11871 = vunpack.c.l.b16 %v11780
    %v11872 = vunpack.c.l.b16 %v11781
    %v11873 = vunpack.c.l.b16 %v11782
    %v11874 = vunpack.c.l.b16 %v11783
    %v11875 = vunpack.c.l.b16 %v11784
    %v11876 = vunpack.c.l.b16 %v11785
    %v11877 = vunpack.c.l.b16 %v11786
    %v11878 = vunpack.c.l.b16 %v11787
    %v11879 = vunpack.c.l.b16 %v11788
    %v11880 = vunpack.c.l.b16 %v11789
    %v11881 = vunpack.c.l.b16 %v11790
    %v11882 = vunpack.c.l.b16 %v11791
    %v11883 = vpack.c.b16 %v11868, %v11867
    %v11884 = vpack.c.b16 %v11870, %v11869
    %v11885 = vpack.c.b16 %v11872, %v11871
    %v11886 = vpack.c.b16 %v11874, %v11873
    %v11887 = vpack.c.b16 %v11876, %v11875
    %v11888 = vpack.c.b16 %v11878, %v11877
    %v11889 = vpack.c.b16 %v11880, %v11879
    %v11890 = vpack.c.b16 %v11882, %v11881
    %11899 = vmatpush.bf16.msra.mxu0 %v11890
    %11900 = vmatpush.bf16.msra.mxu0 %v11889
    %11901 = vmatpush.bf16.msra.mxu0 %v11888
    %11902 = vmatpush.bf16.msra.mxu0 %v11887
    %11903 = vmatpush.bf16.msra.mxu0 %v11886
    %11904 = vmatpush.bf16.msra.mxu0 %v11885
    %11905 = vmatpush.bf16.msra.mxu0 %v11884
    %11906 = vmatpush.bf16.msra.mxu0 %v11883
    %11907 = vmatmul.bf16.gmra.mxu0 %v11849
    %v11908 = vpop.f32.mrf.mxu0
    %v11909 = vadd.f32 %v11794, %v11908
    %v11910 = vpop.f32.mrf.mxu0
    %v11911 = vadd.f32 %v11794, %v11910
    %11912 = vdwg.mxu0
    %11913 = vst [vmem:[#allocation8] sm:$0xff] %v11909
    %11914 = vst [vmem:[#allocation8 + $0x8] sm:$0xff] %v11911
    // Predicated region
    $region58: #{tpu_custom_call.1} parent=1 // pred_check
      _
    $region59: #{tpu_custom_call.1} parent=1 // pred_check_branch
      %11916 = sbr.rel (0) target = $region61
    $region60: #{tpu_custom_call.1} parent=1 // pred_region
      %11918 = vsyncadd [#allocation7], 0
      %s11919 = sshll.u32 [#allocation8], 4
      %s11920 = int_to_ptr.vmem [resolvable:$true] %s11919
      %s11921 = sshll.u32 %s13, 4
      %s11922 = int_to_ptr.hbm [resolvable:$true] %s11921
      %11927 = dma.vmem_to_hbm [thread:$0]  %s11920, 256, %s11922, [#allocation7], 128, 128, 8
    $region61: #{tpu_custom_call.1} parent=1 // pred_fallthru
      _
    // Predicated region
    $region62: #{tpu_custom_call.1} parent=1 // pred_check
      _
    $region63: #{tpu_custom_call.1} parent=1 // pred_check_branch
      %11929 = sbr.rel (0) target = $region65
    $region64: #{tpu_custom_call.1} parent=1 // pred_region
      %11931 = dma.done [#allocation7], 256
    $region65: #{tpu_custom_call.1} parent=1 // pred_fallthru
      _
    %11932 = vsyncpa [#allocation6], 1
    %11933 = vsyncpa [#allocation7], 1

</llo_original>
